<compile_context>
chip_gen: v7x
topology: tpu7x:2x2x1
jax: 0.10.0
libtpu: 0.0.40
codegen_flags: <defaults>
</compile_context>

<pallas_src>
import functools
import math

import numpy as np
import jax
import jax.numpy as jnp
from jax import lax
from jax.experimental import pallas as pl
from jax.experimental.pallas import tpu as pltpu


# ----------------------------------------------------------------------------
# small helpers
# ----------------------------------------------------------------------------
def _round_up(x, m):
    return (x + m - 1) // m * m


def _nbytes(shape, dtype):
    n = 1
    for s in shape:
        n *= int(s)
    return n * jnp.dtype(dtype).itemsize


def _compiler_params(sems, vmem_bytes=None):
    """dimension_semantics + an explicit scoped-VMEM limit when the
    double-buffered working set exceeds the smallest default (16 MiB, v5e)."""
    limit = None
    if vmem_bytes is not None:
        need = 2 * int(vmem_bytes) + (4 << 20)          # double-buffer + headroom
        if need > (16 << 20):
            limit = int(min(need, 40 << 20))            # stay under v7x's 64 MiB
    return pltpu.CompilerParams(dimension_semantics=tuple(sems),
                                vmem_limit_bytes=limit)


def _row_chunk(n, cap=512):
    """largest row block <= cap dividing n that is sublane aligned (or n)."""
    if n <= cap:
        return n
    for d in range(min(cap, n), 0, -1):
        if n % d == 0 and d % 8 == 0:
            return d
    return n


def _chunk_of(total, want=8):
    """divisor of `total` <= want and <= total//2 so there are >=2 grid steps
    per image (keeps both v7x TensorCores fed even at batch 1)."""
    if total <= 1:
        return 1
    cap = max(1, min(want, total // 2))
    for d in range(cap, 0, -1):
        if total % d == 0:
            return d
    return 1


def _softmax_last(a):
    a = a - jnp.max(a, axis=-1, keepdims=True)
    e = jnp.exp(a)
    return e * pl.reciprocal(jnp.sum(e, axis=-1, keepdims=True), approx=True)


def _dot_nt(a, b):
    # a @ b.T without an explicit transpose (contract last dims), f32 accum
    return lax.dot_general(a, b, (((1,), (1,)), ((), ())),
                           preferred_element_type=jnp.float32)


_ERF_A = (0.254829592, -0.284496736, 1.421413741, -1.453152027, 1.061405429)
_ERF_P = 0.3275911


def _erf_approx(x):
    # Abramowitz & Stegun 7.1.26 (|err| < 1.5e-7); only exp/mul/add so it
    # always lowers in Mosaic.
    a1, a2, a3, a4, a5 = _ERF_A
    sgn = jnp.where(x < 0.0, -1.0, 1.0)
    ax = jnp.abs(x)
    t = 1.0 / (1.0 + _ERF_P * ax)
    poly = ((((a5 * t + a4) * t + a3) * t + a2) * t + a1) * t
    return sgn * (1.0 - poly * jnp.exp(-ax * ax))


def _gelu_exact(x):
    # matches torch.nn.GELU() (exact erf form) to ~1e-7
    return 0.5 * x * (1.0 + _erf_approx(x * 0.7071067811865476))


# ----------------------------------------------------------------------------
# Linear (matmul + bias [+ GELU] [+ residual]) kernels, row-tiled
# ----------------------------------------------------------------------------
def _linear_kernel(x_ref, w_ref, b_ref, o_ref, *, act):
    x = x_ref[...].astype(jnp.bfloat16)           # no-op when already bf16
    w = w_ref[...].astype(jnp.bfloat16)
    acc = jnp.dot(x, w, preferred_element_type=jnp.float32)
    acc = acc + b_ref[...].astype(jnp.float32)
    if act == "gelu":
        acc = _gelu_exact(acc)
    o_ref[...] = acc.astype(o_ref.dtype)


def _linear_res_kernel(x_ref, w_ref, b_ref, r_ref, o_ref):
    x = x_ref[...].astype(jnp.bfloat16)
    w = w_ref[...].astype(jnp.bfloat16)
    acc = jnp.dot(x, w, preferred_element_type=jnp.float32)
    acc = acc + b_ref[...].astype(jnp.float32) + r_ref[...].astype(jnp.float32)
    o_ref[...] = acc.astype(o_ref.dtype)


def _pick_bm(M, cap=512):
    return min(_round_up(M, 8), cap)


def linear(x, w, b, act=None, residual=None, out_dtype=None):
    """x: (..., K); w: (K, N) (torch weight transposed, bf16); b: (N,) f32."""
    assert act is None or residual is None
    lead = x.shape[:-1]
    K = x.shape[-1]
    N = w.shape[-1]
    if residual is not None:
        out_dtype = residual.dtype
    elif out_dtype is None:
        out_dtype = x.dtype
    x2 = x.reshape(-1, K)
    M = x2.shape[0]
    bm = _pick_bm(M)
    Mp = _round_up(M, bm)
    if Mp != M:
        x2 = jnp.pad(x2, ((0, Mp - M), (0, 0)))
    in_specs = [
        pl.BlockSpec((bm, K), lambda i: (i, 0)),
        pl.BlockSpec((K, N), lambda i: (0, 0)),
        pl.BlockSpec((1, N), lambda i: (0, 0)),
    ]
    args = [x2, w, b.reshape(1, N)]
    vmem = (_nbytes((bm, K), x.dtype) + _nbytes((K, N), w.dtype) +
            _nbytes((bm, N), out_dtype))
    bytes_acc = (_nbytes((M, K), x.dtype) + _nbytes((K, N), w.dtype) +
                 _nbytes((M, N), out_dtype))
    if residual is not None:
        r2 = residual.reshape(-1, N)
        if Mp != M:
            r2 = jnp.pad(r2, ((0, Mp - M), (0, 0)))
        in_specs.append(pl.BlockSpec((bm, N), lambda i: (i, 0)))
        args.append(r2)
        vmem += _nbytes((bm, N), residual.dtype)
        bytes_acc += _nbytes((M, N), residual.dtype)
        kern = _linear_res_kernel
    else:
        kern = functools.partial(_linear_kernel, act=act)
    out = pl.pallas_call(
        kern,
        grid=(Mp // bm,),
        in_specs=in_specs,
        out_specs=pl.BlockSpec((bm, N), lambda i: (i, 0)),
        out_shape=jax.ShapeDtypeStruct((Mp, N), out_dtype),
        compiler_params=_compiler_params(("parallel",), vmem),
        cost_estimate=pl.CostEstimate(
            flops=int(2 * M * K * N),
            transcendentals=int(M * N if act == "gelu" else 0),
            bytes_accessed=int(bytes_acc)),
    )(*args)
    if Mp != M:
        out = out[:M]
    return out.reshape(*lead, N)


# ----------------------------------------------------------------------------
# fused LayerNorm + Linear (+ GELU) kernels (torch LayerNorm eps=1e-5)
# ----------------------------------------------------------------------------
def _ln_matmul(x_ref, g_ref, be_ref, w_ref, b_ref, act):
    x = x_ref[...].astype(jnp.float32)
    mu = jnp.mean(x, axis=-1, keepdims=True)
    var = jnp.mean((x - mu) ** 2, axis=-1, keepdims=True)
    xn = (x - mu) * lax.rsqrt(var + 1e-5)
    xn = xn * g_ref[...].astype(jnp.float32) + be_ref[...].astype(jnp.float32)
    acc = jnp.dot(xn.astype(jnp.bfloat16), w_ref[...].astype(jnp.bfloat16),
                  preferred_element_type=jnp.float32)
    acc = acc + b_ref[...].astype(jnp.float32)
    if act == "gelu":
        acc = _gelu_exact(acc)
    return xn, acc


def _ln_linear_kernel(x_ref, g_ref, be_ref, w_ref, b_ref, o_ref, *, act):
    _, acc = _ln_matmul(x_ref, g_ref, be_ref, w_ref, b_ref, act)
    o_ref[...] = acc.astype(o_ref.dtype)


def _ln_linear2_kernel(x_ref, g_ref, be_ref, w_ref, b_ref, xn_ref, o_ref, *, act):
    xn, acc = _ln_matmul(x_ref, g_ref, be_ref, w_ref, b_ref, act)
    xn_ref[...] = xn.astype(xn_ref.dtype)
    o_ref[...] = acc.astype(o_ref.dtype)


def layernorm_linear(x, g, be, w, bias, act=None, return_normed=False,
                     out_dtype=None):
    lead = x.shape[:-1]
    C = x.shape[-1]
    N = w.shape[-1]
    if out_dtype is None:
        out_dtype = x.dtype
    x2 = x.reshape(-1, C)
    M = x2.shape[0]
    bm = _pick_bm(M)
    Mp = _round_up(M, bm)
    if Mp != M:
        x2 = jnp.pad(x2, ((0, Mp - M), (0, 0)))
    in_specs = [
        pl.BlockSpec((bm, C), lambda i: (i, 0)),
        pl.BlockSpec((1, C), lambda i: (0, 0)),
        pl.BlockSpec((1, C), lambda i: (0, 0)),
        pl.BlockSpec((C, N), lambda i: (0, 0)),
        pl.BlockSpec((1, N), lambda i: (0, 0)),
    ]
    args = (x2, g.reshape(1, C), be.reshape(1, C), w, bias.reshape(1, N))
    vmem = (_nbytes((bm, C), x.dtype) + _nbytes((C, N), w.dtype) +
            _nbytes((bm, N), out_dtype) +
            (_nbytes((bm, C), x.dtype) if return_normed else 0))
    ce = pl.CostEstimate(
        flops=int(2 * M * C * N + 8 * M * C),
        transcendentals=int(M * N if act == "gelu" else 0),
        bytes_accessed=int(_nbytes((M, C), x.dtype) + _nbytes((C, N), w.dtype) +
                           _nbytes((M, N), out_dtype)))
    if return_normed:
        xn, y = pl.pallas_call(
            functools.partial(_ln_linear2_kernel, act=act),
            grid=(Mp // bm,),
            in_specs=in_specs,
            out_specs=[pl.BlockSpec((bm, C), lambda i: (i, 0)),
                       pl.BlockSpec((bm, N), lambda i: (i, 0))],
            out_shape=[jax.ShapeDtypeStruct((Mp, C), x.dtype),
                       jax.ShapeDtypeStruct((Mp, N), out_dtype)],
            compiler_params=_compiler_params(("parallel",), vmem),
            cost_estimate=ce,
        )(*args)
        if Mp != M:
            xn = xn[:M]
            y = y[:M]
        return xn.reshape(*lead, C), y.reshape(*lead, N)
    y = pl.pallas_call(
        functools.partial(_ln_linear_kernel, act=act),
        grid=(Mp // bm,),
        in_specs=in_specs,
        out_specs=pl.BlockSpec((bm, N), lambda i: (i, 0)),
        out_shape=jax.ShapeDtypeStruct((Mp, N), out_dtype),
        compiler_params=_compiler_params(("parallel",), vmem),
        cost_estimate=ce,
    )(*args)
    if Mp != M:
        y = y[:M]
    return y.reshape(*lead, N)


# ----------------------------------------------------------------------------
# ATD_CA: cross attention between tokens and token dictionary
# (row-tiled over n, also emits the int32 argmax used by AC-MSA)
# ----------------------------------------------------------------------------
def _atd_ca_kernel(q_ref, k_ref, v_ref, scale_ref, o_ref, attn_ref, tk_ref, *,
                   log_m):
    q = q_ref[...].astype(jnp.float32)            # (bn, rd)
    k = k_ref[...].astype(jnp.float32)            # (m, rd)
    # F.normalize(·, dim=-1): x / max(||x||, 1e-12) == x * rsqrt(max(||x||², 1e-24))
    qn = q * lax.rsqrt(jnp.maximum(jnp.sum(q * q, axis=-1, keepdims=True), 1e-24))
    kn = k * lax.rsqrt(jnp.maximum(jnp.sum(k * k, axis=-1, keepdims=True), 1e-24))
    attn = _dot_nt(qn, kn)                        # (bn, m) f32
    scale = jnp.clip(scale_ref[...].astype(jnp.float32), 0.0, 1.0)   # (1, m)
    attn = attn * (1.0 + scale * log_m)
    attn = _softmax_last(attn)
    attn_ref[...] = attn.astype(attn_ref.dtype)
    # first-index argmax over the dictionary axis (torch.argmax semantics),
    # emitted here so XLA never re-reads the full (b, n, m) f32 sim for it.
    col = lax.broadcasted_iota(jnp.int32, attn.shape, 1)
    rmax = jnp.max(attn, axis=-1, keepdims=True)
    tk_ref[...] = jnp.min(jnp.where(attn >= rmax, col, attn.shape[-1]),
                          axis=-1, keepdims=True).astype(jnp.int32)
    o_ref[...] = jnp.dot(attn.astype(jnp.bfloat16),
                         v_ref[...].astype(jnp.bfloat16),
                         preferred_element_type=jnp.float32).astype(o_ref.dtype)


def atd_ca(xn, td, params, cfg):
    b, n, c = xn.shape
    m = cfg['num_tokens']
    rd = cfg['reducted_dim']
    q = linear(xn, params['wq_w'], params['wq_b'], out_dtype=jnp.float32)
    k = linear(td, params['wk_w'], params['wk_b'], out_dtype=jnp.float32)
    v = linear(td, params['wv_w'], params['wv_b'], out_dtype=jnp.float32)
    bn = _row_chunk(n, 256)
    vmem = (_nbytes((bn, rd), jnp.float32) + _nbytes((m, rd), jnp.float32) +
            _nbytes((m, c), jnp.float32) + _nbytes((bn, c), jnp.float32) +
            2 * _nbytes((bn, m), jnp.float32))
    kern = functools.partial(_atd_ca_kernel, log_m=float(np.log(m)))
    x_atd, attn, tk = pl.pallas_call(
        kern,
        grid=(b, n // bn),
        in_specs=[
            pl.BlockSpec((None, bn, rd), lambda i, j: (i, j, 0)),
            pl.BlockSpec((None, m, rd), lambda i, j: (i, 0, 0)),
            pl.BlockSpec((None, m, c), lambda i, j: (i, 0, 0)),
            pl.BlockSpec((1, m), lambda i, j: (0, 0)),
        ],
        out_specs=[
            pl.BlockSpec((None, bn, c), lambda i, j: (i, j, 0)),
            pl.BlockSpec((None, bn, m), lambda i, j: (i, j, 0)),
            pl.BlockSpec((None, bn, 1), lambda i, j: (i, j, 0)),
        ],
        out_shape=[
            jax.ShapeDtypeStruct((b, n, c), jnp.float32),
            jax.ShapeDtypeStruct((b, n, m), jnp.float32),
            jax.ShapeDtypeStruct((b, n, 1), jnp.int32),
        ],
        compiler_params=_compiler_params(("parallel", "parallel"), vmem),
    )(q, k, v, params['atd_scale'].reshape(1, m))
    return x_atd, attn, tk[..., 0]


# ----------------------------------------------------------------------------
# AC-MSA: category-sorted grouped multi-head self attention
# ----------------------------------------------------------------------------
def _acmsa_kernel(q_ref, k_ref, v_ref, ls_ref, o_ref):
    q = q_ref[...].astype(jnp.bfloat16)           # (gb, gs, hd)
    k = k_ref[...].astype(jnp.bfloat16)
    v = v_ref[...].astype(jnp.bfloat16)
    attn = jnp.einsum('gqd,gkd->gqk', q, k,
                      preferred_element_type=jnp.float32)            # (gb, gs, gs)
    attn = attn * ls_ref[...]
    attn = _softmax_last(attn)
    out = jnp.einsum('gqk,gkd->gqd', attn.astype(jnp.bfloat16), v,
                     preferred_element_type=jnp.float32)
    o_ref[...] = out.astype(o_ref.dtype)


def ac_msa(qkv, tk_id, params, cfg):
    b, n, c3 = qkv.shape
    c = c3 // 3
    heads = cfg['num_heads']
    hd = c // heads
    gs = min(n, cfg['category_size'])
    ng = (n + gs - 1) // gs
    pad_n = ng * gs - n

    # TODO(synk): the argsort + take_along_axis category shuffle stays in XLA;
    # a PrefetchScalarGridSpec / pl.Element row-gather could hide it behind
    # the attention compute.
    idx = jnp.argsort(tk_id, axis=-1)
    idx_rev = jnp.argsort(idx, axis=-1)
    shuffled = jnp.take_along_axis(
        qkv, jnp.broadcast_to(idx[:, :, None], qkv.shape), axis=1)
    if pad_n > 0:
        pad = jnp.flip(shuffled[:, n - pad_n:n, :], axis=1)
        shuffled = jnp.concatenate([shuffled, pad], axis=1)

    y = shuffled.reshape(b, ng, gs, 3, heads, hd).transpose(3, 0, 1, 4, 2, 5)
    Gb = ng * heads
    qf = y[0].reshape(b, Gb, gs, hd)
    kf = y[1].reshape(b, Gb, gs, hd)
    vf = y[2].reshape(b, Gb, gs, hd)
    ls = jnp.exp(jnp.minimum(params['logit_scale'],
                             math.log(1.0 / 0.01))).astype(jnp.float32)  # (1, 1)
    gb = _chunk_of(Gb, 8)
    vmem = (4 * _nbytes((gb, gs, hd), qkv.dtype) +
            2 * _nbytes((gb, gs, gs), jnp.float32))
    out = pl.pallas_call(
        _acmsa_kernel,
        grid=(b, Gb // gb),
        in_specs=[
            pl.BlockSpec((None, gb, gs, hd), lambda i, j: (i, j, 0, 0)),
            pl.BlockSpec((None, gb, gs, hd), lambda i, j: (i, j, 0, 0)),
            pl.BlockSpec((None, gb, gs, hd), lambda i, j: (i, j, 0, 0)),
            pl.BlockSpec((1, 1), lambda i, j: (0, 0)),
        ],
        out_specs=pl.BlockSpec((None, gb, gs, hd), lambda i, j: (i, j, 0, 0)),
        out_shape=jax.ShapeDtypeStruct((b, Gb, gs, hd), qkv.dtype),
        compiler_params=_compiler_params(("parallel", "parallel"), vmem),
    )(qf, kf, vf, ls)
    out = out.reshape(b, ng, heads, gs, hd).transpose(0, 1, 3, 2, 4)
    out = out.reshape(b, ng * gs, c)[:, :n, :]
    out = jnp.take_along_axis(
        out, jnp.broadcast_to(idx_rev[:, :, None], out.shape), axis=1)
    return linear(out, params['proj_aca_w'], params['proj_aca_b'],
                  out_dtype=jnp.float32)


# ----------------------------------------------------------------------------
# Window attention (Swin style), chunked over windows per grid step
# ----------------------------------------------------------------------------
def _win_attn_kernel(q_ref, k_ref, v_ref, bias_ref, *rest, scale, has_mask):
    if has_mask:
        mask_ref, o_ref = rest
    else:
        (o_ref,) = rest
    wb, heads, nwin, hd = q_ref.shape
    g = wb * heads
    q = q_ref[...].astype(jnp.bfloat16).reshape(g, nwin, hd)
    k = k_ref[...].astype(jnp.bfloat16).reshape(g, nwin, hd)
    v = v_ref[...].astype(jnp.bfloat16).reshape(g, nwin, hd)
    attn = jnp.einsum('gqd,gkd->gqk', q, k,
                      preferred_element_type=jnp.float32) * scale
    attn = attn.reshape(wb, heads, nwin, nwin)
    attn = attn + bias_ref[...].astype(jnp.float32)[None]
    if has_mask:
        attn = attn + mask_ref[...].astype(jnp.float32)[:, None]
    attn = _softmax_last(attn.reshape(g, nwin, nwin))
    out = jnp.einsum('gqk,gkd->gqd', attn.astype(jnp.bfloat16), v,
                     preferred_element_type=jnp.float32)
    o_ref[...] = out.reshape(wb, heads, nwin, hd).astype(o_ref.dtype)


def window_attention(q, k, v, mask, bias, cfg):
    """q/k/v: (b, nw, heads, nwin, hd); returns same layout."""
    b, nw, heads, nwin, hd = q.shape
    wb = _chunk_of(nw, 8)
    has_mask = mask is not None
    kern = functools.partial(_win_attn_kernel, scale=float(hd) ** -0.5,
                             has_mask=has_mask)
    in_specs = [
        pl.BlockSpec((None, wb, heads, nwin, hd), lambda i, j: (i, j, 0, 0, 0)),
        pl.BlockSpec((None, wb, heads, nwin, hd), lambda i, j: (i, j, 0, 0, 0)),
        pl.BlockSpec((None, wb, heads, nwin, hd), lambda i, j: (i, j, 0, 0, 0)),
        pl.BlockSpec((heads, nwin, nwin), lambda i, j: (0, 0, 0)),
    ]
    args = [q, k, v, bias]
    vmem = (4 * _nbytes((wb, heads, nwin, hd), q.dtype) +
            _nbytes((heads, nwin, nwin), jnp.float32) +
            2 * _nbytes((wb * heads, nwin, nwin), jnp.float32))
    if has_mask:
        in_specs.append(pl.BlockSpec((wb, nwin, nwin), lambda i, j: (j, 0, 0)))
        args.append(mask)
        vmem += _nbytes((wb, nwin, nwin), jnp.float32)
    # TODO(synk): lane-dense (nwin, c) output / in-kernel head merge would
    # remove the masked hd-wide stores but needs an in-kernel minor-dim
    # relayout; kept in the safe layout for now.
    out = pl.pallas_call(
        kern,
        grid=(b, nw // wb),
        in_specs=in_specs,
        out_specs=pl.BlockSpec((None, wb, heads, nwin, hd),
                               lambda i, j: (i, j, 0, 0, 0)),
        out_shape=jax.ShapeDtypeStruct((b, nw, heads, nwin, hd), q.dtype),
        compiler_params=_compiler_params(("parallel", "parallel"), vmem),
    )(*args)
    return out


# ----------------------------------------------------------------------------
# ConvFFN: fused norm2+fc1+GELU -> depthwise conv (+GELU + residual) -> fc2(+res)
# depthwise conv is chunked over channels (depthwise => channels independent)
# ----------------------------------------------------------------------------
def _dwconv_kernel(xpad_ref, w_ref, b_ref, o_ref, *, kh, kw, oh, ow, pad):
    xp = xpad_ref[...].astype(jnp.float32)        # (oh+2p, ow+2p, hc)
    wv = w_ref[...].astype(jnp.float32)           # (kh*kw, hc)
    hc = xp.shape[-1]
    acc = jnp.zeros((oh, ow, hc), jnp.float32)
    # TODO(synk): for big images on v5e, replace the per-tap column slices with
    # pltpu.roll shifts + row-stripe (halo) tiling; kept simple here.
    for ki in range(kh):
        row = xp[ki:ki + oh]                      # major-axis slice (cheap)
        for kj in range(kw):
            acc = acc + row[:, kj:kj + ow, :] * wv[ki * kw + kj, :]
    conv = _gelu_exact(acc + b_ref[...].reshape(1, 1, -1).astype(jnp.float32))
    x_in = xp[pad:pad + oh, pad:pad + ow, :]      # interior == pre-conv acts
    o_ref[...] = (x_in + conv).astype(o_ref.dtype)


def conv_ffn(x, x_size, params, cfg):
    """Returns x + fc2(y), y = gelu(fc1(LN2(x))) + gelu(dwconv(gelu(fc1(LN2(x)))))."""
    h, w = x_size
    b, n, _ = x.shape
    hidden = params['fc1_w'].shape[1]
    ksz = cfg['convffn_kernel_size']
    p = (ksz - 1) // 2
    # fused norm2 + fc1 + exact GELU; hidden activations carried in bf16
    x1 = layernorm_linear(x, params['norm2_g'], params['norm2_b'],
                          params['fc1_w'], params['fc1_b'], act="gelu",
                          out_dtype=jnp.bfloat16)
    xpad = jnp.pad(x1.reshape(b, h, w, hidden), ((0, 0), (p, p), (p, p), (0, 0)))
    hp, wp = h + 2 * p, w + 2 * p
    hc = 128 if (hidden % 128 == 0 and hidden > 128) else hidden
    vmem = (_nbytes((hp, wp, hc), x1.dtype) + _nbytes((hp, wp, hc), jnp.float32) +
            _nbytes((h, w, hc), x1.dtype) + 2 * _nbytes((h, w, hc), jnp.float32))
    y = pl.pallas_call(
        functools.partial(_dwconv_kernel, kh=ksz, kw=ksz, oh=h, ow=w, pad=p),
        grid=(b, hidden // hc),
        in_specs=[
            pl.BlockSpec((None, hp, wp, hc), lambda i, j: (i, 0, 0, j)),
            pl.BlockSpec((ksz * ksz, hc), lambda i, j: (0, j)),
            pl.BlockSpec((1, hc), lambda i, j: (0, j)),
        ],
        out_specs=pl.BlockSpec((None, h, w, hc), lambda i, j: (i, 0, 0, j)),
        out_shape=jax.ShapeDtypeStruct((b, h, w, hidden), x1.dtype),
        compiler_params=_compiler_params(("parallel", "parallel"), vmem),
    )(xpad, params['dw_w'], params['dw_b'].reshape(1, hidden))
    # fc2 with the outer residual fused into the kernel (f32 output)
    return linear(y.reshape(b, n, hidden), params['fc2_w'], params['fc2_b'],
                  residual=x)


# ----------------------------------------------------------------------------
# token-dictionary update (InstanceNorm1d + softmax + sigmoid blend)
# consumes sim in its native (n, m) layout -> no HBM transpose
# ----------------------------------------------------------------------------
def _td_update_kernel(sim_ref, x_ref, td_ref, g_ref, be_ref, sig_ref, o_ref):
    s = sim_ref[...].astype(jnp.float32)          # (n, m)
    mu = jnp.mean(s, axis=0, keepdims=True)       # InstanceNorm stats over n
    var = jnp.mean((s - mu) ** 2, axis=0, keepdims=True)
    s = (s - mu) * lax.rsqrt(var + 1e-5)
    s = s * g_ref[...].astype(jnp.float32) + be_ref[...].astype(jnp.float32)
    # softmax over n (axis 0)
    smax = jnp.max(s, axis=0, keepdims=True)
    e = jnp.exp(s - smax)
    probs = e * pl.reciprocal(jnp.sum(e, axis=0, keepdims=True), approx=True)
    agg = lax.dot_general(probs.astype(jnp.bfloat16), x_ref[...].astype(jnp.bfloat16),
                          (((0,), (0,)), ((), ())),
                          preferred_element_type=jnp.float32)                  # (m, c)
    sg = 1.0 / (1.0 + jnp.exp(-sig_ref[...].astype(jnp.float32)))              # (m, 1)
    o_ref[...] = (sg * td_ref[...].astype(jnp.float32) +
                  (1.0 - sg) * agg).astype(o_ref.dtype)


# ----------------------------------------------------------------------------
# window partition (numpy layout glue, only used to build the attention mask)
# ----------------------------------------------------------------------------
def window_partition(x, ws):
    b, h, w, c = x.shape
    x = x.reshape(b, h // ws, ws, w // ws, ws, c)
    return x.transpose(0, 1, 3, 2, 4, 5).reshape(-1, ws, ws, c)


# ----------------------------------------------------------------------------
# Full ATDTransformerLayer forward
# ----------------------------------------------------------------------------
def atd_transformer_layer(x, td, x_size, params, cfg):
    h, w = x_size
    b, n, c = x.shape
    ws = cfg['window_size']
    shift = cfg['shift_size']
    heads = cfg['num_heads']
    hd = c // heads
    nwin = ws * ws
    nwh, nww = h // ws, w // ws
    nw = nwh * nww
    m = cfg['num_tokens']

    shortcut = x
    # fused norm1 + wqkv; qkv carried in bf16 (attention-only consumer), the
    # normalized activations stay f32 for the ATD cosine-similarity path.
    xn, qkv = layernorm_linear(x, params['norm1_g'], params['norm1_b'],
                               params['wqkv_w'], params['wqkv_b'],
                               return_normed=True, out_dtype=jnp.bfloat16)

    x_atd, sim_atd, tk_id = atd_ca(xn, td, params, cfg)
    x_aca = ac_msa(qkv, tk_id, params, cfg)

    # ---- shifted-window attention branch --------------------------------
    qkv_img = qkv.reshape(b, h, w, 3 * c)
    if shift > 0:
        # TODO(synk): the cyclic shift could be folded into the window
        # index_map (wrap arithmetic) to save this HBM pass.
        qkv_img = jnp.roll(qkv_img, (-shift, -shift), axis=(1, 2))
        mask = params['attn_mask']
    else:
        mask = None
    # window partition + head split in a single relayout
    t = qkv_img.reshape(b, nwh, ws, nww, ws, 3, heads, hd)
    t = t.transpose(5, 0, 1, 3, 6, 2, 4, 7).reshape(3, b, nw, heads, nwin, hd)
    win_out = window_attention(t[0], t[1], t[2], mask, params['rpb_bias'], cfg)
    # head merge + window reverse in a single relayout
    o = win_out.reshape(b, nwh, nww, heads, ws, ws, hd)
    o = o.transpose(0, 1, 4, 2, 5, 3, 6).reshape(b, h, w, c)
    if shift > 0:
        o = jnp.roll(o, (shift, shift), axis=(1, 2))
    x_win = linear(o.reshape(b, n, c), params['proj_win_w'], params['proj_win_b'],
                   out_dtype=jnp.float32)

    x = shortcut + x_win + x_atd + x_aca

    # fused norm2 + ConvFFN with the residual folded into fc2
    x = conv_ffn(x, x_size, params, cfg)

    # token dictionary refresh (is_last = False branch)
    vmem = (_nbytes((n, m), jnp.float32) + _nbytes((n, c), jnp.float32) +
            2 * _nbytes((m, c), jnp.float32))
    td_new = pl.pallas_call(
        _td_update_kernel,
        grid=(b,),
        in_specs=[
            pl.BlockSpec((None, n, m), lambda i: (i, 0, 0)),
            pl.BlockSpec((None, n, c), lambda i: (i, 0, 0)),
            pl.BlockSpec((None, m, c), lambda i: (i, 0, 0)),
            pl.BlockSpec((1, m), lambda i: (0, 0)),
            pl.BlockSpec((1, m), lambda i: (0, 0)),
            pl.BlockSpec((m, 1), lambda i: (0, 0)),
        ],
        out_specs=pl.BlockSpec((None, m, c), lambda i: (i, 0, 0)),
        out_shape=jax.ShapeDtypeStruct((b, m, c), td.dtype),
        input_output_aliases={2: 0},
        compiler_params=_compiler_params(("parallel",), vmem),
    )(sim_atd, x, td,
      params['norm3_g'].reshape(1, m),
      params['norm3_b'].reshape(1, m),
      params['sigma'])
    return x, td_new


# ----------------------------------------------------------------------------
# deterministic parameter init + precomputed indices / masks
# ----------------------------------------------------------------------------
def init_params(key, cfg):
    c = cfg['dim']
    m = cfg['num_tokens']
    rd = cfg['reducted_dim']
    heads = cfg['num_heads']
    ws = cfg['window_size']
    hidden = int(c * cfg['mlp_ratio'])
    ksz = cfg['convffn_kernel_size']
    ks = jax.random.split(key, 12)

    def w_(k, shape):
        return (jax.random.normal(k, shape) * 0.02).astype(jnp.float32)

    p = {}
    p['norm1_g'] = jnp.ones((c,), jnp.float32); p['norm1_b'] = jnp.zeros((c,), jnp.float32)
    p['norm2_g'] = jnp.ones((c,), jnp.float32); p['norm2_b'] = jnp.zeros((c,), jnp.float32)
    p['norm3_g'] = jnp.ones((m,), jnp.float32); p['norm3_b'] = jnp.zeros((m,), jnp.float32)
    p['sigma'] = jnp.zeros((m, 1), jnp.float32)
    p['wqkv_w'] = w_(ks[0], (c, 3 * c)); p['wqkv_b'] = jnp.zeros((3 * c,), jnp.float32)
    # WindowAttention
    p['rpb_table'] = w_(ks[1], ((2 * ws - 1) ** 2, heads))
    p['proj_win_w'] = w_(ks[2], (c, c)); p['proj_win_b'] = jnp.zeros((c,), jnp.float32)
    # ATD_CA
    p['wq_w'] = w_(ks[3], (c, rd)); p['wq_b'] = jnp.zeros((rd,), jnp.float32)
    p['wk_w'] = w_(ks[4], (c, rd)); p['wk_b'] = jnp.zeros((rd,), jnp.float32)
    p['wv_w'] = w_(ks[5], (c, c)); p['wv_b'] = jnp.zeros((c,), jnp.float32)
    p['atd_scale'] = jnp.full((m,), 0.5, jnp.float32)
    # AC_MSA
    p['proj_aca_w'] = w_(ks[6], (c, c)); p['proj_aca_b'] = jnp.zeros((c,), jnp.float32)
    p['logit_scale'] = jnp.full((1, 1), math.log(10.0), jnp.float32)
    # ConvFFN
    p['fc1_w'] = w_(ks[7], (c, hidden)); p['fc1_b'] = jnp.zeros((hidden,), jnp.float32)
    p['fc2_w'] = w_(ks[8], (hidden, c)); p['fc2_b'] = jnp.zeros((c,), jnp.float32)
    p['dw_w'] = w_(ks[9], (ksz * ksz, hidden)); p['dw_b'] = jnp.zeros((hidden,), jnp.float32)
    return p


def prepare_params(params, cfg):
    """One-time host-side prep: bf16 weight copies for the MXU paths and the
    precomputed relative-position bias (removes a per-forward gather)."""
    p = dict(params)
    for k in ('wqkv_w', 'wq_w', 'wk_w', 'wv_w', 'proj_win_w', 'proj_aca_w',
              'fc1_w', 'fc2_w', 'dw_w'):
        p[k] = params[k].astype(jnp.bfloat16)
    ws = cfg['window_size']
    heads = cfg['num_heads']
    nwin = ws * ws
    rpi = params['rpi_sa'].reshape(-1)
    p['rpb_bias'] = (params['rpb_table'][rpi]
                     .reshape(nwin, nwin, heads)
                     .transpose(2, 0, 1)
                     .astype(jnp.float32))
    return p


def build_rpi(ws):
    coords = np.stack(np.meshgrid(np.arange(ws), np.arange(ws), indexing='ij'))
    coords_flat = coords.reshape(2, -1)
    rel = coords_flat[:, :, None] - coords_flat[:, None, :]
    rel = rel.transpose(1, 2, 0).astype(np.int64)
    rel[..., 0] += ws - 1
    rel[..., 1] += ws - 1
    rel[..., 0] *= 2 * ws - 1
    return rel.sum(-1)                                                 # (ws*ws, ws*ws)


def build_attn_mask(h, w, ws, shift):
    img_mask = np.zeros((1, h, w, 1), np.float32)
    h_slices = (slice(0, -ws), slice(-ws, -shift), slice(-shift, None))
    w_slices = (slice(0, -ws), slice(-ws, -shift), slice(-shift, None))
    cnt = 0
    for hs in h_slices:
        for wsl in w_slices:
            img_mask[:, hs, wsl, :] = cnt
            cnt += 1
    mask_windows = window_partition(img_mask, ws).reshape(-1, ws * ws)
    attn_mask = mask_windows[:, None, :] - mask_windows[:, :, None]
    attn_mask = np.where(attn_mask != 0, -100.0, 0.0).astype(np.float32)
    return attn_mask                                                   # (nw, ws*ws, ws*ws)


# ----------------------------------------------------------------------------
if __name__ == "__main__":
    cfg = dict(dim=32, num_heads=4, window_size=4, shift_size=2,
               category_size=16, num_tokens=16, reducted_dim=8,
               convffn_kernel_size=5, mlp_ratio=2.0)
    b = 2
    h = w = 8

    key = jax.random.PRNGKey(0)
    kp, kx, kt = jax.random.split(key, 3)
    params = init_params(kp, cfg)
    params['rpi_sa'] = jnp.asarray(build_rpi(cfg['window_size']), jnp.int32)
    params['attn_mask'] = jnp.asarray(
        build_attn_mask(h, w, cfg['window_size'], cfg['shift_size']), jnp.float32)
    params = prepare_params(params, cfg)

    x = jax.random.normal(kx, (b, h * w, cfg['dim']), jnp.float32)
    td = jax.random.normal(kt, (b, cfg['num_tokens'], cfg['dim']), jnp.float32)

    fwd = jax.jit(lambda x_, td_, p_: atd_transformer_layer(x_, td_, (h, w), p_, cfg))
    out_x, out_td = fwd(x, td, params)
    jax.block_until_ready((out_x, out_td))

    assert out_x.shape == (b, h * w, cfg['dim'])
    assert out_td.shape == (b, cfg['num_tokens'], cfg['dim'])
    assert bool(jnp.all(jnp.isfinite(out_x))) and bool(jnp.all(jnp.isfinite(out_td)))
    print("KERNEL_OK")
</pallas_src>

<mosaic_0001>
module attributes {stable_mosaic.version = 11 : i64} {
  func.func private @main(%arg0: i32) attributes {dimension_semantics = [#tpu.dimension_semantics<core_parallel>], iteration_bounds = array<i64: 2>, tpu.core_type = #tpu.core_type<sc_scalar_subcore>, window_params = []} {
    return
  }
}

module attributes {stable_mosaic.version = 11 : i64} {
  func.func private @main(%arg0: i32) attributes {dimension_semantics = [#tpu.dimension_semantics<core_parallel>], iteration_bounds = array<i64: 2>, tpu.core_type = #tpu.core_type<sc_scalar_subcore>, window_params = []} {
    return
  }
}

module attributes {stable_mosaic.version = 11 : i64} {
  func.func @_linear_kernel(%arg0: i32, %arg1: memref<32x32xf32, #tpu.memory_space<vmem>>, %arg2: memref<32x8xbf16, #tpu.memory_space<vmem>>, %arg3: memref<1x8xf32, #tpu.memory_space<vmem>>, %arg4: memref<32x8xf32, #tpu.memory_space<vmem>>) attributes {dimension_semantics = [#tpu.dimension_semantics<parallel>], iteration_bounds = array<i64: 1>, scalar_prefetch = 0 : i64, scratch_operands = 0 : i64, tpu.core_type = #tpu.core_type<tc>, window_params = [{transform_indices = @transform_0, window_bounds = array<i64: 32, 32>}, {pipeline_mode = #tpu.pipeline_mode<synchronous>, transform_indices = @transform_1, window_bounds = array<i64: 32, 8>}, {pipeline_mode = #tpu.pipeline_mode<synchronous>, transform_indices = @transform_2, window_bounds = array<i64: 1, 8>}, {transform_indices = @transform_3, window_bounds = array<i64: 32, 8>}]} {
    %c0 = arith.constant 0 : index
    %c0_0 = arith.constant 0 : index
    %0 = vector.load %arg1[%c0, %c0_0] : memref<32x32xf32, #tpu.memory_space<vmem>>, vector<32x32xf32>
    %1 = arith.truncf %0 : vector<32x32xf32> to vector<32x32xbf16>
    %c0_1 = arith.constant 0 : index
    %c0_2 = arith.constant 0 : index
    %2 = vector.load %arg2[%c0_1, %c0_2] : memref<32x8xbf16, #tpu.memory_space<vmem>>, vector<32x8xbf16>
    %cst = arith.constant dense<0.000000e+00> : vector<32x8xf32>
    %3 = tpu.matmul %1, %2, %cst {dimension_numbers = #tpu.dot_dimension_numbers<[1], [0], [0], [1], [0, 0, 1, 1], [], []>} : vector<32x32xbf16>, vector<32x8xbf16>, vector<32x8xf32> -> vector<32x8xf32>
    %c0_3 = arith.constant 0 : index
    %c0_4 = arith.constant 0 : index
    %4 = vector.load %arg3[%c0_3, %c0_4] : memref<1x8xf32, #tpu.memory_space<vmem>>, vector<1x8xf32>
    %5 = vector.broadcast %4 : vector<1x8xf32> to vector<32x8xf32>
    %6 = arith.addf %3, %5 : vector<32x8xf32>
    %c0_5 = arith.constant 0 : index
    %c0_6 = arith.constant 0 : index
    %7 = vector.load %arg4[%c0_5, %c0_6] : memref<32x8xf32, #tpu.memory_space<vmem>>, vector<32x8xf32>
    tpu.vector_store %arg4[%c0_5, %c0_6], %6 {strides = array<i32>} : memref<32x8xf32, #tpu.memory_space<vmem>>, vector<32x8xf32>,
    return
  }
  func.func @transform_0(%arg0: i32) -> (i32, i32) {
    %c0_i32 = arith.constant 0 : i32
    %c0_i32_0 = arith.constant 0 : i32
    return %arg0, %c0_i32 : i32, i32
  }
  func.func @transform_1(%arg0: i32) -> (i32, i32) {
    %c0_i32 = arith.constant 0 : i32
    %c0_i32_0 = arith.constant 0 : i32
    %c0_i32_1 = arith.constant 0 : i32
    return %c0_i32, %c0_i32_0 : i32, i32
  }
  func.func @transform_2(%arg0: i32) -> (i32, i32) {
    %c0_i32 = arith.constant 0 : i32
    %c0_i32_0 = arith.constant 0 : i32
    %c0_i32_1 = arith.constant 0 : i32
    return %c0_i32, %c0_i32_0 : i32, i32
  }
  func.func @transform_3(%arg0: i32) -> (i32, i32) {
    %c0_i32 = arith.constant 0 : i32
    %c0_i32_0 = arith.constant 0 : i32
    return %arg0, %c0_i32 : i32, i32
  }
}

module attributes {stable_mosaic.version = 11 : i64} {
  func.func @_linear_kernel(%arg0: i32, %arg1: memref<32x32xf32, #tpu.memory_space<vmem>>, %arg2: memref<32x32xbf16, #tpu.memory_space<vmem>>, %arg3: memref<1x32xf32, #tpu.memory_space<vmem>>, %arg4: memref<32x32xf32, #tpu.memory_space<vmem>>) attributes {dimension_semantics = [#tpu.dimension_semantics<parallel>], iteration_bounds = array<i64: 1>, scalar_prefetch = 0 : i64, scratch_operands = 0 : i64, tpu.core_type = #tpu.core_type<tc>, window_params = [{transform_indices = @transform_0, window_bounds = array<i64: 32, 32>}, {pipeline_mode = #tpu.pipeline_mode<synchronous>, transform_indices = @transform_1, window_bounds = array<i64: 32, 32>}, {pipeline_mode = #tpu.pipeline_mode<synchronous>, transform_indices = @transform_2, window_bounds = array<i64: 1, 32>}, {transform_indices = @transform_3, window_bounds = array<i64: 32, 32>}]} {
    %c0 = arith.constant 0 : index
    %c0_0 = arith.constant 0 : index
    %0 = vector.load %arg1[%c0, %c0_0] : memref<32x32xf32, #tpu.memory_space<vmem>>, vector<32x32xf32>
    %1 = arith.truncf %0 : vector<32x32xf32> to vector<32x32xbf16>
    %c0_1 = arith.constant 0 : index
    %c0_2 = arith.constant 0 : index
    %2 = vector.load %arg2[%c0_1, %c0_2] : memref<32x32xbf16, #tpu.memory_space<vmem>>, vector<32x32xbf16>
    %cst = arith.constant dense<0.000000e+00> : vector<32x32xf32>
    %3 = tpu.matmul %1, %2, %cst {dimension_numbers = #tpu.dot_dimension_numbers<[1], [0], [0], [1], [0, 0, 1, 1], [], []>} : vector<32x32xbf16>, vector<32x32xbf16>, vector<32x32xf32> -> vector<32x32xf32>
    %c0_3 = arith.constant 0 : index
    %c0_4 = arith.constant 0 : index
    %4 = vector.load %arg3[%c0_3, %c0_4] : memref<1x32xf32, #tpu.memory_space<vmem>>, vector<1x32xf32>
    %5 = vector.broadcast %4 : vector<1x32xf32> to vector<32x32xf32>
    %6 = arith.addf %3, %5 : vector<32x32xf32>
    %c0_5 = arith.constant 0 : index
    %c0_6 = arith.constant 0 : index
    %7 = vector.load %arg4[%c0_5, %c0_6] : memref<32x32xf32, #tpu.memory_space<vmem>>, vector<32x32xf32>
    tpu.vector_store %arg4[%c0_5, %c0_6], %6 {strides = array<i32>} : memref<32x32xf32, #tpu.memory_space<vmem>>, vector<32x32xf32>,
    return
  }
  func.func @transform_0(%arg0: i32) -> (i32, i32) {
    %c0_i32 = arith.constant 0 : i32
    %c0_i32_0 = arith.constant 0 : i32
    return %arg0, %c0_i32 : i32, i32
  }
  func.func @transform_1(%arg0: i32) -> (i32, i32) {
    %c0_i32 = arith.constant 0 : i32
    %c0_i32_0 = arith.constant 0 : i32
    %c0_i32_1 = arith.constant 0 : i32
    return %c0_i32, %c0_i32_0 : i32, i32
  }
  func.func @transform_2(%arg0: i32) -> (i32, i32) {
    %c0_i32 = arith.constant 0 : i32
    %c0_i32_0 = arith.constant 0 : i32
    %c0_i32_1 = arith.constant 0 : i32
    return %c0_i32, %c0_i32_0 : i32, i32
  }
  func.func @transform_3(%arg0: i32) -> (i32, i32) {
    %c0_i32 = arith.constant 0 : i32
    %c0_i32_0 = arith.constant 0 : i32
    return %arg0, %c0_i32 : i32, i32
  }
}

module attributes {stable_mosaic.version = 11 : i64} {
  func.func @_ln_linear2_kernel(%arg0: i32, %arg1: memref<128x32xf32, #tpu.memory_space<vmem>>, %arg2: memref<1x32xf32, #tpu.memory_space<vmem>>, %arg3: memref<1x32xf32, #tpu.memory_space<vmem>>, %arg4: memref<32x96xbf16, #tpu.memory_space<vmem>>, %arg5: memref<1x96xf32, #tpu.memory_space<vmem>>, %arg6: memref<128x32xf32, #tpu.memory_space<vmem>>, %arg7: memref<128x96xbf16, #tpu.memory_space<vmem>>) attributes {dimension_semantics = [#tpu.dimension_semantics<parallel>], iteration_bounds = array<i64: 1>, scalar_prefetch = 0 : i64, scratch_operands = 0 : i64, tpu.core_type = #tpu.core_type<tc>, window_params = [{transform_indices = @transform_0, window_bounds = array<i64: 128, 32>}, {pipeline_mode = #tpu.pipeline_mode<synchronous>, transform_indices = @transform_1, window_bounds = array<i64: 1, 32>}, {pipeline_mode = #tpu.pipeline_mode<synchronous>, transform_indices = @transform_2, window_bounds = array<i64: 1, 32>}, {pipeline_mode = #tpu.pipeline_mode<synchronous>, transform_indices = @transform_3, window_bounds = array<i64: 32, 96>}, {pipeline_mode = #tpu.pipeline_mode<synchronous>, transform_indices = @transform_4, window_bounds = array<i64: 1, 96>}, {transform_indices = @transform_5, window_bounds = array<i64: 128, 32>}, {transform_indices = @transform_6, window_bounds = array<i64: 128, 96>}]} {
    %c0 = arith.constant 0 : index
    %c0_0 = arith.constant 0 : index
    %0 = vector.load %arg1[%c0, %c0_0] : memref<128x32xf32, #tpu.memory_space<vmem>>, vector<128x32xf32>
    %cst = arith.constant dense<0.000000e+00> : vector<128xf32>
    %1 = vector.multi_reduction <add>, %0, %cst [1] : vector<128x32xf32> to vector<128xf32>
    %2 = vector.shape_cast %1 : vector<128xf32> to vector<128x1xf32>
    %cst_1 = arith.constant 3.200000e+01 : f32
    %3 = vector.broadcast %cst_1 : f32 to vector<128x1xf32>
    %4 = arith.divf %2, %3 : vector<128x1xf32>
    %5 = vector.broadcast %4 : vector<128x1xf32> to vector<128x32xf32>
    %6 = arith.subf %0, %5 : vector<128x32xf32>
    %7 = arith.mulf %6, %6 : vector<128x32xf32>
    %cst_2 = arith.constant dense<0.000000e+00> : vector<128xf32>
    %8 = vector.multi_reduction <add>, %7, %cst_2 [1] : vector<128x32xf32> to vector<128xf32>
    %9 = vector.shape_cast %8 : vector<128xf32> to vector<128x1xf32>
    %cst_3 = arith.constant 3.200000e+01 : f32
    %10 = vector.broadcast %cst_3 : f32 to vector<128x1xf32>
    %11 = arith.divf %9, %10 : vector<128x1xf32>
    %12 = vector.broadcast %4 : vector<128x1xf32> to vector<128x32xf32>
    %13 = arith.subf %0, %12 : vector<128x32xf32>
    %cst_4 = arith.constant 9.99999974E-6 : f32
    %14 = vector.broadcast %cst_4 : f32 to vector<128x1xf32>
    %15 = arith.addf %11, %14 : vector<128x1xf32>
    %16 = math.rsqrt %15 : vector<128x1xf32>
    %17 = vector.broadcast %16 : vector<128x1xf32> to vector<128x32xf32>
    %18 = arith.mulf %13, %17 : vector<128x32xf32>
    %c0_5 = arith.constant 0 : index
    %c0_6 = arith.constant 0 : index
    %19 = vector.load %arg2[%c0_5, %c0_6] : memref<1x32xf32, #tpu.memory_space<vmem>>, vector<1x32xf32>
    %20 = vector.broadcast %19 : vector<1x32xf32> to vector<128x32xf32>
    %21 = arith.mulf %18, %20 : vector<128x32xf32>
    %c0_7 = arith.constant 0 : index
    %c0_8 = arith.constant 0 : index
    %22 = vector.load %arg3[%c0_7, %c0_8] : memref<1x32xf32, #tpu.memory_space<vmem>>, vector<1x32xf32>
    %23 = vector.broadcast %22 : vector<1x32xf32> to vector<128x32xf32>
    %24 = arith.addf %21, %23 : vector<128x32xf32>
    %25 = arith.truncf %24 : vector<128x32xf32> to vector<128x32xbf16>
    %c0_9 = arith.constant 0 : index
    %c0_10 = arith.constant 0 : index
    %26 = vector.load %arg4[%c0_9, %c0_10] : memref<32x96xbf16, #tpu.memory_space<vmem>>, vector<32x96xbf16>
    %cst_11 = arith.constant dense<0.000000e+00> : vector<128x96xf32>
    %27 = tpu.matmul %25, %26, %cst_11 {dimension_numbers = #tpu.dot_dimension_numbers<[1], [0], [0], [1], [0, 0, 1, 1], [], []>} : vector<128x32xbf16>, vector<32x96xbf16>, vector<128x96xf32> -> vector<128x96xf32>
    %c0_12 = arith.constant 0 : index
    %c0_13 = arith.constant 0 : index
    %28 = vector.load %arg5[%c0_12, %c0_13] : memref<1x96xf32, #tpu.memory_space<vmem>>, vector<1x96xf32>
    %29 = vector.broadcast %28 : vector<1x96xf32> to vector<128x96xf32>
    %30 = arith.addf %27, %29 : vector<128x96xf32>
    %c0_14 = arith.constant 0 : index
    %c0_15 = arith.constant 0 : index
    %31 = vector.load %arg6[%c0_14, %c0_15] : memref<128x32xf32, #tpu.memory_space<vmem>>, vector<128x32xf32>
    tpu.vector_store %arg6[%c0_14, %c0_15], %24 {strides = array<i32>} : memref<128x32xf32, #tpu.memory_space<vmem>>, vector<128x32xf32>,
    %32 = arith.truncf %30 : vector<128x96xf32> to vector<128x96xbf16>
    %c0_16 = arith.constant 0 : index
    %c0_17 = arith.constant 0 : index
    %33 = vector.load %arg7[%c0_16, %c0_17] : memref<128x96xbf16, #tpu.memory_space<vmem>>, vector<128x96xbf16>
    tpu.vector_store %arg7[%c0_16, %c0_17], %32 {strides = array<i32>} : memref<128x96xbf16, #tpu.memory_space<vmem>>, vector<128x96xbf16>,
    return
  }
  func.func @transform_0(%arg0: i32) -> (i32, i32) {
    %c0_i32 = arith.constant 0 : i32
    %c0_i32_0 = arith.constant 0 : i32
    return %arg0, %c0_i32 : i32, i32
  }
  func.func @transform_1(%arg0: i32) -> (i32, i32) {
    %c0_i32 = arith.constant 0 : i32
    %c0_i32_0 = arith.constant 0 : i32
    %c0_i32_1 = arith.constant 0 : i32
    return %c0_i32, %c0_i32_0 : i32, i32
  }
  func.func @transform_2(%arg0: i32) -> (i32, i32) {
    %c0_i32 = arith.constant 0 : i32
    %c0_i32_0 = arith.constant 0 : i32
    %c0_i32_1 = arith.constant 0 : i32
    return %c0_i32, %c0_i32_0 : i32, i32
  }
  func.func @transform_3(%arg0: i32) -> (i32, i32) {
    %c0_i32 = arith.constant 0 : i32
    %c0_i32_0 = arith.constant 0 : i32
    %c0_i32_1 = arith.constant 0 : i32
    return %c0_i32, %c0_i32_0 : i32, i32
  }
  func.func @transform_4(%arg0: i32) -> (i32, i32) {
    %c0_i32 = arith.constant 0 : i32
    %c0_i32_0 = arith.constant 0 : i32
    %c0_i32_1 = arith.constant 0 : i32
    return %c0_i32, %c0_i32_0 : i32, i32
  }
  func.func @transform_5(%arg0: i32) -> (i32, i32) {
    %c0_i32 = arith.constant 0 : i32
    %c0_i32_0 = arith.constant 0 : i32
    return %arg0, %c0_i32 : i32, i32
  }
  func.func @transform_6(%arg0: i32) -> (i32, i32) {
    %c0_i32 = arith.constant 0 : i32
    %c0_i32_0 = arith.constant 0 : i32
    return %arg0, %c0_i32 : i32, i32
  }
}

module attributes {stable_mosaic.version = 11 : i64} {
  func.func @_linear_kernel(%arg0: i32, %arg1: memref<128x32xf32, #tpu.memory_space<vmem>>, %arg2: memref<32x8xbf16, #tpu.memory_space<vmem>>, %arg3: memref<1x8xf32, #tpu.memory_space<vmem>>, %arg4: memref<128x8xf32, #tpu.memory_space<vmem>>) attributes {dimension_semantics = [#tpu.dimension_semantics<parallel>], iteration_bounds = array<i64: 1>, scalar_prefetch = 0 : i64, scratch_operands = 0 : i64, tpu.core_type = #tpu.core_type<tc>, window_params = [{transform_indices = @transform_0, window_bounds = array<i64: 128, 32>}, {pipeline_mode = #tpu.pipeline_mode<synchronous>, transform_indices = @transform_1, window_bounds = array<i64: 32, 8>}, {pipeline_mode = #tpu.pipeline_mode<synchronous>, transform_indices = @transform_2, window_bounds = array<i64: 1, 8>}, {transform_indices = @transform_3, window_bounds = array<i64: 128, 8>}]} {
    %c0 = arith.constant 0 : index
    %c0_0 = arith.constant 0 : index
    %0 = vector.load %arg1[%c0, %c0_0] : memref<128x32xf32, #tpu.memory_space<vmem>>, vector<128x32xf32>
    %1 = arith.truncf %0 : vector<128x32xf32> to vector<128x32xbf16>
    %c0_1 = arith.constant 0 : index
    %c0_2 = arith.constant 0 : index
    %2 = vector.load %arg2[%c0_1, %c0_2] : memref<32x8xbf16, #tpu.memory_space<vmem>>, vector<32x8xbf16>
    %cst = arith.constant dense<0.000000e+00> : vector<128x8xf32>
    %3 = tpu.matmul %1, %2, %cst {dimension_numbers = #tpu.dot_dimension_numbers<[1], [0], [0], [1], [0, 0, 1, 1], [], []>} : vector<128x32xbf16>, vector<32x8xbf16>, vector<128x8xf32> -> vector<128x8xf32>
    %c0_3 = arith.constant 0 : index
    %c0_4 = arith.constant 0 : index
    %4 = vector.load %arg3[%c0_3, %c0_4] : memref<1x8xf32, #tpu.memory_space<vmem>>, vector<1x8xf32>
    %5 = vector.broadcast %4 : vector<1x8xf32> to vector<128x8xf32>
    %6 = arith.addf %3, %5 : vector<128x8xf32>
    %c0_5 = arith.constant 0 : index
    %c0_6 = arith.constant 0 : index
    %7 = vector.load %arg4[%c0_5, %c0_6] : memref<128x8xf32, #tpu.memory_space<vmem>>, vector<128x8xf32>
    tpu.vector_store %arg4[%c0_5, %c0_6], %6 {strides = array<i32>} : memref<128x8xf32, #tpu.memory_space<vmem>>, vector<128x8xf32>,
    return
  }
  func.func @transform_0(%arg0: i32) -> (i32, i32) {
    %c0_i32 = arith.constant 0 : i32
    %c0_i32_0 = arith.constant 0 : i32
    return %arg0, %c0_i32 : i32, i32
  }
  func.func @transform_1(%arg0: i32) -> (i32, i32) {
    %c0_i32 = arith.constant 0 : i32
    %c0_i32_0 = arith.constant 0 : i32
    %c0_i32_1 = arith.constant 0 : i32
    return %c0_i32, %c0_i32_0 : i32, i32
  }
  func.func @transform_2(%arg0: i32) -> (i32, i32) {
    %c0_i32 = arith.constant 0 : i32
    %c0_i32_0 = arith.constant 0 : i32
    %c0_i32_1 = arith.constant 0 : i32
    return %c0_i32, %c0_i32_0 : i32, i32
  }
  func.func @transform_3(%arg0: i32) -> (i32, i32) {
    %c0_i32 = arith.constant 0 : i32
    %c0_i32_0 = arith.constant 0 : i32
    return %arg0, %c0_i32 : i32, i32
  }
}

module attributes {stable_mosaic.version = 11 : i64} {
  func.func @_atd_ca_kernel(%arg0: i32, %arg1: i32, %arg2: memref<1x64x8xf32, #tpu.memory_space<vmem>>, %arg3: memref<1x16x8xf32, #tpu.memory_space<vmem>>, %arg4: memref<1x16x32xf32, #tpu.memory_space<vmem>>, %arg5: memref<1x16xf32, #tpu.memory_space<vmem>>, %arg6: memref<1x64x32xf32, #tpu.memory_space<vmem>>, %arg7: memref<1x64x16xf32, #tpu.memory_space<vmem>>, %arg8: memref<1x64x1xi32, #tpu.memory_space<vmem>>) attributes {dimension_semantics = [#tpu.dimension_semantics<parallel>, #tpu.dimension_semantics<parallel>], iteration_bounds = array<i64: 2, 1>, scalar_prefetch = 0 : i64, scratch_operands = 0 : i64, tpu.core_type = #tpu.core_type<tc>, window_params = [{transform_indices = @transform_0, window_bounds = array<i64: 1, 64, 8>}, {transform_indices = @transform_1, window_bounds = array<i64: 1, 16, 8>}, {transform_indices = @transform_2, window_bounds = array<i64: 1, 16, 32>}, {pipeline_mode = #tpu.pipeline_mode<synchronous>, transform_indices = @transform_3, window_bounds = array<i64: 1, 16>}, {transform_indices = @transform_4, window_bounds = array<i64: 1, 64, 32>}, {transform_indices = @transform_5, window_bounds = array<i64: 1, 64, 16>}, {transform_indices = @transform_6, window_bounds = array<i64: 1, 64, 1>}]} {
    %c0 = arith.constant 0 : index
    %c0_0 = arith.constant 0 : index
    %c0_1 = arith.constant 0 : index
    %0 = vector.load %arg2[%c0, %c0_0, %c0_1] : memref<1x64x8xf32, #tpu.memory_space<vmem>>, vector<1x64x8xf32>
    %1 = vector.shape_cast %0 : vector<1x64x8xf32> to vector<64x8xf32>
    %c0_2 = arith.constant 0 : index
    %c0_3 = arith.constant 0 : index
    %c0_4 = arith.constant 0 : index
    %2 = vector.load %arg3[%c0_2, %c0_3, %c0_4] : memref<1x16x8xf32, #tpu.memory_space<vmem>>, vector<1x16x8xf32>
    %3 = vector.shape_cast %2 : vector<1x16x8xf32> to vector<16x8xf32>
    %4 = arith.mulf %1, %1 : vector<64x8xf32>
    %cst = arith.constant dense<0.000000e+00> : vector<64xf32>
    %5 = vector.multi_reduction <add>, %4, %cst [1] : vector<64x8xf32> to vector<64xf32>
    %6 = vector.shape_cast %5 : vector<64xf32> to vector<64x1xf32>
    %cst_5 = arith.constant 1.000000e-24 : f32
    %7 = vector.broadcast %cst_5 : f32 to vector<64x1xf32>
    %8 = arith.maximumf %6, %7 : vector<64x1xf32>
    %9 = math.rsqrt %8 : vector<64x1xf32>
    %10 = vector.broadcast %9 : vector<64x1xf32> to vector<64x8xf32>
    %11 = arith.mulf %1, %10 : vector<64x8xf32>
    %12 = arith.mulf %3, %3 : vector<16x8xf32>
    %cst_6 = arith.constant dense<0.000000e+00> : vector<16xf32>
    %13 = vector.multi_reduction <add>, %12, %cst_6 [1] : vector<16x8xf32> to vector<16xf32>
    %14 = vector.shape_cast %13 : vector<16xf32> to vector<16x1xf32>
    %cst_7 = arith.constant 1.000000e-24 : f32
    %15 = vector.broadcast %cst_7 : f32 to vector<16x1xf32>
    %16 = arith.maximumf %14, %15 : vector<16x1xf32>
    %17 = math.rsqrt %16 : vector<16x1xf32>
    %18 = vector.broadcast %17 : vector<16x1xf32> to vector<16x8xf32>
    %19 = arith.mulf %3, %18 : vector<16x8xf32>
    %cst_8 = arith.constant dense<0.000000e+00> : vector<64x16xf32>
    %20 = tpu.matmul %11, %19, %cst_8 {dimension_numbers = #tpu.dot_dimension_numbers<[1], [1], [0], [0], [0, 0, 1, 0], [], []>} : vector<64x8xf32>, vector<16x8xf32>, vector<64x16xf32> -> vector<64x16xf32>
    %c0_9 = arith.constant 0 : index
    %c0_10 = arith.constant 0 : index
    %21 = vector.load %arg5[%c0_9, %c0_10] : memref<1x16xf32, #tpu.memory_space<vmem>>, vector<1x16xf32>
    %cst_11 = arith.constant 0.000000e+00 : f32
    %cst_12 = arith.constant 1.000000e+00 : f32
    %22 = vector.broadcast %cst_11 : f32 to vector<1x16xf32>
    %23 = arith.maximumf %22, %21 : vector<1x16xf32>
    %24 = vector.broadcast %cst_12 : f32 to vector<1x16xf32>
    %25 = arith.minimumf %24, %23 : vector<1x16xf32>
    %cst_13 = arith.constant 2.77258873 : f32
    %26 = vector.broadcast %cst_13 : f32 to vector<1x16xf32>
    %27 = arith.mulf %25, %26 : vector<1x16xf32>
    %cst_14 = arith.constant 1.000000e+00 : f32
    %28 = vector.broadcast %cst_14 : f32 to vector<1x16xf32>
    %29 = arith.addf %28, %27 : vector<1x16xf32>
    %30 = vector.broadcast %29 : vector<1x16xf32> to vector<64x16xf32>
    %31 = arith.mulf %20, %30 : vector<64x16xf32>
    %cst_15 = arith.constant dense<0xFF800000> : vector<64xf32>
    %32 = vector.multi_reduction <maximumf>, %31, %cst_15 [1] : vector<64x16xf32> to vector<64xf32>
    %33 = vector.shape_cast %32 : vector<64xf32> to vector<64x1xf32>
    %34 = vector.broadcast %33 : vector<64x1xf32> to vector<64x16xf32>
    %35 = arith.subf %31, %34 : vector<64x16xf32>
    %36 = math.exp %35 : vector<64x16xf32>
    %cst_16 = arith.constant dense<0.000000e+00> : vector<64xf32>
    %37 = vector.multi_reduction <add>, %36, %cst_16 [1] : vector<64x16xf32> to vector<64xf32>
    %38 = vector.shape_cast %37 : vector<64xf32> to vector<64x1xf32>
    %39 = tpu.reciprocal %38 {approx = true} : vector<64x1xf32> -> vector<64x1xf32>
    %40 = vector.broadcast %39 : vector<64x1xf32> to vector<64x16xf32>
    %41 = arith.mulf %36, %40 : vector<64x16xf32>
    %c0_17 = arith.constant 0 : index
    %c0_18 = arith.constant 0 : index
    %c0_19 = arith.constant 0 : index
    %42 = vector.load %arg7[%c0_17, %c0_18, %c0_19] : memref<1x64x16xf32, #tpu.memory_space<vmem>>, vector<1x64x16xf32>
    %43 = vector.shape_cast %42 : vector<1x64x16xf32> to vector<64x16xf32>
    %44 = vector.shape_cast %41 : vector<64x16xf32> to vector<1x64x16xf32>
    tpu.vector_store %arg7[%c0_17, %c0_18, %c0_19], %44 {strides = array<i32>} : memref<1x64x16xf32, #tpu.memory_space<vmem>>, vector<1x64x16xf32>,
    %45 = tpu.iota {dimensions = array<i32: 1>} : vector<64x16xi32>
    %cst_20 = arith.constant dense<0xFF800000> : vector<64xf32>
    %46 = vector.multi_reduction <maximumf>, %41, %cst_20 [1] : vector<64x16xf32> to vector<64xf32>
    %47 = vector.shape_cast %46 : vector<64xf32> to vector<64x1xf32>
    %48 = vector.broadcast %47 : vector<64x1xf32> to vector<64x16xf32>
    %49 = arith.cmpf oge, %41, %48 : vector<64x16xf32>
    %c16_i32 = arith.constant 16 : i32
    %50 = vector.broadcast %c16_i32 : i32 to vector<64x16xi32>
    %51 = arith.select %49, %45, %50 : vector<64x16xi1>, vector<64x16xi32>
    %cst_21 = arith.constant dense<2147483647> : vector<64xi32>
    %52 = vector.multi_reduction <minsi>, %51, %cst_21 [1] : vector<64x16xi32> to vector<64xi32>
    %53 = vector.shape_cast %52 : vector<64xi32> to vector<64x1xi32>
    %c0_22 = arith.constant 0 : index
    %c0_23 = arith.constant 0 : index
    %c0_24 = arith.constant 0 : index
    %54 = vector.load %arg8[%c0_22, %c0_23, %c0_24] : memref<1x64x1xi32, #tpu.memory_space<vmem>>, vector<1x64x1xi32>
    %55 = vector.shape_cast %54 : vector<1x64x1xi32> to vector<64x1xi32>
    %56 = vector.shape_cast %53 : vector<64x1xi32> to vector<1x64x1xi32>
    tpu.vector_store %arg8[%c0_22, %c0_23, %c0_24], %56 {strides = array<i32>} : memref<1x64x1xi32, #tpu.memory_space<vmem>>, vector<1x64x1xi32>,
    %57 = arith.truncf %41 : vector<64x16xf32> to vector<64x16xbf16>
    %c0_25 = arith.constant 0 : index
    %c0_26 = arith.constant 0 : index
    %c0_27 = arith.constant 0 : index
    %58 = vector.load %arg4[%c0_25, %c0_26, %c0_27] : memref<1x16x32xf32, #tpu.memory_space<vmem>>, vector<1x16x32xf32>
    %59 = vector.shape_cast %58 : vector<1x16x32xf32> to vector<16x32xf32>
    %60 = arith.truncf %59 : vector<16x32xf32> to vector<16x32xbf16>
    %cst_28 = arith.constant dense<0.000000e+00> : vector<64x32xf32>
    %61 = tpu.matmul %57, %60, %cst_28 {dimension_numbers = #tpu.dot_dimension_numbers<[1], [0], [0], [1], [0, 0, 1, 1], [], []>} : vector<64x16xbf16>, vector<16x32xbf16>, vector<64x32xf32> -> vector<64x32xf32>
    %c0_29 = arith.constant 0 : index
    %c0_30 = arith.constant 0 : index
    %c0_31 = arith.constant 0 : index
    %62 = vector.load %arg6[%c0_29, %c0_30, %c0_31] : memref<1x64x32xf32, #tpu.memory_space<vmem>>, vector<1x64x32xf32>
    %63 = vector.shape_cast %62 : vector<1x64x32xf32> to vector<64x32xf32>
    %64 = vector.shape_cast %61 : vector<64x32xf32> to vector<1x64x32xf32>
    tpu.vector_store %arg6[%c0_29, %c0_30, %c0_31], %64 {strides = array<i32>} : memref<1x64x32xf32, #tpu.memory_space<vmem>>, vector<1x64x32xf32>,
    return
  }
  func.func @transform_0(%arg0: i32, %arg1: i32) -> (i32, i32, i32) {
    %c0_i32 = arith.constant 0 : i32
    %c0_i32_0 = arith.constant 0 : i32
    return %arg0, %arg1, %c0_i32 : i32, i32, i32
  }
  func.func @transform_1(%arg0: i32, %arg1: i32) -> (i32, i32, i32) {
    %c0_i32 = arith.constant 0 : i32
    %c0_i32_0 = arith.constant 0 : i32
    %c0_i32_1 = arith.constant 0 : i32
    return %arg0, %c0_i32, %c0_i32_0 : i32, i32, i32
  }
  func.func @transform_2(%arg0: i32, %arg1: i32) -> (i32, i32, i32) {
    %c0_i32 = arith.constant 0 : i32
    %c0_i32_0 = arith.constant 0 : i32
    %c0_i32_1 = arith.constant 0 : i32
    return %arg0, %c0_i32, %c0_i32_0 : i32, i32, i32
  }
  func.func @transform_3(%arg0: i32, %arg1: i32) -> (i32, i32) {
    %c0_i32 = arith.constant 0 : i32
    %c0_i32_0 = arith.constant 0 : i32
    %c0_i32_1 = arith.constant 0 : i32
    return %c0_i32, %c0_i32_0 : i32, i32
  }
  func.func @transform_4(%arg0: i32, %arg1: i32) -> (i32, i32, i32) {
    %c0_i32 = arith.constant 0 : i32
    %c0_i32_0 = arith.constant 0 : i32
    return %arg0, %arg1, %c0_i32 : i32, i32, i32
  }
  func.func @transform_5(%arg0: i32, %arg1: i32) -> (i32, i32, i32) {
    %c0_i32 = arith.constant 0 : i32
    %c0_i32_0 = arith.constant 0 : i32
    return %arg0, %arg1, %c0_i32 : i32, i32, i32
  }
  func.func @transform_6(%arg0: i32, %arg1: i32) -> (i32, i32, i32) {
    %c0_i32 = arith.constant 0 : i32
    %c0_i32_0 = arith.constant 0 : i32
    return %arg0, %arg1, %c0_i32 : i32, i32, i32
  }
}

module attributes {stable_mosaic.version = 11 : i64} {
  func.func @_win_attn_kernel(%arg0: i32, %arg1: i32, %arg2: memref<1x2x4x16x8xbf16, #tpu.memory_space<vmem>>, %arg3: memref<1x2x4x16x8xbf16, #tpu.memory_space<vmem>>, %arg4: memref<1x2x4x16x8xbf16, #tpu.memory_space<vmem>>, %arg5: memref<4x16x16xf32, #tpu.memory_space<vmem>>, %arg6: memref<2x16x16xf32, #tpu.memory_space<vmem>>, %arg7: memref<1x2x4x16x8xbf16, #tpu.memory_space<vmem>>) attributes {dimension_semantics = [#tpu.dimension_semantics<parallel>, #tpu.dimension_semantics<parallel>], iteration_bounds = array<i64: 2, 2>, scalar_prefetch = 0 : i64, scratch_operands = 0 : i64, tpu.core_type = #tpu.core_type<tc>, window_params = [{transform_indices = @transform_0, window_bounds = array<i64: 1, 2, 4, 16, 8>}, {transform_indices = @transform_1, window_bounds = array<i64: 1, 2, 4, 16, 8>}, {transform_indices = @transform_2, window_bounds = array<i64: 1, 2, 4, 16, 8>}, {pipeline_mode = #tpu.pipeline_mode<synchronous>, transform_indices = @transform_3, window_bounds = array<i64: 4, 16, 16>}, {transform_indices = @transform_4, window_bounds = array<i64: 2, 16, 16>}, {transform_indices = @transform_5, window_bounds = array<i64: 1, 2, 4, 16, 8>}]} {
    %c0 = arith.constant 0 : index
    %c0_0 = arith.constant 0 : index
    %c0_1 = arith.constant 0 : index
    %c0_2 = arith.constant 0 : index
    %c0_3 = arith.constant 0 : index
    %0 = vector.load %arg2[%c0, %c0_0, %c0_1, %c0_2, %c0_3] : memref<1x2x4x16x8xbf16, #tpu.memory_space<vmem>>, vector<1x2x4x16x8xbf16>
    %1 = vector.shape_cast %0 : vector<1x2x4x16x8xbf16> to vector<2x4x16x8xbf16>
    %2 = vector.shape_cast %1 : vector<2x4x16x8xbf16> to vector<8x16x8xbf16>
    %c0_4 = arith.constant 0 : index
    %c0_5 = arith.constant 0 : index
    %c0_6 = arith.constant 0 : index
    %c0_7 = arith.constant 0 : index
    %c0_8 = arith.constant 0 : index
    %3 = vector.load %arg3[%c0_4, %c0_5, %c0_6, %c0_7, %c0_8] : memref<1x2x4x16x8xbf16, #tpu.memory_space<vmem>>, vector<1x2x4x16x8xbf16>
    %4 = vector.shape_cast %3 : vector<1x2x4x16x8xbf16> to vector<2x4x16x8xbf16>
    %5 = vector.shape_cast %4 : vector<2x4x16x8xbf16> to vector<8x16x8xbf16>
    %c0_9 = arith.constant 0 : index
    %c0_10 = arith.constant 0 : index
    %c0_11 = arith.constant 0 : index
    %c0_12 = arith.constant 0 : index
    %c0_13 = arith.constant 0 : index
    %6 = vector.load %arg4[%c0_9, %c0_10, %c0_11, %c0_12, %c0_13] : memref<1x2x4x16x8xbf16, #tpu.memory_space<vmem>>, vector<1x2x4x16x8xbf16>
    %7 = vector.shape_cast %6 : vector<1x2x4x16x8xbf16> to vector<2x4x16x8xbf16>
    %8 = vector.shape_cast %7 : vector<2x4x16x8xbf16> to vector<8x16x8xbf16>
    "tpu.trace_start"() <{level = 10 : i32, message = "gqd,gkd->gqk"}> : () -> ()
    %cst = arith.constant dense<0.000000e+00> : vector<8x16x16xf32>
    %9 = tpu.matmul %2, %5, %cst {dimension_numbers = #tpu.dot_dimension_numbers<[2], [2], [1], [1], [0, 0, 0, 1, 1, 1], [0], [0]>} : vector<8x16x8xbf16>, vector<8x16x8xbf16>, vector<8x16x16xf32> -> vector<8x16x16xf32>
    "tpu.trace_stop"() : () -> ()
    %cst_14 = arith.constant 0.353553385 : f32
    %10 = vector.broadcast %cst_14 : f32 to vector<8x16x16xf32>
    %11 = arith.mulf %9, %10 : vector<8x16x16xf32>
    %12 = vector.shape_cast %11 : vector<8x16x16xf32> to vector<2x4x16x16xf32>
    %c0_15 = arith.constant 0 : index
    %c0_16 = arith.constant 0 : index
    %c0_17 = arith.constant 0 : index
    %13 = vector.load %arg5[%c0_15, %c0_16, %c0_17] : memref<4x16x16xf32, #tpu.memory_space<vmem>>, vector<4x16x16xf32>
    %14 = vector.shape_cast %13 : vector<4x16x16xf32> to vector<1x4x16x16xf32>
    %15 = vector.broadcast %14 : vector<1x4x16x16xf32> to vector<2x4x16x16xf32>
    %16 = arith.addf %12, %15 : vector<2x4x16x16xf32>
    %c0_18 = arith.constant 0 : index
    %c0_19 = arith.constant 0 : index
    %c0_20 = arith.constant 0 : index
    %17 = vector.load %arg6[%c0_18, %c0_19, %c0_20] : memref<2x16x16xf32, #tpu.memory_space<vmem>>, vector<2x16x16xf32>
    %18 = vector.shape_cast %17 : vector<2x16x16xf32> to vector<2x1x16x16xf32>
    %19 = vector.broadcast %18 : vector<2x1x16x16xf32> to vector<2x4x16x16xf32>
    %20 = arith.addf %16, %19 : vector<2x4x16x16xf32>
    %21 = vector.shape_cast %20 : vector<2x4x16x16xf32> to vector<8x16x16xf32>
    %cst_21 = arith.constant dense<0xFF800000> : vector<8x16xf32>
    %22 = vector.multi_reduction <maximumf>, %21, %cst_21 [2] : vector<8x16x16xf32> to vector<8x16xf32>
    %23 = vector.shape_cast %22 : vector<8x16xf32> to vector<8x16x1xf32>
    %24 = vector.broadcast %23 : vector<8x16x1xf32> to vector<8x16x16xf32>
    %25 = arith.subf %21, %24 : vector<8x16x16xf32>
    %26 = math.exp %25 : vector<8x16x16xf32>
    %cst_22 = arith.constant dense<0.000000e+00> : vector<8x16xf32>
    %27 = vector.multi_reduction <add>, %26, %cst_22 [2] : vector<8x16x16xf32> to vector<8x16xf32>
    %28 = vector.shape_cast %27 : vector<8x16xf32> to vector<8x16x1xf32>
    %29 = tpu.reciprocal %28 {approx = true} : vector<8x16x1xf32> -> vector<8x16x1xf32>
    %30 = vector.broadcast %29 : vector<8x16x1xf32> to vector<8x16x16xf32>
    %31 = arith.mulf %26, %30 : vector<8x16x16xf32>
    %32 = arith.truncf %31 : vector<8x16x16xf32> to vector<8x16x16xbf16>
    "tpu.trace_start"() <{level = 10 : i32, message = "gqk,gkd->gqd"}> : () -> ()
    %cst_23 = arith.constant dense<0.000000e+00> : vector<8x16x8xf32>
    %33 = tpu.matmul %32, %8, %cst_23 {dimension_numbers = #tpu.dot_dimension_numbers<[2], [1], [1], [2], [0, 0, 0, 1, 1, 2], [0], [0]>} : vector<8x16x16xbf16>, vector<8x16x8xbf16>, vector<8x16x8xf32> -> vector<8x16x8xf32>
    "tpu.trace_stop"() : () -> ()
    %34 = vector.shape_cast %33 : vector<8x16x8xf32> to vector<2x4x16x8xf32>
    %35 = arith.truncf %34 : vector<2x4x16x8xf32> to vector<2x4x16x8xbf16>
    %c0_24 = arith.constant 0 : index
    %c0_25 = arith.constant 0 : index
    %c0_26 = arith.constant 0 : index
    %c0_27 = arith.constant 0 : index
    %c0_28 = arith.constant 0 : index
    %36 = vector.load %arg7[%c0_24, %c0_25, %c0_26, %c0_27, %c0_28] : memref<1x2x4x16x8xbf16, #tpu.memory_space<vmem>>, vector<1x2x4x16x8xbf16>
    %37 = vector.shape_cast %36 : vector<1x2x4x16x8xbf16> to vector<2x4x16x8xbf16>
    %38 = vector.shape_cast %35 : vector<2x4x16x8xbf16> to vector<1x2x4x16x8xbf16>
    tpu.vector_store %arg7[%c0_24, %c0_25, %c0_26, %c0_27, %c0_28], %38 {strides = array<i32>} : memref<1x2x4x16x8xbf16, #tpu.memory_space<vmem>>, vector<1x2x4x16x8xbf16>,
    return
  }
  func.func @transform_0(%arg0: i32, %arg1: i32) -> (i32, i32, i32, i32, i32) {
    %c0_i32 = arith.constant 0 : i32
    %c0_i32_0 = arith.constant 0 : i32
    %c0_i32_1 = arith.constant 0 : i32
    %c0_i32_2 = arith.constant 0 : i32
    return %arg0, %arg1, %c0_i32, %c0_i32_0, %c0_i32_1 : i32, i32, i32, i32, i32
  }
  func.func @transform_1(%arg0: i32, %arg1: i32) -> (i32, i32, i32, i32, i32) {
    %c0_i32 = arith.constant 0 : i32
    %c0_i32_0 = arith.constant 0 : i32
    %c0_i32_1 = arith.constant 0 : i32
    %c0_i32_2 = arith.constant 0 : i32
    return %arg0, %arg1, %c0_i32, %c0_i32_0, %c0_i32_1 : i32, i32, i32, i32, i32
  }
  func.func @transform_2(%arg0: i32, %arg1: i32) -> (i32, i32, i32, i32, i32) {
    %c0_i32 = arith.constant 0 : i32
    %c0_i32_0 = arith.constant 0 : i32
    %c0_i32_1 = arith.constant 0 : i32
    %c0_i32_2 = arith.constant 0 : i32
    return %arg0, %arg1, %c0_i32, %c0_i32_0, %c0_i32_1 : i32, i32, i32, i32, i32
  }
  func.func @transform_3(%arg0: i32, %arg1: i32) -> (i32, i32, i32) {
    %c0_i32 = arith.constant 0 : i32
    %c0_i32_0 = arith.constant 0 : i32
    %c0_i32_1 = arith.constant 0 : i32
    %c0_i32_2 = arith.constant 0 : i32
    return %c0_i32, %c0_i32_0, %c0_i32_1 : i32, i32, i32
  }
  func.func @transform_4(%arg0: i32, %arg1: i32) -> (i32, i32, i32) {
    %c0_i32 = arith.constant 0 : i32
    %c0_i32_0 = arith.constant 0 : i32
    %c0_i32_1 = arith.constant 0 : i32
    return %arg1, %c0_i32, %c0_i32_0 : i32, i32, i32
  }
  func.func @transform_5(%arg0: i32, %arg1: i32) -> (i32, i32, i32, i32, i32) {
    %c0_i32 = arith.constant 0 : i32
    %c0_i32_0 = arith.constant 0 : i32
    %c0_i32_1 = arith.constant 0 : i32
    %c0_i32_2 = arith.constant 0 : i32
    return %arg0, %arg1, %c0_i32, %c0_i32_0, %c0_i32_1 : i32, i32, i32, i32, i32
  }
}

module attributes {stable_mosaic.version = 11 : i64} {
  func.func @_linear_kernel(%arg0: i32, %arg1: memref<128x32xbf16, #tpu.memory_space<vmem>>, %arg2: memref<32x32xbf16, #tpu.memory_space<vmem>>, %arg3: memref<1x32xf32, #tpu.memory_space<vmem>>, %arg4: memref<128x32xf32, #tpu.memory_space<vmem>>) attributes {dimension_semantics = [#tpu.dimension_semantics<parallel>], iteration_bounds = array<i64: 1>, scalar_prefetch = 0 : i64, scratch_operands = 0 : i64, tpu.core_type = #tpu.core_type<tc>, window_params = [{transform_indices = @transform_0, window_bounds = array<i64: 128, 32>}, {pipeline_mode = #tpu.pipeline_mode<synchronous>, transform_indices = @transform_1, window_bounds = array<i64: 32, 32>}, {pipeline_mode = #tpu.pipeline_mode<synchronous>, transform_indices = @transform_2, window_bounds = array<i64: 1, 32>}, {transform_indices = @transform_3, window_bounds = array<i64: 128, 32>}]} {
    %c0 = arith.constant 0 : index
    %c0_0 = arith.constant 0 : index
    %0 = vector.load %arg1[%c0, %c0_0] : memref<128x32xbf16, #tpu.memory_space<vmem>>, vector<128x32xbf16>
    %c0_1 = arith.constant 0 : index
    %c0_2 = arith.constant 0 : index
    %1 = vector.load %arg2[%c0_1, %c0_2] : memref<32x32xbf16, #tpu.memory_space<vmem>>, vector<32x32xbf16>
    %cst = arith.constant dense<0.000000e+00> : vector<128x32xf32>
    %2 = tpu.matmul %0, %1, %cst {dimension_numbers = #tpu.dot_dimension_numbers<[1], [0], [0], [1], [0, 0, 1, 1], [], []>} : vector<128x32xbf16>, vector<32x32xbf16>, vector<128x32xf32> -> vector<128x32xf32>
    %c0_3 = arith.constant 0 : index
    %c0_4 = arith.constant 0 : index
    %3 = vector.load %arg3[%c0_3, %c0_4] : memref<1x32xf32, #tpu.memory_space<vmem>>, vector<1x32xf32>
    %4 = vector.broadcast %3 : vector<1x32xf32> to vector<128x32xf32>
    %5 = arith.addf %2, %4 : vector<128x32xf32>
    %c0_5 = arith.constant 0 : index
    %c0_6 = arith.constant 0 : index
    %6 = vector.load %arg4[%c0_5, %c0_6] : memref<128x32xf32, #tpu.memory_space<vmem>>, vector<128x32xf32>
    tpu.vector_store %arg4[%c0_5, %c0_6], %5 {strides = array<i32>} : memref<128x32xf32, #tpu.memory_space<vmem>>, vector<128x32xf32>,
    return
  }
  func.func @transform_0(%arg0: i32) -> (i32, i32) {
    %c0_i32 = arith.constant 0 : i32
    %c0_i32_0 = arith.constant 0 : i32
    return %arg0, %c0_i32 : i32, i32
  }
  func.func @transform_1(%arg0: i32) -> (i32, i32) {
    %c0_i32 = arith.constant 0 : i32
    %c0_i32_0 = arith.constant 0 : i32
    %c0_i32_1 = arith.constant 0 : i32
    return %c0_i32, %c0_i32_0 : i32, i32
  }
  func.func @transform_2(%arg0: i32) -> (i32, i32) {
    %c0_i32 = arith.constant 0 : i32
    %c0_i32_0 = arith.constant 0 : i32
    %c0_i32_1 = arith.constant 0 : i32
    return %c0_i32, %c0_i32_0 : i32, i32
  }
  func.func @transform_3(%arg0: i32) -> (i32, i32) {
    %c0_i32 = arith.constant 0 : i32
    %c0_i32_0 = arith.constant 0 : i32
    return %arg0, %c0_i32 : i32, i32
  }
}

module attributes {stable_mosaic.version = 11 : i64} {
  func.func @_acmsa_kernel(%arg0: i32, %arg1: i32, %arg2: memref<1x8x16x8xbf16, #tpu.memory_space<vmem>>, %arg3: memref<1x8x16x8xbf16, #tpu.memory_space<vmem>>, %arg4: memref<1x8x16x8xbf16, #tpu.memory_space<vmem>>, %arg5: memref<1x1xf32, #tpu.memory_space<vmem>>, %arg6: memref<1x8x16x8xbf16, #tpu.memory_space<vmem>>) attributes {dimension_semantics = [#tpu.dimension_semantics<parallel>, #tpu.dimension_semantics<parallel>], iteration_bounds = array<i64: 2, 2>, scalar_prefetch = 0 : i64, scratch_operands = 0 : i64, tpu.core_type = #tpu.core_type<tc>, window_params = [{transform_indices = @transform_0, window_bounds = array<i64: 1, 8, 16, 8>}, {transform_indices = @transform_1, window_bounds = array<i64: 1, 8, 16, 8>}, {transform_indices = @transform_2, window_bounds = array<i64: 1, 8, 16, 8>}, {pipeline_mode = #tpu.pipeline_mode<synchronous>, transform_indices = @transform_3, window_bounds = array<i64: 1, 1>}, {transform_indices = @transform_4, window_bounds = array<i64: 1, 8, 16, 8>}]} {
    %c0 = arith.constant 0 : index
    %c0_0 = arith.constant 0 : index
    %c0_1 = arith.constant 0 : index
    %c0_2 = arith.constant 0 : index
    %0 = vector.load %arg2[%c0, %c0_0, %c0_1, %c0_2] : memref<1x8x16x8xbf16, #tpu.memory_space<vmem>>, vector<1x8x16x8xbf16>
    %1 = vector.shape_cast %0 : vector<1x8x16x8xbf16> to vector<8x16x8xbf16>
    %c0_3 = arith.constant 0 : index
    %c0_4 = arith.constant 0 : index
    %c0_5 = arith.constant 0 : index
    %c0_6 = arith.constant 0 : index
    %2 = vector.load %arg3[%c0_3, %c0_4, %c0_5, %c0_6] : memref<1x8x16x8xbf16, #tpu.memory_space<vmem>>, vector<1x8x16x8xbf16>
    %3 = vector.shape_cast %2 : vector<1x8x16x8xbf16> to vector<8x16x8xbf16>
    %c0_7 = arith.constant 0 : index
    %c0_8 = arith.constant 0 : index
    %c0_9 = arith.constant 0 : index
    %c0_10 = arith.constant 0 : index
    %4 = vector.load %arg4[%c0_7, %c0_8, %c0_9, %c0_10] : memref<1x8x16x8xbf16, #tpu.memory_space<vmem>>, vector<1x8x16x8xbf16>
    %5 = vector.shape_cast %4 : vector<1x8x16x8xbf16> to vector<8x16x8xbf16>
    "tpu.trace_start"() <{level = 10 : i32, message = "gqd,gkd->gqk"}> : () -> ()
    %cst = arith.constant dense<0.000000e+00> : vector<8x16x16xf32>
    %6 = tpu.matmul %1, %3, %cst {dimension_numbers = #tpu.dot_dimension_numbers<[2], [2], [1], [1], [0, 0, 0, 1, 1, 1], [0], [0]>} : vector<8x16x8xbf16>, vector<8x16x8xbf16>, vector<8x16x16xf32> -> vector<8x16x16xf32>
    "tpu.trace_stop"() : () -> ()
    %c0_11 = arith.constant 0 : index
    %c0_12 = arith.constant 0 : index
    %7 = vector.load %arg5[%c0_11, %c0_12] : memref<1x1xf32, #tpu.memory_space<vmem>>, vector<1x1xf32>
    %8 = vector.shape_cast %7 : vector<1x1xf32> to vector<1x1x1xf32>
    %9 = vector.broadcast %8 : vector<1x1x1xf32> to vector<8x16x16xf32>
    %10 = arith.mulf %6, %9 : vector<8x16x16xf32>
    %cst_13 = arith.constant dense<0xFF800000> : vector<8x16xf32>
    %11 = vector.multi_reduction <maximumf>, %10, %cst_13 [2] : vector<8x16x16xf32> to vector<8x16xf32>
    %12 = vector.shape_cast %11 : vector<8x16xf32> to vector<8x16x1xf32>
    %13 = vector.broadcast %12 : vector<8x16x1xf32> to vector<8x16x16xf32>
    %14 = arith.subf %10, %13 : vector<8x16x16xf32>
    %15 = math.exp %14 : vector<8x16x16xf32>
    %cst_14 = arith.constant dense<0.000000e+00> : vector<8x16xf32>
    %16 = vector.multi_reduction <add>, %15, %cst_14 [2] : vector<8x16x16xf32> to vector<8x16xf32>
    %17 = vector.shape_cast %16 : vector<8x16xf32> to vector<8x16x1xf32>
    %18 = tpu.reciprocal %17 {approx = true} : vector<8x16x1xf32> -> vector<8x16x1xf32>
    %19 = vector.broadcast %18 : vector<8x16x1xf32> to vector<8x16x16xf32>
    %20 = arith.mulf %15, %19 : vector<8x16x16xf32>
    %21 = arith.truncf %20 : vector<8x16x16xf32> to vector<8x16x16xbf16>
    "tpu.trace_start"() <{level = 10 : i32, message = "gqk,gkd->gqd"}> : () -> ()
    %cst_15 = arith.constant dense<0.000000e+00> : vector<8x16x8xf32>
    %22 = tpu.matmul %21, %5, %cst_15 {dimension_numbers = #tpu.dot_dimension_numbers<[2], [1], [1], [2], [0, 0, 0, 1, 1, 2], [0], [0]>} : vector<8x16x16xbf16>, vector<8x16x8xbf16>, vector<8x16x8xf32> -> vector<8x16x8xf32>
    "tpu.trace_stop"() : () -> ()
    %23 = arith.truncf %22 : vector<8x16x8xf32> to vector<8x16x8xbf16>
    %c0_16 = arith.constant 0 : index
    %c0_17 = arith.constant 0 : index
    %c0_18 = arith.constant 0 : index
    %c0_19 = arith.constant 0 : index
    %24 = vector.load %arg6[%c0_16, %c0_17, %c0_18, %c0_19] : memref<1x8x16x8xbf16, #tpu.memory_space<vmem>>, vector<1x8x16x8xbf16>
    %25 = vector.shape_cast %24 : vector<1x8x16x8xbf16> to vector<8x16x8xbf16>
    %26 = vector.shape_cast %23 : vector<8x16x8xbf16> to vector<1x8x16x8xbf16>
    tpu.vector_store %arg6[%c0_16, %c0_17, %c0_18, %c0_19], %26 {strides = array<i32>} : memref<1x8x16x8xbf16, #tpu.memory_space<vmem>>, vector<1x8x16x8xbf16>,
    return
  }
  func.func @transform_0(%arg0: i32, %arg1: i32) -> (i32, i32, i32, i32) {
    %c0_i32 = arith.constant 0 : i32
    %c0_i32_0 = arith.constant 0 : i32
    %c0_i32_1 = arith.constant 0 : i32
    return %arg0, %arg1, %c0_i32, %c0_i32_0 : i32, i32, i32, i32
  }
  func.func @transform_1(%arg0: i32, %arg1: i32) -> (i32, i32, i32, i32) {
    %c0_i32 = arith.constant 0 : i32
    %c0_i32_0 = arith.constant 0 : i32
    %c0_i32_1 = arith.constant 0 : i32
    return %arg0, %arg1, %c0_i32, %c0_i32_0 : i32, i32, i32, i32
  }
  func.func @transform_2(%arg0: i32, %arg1: i32) -> (i32, i32, i32, i32) {
    %c0_i32 = arith.constant 0 : i32
    %c0_i32_0 = arith.constant 0 : i32
    %c0_i32_1 = arith.constant 0 : i32
    return %arg0, %arg1, %c0_i32, %c0_i32_0 : i32, i32, i32, i32
  }
  func.func @transform_3(%arg0: i32, %arg1: i32) -> (i32, i32) {
    %c0_i32 = arith.constant 0 : i32
    %c0_i32_0 = arith.constant 0 : i32
    %c0_i32_1 = arith.constant 0 : i32
    return %c0_i32, %c0_i32_0 : i32, i32
  }
  func.func @transform_4(%arg0: i32, %arg1: i32) -> (i32, i32, i32, i32) {
    %c0_i32 = arith.constant 0 : i32
    %c0_i32_0 = arith.constant 0 : i32
    %c0_i32_1 = arith.constant 0 : i32
    return %arg0, %arg1, %c0_i32, %c0_i32_0 : i32, i32, i32, i32
  }
}

module attributes {stable_mosaic.version = 11 : i64} {
  func.func @_ln_linear_kernel(%arg0: i32, %arg1: memref<128x32xf32, #tpu.memory_space<vmem>>, %arg2: memref<1x32xf32, #tpu.memory_space<vmem>>, %arg3: memref<1x32xf32, #tpu.memory_space<vmem>>, %arg4: memref<32x64xbf16, #tpu.memory_space<vmem>>, %arg5: memref<1x64xf32, #tpu.memory_space<vmem>>, %arg6: memref<128x64xbf16, #tpu.memory_space<vmem>>) attributes {dimension_semantics = [#tpu.dimension_semantics<parallel>], iteration_bounds = array<i64: 1>, scalar_prefetch = 0 : i64, scratch_operands = 0 : i64, tpu.core_type = #tpu.core_type<tc>, window_params = [{transform_indices = @transform_0, window_bounds = array<i64: 128, 32>}, {pipeline_mode = #tpu.pipeline_mode<synchronous>, transform_indices = @transform_1, window_bounds = array<i64: 1, 32>}, {pipeline_mode = #tpu.pipeline_mode<synchronous>, transform_indices = @transform_2, window_bounds = array<i64: 1, 32>}, {pipeline_mode = #tpu.pipeline_mode<synchronous>, transform_indices = @transform_3, window_bounds = array<i64: 32, 64>}, {pipeline_mode = #tpu.pipeline_mode<synchronous>, transform_indices = @transform_4, window_bounds = array<i64: 1, 64>}, {transform_indices = @transform_5, window_bounds = array<i64: 128, 64>}]} {
    %c0 = arith.constant 0 : index
    %c0_0 = arith.constant 0 : index
    %0 = vector.load %arg1[%c0, %c0_0] : memref<128x32xf32, #tpu.memory_space<vmem>>, vector<128x32xf32>
    %cst = arith.constant dense<0.000000e+00> : vector<128xf32>
    %1 = vector.multi_reduction <add>, %0, %cst [1] : vector<128x32xf32> to vector<128xf32>
    %2 = vector.shape_cast %1 : vector<128xf32> to vector<128x1xf32>
    %cst_1 = arith.constant 3.200000e+01 : f32
    %3 = vector.broadcast %cst_1 : f32 to vector<128x1xf32>
    %4 = arith.divf %2, %3 : vector<128x1xf32>
    %5 = vector.broadcast %4 : vector<128x1xf32> to vector<128x32xf32>
    %6 = arith.subf %0, %5 : vector<128x32xf32>
    %7 = arith.mulf %6, %6 : vector<128x32xf32>
    %cst_2 = arith.constant dense<0.000000e+00> : vector<128xf32>
    %8 = vector.multi_reduction <add>, %7, %cst_2 [1] : vector<128x32xf32> to vector<128xf32>
    %9 = vector.shape_cast %8 : vector<128xf32> to vector<128x1xf32>
    %cst_3 = arith.constant 3.200000e+01 : f32
    %10 = vector.broadcast %cst_3 : f32 to vector<128x1xf32>
    %11 = arith.divf %9, %10 : vector<128x1xf32>
    %12 = vector.broadcast %4 : vector<128x1xf32> to vector<128x32xf32>
    %13 = arith.subf %0, %12 : vector<128x32xf32>
    %cst_4 = arith.constant 9.99999974E-6 : f32
    %14 = vector.broadcast %cst_4 : f32 to vector<128x1xf32>
    %15 = arith.addf %11, %14 : vector<128x1xf32>
    %16 = math.rsqrt %15 : vector<128x1xf32>
    %17 = vector.broadcast %16 : vector<128x1xf32> to vector<128x32xf32>
    %18 = arith.mulf %13, %17 : vector<128x32xf32>
    %c0_5 = arith.constant 0 : index
    %c0_6 = arith.constant 0 : index
    %19 = vector.load %arg2[%c0_5, %c0_6] : memref<1x32xf32, #tpu.memory_space<vmem>>, vector<1x32xf32>
    %20 = vector.broadcast %19 : vector<1x32xf32> to vector<128x32xf32>
    %21 = arith.mulf %18, %20 : vector<128x32xf32>
    %c0_7 = arith.constant 0 : index
    %c0_8 = arith.constant 0 : index
    %22 = vector.load %arg3[%c0_7, %c0_8] : memref<1x32xf32, #tpu.memory_space<vmem>>, vector<1x32xf32>
    %23 = vector.broadcast %22 : vector<1x32xf32> to vector<128x32xf32>
    %24 = arith.addf %21, %23 : vector<128x32xf32>
    %25 = arith.truncf %24 : vector<128x32xf32> to vector<128x32xbf16>
    %c0_9 = arith.constant 0 : index
    %c0_10 = arith.constant 0 : index
    %26 = vector.load %arg4[%c0_9, %c0_10] : memref<32x64xbf16, #tpu.memory_space<vmem>>, vector<32x64xbf16>
    %cst_11 = arith.constant dense<0.000000e+00> : vector<128x64xf32>
    %27 = tpu.matmul %25, %26, %cst_11 {dimension_numbers = #tpu.dot_dimension_numbers<[1], [0], [0], [1], [0, 0, 1, 1], [], []>} : vector<128x32xbf16>, vector<32x64xbf16>, vector<128x64xf32> -> vector<128x64xf32>
    %c0_12 = arith.constant 0 : index
    %c0_13 = arith.constant 0 : index
    %28 = vector.load %arg5[%c0_12, %c0_13] : memref<1x64xf32, #tpu.memory_space<vmem>>, vector<1x64xf32>
    %29 = vector.broadcast %28 : vector<1x64xf32> to vector<128x64xf32>
    %30 = arith.addf %27, %29 : vector<128x64xf32>
    %cst_14 = arith.constant 5.000000e-01 : f32
    %31 = vector.broadcast %cst_14 : f32 to vector<128x64xf32>
    %32 = arith.mulf %31, %30 : vector<128x64xf32>
    %cst_15 = arith.constant 0.707106769 : f32
    %33 = vector.broadcast %cst_15 : f32 to vector<128x64xf32>
    %34 = arith.mulf %30, %33 : vector<128x64xf32>
    %cst_16 = arith.constant 0.000000e+00 : f32
    %35 = vector.broadcast %cst_16 : f32 to vector<128x64xf32>
    %36 = arith.cmpf olt, %34, %35 : vector<128x64xf32>
    %cst_17 = arith.constant -1.000000e+00 : f32
    %cst_18 = arith.constant 1.000000e+00 : f32
    %37 = vector.broadcast %cst_17 : f32 to vector<128x64xf32>
    %38 = vector.broadcast %cst_18 : f32 to vector<128x64xf32>
    %39 = arith.select %36, %37, %38 : vector<128x64xi1>, vector<128x64xf32>
    %40 = math.absf %34 : vector<128x64xf32>
    %cst_19 = arith.constant 0.327591091 : f32
    %41 = vector.broadcast %cst_19 : f32 to vector<128x64xf32>
    %42 = arith.mulf %41, %40 : vector<128x64xf32>
    %cst_20 = arith.constant 1.000000e+00 : f32
    %43 = vector.broadcast %cst_20 : f32 to vector<128x64xf32>
    %44 = arith.addf %43, %42 : vector<128x64xf32>
    %cst_21 = arith.constant 1.000000e+00 : f32
    %45 = vector.broadcast %cst_21 : f32 to vector<128x64xf32>
    %46 = arith.divf %45, %44 : vector<128x64xf32>
    %cst_22 = arith.constant 1.06140542 : f32
    %47 = vector.broadcast %cst_22 : f32 to vector<128x64xf32>
    %48 = arith.mulf %47, %46 : vector<128x64xf32>
    %cst_23 = arith.constant -1.45315206 : f32
    %49 = vector.broadcast %cst_23 : f32 to vector<128x64xf32>
    %50 = arith.addf %48, %49 : vector<128x64xf32>
    %51 = arith.mulf %50, %46 : vector<128x64xf32>
    %cst_24 = arith.constant 1.42141378 : f32
    %52 = vector.broadcast %cst_24 : f32 to vector<128x64xf32>
    %53 = arith.addf %51, %52 : vector<128x64xf32>
    %54 = arith.mulf %53, %46 : vector<128x64xf32>
    %cst_25 = arith.constant -0.284496725 : f32
    %55 = vector.broadcast %cst_25 : f32 to vector<128x64xf32>
    %56 = arith.addf %54, %55 : vector<128x64xf32>
    %57 = arith.mulf %56, %46 : vector<128x64xf32>
    %cst_26 = arith.constant 0.254829586 : f32
    %58 = vector.broadcast %cst_26 : f32 to vector<128x64xf32>
    %59 = arith.addf %57, %58 : vector<128x64xf32>
    %60 = arith.mulf %59, %46 : vector<128x64xf32>
    %cst_27 = arith.constant 0.000000e+00 : f32
    %61 = vector.broadcast %cst_27 : f32 to vector<128x64xf32>
    %62 = arith.subf %61, %40 : vector<128x64xf32>
    %63 = arith.mulf %62, %40 : vector<128x64xf32>
    %64 = math.exp %63 : vector<128x64xf32>
    %65 = arith.mulf %60, %64 : vector<128x64xf32>
    %cst_28 = arith.constant 1.000000e+00 : f32
    %66 = vector.broadcast %cst_28 : f32 to vector<128x64xf32>
    %67 = arith.subf %66, %65 : vector<128x64xf32>
    %68 = arith.mulf %39, %67 : vector<128x64xf32>
    %cst_29 = arith.constant 1.000000e+00 : f32
    %69 = vector.broadcast %cst_29 : f32 to vector<128x64xf32>
    %70 = arith.addf %69, %68 : vector<128x64xf32>
    %71 = arith.mulf %32, %70 : vector<128x64xf32>
    %72 = arith.truncf %71 : vector<128x64xf32> to vector<128x64xbf16>
    %c0_30 = arith.constant 0 : index
    %c0_31 = arith.constant 0 : index
    %73 = vector.load %arg6[%c0_30, %c0_31] : memref<128x64xbf16, #tpu.memory_space<vmem>>, vector<128x64xbf16>
    tpu.vector_store %arg6[%c0_30, %c0_31], %72 {strides = array<i32>} : memref<128x64xbf16, #tpu.memory_space<vmem>>, vector<128x64xbf16>,
    return
  }
  func.func @transform_0(%arg0: i32) -> (i32, i32) {
    %c0_i32 = arith.constant 0 : i32
    %c0_i32_0 = arith.constant 0 : i32
    return %arg0, %c0_i32 : i32, i32
  }
  func.func @transform_1(%arg0: i32) -> (i32, i32) {
    %c0_i32 = arith.constant 0 : i32
    %c0_i32_0 = arith.constant 0 : i32
    %c0_i32_1 = arith.constant 0 : i32
    return %c0_i32, %c0_i32_0 : i32, i32
  }
  func.func @transform_2(%arg0: i32) -> (i32, i32) {
    %c0_i32 = arith.constant 0 : i32
    %c0_i32_0 = arith.constant 0 : i32
    %c0_i32_1 = arith.constant 0 : i32
    return %c0_i32, %c0_i32_0 : i32, i32
  }
  func.func @transform_3(%arg0: i32) -> (i32, i32) {
    %c0_i32 = arith.constant 0 : i32
    %c0_i32_0 = arith.constant 0 : i32
    %c0_i32_1 = arith.constant 0 : i32
    return %c0_i32, %c0_i32_0 : i32, i32
  }
  func.func @transform_4(%arg0: i32) -> (i32, i32) {
    %c0_i32 = arith.constant 0 : i32
    %c0_i32_0 = arith.constant 0 : i32
    %c0_i32_1 = arith.constant 0 : i32
    return %c0_i32, %c0_i32_0 : i32, i32
  }
  func.func @transform_5(%arg0: i32) -> (i32, i32) {
    %c0_i32 = arith.constant 0 : i32
    %c0_i32_0 = arith.constant 0 : i32
    return %arg0, %c0_i32 : i32, i32
  }
}

module attributes {stable_mosaic.version = 11 : i64} {
  func.func @_dwconv_kernel(%arg0: i32, %arg1: i32, %arg2: memref<1x12x12x64xbf16, #tpu.memory_space<vmem>>, %arg3: memref<25x64xbf16, #tpu.memory_space<vmem>>, %arg4: memref<1x64xf32, #tpu.memory_space<vmem>>, %arg5: memref<1x8x8x64xbf16, #tpu.memory_space<vmem>>) attributes {dimension_semantics = [#tpu.dimension_semantics<parallel>, #tpu.dimension_semantics<parallel>], iteration_bounds = array<i64: 2, 1>, scalar_prefetch = 0 : i64, scratch_operands = 0 : i64, tpu.core_type = #tpu.core_type<tc>, window_params = [{transform_indices = @transform_0, window_bounds = array<i64: 1, 12, 12, 64>}, {transform_indices = @transform_1, window_bounds = array<i64: 25, 64>}, {transform_indices = @transform_2, window_bounds = array<i64: 1, 64>}, {transform_indices = @transform_3, window_bounds = array<i64: 1, 8, 8, 64>}]} {
    %c0 = arith.constant 0 : index
    %c0_0 = arith.constant 0 : index
    %c0_1 = arith.constant 0 : index
    %c0_2 = arith.constant 0 : index
    %0 = vector.load %arg2[%c0, %c0_0, %c0_1, %c0_2] : memref<1x12x12x64xbf16, #tpu.memory_space<vmem>>, vector<1x12x12x64xbf16>
    %1 = vector.shape_cast %0 : vector<1x12x12x64xbf16> to vector<12x12x64xbf16>
    %2 = arith.extf %1 : vector<12x12x64xbf16> to vector<12x12x64xf32>
    %c0_3 = arith.constant 0 : index
    %c0_4 = arith.constant 0 : index
    %3 = vector.load %arg3[%c0_3, %c0_4] : memref<25x64xbf16, #tpu.memory_space<vmem>>, vector<25x64xbf16>
    %4 = arith.extf %3 : vector<25x64xbf16> to vector<25x64xf32>
    %cst = arith.constant 0.000000e+00 : f32
    %5 = vector.broadcast %cst : f32 to vector<8x8x64xf32>
    %6 = vector.extract_strided_slice %2 {offsets = [0, 0, 0], sizes = [8, 12, 64], strides = [1, 1, 1]} : vector<12x12x64xf32> to vector<8x12x64xf32>
    %7 = vector.extract_strided_slice %6 {offsets = [0, 0, 0], sizes = [8, 8, 64], strides = [1, 1, 1]} : vector<8x12x64xf32> to vector<8x8x64xf32>
    %8 = vector.extract_strided_slice %4 {offsets = [0, 0], sizes = [1, 64], strides = [1, 1]} : vector<25x64xf32> to vector<1x64xf32>
    %9 = vector.shape_cast %8 : vector<1x64xf32> to vector<64xf32>
    %10 = vector.shape_cast %9 : vector<64xf32> to vector<1x1x64xf32>
    %11 = vector.broadcast %10 : vector<1x1x64xf32> to vector<8x8x64xf32>
    %12 = arith.mulf %7, %11 : vector<8x8x64xf32>
    %13 = arith.addf %5, %12 : vector<8x8x64xf32>
    %14 = vector.extract_strided_slice %6 {offsets = [0, 1, 0], sizes = [8, 8, 64], strides = [1, 1, 1]} : vector<8x12x64xf32> to vector<8x8x64xf32>
    %15 = vector.extract_strided_slice %4 {offsets = [1, 0], sizes = [1, 64], strides = [1, 1]} : vector<25x64xf32> to vector<1x64xf32>
    %16 = vector.shape_cast %15 : vector<1x64xf32> to vector<64xf32>
    %17 = vector.shape_cast %16 : vector<64xf32> to vector<1x1x64xf32>
    %18 = vector.broadcast %17 : vector<1x1x64xf32> to vector<8x8x64xf32>
    %19 = arith.mulf %14, %18 : vector<8x8x64xf32>
    %20 = arith.addf %13, %19 : vector<8x8x64xf32>
    %21 = vector.extract_strided_slice %6 {offsets = [0, 2, 0], sizes = [8, 8, 64], strides = [1, 1, 1]} : vector<8x12x64xf32> to vector<8x8x64xf32>
    %22 = vector.extract_strided_slice %4 {offsets = [2, 0], sizes = [1, 64], strides = [1, 1]} : vector<25x64xf32> to vector<1x64xf32>
    %23 = vector.shape_cast %22 : vector<1x64xf32> to vector<64xf32>
    %24 = vector.shape_cast %23 : vector<64xf32> to vector<1x1x64xf32>
    %25 = vector.broadcast %24 : vector<1x1x64xf32> to vector<8x8x64xf32>
    %26 = arith.mulf %21, %25 : vector<8x8x64xf32>
    %27 = arith.addf %20, %26 : vector<8x8x64xf32>
    %28 = vector.extract_strided_slice %6 {offsets = [0, 3, 0], sizes = [8, 8, 64], strides = [1, 1, 1]} : vector<8x12x64xf32> to vector<8x8x64xf32>
    %29 = vector.extract_strided_slice %4 {offsets = [3, 0], sizes = [1, 64], strides = [1, 1]} : vector<25x64xf32> to vector<1x64xf32>
    %30 = vector.shape_cast %29 : vector<1x64xf32> to vector<64xf32>
    %31 = vector.shape_cast %30 : vector<64xf32> to vector<1x1x64xf32>
    %32 = vector.broadcast %31 : vector<1x1x64xf32> to vector<8x8x64xf32>
    %33 = arith.mulf %28, %32 : vector<8x8x64xf32>
    %34 = arith.addf %27, %33 : vector<8x8x64xf32>
    %35 = vector.extract_strided_slice %6 {offsets = [0, 4, 0], sizes = [8, 8, 64], strides = [1, 1, 1]} : vector<8x12x64xf32> to vector<8x8x64xf32>
    %36 = vector.extract_strided_slice %4 {offsets = [4, 0], sizes = [1, 64], strides = [1, 1]} : vector<25x64xf32> to vector<1x64xf32>
    %37 = vector.shape_cast %36 : vector<1x64xf32> to vector<64xf32>
    %38 = vector.shape_cast %37 : vector<64xf32> to vector<1x1x64xf32>
    %39 = vector.broadcast %38 : vector<1x1x64xf32> to vector<8x8x64xf32>
    %40 = arith.mulf %35, %39 : vector<8x8x64xf32>
    %41 = arith.addf %34, %40 : vector<8x8x64xf32>
    %42 = vector.extract_strided_slice %2 {offsets = [1, 0, 0], sizes = [8, 12, 64], strides = [1, 1, 1]} : vector<12x12x64xf32> to vector<8x12x64xf32>
    %43 = vector.extract_strided_slice %42 {offsets = [0, 0, 0], sizes = [8, 8, 64], strides = [1, 1, 1]} : vector<8x12x64xf32> to vector<8x8x64xf32>
    %44 = vector.extract_strided_slice %4 {offsets = [5, 0], sizes = [1, 64], strides = [1, 1]} : vector<25x64xf32> to vector<1x64xf32>
    %45 = vector.shape_cast %44 : vector<1x64xf32> to vector<64xf32>
    %46 = vector.shape_cast %45 : vector<64xf32> to vector<1x1x64xf32>
    %47 = vector.broadcast %46 : vector<1x1x64xf32> to vector<8x8x64xf32>
    %48 = arith.mulf %43, %47 : vector<8x8x64xf32>
    %49 = arith.addf %41, %48 : vector<8x8x64xf32>
    %50 = vector.extract_strided_slice %42 {offsets = [0, 1, 0], sizes = [8, 8, 64], strides = [1, 1, 1]} : vector<8x12x64xf32> to vector<8x8x64xf32>
    %51 = vector.extract_strided_slice %4 {offsets = [6, 0], sizes = [1, 64], strides = [1, 1]} : vector<25x64xf32> to vector<1x64xf32>
    %52 = vector.shape_cast %51 : vector<1x64xf32> to vector<64xf32>
    %53 = vector.shape_cast %52 : vector<64xf32> to vector<1x1x64xf32>
    %54 = vector.broadcast %53 : vector<1x1x64xf32> to vector<8x8x64xf32>
    %55 = arith.mulf %50, %54 : vector<8x8x64xf32>
    %56 = arith.addf %49, %55 : vector<8x8x64xf32>
    %57 = vector.extract_strided_slice %42 {offsets = [0, 2, 0], sizes = [8, 8, 64], strides = [1, 1, 1]} : vector<8x12x64xf32> to vector<8x8x64xf32>
    %58 = vector.extract_strided_slice %4 {offsets = [7, 0], sizes = [1, 64], strides = [1, 1]} : vector<25x64xf32> to vector<1x64xf32>
    %59 = vector.shape_cast %58 : vector<1x64xf32> to vector<64xf32>
    %60 = vector.shape_cast %59 : vector<64xf32> to vector<1x1x64xf32>
    %61 = vector.broadcast %60 : vector<1x1x64xf32> to vector<8x8x64xf32>
    %62 = arith.mulf %57, %61 : vector<8x8x64xf32>
    %63 = arith.addf %56, %62 : vector<8x8x64xf32>
    %64 = vector.extract_strided_slice %42 {offsets = [0, 3, 0], sizes = [8, 8, 64], strides = [1, 1, 1]} : vector<8x12x64xf32> to vector<8x8x64xf32>
    %65 = vector.extract_strided_slice %4 {offsets = [8, 0], sizes = [1, 64], strides = [1, 1]} : vector<25x64xf32> to vector<1x64xf32>
    %66 = vector.shape_cast %65 : vector<1x64xf32> to vector<64xf32>
    %67 = vector.shape_cast %66 : vector<64xf32> to vector<1x1x64xf32>
    %68 = vector.broadcast %67 : vector<1x1x64xf32> to vector<8x8x64xf32>
    %69 = arith.mulf %64, %68 : vector<8x8x64xf32>
    %70 = arith.addf %63, %69 : vector<8x8x64xf32>
    %71 = vector.extract_strided_slice %42 {offsets = [0, 4, 0], sizes = [8, 8, 64], strides = [1, 1, 1]} : vector<8x12x64xf32> to vector<8x8x64xf32>
    %72 = vector.extract_strided_slice %4 {offsets = [9, 0], sizes = [1, 64], strides = [1, 1]} : vector<25x64xf32> to vector<1x64xf32>
    %73 = vector.shape_cast %72 : vector<1x64xf32> to vector<64xf32>
    %74 = vector.shape_cast %73 : vector<64xf32> to vector<1x1x64xf32>
    %75 = vector.broadcast %74 : vector<1x1x64xf32> to vector<8x8x64xf32>
    %76 = arith.mulf %71, %75 : vector<8x8x64xf32>
    %77 = arith.addf %70, %76 : vector<8x8x64xf32>
    %78 = vector.extract_strided_slice %2 {offsets = [2, 0, 0], sizes = [8, 12, 64], strides = [1, 1, 1]} : vector<12x12x64xf32> to vector<8x12x64xf32>
    %79 = vector.extract_strided_slice %78 {offsets = [0, 0, 0], sizes = [8, 8, 64], strides = [1, 1, 1]} : vector<8x12x64xf32> to vector<8x8x64xf32>
    %80 = vector.extract_strided_slice %4 {offsets = [10, 0], sizes = [1, 64], strides = [1, 1]} : vector<25x64xf32> to vector<1x64xf32>
    %81 = vector.shape_cast %80 : vector<1x64xf32> to vector<64xf32>
    %82 = vector.shape_cast %81 : vector<64xf32> to vector<1x1x64xf32>
    %83 = vector.broadcast %82 : vector<1x1x64xf32> to vector<8x8x64xf32>
    %84 = arith.mulf %79, %83 : vector<8x8x64xf32>
    %85 = arith.addf %77, %84 : vector<8x8x64xf32>
    %86 = vector.extract_strided_slice %78 {offsets = [0, 1, 0], sizes = [8, 8, 64], strides = [1, 1, 1]} : vector<8x12x64xf32> to vector<8x8x64xf32>
    %87 = vector.extract_strided_slice %4 {offsets = [11, 0], sizes = [1, 64], strides = [1, 1]} : vector<25x64xf32> to vector<1x64xf32>
    %88 = vector.shape_cast %87 : vector<1x64xf32> to vector<64xf32>
    %89 = vector.shape_cast %88 : vector<64xf32> to vector<1x1x64xf32>
    %90 = vector.broadcast %89 : vector<1x1x64xf32> to vector<8x8x64xf32>
    %91 = arith.mulf %86, %90 : vector<8x8x64xf32>
    %92 = arith.addf %85, %91 : vector<8x8x64xf32>
    %93 = vector.extract_strided_slice %78 {offsets = [0, 2, 0], sizes = [8, 8, 64], strides = [1, 1, 1]} : vector<8x12x64xf32> to vector<8x8x64xf32>
    %94 = vector.extract_strided_slice %4 {offsets = [12, 0], sizes = [1, 64], strides = [1, 1]} : vector<25x64xf32> to vector<1x64xf32>
    %95 = vector.shape_cast %94 : vector<1x64xf32> to vector<64xf32>
    %96 = vector.shape_cast %95 : vector<64xf32> to vector<1x1x64xf32>
    %97 = vector.broadcast %96 : vector<1x1x64xf32> to vector<8x8x64xf32>
    %98 = arith.mulf %93, %97 : vector<8x8x64xf32>
    %99 = arith.addf %92, %98 : vector<8x8x64xf32>
    %100 = vector.extract_strided_slice %78 {offsets = [0, 3, 0], sizes = [8, 8, 64], strides = [1, 1, 1]} : vector<8x12x64xf32> to vector<8x8x64xf32>
    %101 = vector.extract_strided_slice %4 {offsets = [13, 0], sizes = [1, 64], strides = [1, 1]} : vector<25x64xf32> to vector<1x64xf32>
    %102 = vector.shape_cast %101 : vector<1x64xf32> to vector<64xf32>
    %103 = vector.shape_cast %102 : vector<64xf32> to vector<1x1x64xf32>
    %104 = vector.broadcast %103 : vector<1x1x64xf32> to vector<8x8x64xf32>
    %105 = arith.mulf %100, %104 : vector<8x8x64xf32>
    %106 = arith.addf %99, %105 : vector<8x8x64xf32>
    %107 = vector.extract_strided_slice %78 {offsets = [0, 4, 0], sizes = [8, 8, 64], strides = [1, 1, 1]} : vector<8x12x64xf32> to vector<8x8x64xf32>
    %108 = vector.extract_strided_slice %4 {offsets = [14, 0], sizes = [1, 64], strides = [1, 1]} : vector<25x64xf32> to vector<1x64xf32>
    %109 = vector.shape_cast %108 : vector<1x64xf32> to vector<64xf32>
    %110 = vector.shape_cast %109 : vector<64xf32> to vector<1x1x64xf32>
    %111 = vector.broadcast %110 : vector<1x1x64xf32> to vector<8x8x64xf32>
    %112 = arith.mulf %107, %111 : vector<8x8x64xf32>
    %113 = arith.addf %106, %112 : vector<8x8x64xf32>
    %114 = vector.extract_strided_slice %2 {offsets = [3, 0, 0], sizes = [8, 12, 64], strides = [1, 1, 1]} : vector<12x12x64xf32> to vector<8x12x64xf32>
    %115 = vector.extract_strided_slice %114 {offsets = [0, 0, 0], sizes = [8, 8, 64], strides = [1, 1, 1]} : vector<8x12x64xf32> to vector<8x8x64xf32>
    %116 = vector.extract_strided_slice %4 {offsets = [15, 0], sizes = [1, 64], strides = [1, 1]} : vector<25x64xf32> to vector<1x64xf32>
    %117 = vector.shape_cast %116 : vector<1x64xf32> to vector<64xf32>
    %118 = vector.shape_cast %117 : vector<64xf32> to vector<1x1x64xf32>
    %119 = vector.broadcast %118 : vector<1x1x64xf32> to vector<8x8x64xf32>
    %120 = arith.mulf %115, %119 : vector<8x8x64xf32>
    %121 = arith.addf %113, %120 : vector<8x8x64xf32>
    %122 = vector.extract_strided_slice %114 {offsets = [0, 1, 0], sizes = [8, 8, 64], strides = [1, 1, 1]} : vector<8x12x64xf32> to vector<8x8x64xf32>
    %123 = vector.extract_strided_slice %4 {offsets = [16, 0], sizes = [1, 64], strides = [1, 1]} : vector<25x64xf32> to vector<1x64xf32>
    %124 = vector.shape_cast %123 : vector<1x64xf32> to vector<64xf32>
    %125 = vector.shape_cast %124 : vector<64xf32> to vector<1x1x64xf32>
    %126 = vector.broadcast %125 : vector<1x1x64xf32> to vector<8x8x64xf32>
    %127 = arith.mulf %122, %126 : vector<8x8x64xf32>
    %128 = arith.addf %121, %127 : vector<8x8x64xf32>
    %129 = vector.extract_strided_slice %114 {offsets = [0, 2, 0], sizes = [8, 8, 64], strides = [1, 1, 1]} : vector<8x12x64xf32> to vector<8x8x64xf32>
    %130 = vector.extract_strided_slice %4 {offsets = [17, 0], sizes = [1, 64], strides = [1, 1]} : vector<25x64xf32> to vector<1x64xf32>
    %131 = vector.shape_cast %130 : vector<1x64xf32> to vector<64xf32>
    %132 = vector.shape_cast %131 : vector<64xf32> to vector<1x1x64xf32>
    %133 = vector.broadcast %132 : vector<1x1x64xf32> to vector<8x8x64xf32>
    %134 = arith.mulf %129, %133 : vector<8x8x64xf32>
    %135 = arith.addf %128, %134 : vector<8x8x64xf32>
    %136 = vector.extract_strided_slice %114 {offsets = [0, 3, 0], sizes = [8, 8, 64], strides = [1, 1, 1]} : vector<8x12x64xf32> to vector<8x8x64xf32>
    %137 = vector.extract_strided_slice %4 {offsets = [18, 0], sizes = [1, 64], strides = [1, 1]} : vector<25x64xf32> to vector<1x64xf32>
    %138 = vector.shape_cast %137 : vector<1x64xf32> to vector<64xf32>
    %139 = vector.shape_cast %138 : vector<64xf32> to vector<1x1x64xf32>
    %140 = vector.broadcast %139 : vector<1x1x64xf32> to vector<8x8x64xf32>
    %141 = arith.mulf %136, %140 : vector<8x8x64xf32>
    %142 = arith.addf %135, %141 : vector<8x8x64xf32>
    %143 = vector.extract_strided_slice %114 {offsets = [0, 4, 0], sizes = [8, 8, 64], strides = [1, 1, 1]} : vector<8x12x64xf32> to vector<8x8x64xf32>
    %144 = vector.extract_strided_slice %4 {offsets = [19, 0], sizes = [1, 64], strides = [1, 1]} : vector<25x64xf32> to vector<1x64xf32>
    %145 = vector.shape_cast %144 : vector<1x64xf32> to vector<64xf32>
    %146 = vector.shape_cast %145 : vector<64xf32> to vector<1x1x64xf32>
    %147 = vector.broadcast %146 : vector<1x1x64xf32> to vector<8x8x64xf32>
    %148 = arith.mulf %143, %147 : vector<8x8x64xf32>
    %149 = arith.addf %142, %148 : vector<8x8x64xf32>
    %150 = vector.extract_strided_slice %2 {offsets = [4, 0, 0], sizes = [8, 12, 64], strides = [1, 1, 1]} : vector<12x12x64xf32> to vector<8x12x64xf32>
    %151 = vector.extract_strided_slice %150 {offsets = [0, 0, 0], sizes = [8, 8, 64], strides = [1, 1, 1]} : vector<8x12x64xf32> to vector<8x8x64xf32>
    %152 = vector.extract_strided_slice %4 {offsets = [20, 0], sizes = [1, 64], strides = [1, 1]} : vector<25x64xf32> to vector<1x64xf32>
    %153 = vector.shape_cast %152 : vector<1x64xf32> to vector<64xf32>
    %154 = vector.shape_cast %153 : vector<64xf32> to vector<1x1x64xf32>
    %155 = vector.broadcast %154 : vector<1x1x64xf32> to vector<8x8x64xf32>
    %156 = arith.mulf %151, %155 : vector<8x8x64xf32>
    %157 = arith.addf %149, %156 : vector<8x8x64xf32>
    %158 = vector.extract_strided_slice %150 {offsets = [0, 1, 0], sizes = [8, 8, 64], strides = [1, 1, 1]} : vector<8x12x64xf32> to vector<8x8x64xf32>
    %159 = vector.extract_strided_slice %4 {offsets = [21, 0], sizes = [1, 64], strides = [1, 1]} : vector<25x64xf32> to vector<1x64xf32>
    %160 = vector.shape_cast %159 : vector<1x64xf32> to vector<64xf32>
    %161 = vector.shape_cast %160 : vector<64xf32> to vector<1x1x64xf32>
    %162 = vector.broadcast %161 : vector<1x1x64xf32> to vector<8x8x64xf32>
    %163 = arith.mulf %158, %162 : vector<8x8x64xf32>
    %164 = arith.addf %157, %163 : vector<8x8x64xf32>
    %165 = vector.extract_strided_slice %150 {offsets = [0, 2, 0], sizes = [8, 8, 64], strides = [1, 1, 1]} : vector<8x12x64xf32> to vector<8x8x64xf32>
    %166 = vector.extract_strided_slice %4 {offsets = [22, 0], sizes = [1, 64], strides = [1, 1]} : vector<25x64xf32> to vector<1x64xf32>
    %167 = vector.shape_cast %166 : vector<1x64xf32> to vector<64xf32>
    %168 = vector.shape_cast %167 : vector<64xf32> to vector<1x1x64xf32>
    %169 = vector.broadcast %168 : vector<1x1x64xf32> to vector<8x8x64xf32>
    %170 = arith.mulf %165, %169 : vector<8x8x64xf32>
    %171 = arith.addf %164, %170 : vector<8x8x64xf32>
    %172 = vector.extract_strided_slice %150 {offsets = [0, 3, 0], sizes = [8, 8, 64], strides = [1, 1, 1]} : vector<8x12x64xf32> to vector<8x8x64xf32>
    %173 = vector.extract_strided_slice %4 {offsets = [23, 0], sizes = [1, 64], strides = [1, 1]} : vector<25x64xf32> to vector<1x64xf32>
    %174 = vector.shape_cast %173 : vector<1x64xf32> to vector<64xf32>
    %175 = vector.shape_cast %174 : vector<64xf32> to vector<1x1x64xf32>
    %176 = vector.broadcast %175 : vector<1x1x64xf32> to vector<8x8x64xf32>
    %177 = arith.mulf %172, %176 : vector<8x8x64xf32>
    %178 = arith.addf %171, %177 : vector<8x8x64xf32>
    %179 = vector.extract_strided_slice %150 {offsets = [0, 4, 0], sizes = [8, 8, 64], strides = [1, 1, 1]} : vector<8x12x64xf32> to vector<8x8x64xf32>
    %180 = vector.extract_strided_slice %4 {offsets = [24, 0], sizes = [1, 64], strides = [1, 1]} : vector<25x64xf32> to vector<1x64xf32>
    %181 = vector.shape_cast %180 : vector<1x64xf32> to vector<64xf32>
    %182 = vector.shape_cast %181 : vector<64xf32> to vector<1x1x64xf32>
    %183 = vector.broadcast %182 : vector<1x1x64xf32> to vector<8x8x64xf32>
    %184 = arith.mulf %179, %183 : vector<8x8x64xf32>
    %185 = arith.addf %178, %184 : vector<8x8x64xf32>
    %c0_5 = arith.constant 0 : index
    %c0_6 = arith.constant 0 : index
    %186 = vector.load %arg4[%c0_5, %c0_6] : memref<1x64xf32, #tpu.memory_space<vmem>>, vector<1x64xf32>
    %187 = vector.shape_cast %186 : vector<1x64xf32> to vector<1x1x64xf32>
    %188 = vector.broadcast %187 : vector<1x1x64xf32> to vector<8x8x64xf32>
    %189 = arith.addf %185, %188 : vector<8x8x64xf32>
    %cst_7 = arith.constant 5.000000e-01 : f32
    %190 = vector.broadcast %cst_7 : f32 to vector<8x8x64xf32>
    %191 = arith.mulf %190, %189 : vector<8x8x64xf32>
    %cst_8 = arith.constant 0.707106769 : f32
    %192 = vector.broadcast %cst_8 : f32 to vector<8x8x64xf32>
    %193 = arith.mulf %189, %192 : vector<8x8x64xf32>
    %cst_9 = arith.constant 0.000000e+00 : f32
    %194 = vector.broadcast %cst_9 : f32 to vector<8x8x64xf32>
    %195 = arith.cmpf olt, %193, %194 : vector<8x8x64xf32>
    %cst_10 = arith.constant -1.000000e+00 : f32
    %cst_11 = arith.constant 1.000000e+00 : f32
    %196 = vector.broadcast %cst_10 : f32 to vector<8x8x64xf32>
    %197 = vector.broadcast %cst_11 : f32 to vector<8x8x64xf32>
    %198 = arith.select %195, %196, %197 : vector<8x8x64xi1>, vector<8x8x64xf32>
    %199 = math.absf %193 : vector<8x8x64xf32>
    %cst_12 = arith.constant 0.327591091 : f32
    %200 = vector.broadcast %cst_12 : f32 to vector<8x8x64xf32>
    %201 = arith.mulf %200, %199 : vector<8x8x64xf32>
    %cst_13 = arith.constant 1.000000e+00 : f32
    %202 = vector.broadcast %cst_13 : f32 to vector<8x8x64xf32>
    %203 = arith.addf %202, %201 : vector<8x8x64xf32>
    %cst_14 = arith.constant 1.000000e+00 : f32
    %204 = vector.broadcast %cst_14 : f32 to vector<8x8x64xf32>
    %205 = arith.divf %204, %203 : vector<8x8x64xf32>
    %cst_15 = arith.constant 1.06140542 : f32
    %206 = vector.broadcast %cst_15 : f32 to vector<8x8x64xf32>
    %207 = arith.mulf %206, %205 : vector<8x8x64xf32>
    %cst_16 = arith.constant -1.45315206 : f32
    %208 = vector.broadcast %cst_16 : f32 to vector<8x8x64xf32>
    %209 = arith.addf %207, %208 : vector<8x8x64xf32>
    %210 = arith.mulf %209, %205 : vector<8x8x64xf32>
    %cst_17 = arith.constant 1.42141378 : f32
    %211 = vector.broadcast %cst_17 : f32 to vector<8x8x64xf32>
    %212 = arith.addf %210, %211 : vector<8x8x64xf32>
    %213 = arith.mulf %212, %205 : vector<8x8x64xf32>
    %cst_18 = arith.constant -0.284496725 : f32
    %214 = vector.broadcast %cst_18 : f32 to vector<8x8x64xf32>
    %215 = arith.addf %213, %214 : vector<8x8x64xf32>
    %216 = arith.mulf %215, %205 : vector<8x8x64xf32>
    %cst_19 = arith.constant 0.254829586 : f32
    %217 = vector.broadcast %cst_19 : f32 to vector<8x8x64xf32>
    %218 = arith.addf %216, %217 : vector<8x8x64xf32>
    %219 = arith.mulf %218, %205 : vector<8x8x64xf32>
    %cst_20 = arith.constant 0.000000e+00 : f32
    %220 = vector.broadcast %cst_20 : f32 to vector<8x8x64xf32>
    %221 = arith.subf %220, %199 : vector<8x8x64xf32>
    %222 = arith.mulf %221, %199 : vector<8x8x64xf32>
    %223 = math.exp %222 : vector<8x8x64xf32>
    %224 = arith.mulf %219, %223 : vector<8x8x64xf32>
    %cst_21 = arith.constant 1.000000e+00 : f32
    %225 = vector.broadcast %cst_21 : f32 to vector<8x8x64xf32>
    %226 = arith.subf %225, %224 : vector<8x8x64xf32>
    %227 = arith.mulf %198, %226 : vector<8x8x64xf32>
    %cst_22 = arith.constant 1.000000e+00 : f32
    %228 = vector.broadcast %cst_22 : f32 to vector<8x8x64xf32>
    %229 = arith.addf %228, %227 : vector<8x8x64xf32>
    %230 = arith.mulf %191, %229 : vector<8x8x64xf32>
    %231 = vector.extract_strided_slice %2 {offsets = [2, 2, 0], sizes = [8, 8, 64], strides = [1, 1, 1]} : vector<12x12x64xf32> to vector<8x8x64xf32>
    %232 = arith.addf %231, %230 : vector<8x8x64xf32>
    %233 = arith.truncf %232 : vector<8x8x64xf32> to vector<8x8x64xbf16>
    %c0_23 = arith.constant 0 : index
    %c0_24 = arith.constant 0 : index
    %c0_25 = arith.constant 0 : index
    %c0_26 = arith.constant 0 : index
    %234 = vector.load %arg5[%c0_23, %c0_24, %c0_25, %c0_26] : memref<1x8x8x64xbf16, #tpu.memory_space<vmem>>, vector<1x8x8x64xbf16>
    %235 = vector.shape_cast %234 : vector<1x8x8x64xbf16> to vector<8x8x64xbf16>
    %236 = vector.shape_cast %233 : vector<8x8x64xbf16> to vector<1x8x8x64xbf16>
    tpu.vector_store %arg5[%c0_23, %c0_24, %c0_25, %c0_26], %236 {strides = array<i32>} : memref<1x8x8x64xbf16, #tpu.memory_space<vmem>>, vector<1x8x8x64xbf16>,
    return
  }
  func.func @transform_0(%arg0: i32, %arg1: i32) -> (i32, i32, i32, i32) {
    %c0_i32 = arith.constant 0 : i32
    %c0_i32_0 = arith.constant 0 : i32
    %c0_i32_1 = arith.constant 0 : i32
    return %arg0, %c0_i32, %c0_i32_0, %arg1 : i32, i32, i32, i32
  }
  func.func @transform_1(%arg0: i32, %arg1: i32) -> (i32, i32) {
    %c0_i32 = arith.constant 0 : i32
    %c0_i32_0 = arith.constant 0 : i32
    return %c0_i32, %arg1 : i32, i32
  }
  func.func @transform_2(%arg0: i32, %arg1: i32) -> (i32, i32) {
    %c0_i32 = arith.constant 0 : i32
    %c0_i32_0 = arith.constant 0 : i32
    return %c0_i32, %arg1 : i32, i32
  }
  func.func @transform_3(%arg0: i32, %arg1: i32) -> (i32, i32, i32, i32) {
    %c0_i32 = arith.constant 0 : i32
    %c0_i32_0 = arith.constant 0 : i32
    %c0_i32_1 = arith.constant 0 : i32
    return %arg0, %c0_i32, %c0_i32_0, %arg1 : i32, i32, i32, i32
  }
}

module attributes {stable_mosaic.version = 11 : i64} {
  func.func @_linear_res_kernel(%arg0: i32, %arg1: memref<128x64xbf16, #tpu.memory_space<vmem>>, %arg2: memref<64x32xbf16, #tpu.memory_space<vmem>>, %arg3: memref<1x32xf32, #tpu.memory_space<vmem>>, %arg4: memref<128x32xf32, #tpu.memory_space<vmem>>, %arg5: memref<128x32xf32, #tpu.memory_space<vmem>>) attributes {dimension_semantics = [#tpu.dimension_semantics<parallel>], iteration_bounds = array<i64: 1>, scalar_prefetch = 0 : i64, scratch_operands = 0 : i64, tpu.core_type = #tpu.core_type<tc>, window_params = [{transform_indices = @transform_0, window_bounds = array<i64: 128, 64>}, {pipeline_mode = #tpu.pipeline_mode<synchronous>, transform_indices = @transform_1, window_bounds = array<i64: 64, 32>}, {pipeline_mode = #tpu.pipeline_mode<synchronous>, transform_indices = @transform_2, window_bounds = array<i64: 1, 32>}, {transform_indices = @transform_3, window_bounds = array<i64: 128, 32>}, {transform_indices = @transform_4, window_bounds = array<i64: 128, 32>}]} {
    %c0 = arith.constant 0 : index
    %c0_0 = arith.constant 0 : index
    %0 = vector.load %arg1[%c0, %c0_0] : memref<128x64xbf16, #tpu.memory_space<vmem>>, vector<128x64xbf16>
    %c0_1 = arith.constant 0 : index
    %c0_2 = arith.constant 0 : index
    %1 = vector.load %arg2[%c0_1, %c0_2] : memref<64x32xbf16, #tpu.memory_space<vmem>>, vector<64x32xbf16>
    %cst = arith.constant dense<0.000000e+00> : vector<128x32xf32>
    %2 = tpu.matmul %0, %1, %cst {dimension_numbers = #tpu.dot_dimension_numbers<[1], [0], [0], [1], [0, 0, 1, 1], [], []>} : vector<128x64xbf16>, vector<64x32xbf16>, vector<128x32xf32> -> vector<128x32xf32>
    %c0_3 = arith.constant 0 : index
    %c0_4 = arith.constant 0 : index
    %3 = vector.load %arg3[%c0_3, %c0_4] : memref<1x32xf32, #tpu.memory_space<vmem>>, vector<1x32xf32>
    %4 = vector.broadcast %3 : vector<1x32xf32> to vector<128x32xf32>
    %5 = arith.addf %2, %4 : vector<128x32xf32>
    %c0_5 = arith.constant 0 : index
    %c0_6 = arith.constant 0 : index
    %6 = vector.load %arg4[%c0_5, %c0_6] : memref<128x32xf32, #tpu.memory_space<vmem>>, vector<128x32xf32>
    %7 = arith.addf %5, %6 : vector<128x32xf32>
    %c0_7 = arith.constant 0 : index
    %c0_8 = arith.constant 0 : index
    %8 = vector.load %arg5[%c0_7, %c0_8] : memref<128x32xf32, #tpu.memory_space<vmem>>, vector<128x32xf32>
    tpu.vector_store %arg5[%c0_7, %c0_8], %7 {strides = array<i32>} : memref<128x32xf32, #tpu.memory_space<vmem>>, vector<128x32xf32>,
    return
  }
  func.func @transform_0(%arg0: i32) -> (i32, i32) {
    %c0_i32 = arith.constant 0 : i32
    %c0_i32_0 = arith.constant 0 : i32
    return %arg0, %c0_i32 : i32, i32
  }
  func.func @transform_1(%arg0: i32) -> (i32, i32) {
    %c0_i32 = arith.constant 0 : i32
    %c0_i32_0 = arith.constant 0 : i32
    %c0_i32_1 = arith.constant 0 : i32
    return %c0_i32, %c0_i32_0 : i32, i32
  }
  func.func @transform_2(%arg0: i32) -> (i32, i32) {
    %c0_i32 = arith.constant 0 : i32
    %c0_i32_0 = arith.constant 0 : i32
    %c0_i32_1 = arith.constant 0 : i32
    return %c0_i32, %c0_i32_0 : i32, i32
  }
  func.func @transform_3(%arg0: i32) -> (i32, i32) {
    %c0_i32 = arith.constant 0 : i32
    %c0_i32_0 = arith.constant 0 : i32
    return %arg0, %c0_i32 : i32, i32
  }
  func.func @transform_4(%arg0: i32) -> (i32, i32) {
    %c0_i32 = arith.constant 0 : i32
    %c0_i32_0 = arith.constant 0 : i32
    return %arg0, %c0_i32 : i32, i32
  }
}

module attributes {stable_mosaic.version = 11 : i64} {
  func.func @_td_update_kernel(%arg0: i32, %arg1: memref<1x64x16xf32, #tpu.memory_space<vmem>>, %arg2: memref<1x64x32xf32, #tpu.memory_space<vmem>>, %arg3: memref<1x16x32xf32, #tpu.memory_space<vmem>>, %arg4: memref<1x16xf32, #tpu.memory_space<vmem>>, %arg5: memref<1x16xf32, #tpu.memory_space<vmem>>, %arg6: memref<16x1xf32, #tpu.memory_space<vmem>>, %arg7: memref<1x16x32xf32, #tpu.memory_space<vmem>>) attributes {dimension_semantics = [#tpu.dimension_semantics<parallel>], iteration_bounds = array<i64: 2>, scalar_prefetch = 0 : i64, scratch_operands = 0 : i64, tpu.core_type = #tpu.core_type<tc>, window_params = [{transform_indices = @transform_0, window_bounds = array<i64: 1, 64, 16>}, {transform_indices = @transform_1, window_bounds = array<i64: 1, 64, 32>}, {transform_indices = @transform_2, window_bounds = array<i64: 1, 16, 32>}, {pipeline_mode = #tpu.pipeline_mode<synchronous>, transform_indices = @transform_3, window_bounds = array<i64: 1, 16>}, {pipeline_mode = #tpu.pipeline_mode<synchronous>, transform_indices = @transform_4, window_bounds = array<i64: 1, 16>}, {pipeline_mode = #tpu.pipeline_mode<synchronous>, transform_indices = @transform_5, window_bounds = array<i64: 16, 1>}, {transform_indices = @transform_6, window_bounds = array<i64: 1, 16, 32>}]} {
    %c0 = arith.constant 0 : index
    %c0_0 = arith.constant 0 : index
    %c0_1 = arith.constant 0 : index
    %0 = vector.load %arg1[%c0, %c0_0, %c0_1] : memref<1x64x16xf32, #tpu.memory_space<vmem>>, vector<1x64x16xf32>
    %1 = vector.shape_cast %0 : vector<1x64x16xf32> to vector<64x16xf32>
    %cst = arith.constant dense<0.000000e+00> : vector<16xf32>
    %2 = vector.multi_reduction <add>, %1, %cst [0] : vector<64x16xf32> to vector<16xf32>
    %3 = vector.shape_cast %2 : vector<16xf32> to vector<1x16xf32>
    %cst_2 = arith.constant 6.400000e+01 : f32
    %4 = vector.broadcast %cst_2 : f32 to vector<1x16xf32>
    %5 = arith.divf %3, %4 : vector<1x16xf32>
    %6 = vector.broadcast %5 : vector<1x16xf32> to vector<64x16xf32>
    %7 = arith.subf %1, %6 : vector<64x16xf32>
    %8 = arith.mulf %7, %7 : vector<64x16xf32>
    %cst_3 = arith.constant dense<0.000000e+00> : vector<16xf32>
    %9 = vector.multi_reduction <add>, %8, %cst_3 [0] : vector<64x16xf32> to vector<16xf32>
    %10 = vector.shape_cast %9 : vector<16xf32> to vector<1x16xf32>
    %cst_4 = arith.constant 6.400000e+01 : f32
    %11 = vector.broadcast %cst_4 : f32 to vector<1x16xf32>
    %12 = arith.divf %10, %11 : vector<1x16xf32>
    %13 = vector.broadcast %5 : vector<1x16xf32> to vector<64x16xf32>
    %14 = arith.subf %1, %13 : vector<64x16xf32>
    %cst_5 = arith.constant 9.99999974E-6 : f32
    %15 = vector.broadcast %cst_5 : f32 to vector<1x16xf32>
    %16 = arith.addf %12, %15 : vector<1x16xf32>
    %17 = math.rsqrt %16 : vector<1x16xf32>
    %18 = vector.broadcast %17 : vector<1x16xf32> to vector<64x16xf32>
    %19 = arith.mulf %14, %18 : vector<64x16xf32>
    %c0_6 = arith.constant 0 : index
    %c0_7 = arith.constant 0 : index
    %20 = vector.load %arg4[%c0_6, %c0_7] : memref<1x16xf32, #tpu.memory_space<vmem>>, vector<1x16xf32>
    %21 = vector.broadcast %20 : vector<1x16xf32> to vector<64x16xf32>
    %22 = arith.mulf %19, %21 : vector<64x16xf32>
    %c0_8 = arith.constant 0 : index
    %c0_9 = arith.constant 0 : index
    %23 = vector.load %arg5[%c0_8, %c0_9] : memref<1x16xf32, #tpu.memory_space<vmem>>, vector<1x16xf32>
    %24 = vector.broadcast %23 : vector<1x16xf32> to vector<64x16xf32>
    %25 = arith.addf %22, %24 : vector<64x16xf32>
    %cst_10 = arith.constant dense<0xFF800000> : vector<16xf32>
    %26 = vector.multi_reduction <maximumf>, %25, %cst_10 [0] : vector<64x16xf32> to vector<16xf32>
    %27 = vector.shape_cast %26 : vector<16xf32> to vector<1x16xf32>
    %28 = vector.broadcast %27 : vector<1x16xf32> to vector<64x16xf32>
    %29 = arith.subf %25, %28 : vector<64x16xf32>
    %30 = math.exp %29 : vector<64x16xf32>
    %cst_11 = arith.constant dense<0.000000e+00> : vector<16xf32>
    %31 = vector.multi_reduction <add>, %30, %cst_11 [0] : vector<64x16xf32> to vector<16xf32>
    %32 = vector.shape_cast %31 : vector<16xf32> to vector<1x16xf32>
    %33 = tpu.reciprocal %32 {approx = true} : vector<1x16xf32> -> vector<1x16xf32>
    %34 = vector.broadcast %33 : vector<1x16xf32> to vector<64x16xf32>
    %35 = arith.mulf %30, %34 : vector<64x16xf32>
    %36 = arith.truncf %35 : vector<64x16xf32> to vector<64x16xbf16>
    %c0_12 = arith.constant 0 : index
    %c0_13 = arith.constant 0 : index
    %c0_14 = arith.constant 0 : index
    %37 = vector.load %arg2[%c0_12, %c0_13, %c0_14] : memref<1x64x32xf32, #tpu.memory_space<vmem>>, vector<1x64x32xf32>
    %38 = vector.shape_cast %37 : vector<1x64x32xf32> to vector<64x32xf32>
    %39 = arith.truncf %38 : vector<64x32xf32> to vector<64x32xbf16>
    %cst_15 = arith.constant dense<0.000000e+00> : vector<16x32xf32>
    %40 = tpu.matmul %36, %39, %cst_15 {dimension_numbers = #tpu.dot_dimension_numbers<[0], [0], [1], [1], [0, 1, 1, 1], [], []>} : vector<64x16xbf16>, vector<64x32xbf16>, vector<16x32xf32> -> vector<16x32xf32>
    %c0_16 = arith.constant 0 : index
    %c0_17 = arith.constant 0 : index
    %41 = vector.load %arg6[%c0_16, %c0_17] : memref<16x1xf32, #tpu.memory_space<vmem>>, vector<16x1xf32>
    %cst_18 = arith.constant 0.000000e+00 : f32
    %42 = vector.broadcast %cst_18 : f32 to vector<16x1xf32>
    %43 = arith.subf %42, %41 : vector<16x1xf32>
    %44 = math.exp %43 : vector<16x1xf32>
    %cst_19 = arith.constant 1.000000e+00 : f32
    %45 = vector.broadcast %cst_19 : f32 to vector<16x1xf32>
    %46 = arith.addf %45, %44 : vector<16x1xf32>
    %cst_20 = arith.constant 1.000000e+00 : f32
    %47 = vector.broadcast %cst_20 : f32 to vector<16x1xf32>
    %48 = arith.divf %47, %46 : vector<16x1xf32>
    %c0_21 = arith.constant 0 : index
    %c0_22 = arith.constant 0 : index
    %c0_23 = arith.constant 0 : index
    %49 = vector.load %arg3[%c0_21, %c0_22, %c0_23] : memref<1x16x32xf32, #tpu.memory_space<vmem>>, vector<1x16x32xf32>
    %50 = vector.shape_cast %49 : vector<1x16x32xf32> to vector<16x32xf32>
    %51 = vector.broadcast %48 : vector<16x1xf32> to vector<16x32xf32>
    %52 = arith.mulf %51, %50 : vector<16x32xf32>
    %cst_24 = arith.constant 1.000000e+00 : f32
    %53 = vector.broadcast %cst_24 : f32 to vector<16x1xf32>
    %54 = arith.subf %53, %48 : vector<16x1xf32>
    %55 = vector.broadcast %54 : vector<16x1xf32> to vector<16x32xf32>
    %56 = arith.mulf %55, %40 : vector<16x32xf32>
    %57 = arith.addf %52, %56 : vector<16x32xf32>
    %c0_25 = arith.constant 0 : index
    %c0_26 = arith.constant 0 : index
    %c0_27 = arith.constant 0 : index
    %58 = vector.load %arg7[%c0_25, %c0_26, %c0_27] : memref<1x16x32xf32, #tpu.memory_space<vmem>>, vector<1x16x32xf32>
    %59 = vector.shape_cast %58 : vector<1x16x32xf32> to vector<16x32xf32>
    %60 = vector.shape_cast %57 : vector<16x32xf32> to vector<1x16x32xf32>
    tpu.vector_store %arg7[%c0_25, %c0_26, %c0_27], %60 {strides = array<i32>} : memref<1x16x32xf32, #tpu.memory_space<vmem>>, vector<1x16x32xf32>,
    return
  }
  func.func @transform_0(%arg0: i32) -> (i32, i32, i32) {
    %c0_i32 = arith.constant 0 : i32
    %c0_i32_0 = arith.constant 0 : i32
    %c0_i32_1 = arith.constant 0 : i32
    return %arg0, %c0_i32, %c0_i32_0 : i32, i32, i32
  }
  func.func @transform_1(%arg0: i32) -> (i32, i32, i32) {
    %c0_i32 = arith.constant 0 : i32
    %c0_i32_0 = arith.constant 0 : i32
    %c0_i32_1 = arith.constant 0 : i32
    return %arg0, %c0_i32, %c0_i32_0 : i32, i32, i32
  }
  func.func @transform_2(%arg0: i32) -> (i32, i32, i32) {
    %c0_i32 = arith.constant 0 : i32
    %c0_i32_0 = arith.constant 0 : i32
    %c0_i32_1 = arith.constant 0 : i32
    return %arg0, %c0_i32, %c0_i32_0 : i32, i32, i32
  }
  func.func @transform_3(%arg0: i32) -> (i32, i32) {
    %c0_i32 = arith.constant 0 : i32
    %c0_i32_0 = arith.constant 0 : i32
    %c0_i32_1 = arith.constant 0 : i32
    return %c0_i32, %c0_i32_0 : i32, i32
  }
  func.func @transform_4(%arg0: i32) -> (i32, i32) {
    %c0_i32 = arith.constant 0 : i32
    %c0_i32_0 = arith.constant 0 : i32
    %c0_i32_1 = arith.constant 0 : i32
    return %c0_i32, %c0_i32_0 : i32, i32
  }
  func.func @transform_5(%arg0: i32) -> (i32, i32) {
    %c0_i32 = arith.constant 0 : i32
    %c0_i32_0 = arith.constant 0 : i32
    %c0_i32_1 = arith.constant 0 : i32
    return %c0_i32, %c0_i32_0 : i32, i32
  }
  func.func @transform_6(%arg0: i32) -> (i32, i32, i32) {
    %c0_i32 = arith.constant 0 : i32
    %c0_i32_0 = arith.constant 0 : i32
    %c0_i32_1 = arith.constant 0 : i32
    return %arg0, %c0_i32, %c0_i32_0 : i32, i32, i32
  }
}

</mosaic_0001>

<llo_original>
// kernel: _lambda_.15
$region0: #{_lambda_.15}
  #allocation0 [shape = 'u32[]', space=smem, size = 0x4, offset = 0x4, fixed_abs, tag = 'smem constant byte address 0x4 - core index']
  #allocation1 [shape = 'u32[144,128]{1,0:T(1,128)}', space=vmem, size = 0x12000, scoped, tag = 'internal scratch']
  %s0 = inlined_call_operand.vmem [shape: f32[32,32], index: 0, kind: input, shape index: {}]
  %s1 = inlined_call_operand.vmem [shape: bf16[32,8], index: 1, kind: input, shape index: {}]
  %s2 = inlined_call_operand.hbm [shape: f32[1,8], index: 2, kind: input, shape index: {}]
  %s3 = inlined_call_operand.vmem [shape: f32[32,8], index: 3, kind: output, shape index: {}]
  %s4 = sld [smem:[#allocation0]]
  $region26: #{_lambda_.15} parent=0
    _
  %s6 = ssub.s32 1, %s4
  %s7 = scalar_select 0, %s6, %s4
  $region1: #{_lambda_.15} parent=0
    #allocation2 [shape = 'u8[512]{0}', space=vmem, size = 0x400, scoped, tag = 'input window, operand 2, single buffered']
    #allocation3 [shape = 's32[1]{0}', space=sflag, size = 0x4, scoped, tag = 'scoped memory for _lambda_.15']
    %8 = vsyncpa [#allocation3], 0
    // Predicated region
    $region2: #{_lambda_.15} parent=1 // pred_check
      _
    $region3: #{_lambda_.15} parent=1 // pred_check_branch
      %10 = sbr.rel (0) target = $region5
    $region4: #{_lambda_.15} parent=1 // pred_region
      _
    $region5: #{_lambda_.15} parent=1 // pred_fallthru
      _
    // Predicated region
    $region6: #{_lambda_.15} parent=1 // pred_check
      _
    $region7: #{_lambda_.15} parent=1 // pred_check_branch
      %12 = sbr.rel (0) target = $region9
    $region8: #{_lambda_.15} parent=1 // pred_region
      _
    $region9: #{_lambda_.15} parent=1 // pred_fallthru
      _
    // Predicated region
    $region10: #{_lambda_.15} parent=1 // pred_check
      _
    $region11: #{_lambda_.15} parent=1 // pred_check_branch
      %14 = sbr.rel (0) target = $region13
    $region12: #{_lambda_.15} parent=1 // pred_region
      %s16 = ssub.s32 16, 16
      %17 = vsyncadd [#allocation3], %s16
      %s19 = sshll.u32 [#allocation2], 4
      %s20 = int_to_ptr.vmem [resolvable:$true] %s19
      %22 = dma.hbm_to_vmem [thread:$0]  %s2, 16, %s20, [#allocation3]
    $region13: #{_lambda_.15} parent=1 // pred_fallthru
      _
    // Predicated region
    $region14: #{_lambda_.15} parent=1 // pred_check
      _
    $region15: #{_lambda_.15} parent=1 // pred_check_branch
      %24 = sbr.rel (0) target = $region17
    $region16: #{_lambda_.15} parent=1 // pred_region
      %25 = dma.done [#allocation3], 16
    $region17: #{_lambda_.15} parent=1 // pred_fallthru
      _
    %v27 = vld [vmem:[%s0] sm:$0xff]
    %v28 = vld [vmem:[%s0 + $0x8] sm:$0xff]
    %v29 = vld [vmem:[%s0 + $0x10] sm:$0xff]
    %v30 = vld [vmem:[%s0 + $0x18] sm:$0xff]
    %v31 = vpack.c.bf16 %v28, %v27
    %v32 = vpack.c.bf16 %v30, %v29
    %v33 = vld [vmem:[%s1] sm:$0xf]
    %v34 = vld [vmem:[%s1 + $0x4] sm:$0xf]
    %v35 = vld [vmem:[%s1 + $0x8] sm:$0xf]
    %v36 = vld [vmem:[%s1 + $0xc] sm:$0xf]
    %v37 = vld [vmem:[#allocation2] sm:$0x1]
    %v39 = vlaneseq
    %v40 = vshrl.u32 %v39, 7
    %v41 = vsub.s32 0, %v40
    %v42 = vrot.slane %v37, %v41
    %v48 = vunpack.c.l.b16 %v33
    %v49 = vunpack.c.l.b16 %v34
    %v50 = vunpack.c.l.b16 %v35
    %v51 = vunpack.c.l.b16 %v36
    %v52 = vpack.c.b16 %v49, %v48
    %v53 = vpack.c.b16 %v51, %v50
    %vm56 = vcmask 261120
    %v58 = vsel %vm56, %v31, 0
    %v61 = vsel %vm56, %v32, 0
    %63 = vmatprep.subr.bf16.mxu0 0
    %64 = vmatpush1.bf16.msra.mxu0 %v52
    %65 = vmatprep.subr.bf16.mxu0 0
    %66 = vmatpush1.bf16.msra.mxu0 %v53
    %67 = vmatprep.subr.bf16.mxu0 0
    %68 = vmatpush1.bf16.msra.mxu0 0
    %69 = vmatprep.subr.bf16.mxu0 0
    %70 = vmatpush1.bf16.msra.mxu0 0
    %71 = vmatprep.subr.bf16.mxu0 0
    %72 = vmatpush1.bf16.msra.mxu0 0
    %73 = vmatprep.subr.bf16.mxu0 0
    %74 = vmatpush1.bf16.msra.mxu0 0
    %75 = vmatprep.subr.bf16.mxu0 0
    %76 = vmatpush1.bf16.msra.mxu0 0
    %77 = vmatprep.subr.bf16.mxu0 0
    %78 = vmatpush1.bf16.msra.mxu0 0
    %79 = vmatprep.subr.bf16.mxu0 0
    %80 = vmatpush1.bf16.msra.mxu0 0
    %81 = vmatprep.subr.bf16.mxu0 0
    %82 = vmatpush1.bf16.msra.mxu0 0
    %83 = vmatprep.subr.bf16.mxu0 0
    %84 = vmatpush1.bf16.msra.mxu0 0
    %85 = vmatprep.subr.bf16.mxu0 0
    %86 = vmatpush1.bf16.msra.mxu0 0
    %87 = vmatprep.subr.bf16.mxu0 0
    %88 = vmatpush1.bf16.msra.mxu0 0
    %89 = vmatprep.subr.bf16.mxu0 0
    %90 = vmatpush1.bf16.msra.mxu0 0
    %91 = vmatprep.subr.bf16.mxu0 0
    %92 = vmatpush1.bf16.msra.mxu0 0
    %93 = vmatprep.subr.bf16.mxu0 0
    %94 = vmatpush1.bf16.msra.mxu0 0
    %95 = vmatprep.mubr.bf16.mxu0 0
    %96 = vmatmul.mubr.bf16.gmra.mrb[0].mxu0 %v58
    %v97 = vpop.f32.mrb[0].mxu0
    %v98 = vadd.f32 %v42, %v97
    %v99 = vpop.f32.mrb[0].mxu0
    %v100 = vpop.f32.mrb[0].mxu0
    %v101 = vadd.f32 %v42, %v100
    %v102 = vpop.f32.mrb[0].mxu0
    %103 = vmatprep.mubr.bf16.mxu0 0
    %104 = vmatmul.mubr.bf16.gmra.mrb[0].mxu0 %v61
    %v105 = vpop.f32.mrb[0].mxu0
    %v106 = vadd.f32 %v42, %v105
    %v107 = vpop.f32.mrb[0].mxu0
    %v108 = vpop.f32.mrb[0].mxu0
    %v109 = vadd.f32 %v42, %v108
    %v110 = vpop.f32.mrb[0].mxu0
    %111 = vdwg.mxu0
    %vm112 = vcmask 64512
    %113 = vst.msk [vmem:[%s3] sm:$0xff] %vm112, %v98
    %114 = vst.msk [vmem:[%s3 + $0x8] sm:$0xff] %vm112, %v101
    %115 = vst.msk [vmem:[%s3 + $0x10] sm:$0xff] %vm112, %v106
    %116 = vst.msk [vmem:[%s3 + $0x18] sm:$0xff] %vm112, %v109
    // Predicated region
    $region18: #{_lambda_.15} parent=1 // pred_check
      _
    $region19: #{_lambda_.15} parent=1 // pred_check_branch
      %118 = sbr.rel (0) target = $region21
    $region20: #{_lambda_.15} parent=1 // pred_region
      _
    $region21: #{_lambda_.15} parent=1 // pred_fallthru
      _
    // Predicated region
    $region22: #{_lambda_.15} parent=1 // pred_check
      _
    $region23: #{_lambda_.15} parent=1 // pred_check_branch
      %120 = sbr.rel (0) target = $region25
    $region24: #{_lambda_.15} parent=1 // pred_region
      _
    $region25: #{_lambda_.15} parent=1 // pred_fallthru
      _
    %121 = vsyncpa [#allocation3], 1

// kernel: _lambda_.16
$region0: #{_lambda_.16}
  #allocation0 [shape = 'u32[]', space=smem, size = 0x4, offset = 0x4, fixed_abs, tag = 'smem constant byte address 0x4 - core index']
  #allocation1 [shape = 'u32[144,128]{1,0:T(1,128)}', space=vmem, size = 0x12000, scoped, tag = 'internal scratch']
  %s0 = inlined_call_operand.vmem [shape: f32[32,32], index: 0, kind: input, shape index: {}]
  %s1 = inlined_call_operand.hbm [shape: bf16[32,32], index: 1, kind: input, shape index: {}]
  %s2 = inlined_call_operand.hbm [shape: f32[1,32], index: 2, kind: input, shape index: {}]
  %s3 = inlined_call_operand.vmem [shape: f32[32,32], index: 3, kind: output, shape index: {}]
  %s4 = sld [smem:[#allocation0]]
  $region30: #{_lambda_.16} parent=0
    _
  %s6 = ssub.s32 1, %s4
  %s7 = scalar_select 0, %s6, %s4
  $region1: #{_lambda_.16} parent=0
    #allocation2 [shape = 'u8[8192]{0}', space=vmem, size = 0x2000, scoped, tag = 'input window, operand 1, single buffered']
    #allocation3 [shape = 's32[1]{0}', space=sflag, size = 0x4, scoped, tag = 'scoped memory for _lambda_.16']
    #allocation4 [shape = 'u8[512]{0}', space=vmem, size = 0x400, scoped, tag = 'input window, operand 2, single buffered']
    #allocation5 [shape = 's32[1]{0}', space=sflag, size = 0x4, scoped, tag = 'scoped memory for _lambda_.16']
    %8 = vsyncpa [#allocation3], 0
    %9 = vsyncpa [#allocation5], 0
    // Predicated region
    $region2: #{_lambda_.16} parent=1 // pred_check
      _
    $region3: #{_lambda_.16} parent=1 // pred_check_branch
      %11 = sbr.rel (0) target = $region5
    $region4: #{_lambda_.16} parent=1 // pred_region
      _
    $region5: #{_lambda_.16} parent=1 // pred_fallthru
      _
    // Predicated region
    $region6: #{_lambda_.16} parent=1 // pred_check
      _
    $region7: #{_lambda_.16} parent=1 // pred_check_branch
      %13 = sbr.rel (0) target = $region9
    $region8: #{_lambda_.16} parent=1 // pred_region
      %s15 = ssub.s32 256, 256
      %16 = vsyncadd [#allocation3], %s15
      %s17 = sshll.u32 [#allocation2], 4
      %s18 = int_to_ptr.vmem [resolvable:$true] %s17
      %23 = dma.hbm_to_vmem [thread:$0]  %s1, 256, %s18, [#allocation3], 64, 64, 4
    $region9: #{_lambda_.16} parent=1 // pred_fallthru
      _
    // Predicated region
    $region10: #{_lambda_.16} parent=1 // pred_check
      _
    $region11: #{_lambda_.16} parent=1 // pred_check_branch
      %25 = sbr.rel (0) target = $region13
    $region12: #{_lambda_.16} parent=1 // pred_region
      %s27 = ssub.s32 16, 16
      %28 = vsyncadd [#allocation5], %s27
      %s30 = sshll.u32 [#allocation4], 4
      %s31 = int_to_ptr.vmem [resolvable:$true] %s30
      %33 = dma.hbm_to_vmem [thread:$0]  %s2, 16, %s31, [#allocation5]
    $region13: #{_lambda_.16} parent=1 // pred_fallthru
      _
    // Predicated region
    $region14: #{_lambda_.16} parent=1 // pred_check
      _
    $region15: #{_lambda_.16} parent=1 // pred_check_branch
      %35 = sbr.rel (0) target = $region17
    $region16: #{_lambda_.16} parent=1 // pred_region
      %36 = dma.done [#allocation3], 256
    $region17: #{_lambda_.16} parent=1 // pred_fallthru
      _
    // Predicated region
    $region18: #{_lambda_.16} parent=1 // pred_check
      _
    $region19: #{_lambda_.16} parent=1 // pred_check_branch
      %38 = sbr.rel (0) target = $region21
    $region20: #{_lambda_.16} parent=1 // pred_region
      %39 = dma.done [#allocation5], 16
    $region21: #{_lambda_.16} parent=1 // pred_fallthru
      _
    %v41 = vld [vmem:[%s0] sm:$0xff]
    %v42 = vld [vmem:[%s0 + $0x8] sm:$0xff]
    %v43 = vld [vmem:[%s0 + $0x10] sm:$0xff]
    %v44 = vld [vmem:[%s0 + $0x18] sm:$0xff]
    %v45 = vpack.c.bf16 %v42, %v41
    %v46 = vpack.c.bf16 %v44, %v43
    %v47 = vld [vmem:[#allocation2] sm:$0xf]
    %v48 = vld [vmem:[#allocation2 + $0x4] sm:$0xf]
    %v49 = vld [vmem:[#allocation2 + $0x8] sm:$0xf]
    %v50 = vld [vmem:[#allocation2 + $0xc] sm:$0xf]
    %v51 = vld [vmem:[#allocation4] sm:$0x1]
    %v53 = vlaneseq
    %v54 = vshrl.u32 %v53, 7
    %v55 = vsub.s32 0, %v54
    %v56 = vrot.slane %v51, %v55
    %v62 = vunpack.c.l.b16 %v47
    %v63 = vunpack.c.l.b16 %v48
    %v64 = vunpack.c.l.b16 %v49
    %v65 = vunpack.c.l.b16 %v50
    %v66 = vpack.c.b16 %v63, %v62
    %v67 = vpack.c.b16 %v65, %v64
    %vm70 = vcmask 261120
    %v72 = vsel %vm70, %v45, 0
    %v75 = vsel %vm70, %v46, 0
    %77 = vmatprep.subr.bf16.mxu0 0
    %78 = vmatpush1.bf16.msra.mxu0 %v66
    %79 = vmatprep.subr.bf16.mxu0 0
    %80 = vmatpush1.bf16.msra.mxu0 %v67
    %81 = vmatprep.subr.bf16.mxu0 0
    %82 = vmatpush1.bf16.msra.mxu0 0
    %83 = vmatprep.subr.bf16.mxu0 0
    %84 = vmatpush1.bf16.msra.mxu0 0
    %85 = vmatprep.subr.bf16.mxu0 0
    %86 = vmatpush1.bf16.msra.mxu0 0
    %87 = vmatprep.subr.bf16.mxu0 0
    %88 = vmatpush1.bf16.msra.mxu0 0
    %89 = vmatprep.subr.bf16.mxu0 0
    %90 = vmatpush1.bf16.msra.mxu0 0
    %91 = vmatprep.subr.bf16.mxu0 0
    %92 = vmatpush1.bf16.msra.mxu0 0
    %93 = vmatprep.subr.bf16.mxu0 0
    %94 = vmatpush1.bf16.msra.mxu0 0
    %95 = vmatprep.subr.bf16.mxu0 0
    %96 = vmatpush1.bf16.msra.mxu0 0
    %97 = vmatprep.subr.bf16.mxu0 0
    %98 = vmatpush1.bf16.msra.mxu0 0
    %99 = vmatprep.subr.bf16.mxu0 0
    %100 = vmatpush1.bf16.msra.mxu0 0
    %101 = vmatprep.subr.bf16.mxu0 0
    %102 = vmatpush1.bf16.msra.mxu0 0
    %103 = vmatprep.subr.bf16.mxu0 0
    %104 = vmatpush1.bf16.msra.mxu0 0
    %105 = vmatprep.subr.bf16.mxu0 0
    %106 = vmatpush1.bf16.msra.mxu0 0
    %107 = vmatprep.subr.bf16.mxu0 0
    %108 = vmatpush1.bf16.msra.mxu0 0
    %109 = vmatprep.mubr.bf16.mxu0 0
    %110 = vmatmul.mubr.bf16.gmra.mrb[0].mxu0 %v72
    %v111 = vpop.f32.mrb[0].mxu0
    %v112 = vadd.f32 %v56, %v111
    %v113 = vpop.f32.mrb[0].mxu0
    %v114 = vpop.f32.mrb[0].mxu0
    %v115 = vadd.f32 %v56, %v114
    %v116 = vpop.f32.mrb[0].mxu0
    %117 = vmatprep.mubr.bf16.mxu0 0
    %118 = vmatmul.mubr.bf16.gmra.mrb[0].mxu0 %v75
    %v119 = vpop.f32.mrb[0].mxu0
    %v120 = vadd.f32 %v56, %v119
    %v121 = vpop.f32.mrb[0].mxu0
    %v122 = vpop.f32.mrb[0].mxu0
    %v123 = vadd.f32 %v56, %v122
    %v124 = vpop.f32.mrb[0].mxu0
    %125 = vdwg.mxu0
    %126 = vst.msk [vmem:[%s3] sm:$0xff] %vm70, %v112
    %127 = vst.msk [vmem:[%s3 + $0x8] sm:$0xff] %vm70, %v115
    %128 = vst.msk [vmem:[%s3 + $0x10] sm:$0xff] %vm70, %v120
    %129 = vst.msk [vmem:[%s3 + $0x18] sm:$0xff] %vm70, %v123
    // Predicated region
    $region22: #{_lambda_.16} parent=1 // pred_check
      _
    $region23: #{_lambda_.16} parent=1 // pred_check_branch
      %131 = sbr.rel (0) target = $region25
    $region24: #{_lambda_.16} parent=1 // pred_region
      _
    $region25: #{_lambda_.16} parent=1 // pred_fallthru
      _
    // Predicated region
    $region26: #{_lambda_.16} parent=1 // pred_check
      _
    $region27: #{_lambda_.16} parent=1 // pred_check_branch
      %133 = sbr.rel (0) target = $region29
    $region28: #{_lambda_.16} parent=1 // pred_region
      _
    $region29: #{_lambda_.16} parent=1 // pred_fallthru
      _
    %134 = vsyncpa [#allocation3], 1
    %135 = vsyncpa [#allocation5], 1

// kernel: _lambda_.14
$region0: #{_lambda_.14}
  #allocation0 [shape = 'u32[]', space=smem, size = 0x4, offset = 0x4, fixed_abs, tag = 'smem constant byte address 0x4 - core index']
  #allocation1 [shape = 'u32[144,128]{1,0:T(1,128)}', space=vmem, size = 0x12000, scoped, tag = 'internal scratch']
  %s0 = inlined_call_operand.vmem [shape: f32[128,32], index: 0, kind: input, shape index: {}]
  %s1 = inlined_call_operand.vmem [shape: bf16[32,8], index: 1, kind: input, shape index: {}]
  %s2 = inlined_call_operand.hbm [shape: f32[1,8], index: 2, kind: input, shape index: {}]
  %s3 = inlined_call_operand.vmem [shape: f32[128,8], index: 3, kind: output, shape index: {}]
  %s4 = sld [smem:[#allocation0]]
  $region26: #{_lambda_.14} parent=0
    _
  %s6 = ssub.s32 1, %s4
  %s7 = scalar_select 0, %s6, %s4
  $region1: #{_lambda_.14} parent=0
    #allocation2 [shape = 'u8[512]{0}', space=vmem, size = 0x400, scoped, tag = 'input window, operand 2, single buffered']
    #allocation3 [shape = 's32[1]{0}', space=sflag, size = 0x4, scoped, tag = 'scoped memory for _lambda_.14']
    %8 = vsyncpa [#allocation3], 0
    // Predicated region
    $region2: #{_lambda_.14} parent=1 // pred_check
      _
    $region3: #{_lambda_.14} parent=1 // pred_check_branch
      %10 = sbr.rel (0) target = $region5
    $region4: #{_lambda_.14} parent=1 // pred_region
      _
    $region5: #{_lambda_.14} parent=1 // pred_fallthru
      _
    // Predicated region
    $region6: #{_lambda_.14} parent=1 // pred_check
      _
    $region7: #{_lambda_.14} parent=1 // pred_check_branch
      %12 = sbr.rel (0) target = $region9
    $region8: #{_lambda_.14} parent=1 // pred_region
      _
    $region9: #{_lambda_.14} parent=1 // pred_fallthru
      _
    // Predicated region
    $region10: #{_lambda_.14} parent=1 // pred_check
      _
    $region11: #{_lambda_.14} parent=1 // pred_check_branch
      %14 = sbr.rel (0) target = $region13
    $region12: #{_lambda_.14} parent=1 // pred_region
      %s16 = ssub.s32 16, 16
      %17 = vsyncadd [#allocation3], %s16
      %s19 = sshll.u32 [#allocation2], 4
      %s20 = int_to_ptr.vmem [resolvable:$true] %s19
      %22 = dma.hbm_to_vmem [thread:$0]  %s2, 16, %s20, [#allocation3]
    $region13: #{_lambda_.14} parent=1 // pred_fallthru
      _
    // Predicated region
    $region14: #{_lambda_.14} parent=1 // pred_check
      _
    $region15: #{_lambda_.14} parent=1 // pred_check_branch
      %24 = sbr.rel (0) target = $region17
    $region16: #{_lambda_.14} parent=1 // pred_region
      %25 = dma.done [#allocation3], 16
    $region17: #{_lambda_.14} parent=1 // pred_fallthru
      _
    %v27 = vld [vmem:[%s0] sm:$0xff]
    %v28 = vld [vmem:[%s0 + $0x8] sm:$0xff]
    %v29 = vld [vmem:[%s0 + $0x10] sm:$0xff]
    %v30 = vld [vmem:[%s0 + $0x18] sm:$0xff]
    %v31 = vld [vmem:[%s0 + $0x20] sm:$0xff]
    %v32 = vld [vmem:[%s0 + $0x28] sm:$0xff]
    %v33 = vld [vmem:[%s0 + $0x30] sm:$0xff]
    %v34 = vld [vmem:[%s0 + $0x38] sm:$0xff]
    %v35 = vld [vmem:[%s0 + $0x40] sm:$0xff]
    %v36 = vld [vmem:[%s0 + $0x48] sm:$0xff]
    %v37 = vld [vmem:[%s0 + $0x50] sm:$0xff]
    %v38 = vld [vmem:[%s0 + $0x58] sm:$0xff]
    %v39 = vld [vmem:[%s0 + $0x60] sm:$0xff]
    %v40 = vld [vmem:[%s0 + $0x68] sm:$0xff]
    %v41 = vld [vmem:[%s0 + $0x70] sm:$0xff]
    %v42 = vld [vmem:[%s0 + $0x78] sm:$0xff]
    %v43 = vpack.c.bf16 %v28, %v27
    %v44 = vpack.c.bf16 %v30, %v29
    %v45 = vpack.c.bf16 %v32, %v31
    %v46 = vpack.c.bf16 %v34, %v33
    %v47 = vpack.c.bf16 %v36, %v35
    %v48 = vpack.c.bf16 %v38, %v37
    %v49 = vpack.c.bf16 %v40, %v39
    %v50 = vpack.c.bf16 %v42, %v41
    %v51 = vld [vmem:[%s1] sm:$0xf]
    %v52 = vld [vmem:[%s1 + $0x4] sm:$0xf]
    %v53 = vld [vmem:[%s1 + $0x8] sm:$0xf]
    %v54 = vld [vmem:[%s1 + $0xc] sm:$0xf]
    %v55 = vld [vmem:[#allocation2] sm:$0x1]
    %v57 = vlaneseq
    %v58 = vshrl.u32 %v57, 7
    %v59 = vsub.s32 0, %v58
    %v60 = vrot.slane %v55, %v59
    %v66 = vunpack.c.l.b16 %v51
    %v67 = vunpack.c.l.b16 %v52
    %v68 = vunpack.c.l.b16 %v53
    %v69 = vunpack.c.l.b16 %v54
    %v70 = vpack.c.b16 %v67, %v66
    %v71 = vpack.c.b16 %v69, %v68
    %vm74 = vcmask 261120
    %v76 = vsel %vm74, %v43, 0
    %v79 = vsel %vm74, %v44, 0
    %v82 = vsel %vm74, %v45, 0
    %v85 = vsel %vm74, %v46, 0
    %v88 = vsel %vm74, %v47, 0
    %v91 = vsel %vm74, %v48, 0
    %v94 = vsel %vm74, %v49, 0
    %v97 = vsel %vm74, %v50, 0
    %99 = vmatprep.subr.bf16.mxu0 0
    %100 = vmatpush1.bf16.msra.mxu0 %v70
    %101 = vmatprep.subr.bf16.mxu0 0
    %102 = vmatpush1.bf16.msra.mxu0 %v71
    %103 = vmatprep.subr.bf16.mxu0 0
    %104 = vmatpush1.bf16.msra.mxu0 0
    %105 = vmatprep.subr.bf16.mxu0 0
    %106 = vmatpush1.bf16.msra.mxu0 0
    %107 = vmatprep.subr.bf16.mxu0 0
    %108 = vmatpush1.bf16.msra.mxu0 0
    %109 = vmatprep.subr.bf16.mxu0 0
    %110 = vmatpush1.bf16.msra.mxu0 0
    %111 = vmatprep.subr.bf16.mxu0 0
    %112 = vmatpush1.bf16.msra.mxu0 0
    %113 = vmatprep.subr.bf16.mxu0 0
    %114 = vmatpush1.bf16.msra.mxu0 0
    %115 = vmatprep.subr.bf16.mxu0 0
    %116 = vmatpush1.bf16.msra.mxu0 0
    %117 = vmatprep.subr.bf16.mxu0 0
    %118 = vmatpush1.bf16.msra.mxu0 0
    %119 = vmatprep.subr.bf16.mxu0 0
    %120 = vmatpush1.bf16.msra.mxu0 0
    %121 = vmatprep.subr.bf16.mxu0 0
    %122 = vmatpush1.bf16.msra.mxu0 0
    %123 = vmatprep.subr.bf16.mxu0 0
    %124 = vmatpush1.bf16.msra.mxu0 0
    %125 = vmatprep.subr.bf16.mxu0 0
    %126 = vmatpush1.bf16.msra.mxu0 0
    %127 = vmatprep.subr.bf16.mxu0 0
    %128 = vmatpush1.bf16.msra.mxu0 0
    %129 = vmatprep.subr.bf16.mxu0 0
    %130 = vmatpush1.bf16.msra.mxu0 0
    %131 = vmatprep.mubr.bf16.mxu0 0
    %132 = vmatmul.mubr.bf16.gmra.mrb[0].mxu0 %v76
    %v133 = vpop.f32.mrb[0].mxu0
    %v134 = vadd.f32 %v60, %v133
    %v135 = vpop.f32.mrb[0].mxu0
    %v136 = vpop.f32.mrb[0].mxu0
    %v137 = vadd.f32 %v60, %v136
    %v138 = vpop.f32.mrb[0].mxu0
    %139 = vmatprep.mubr.bf16.mxu0 0
    %140 = vmatmul.mubr.bf16.gmra.mrb[0].mxu0 %v79
    %v141 = vpop.f32.mrb[0].mxu0
    %v142 = vadd.f32 %v60, %v141
    %v143 = vpop.f32.mrb[0].mxu0
    %v144 = vpop.f32.mrb[0].mxu0
    %v145 = vadd.f32 %v60, %v144
    %v146 = vpop.f32.mrb[0].mxu0
    %147 = vmatprep.mubr.bf16.mxu0 0
    %148 = vmatmul.mubr.bf16.gmra.mrb[0].mxu0 %v82
    %v149 = vpop.f32.mrb[0].mxu0
    %v150 = vadd.f32 %v60, %v149
    %v151 = vpop.f32.mrb[0].mxu0
    %v152 = vpop.f32.mrb[0].mxu0
    %v153 = vadd.f32 %v60, %v152
    %v154 = vpop.f32.mrb[0].mxu0
    %155 = vmatprep.mubr.bf16.mxu0 0
    %156 = vmatmul.mubr.bf16.gmra.mrb[0].mxu0 %v85
    %v157 = vpop.f32.mrb[0].mxu0
    %v158 = vadd.f32 %v60, %v157
    %v159 = vpop.f32.mrb[0].mxu0
    %v160 = vpop.f32.mrb[0].mxu0
    %v161 = vadd.f32 %v60, %v160
    %v162 = vpop.f32.mrb[0].mxu0
    %163 = vmatprep.mubr.bf16.mxu0 0
    %164 = vmatmul.mubr.bf16.gmra.mrb[0].mxu0 %v88
    %v165 = vpop.f32.mrb[0].mxu0
    %v166 = vadd.f32 %v60, %v165
    %v167 = vpop.f32.mrb[0].mxu0
    %v168 = vpop.f32.mrb[0].mxu0
    %v169 = vadd.f32 %v60, %v168
    %v170 = vpop.f32.mrb[0].mxu0
    %171 = vmatprep.mubr.bf16.mxu0 0
    %172 = vmatmul.mubr.bf16.gmra.mrb[0].mxu0 %v91
    %v173 = vpop.f32.mrb[0].mxu0
    %v174 = vadd.f32 %v60, %v173
    %v175 = vpop.f32.mrb[0].mxu0
    %v176 = vpop.f32.mrb[0].mxu0
    %v177 = vadd.f32 %v60, %v176
    %v178 = vpop.f32.mrb[0].mxu0
    %179 = vmatprep.mubr.bf16.mxu0 0
    %180 = vmatmul.mubr.bf16.gmra.mrb[0].mxu0 %v94
    %v181 = vpop.f32.mrb[0].mxu0
    %v182 = vadd.f32 %v60, %v181
    %v183 = vpop.f32.mrb[0].mxu0
    %v184 = vpop.f32.mrb[0].mxu0
    %v185 = vadd.f32 %v60, %v184
    %v186 = vpop.f32.mrb[0].mxu0
    %187 = vmatprep.mubr.bf16.mxu0 0
    %188 = vmatmul.mubr.bf16.gmra.mrb[0].mxu0 %v97
    %v189 = vpop.f32.mrb[0].mxu0
    %v190 = vadd.f32 %v60, %v189
    %v191 = vpop.f32.mrb[0].mxu0
    %v192 = vpop.f32.mrb[0].mxu0
    %v193 = vadd.f32 %v60, %v192
    %v194 = vpop.f32.mrb[0].mxu0
    %195 = vdwg.mxu0
    %vm196 = vcmask 64512
    %197 = vst.msk [vmem:[%s3] sm:$0xff] %vm196, %v134
    %198 = vst.msk [vmem:[%s3 + $0x8] sm:$0xff] %vm196, %v137
    %199 = vst.msk [vmem:[%s3 + $0x10] sm:$0xff] %vm196, %v142
    %200 = vst.msk [vmem:[%s3 + $0x18] sm:$0xff] %vm196, %v145
    %201 = vst.msk [vmem:[%s3 + $0x20] sm:$0xff] %vm196, %v150
    %202 = vst.msk [vmem:[%s3 + $0x28] sm:$0xff] %vm196, %v153
    %203 = vst.msk [vmem:[%s3 + $0x30] sm:$0xff] %vm196, %v158
    %204 = vst.msk [vmem:[%s3 + $0x38] sm:$0xff] %vm196, %v161
    %205 = vst.msk [vmem:[%s3 + $0x40] sm:$0xff] %vm196, %v166
    %206 = vst.msk [vmem:[%s3 + $0x48] sm:$0xff] %vm196, %v169
    %207 = vst.msk [vmem:[%s3 + $0x50] sm:$0xff] %vm196, %v174
    %208 = vst.msk [vmem:[%s3 + $0x58] sm:$0xff] %vm196, %v177
    %209 = vst.msk [vmem:[%s3 + $0x60] sm:$0xff] %vm196, %v182
    %210 = vst.msk [vmem:[%s3 + $0x68] sm:$0xff] %vm196, %v185
    %211 = vst.msk [vmem:[%s3 + $0x70] sm:$0xff] %vm196, %v190
    %212 = vst.msk [vmem:[%s3 + $0x78] sm:$0xff] %vm196, %v193
    // Predicated region
    $region18: #{_lambda_.14} parent=1 // pred_check
      _
    $region19: #{_lambda_.14} parent=1 // pred_check_branch
      %214 = sbr.rel (0) target = $region21
    $region20: #{_lambda_.14} parent=1 // pred_region
      _
    $region21: #{_lambda_.14} parent=1 // pred_fallthru
      _
    // Predicated region
    $region22: #{_lambda_.14} parent=1 // pred_check
      _
    $region23: #{_lambda_.14} parent=1 // pred_check_branch
      %216 = sbr.rel (0) target = $region25
    $region24: #{_lambda_.14} parent=1 // pred_region
      _
    $region25: #{_lambda_.14} parent=1 // pred_fallthru
      _
    %217 = vsyncpa [#allocation3], 1

// kernel: _lambda_.13
$region0: #{_lambda_.13}
  #allocation0 [shape = 'u32[]', space=smem, size = 0x4, offset = 0x4, fixed_abs, tag = 'smem constant byte address 0x4 - core index']
  #allocation1 [shape = 'u32[144,128]{1,0:T(1,128)}', space=vmem, size = 0x12000, scoped, tag = 'internal scratch']
  %s0 = inlined_call_operand.vmem [shape: f32[128,32], index: 0, kind: input, shape index: {}]
  %s1 = inlined_call_operand.hbm [shape: f32[1,32], index: 1, kind: input, shape index: {}]
  %s2 = inlined_call_operand.hbm [shape: f32[1,32], index: 2, kind: input, shape index: {}]
  %s3 = inlined_call_operand.hbm [shape: bf16[32,96], index: 3, kind: input, shape index: {}]
  %s4 = inlined_call_operand.hbm [shape: f32[1,96], index: 4, kind: input, shape index: {}]
  %s5 = inlined_call_operand.vmem [shape: f32[128,32], index: 5, kind: output, shape index: {0}]
  %s6 = inlined_call_operand.hbm [shape: bf16[128,96], index: 6, kind: output, shape index: {1}]
  %7 = xla_tuple %s5, %s6
  %s8 = sld [smem:[#allocation0]]
  $region54: #{_lambda_.13} parent=0
    _
  %s10 = ssub.s32 1, %s8
  %s11 = scalar_select 0, %s10, %s8
  $region1: #{_lambda_.13} parent=0
    #allocation2 [shape = 'u8[512]{0}', space=vmem, size = 0x400, scoped, tag = 'input window, operand 1, single buffered']
    #allocation3 [shape = 's32[1]{0}', space=sflag, size = 0x4, scoped, tag = 'scoped memory for _lambda_.13']
    #allocation4 [shape = 's32[1]{0}', space=sflag, size = 0x4, scoped, tag = 'scoped memory for _lambda_.13']
    #allocation5 [shape = 'u8[512]{0}', space=vmem, size = 0x400, scoped, tag = 'input window, operand 2, single buffered']
    #allocation6 [shape = 's32[1]{0}', space=sflag, size = 0x4, scoped, tag = 'scoped memory for _lambda_.13']
    #allocation7 [shape = 'u8[8192]{0}', space=vmem, size = 0x2000, scoped, tag = 'input window, operand 3, single buffered']
    #allocation8 [shape = 'u8[512]{0}', space=vmem, size = 0x400, scoped, tag = 'input window, operand 4, single buffered']
    #allocation9 [shape = 's32[1]{0}', space=sflag, size = 0x4, scoped, tag = 'scoped memory for _lambda_.13']
    #allocation10 [shape = 'u8[32768]{0}', space=vmem, size = 0x8000, scoped, tag = 'output window, operand 1, single buffered']
    %12 = vsyncpa [#allocation3], 0
    %13 = vsyncpa [#allocation6], 0
    %14 = vsyncpa [#allocation9], 0
    %15 = vsyncpa [#allocation4], 0
    // Predicated region
    $region2: #{_lambda_.13} parent=1 // pred_check
      _
    $region3: #{_lambda_.13} parent=1 // pred_check_branch
      %17 = sbr.rel (0) target = $region5
    $region4: #{_lambda_.13} parent=1 // pred_region
      _
    $region5: #{_lambda_.13} parent=1 // pred_fallthru
      _
    // Predicated region
    $region6: #{_lambda_.13} parent=1 // pred_check
      _
    $region7: #{_lambda_.13} parent=1 // pred_check_branch
      %19 = sbr.rel (0) target = $region9
    $region8: #{_lambda_.13} parent=1 // pred_region
      %s21 = ssub.s32 16, 16
      %22 = vsyncadd [#allocation3], %s21
      %s24 = sshll.u32 [#allocation2], 4
      %s25 = int_to_ptr.vmem [resolvable:$true] %s24
      %27 = dma.hbm_to_vmem [thread:$0]  %s1, 16, %s25, [#allocation3]
    $region9: #{_lambda_.13} parent=1 // pred_fallthru
      _
    // Predicated region
    $region10: #{_lambda_.13} parent=1 // pred_check
      _
    $region11: #{_lambda_.13} parent=1 // pred_check_branch
      %29 = sbr.rel (0) target = $region13
    $region12: #{_lambda_.13} parent=1 // pred_region
      %s31 = ssub.s32 16, 16
      %32 = vsyncadd [#allocation6], %s31
      %s34 = sshll.u32 [#allocation5], 4
      %s35 = int_to_ptr.vmem [resolvable:$true] %s34
      %37 = dma.hbm_to_vmem [thread:$0]  %s2, 16, %s35, [#allocation6]
    $region13: #{_lambda_.13} parent=1 // pred_fallthru
      _
    // Predicated region
    $region14: #{_lambda_.13} parent=1 // pred_check
      _
    $region15: #{_lambda_.13} parent=1 // pred_check_branch
      %39 = sbr.rel (0) target = $region17
    $region16: #{_lambda_.13} parent=1 // pred_region
      %s41 = ssub.s32 256, 256
      %42 = vsyncadd [#allocation6], %s41
      %s43 = sshll.u32 [#allocation7], 4
      %s44 = int_to_ptr.vmem [resolvable:$true] %s43
      %49 = dma.hbm_to_vmem [thread:$0]  %s3, 256, %s44, [#allocation6], 64, 64, 4
    $region17: #{_lambda_.13} parent=1 // pred_fallthru
      _
    // Predicated region
    $region18: #{_lambda_.13} parent=1 // pred_check
      _
    $region19: #{_lambda_.13} parent=1 // pred_check_branch
      %51 = sbr.rel (0) target = $region21
    $region20: #{_lambda_.13} parent=1 // pred_region
      %s53 = ssub.s32 16, 16
      %54 = vsyncadd [#allocation9], %s53
      %s56 = sshll.u32 [#allocation8], 4
      %s57 = int_to_ptr.vmem [resolvable:$true] %s56
      %59 = dma.hbm_to_vmem [thread:$0]  %s4, 16, %s57, [#allocation9]
    $region21: #{_lambda_.13} parent=1 // pred_fallthru
      _
    // Predicated region
    $region22: #{_lambda_.13} parent=1 // pred_check
      _
    $region23: #{_lambda_.13} parent=1 // pred_check_branch
      %61 = sbr.rel (0) target = $region25
    $region24: #{_lambda_.13} parent=1 // pred_region
      %62 = dma.done [#allocation3], 16
    $region25: #{_lambda_.13} parent=1 // pred_fallthru
      _
    // Predicated region
    $region26: #{_lambda_.13} parent=1 // pred_check
      _
    $region27: #{_lambda_.13} parent=1 // pred_check_branch
      %64 = sbr.rel (0) target = $region29
    $region28: #{_lambda_.13} parent=1 // pred_region
      %65 = dma.done [#allocation6], 16
    $region29: #{_lambda_.13} parent=1 // pred_fallthru
      _
    // Predicated region
    $region30: #{_lambda_.13} parent=1 // pred_check
      _
    $region31: #{_lambda_.13} parent=1 // pred_check_branch
      %67 = sbr.rel (0) target = $region33
    $region32: #{_lambda_.13} parent=1 // pred_region
      %68 = dma.done [#allocation6], 256
    $region33: #{_lambda_.13} parent=1 // pred_fallthru
      _
    // Predicated region
    $region34: #{_lambda_.13} parent=1 // pred_check
      _
    $region35: #{_lambda_.13} parent=1 // pred_check_branch
      %70 = sbr.rel (0) target = $region37
    $region36: #{_lambda_.13} parent=1 // pred_region
      %71 = dma.done [#allocation9], 16
    $region37: #{_lambda_.13} parent=1 // pred_fallthru
      _
    %v73 = vld [vmem:[%s0] sm:$0xff]
    %v74 = vld [vmem:[%s0 + $0x8] sm:$0xff]
    %v75 = vld [vmem:[%s0 + $0x10] sm:$0xff]
    %v76 = vld [vmem:[%s0 + $0x18] sm:$0xff]
    %v77 = vld [vmem:[%s0 + $0x20] sm:$0xff]
    %v78 = vld [vmem:[%s0 + $0x28] sm:$0xff]
    %v79 = vld [vmem:[%s0 + $0x30] sm:$0xff]
    %v80 = vld [vmem:[%s0 + $0x38] sm:$0xff]
    %v81 = vld [vmem:[%s0 + $0x40] sm:$0xff]
    %v82 = vld [vmem:[%s0 + $0x48] sm:$0xff]
    %v83 = vld [vmem:[%s0 + $0x50] sm:$0xff]
    %v84 = vld [vmem:[%s0 + $0x58] sm:$0xff]
    %v85 = vld [vmem:[%s0 + $0x60] sm:$0xff]
    %v86 = vld [vmem:[%s0 + $0x68] sm:$0xff]
    %v87 = vld [vmem:[%s0 + $0x70] sm:$0xff]
    %v88 = vld [vmem:[%s0 + $0x78] sm:$0xff]
    %vm89 = vcmask 261120
    %v90 = vsel %vm89, %v73, 0.0
    %91 = vadd.xlane.f32.xlu0 %v90
    %v92 = vpop.xlane.xlu0 %91
    %v93 = vsel %vm89, %v74, 0.0
    %94 = vadd.xlane.f32.xlu0 %v93
    %v95 = vpop.xlane.xlu0 %94
    %v96 = vsel %vm89, %v75, 0.0
    %97 = vadd.xlane.f32.xlu0 %v96
    %v98 = vpop.xlane.xlu0 %97
    %v99 = vsel %vm89, %v76, 0.0
    %100 = vadd.xlane.f32.xlu0 %v99
    %v101 = vpop.xlane.xlu0 %100
    %v102 = vsel %vm89, %v77, 0.0
    %103 = vadd.xlane.f32.xlu0 %v102
    %v104 = vpop.xlane.xlu0 %103
    %v105 = vsel %vm89, %v78, 0.0
    %106 = vadd.xlane.f32.xlu0 %v105
    %v107 = vpop.xlane.xlu0 %106
    %v108 = vsel %vm89, %v79, 0.0
    %109 = vadd.xlane.f32.xlu0 %v108
    %v110 = vpop.xlane.xlu0 %109
    %v111 = vsel %vm89, %v80, 0.0
    %112 = vadd.xlane.f32.xlu0 %v111
    %v113 = vpop.xlane.xlu0 %112
    %v114 = vsel %vm89, %v81, 0.0
    %115 = vadd.xlane.f32.xlu0 %v114
    %v116 = vpop.xlane.xlu0 %115
    %v117 = vsel %vm89, %v82, 0.0
    %118 = vadd.xlane.f32.xlu0 %v117
    %v119 = vpop.xlane.xlu0 %118
    %v120 = vsel %vm89, %v83, 0.0
    %121 = vadd.xlane.f32.xlu0 %v120
    %v122 = vpop.xlane.xlu0 %121
    %v123 = vsel %vm89, %v84, 0.0
    %124 = vadd.xlane.f32.xlu0 %v123
    %v125 = vpop.xlane.xlu0 %124
    %v126 = vsel %vm89, %v85, 0.0
    %127 = vadd.xlane.f32.xlu0 %v126
    %v128 = vpop.xlane.xlu0 %127
    %v129 = vsel %vm89, %v86, 0.0
    %130 = vadd.xlane.f32.xlu0 %v129
    %v131 = vpop.xlane.xlu0 %130
    %v132 = vsel %vm89, %v87, 0.0
    %133 = vadd.xlane.f32.xlu0 %v132
    %v134 = vpop.xlane.xlu0 %133
    %v135 = vsel %vm89, %v88, 0.0
    %136 = vadd.xlane.f32.xlu0 %v135
    %v137 = vpop.xlane.xlu0 %136
    %v138 = vrcp.pop 32.0
    %v139 = vmul.f32 %v92, %v138
    %v140 = vmul.f32 %v95, %v138
    %v141 = vmul.f32 %v98, %v138
    %v142 = vmul.f32 %v101, %v138
    %v143 = vmul.f32 %v104, %v138
    %v144 = vmul.f32 %v107, %v138
    %v145 = vmul.f32 %v110, %v138
    %v146 = vmul.f32 %v113, %v138
    %v147 = vmul.f32 %v116, %v138
    %v148 = vmul.f32 %v119, %v138
    %v149 = vmul.f32 %v122, %v138
    %v150 = vmul.f32 %v125, %v138
    %v151 = vmul.f32 %v128, %v138
    %v152 = vmul.f32 %v131, %v138
    %v153 = vmul.f32 %v134, %v138
    %v154 = vmul.f32 %v137, %v138
    %v155 = vsub.f32 %v73, %v139
    %v156 = vsub.f32 %v74, %v140
    %v157 = vsub.f32 %v75, %v141
    %v158 = vsub.f32 %v76, %v142
    %v159 = vsub.f32 %v77, %v143
    %v160 = vsub.f32 %v78, %v144
    %v161 = vsub.f32 %v79, %v145
    %v162 = vsub.f32 %v80, %v146
    %v163 = vsub.f32 %v81, %v147
    %v164 = vsub.f32 %v82, %v148
    %v165 = vsub.f32 %v83, %v149
    %v166 = vsub.f32 %v84, %v150
    %v167 = vsub.f32 %v85, %v151
    %v168 = vsub.f32 %v86, %v152
    %v169 = vsub.f32 %v87, %v153
    %v170 = vsub.f32 %v88, %v154
    %v171 = vmul.f32 %v155, %v155
    %v172 = vmul.f32 %v156, %v156
    %v173 = vmul.f32 %v157, %v157
    %v174 = vmul.f32 %v158, %v158
    %v175 = vmul.f32 %v159, %v159
    %v176 = vmul.f32 %v160, %v160
    %v177 = vmul.f32 %v161, %v161
    %v178 = vmul.f32 %v162, %v162
    %v179 = vmul.f32 %v163, %v163
    %v180 = vmul.f32 %v164, %v164
    %v181 = vmul.f32 %v165, %v165
    %v182 = vmul.f32 %v166, %v166
    %v183 = vmul.f32 %v167, %v167
    %v184 = vmul.f32 %v168, %v168
    %v185 = vmul.f32 %v169, %v169
    %v186 = vmul.f32 %v170, %v170
    %v187 = vsel %vm89, %v171, 0.0
    %188 = vadd.xlane.f32.xlu0 %v187
    %v189 = vpop.xlane.xlu0 %188
    %v190 = vsel %vm89, %v172, 0.0
    %191 = vadd.xlane.f32.xlu0 %v190
    %v192 = vpop.xlane.xlu0 %191
    %v193 = vsel %vm89, %v173, 0.0
    %194 = vadd.xlane.f32.xlu0 %v193
    %v195 = vpop.xlane.xlu0 %194
    %v196 = vsel %vm89, %v174, 0.0
    %197 = vadd.xlane.f32.xlu0 %v196
    %v198 = vpop.xlane.xlu0 %197
    %v199 = vsel %vm89, %v175, 0.0
    %200 = vadd.xlane.f32.xlu0 %v199
    %v201 = vpop.xlane.xlu0 %200
    %v202 = vsel %vm89, %v176, 0.0
    %203 = vadd.xlane.f32.xlu0 %v202
    %v204 = vpop.xlane.xlu0 %203
    %v205 = vsel %vm89, %v177, 0.0
    %206 = vadd.xlane.f32.xlu0 %v205
    %v207 = vpop.xlane.xlu0 %206
    %v208 = vsel %vm89, %v178, 0.0
    %209 = vadd.xlane.f32.xlu0 %v208
    %v210 = vpop.xlane.xlu0 %209
    %v211 = vsel %vm89, %v179, 0.0
    %212 = vadd.xlane.f32.xlu0 %v211
    %v213 = vpop.xlane.xlu0 %212
    %v214 = vsel %vm89, %v180, 0.0
    %215 = vadd.xlane.f32.xlu0 %v214
    %v216 = vpop.xlane.xlu0 %215
    %v217 = vsel %vm89, %v181, 0.0
    %218 = vadd.xlane.f32.xlu0 %v217
    %v219 = vpop.xlane.xlu0 %218
    %v220 = vsel %vm89, %v182, 0.0
    %221 = vadd.xlane.f32.xlu0 %v220
    %v222 = vpop.xlane.xlu0 %221
    %v223 = vsel %vm89, %v183, 0.0
    %224 = vadd.xlane.f32.xlu0 %v223
    %v225 = vpop.xlane.xlu0 %224
    %v226 = vsel %vm89, %v184, 0.0
    %227 = vadd.xlane.f32.xlu0 %v226
    %v228 = vpop.xlane.xlu0 %227
    %v229 = vsel %vm89, %v185, 0.0
    %230 = vadd.xlane.f32.xlu0 %v229
    %v231 = vpop.xlane.xlu0 %230
    %v232 = vsel %vm89, %v186, 0.0
    %233 = vadd.xlane.f32.xlu0 %v232
    %v234 = vpop.xlane.xlu0 %233
    %v235 = vmul.f32 %v189, %v138
    %v236 = vmul.f32 %v192, %v138
    %v237 = vmul.f32 %v195, %v138
    %v238 = vmul.f32 %v198, %v138
    %v239 = vmul.f32 %v201, %v138
    %v240 = vmul.f32 %v204, %v138
    %v241 = vmul.f32 %v207, %v138
    %v242 = vmul.f32 %v210, %v138
    %v243 = vmul.f32 %v213, %v138
    %v244 = vmul.f32 %v216, %v138
    %v245 = vmul.f32 %v219, %v138
    %v246 = vmul.f32 %v222, %v138
    %v247 = vmul.f32 %v225, %v138
    %v248 = vmul.f32 %v228, %v138
    %v249 = vmul.f32 %v231, %v138
    %v250 = vmul.f32 %v234, %v138
    %v251 = vadd.f32 %v235, 1e-05
    %v252 = vadd.f32 %v236, 1e-05
    %v253 = vadd.f32 %v237, 1e-05
    %v254 = vadd.f32 %v238, 1e-05
    %v255 = vadd.f32 %v239, 1e-05
    %v256 = vadd.f32 %v240, 1e-05
    %v257 = vadd.f32 %v241, 1e-05
    %v258 = vadd.f32 %v242, 1e-05
    %v259 = vadd.f32 %v243, 1e-05
    %v260 = vadd.f32 %v244, 1e-05
    %v261 = vadd.f32 %v245, 1e-05
    %v262 = vadd.f32 %v246, 1e-05
    %v263 = vadd.f32 %v247, 1e-05
    %v264 = vadd.f32 %v248, 1e-05
    %v265 = vadd.f32 %v249, 1e-05
    %v266 = vadd.f32 %v250, 1e-05
    %v267 = vrsqrt.pop %v251
    %v268 = vrsqrt.pop %v252
    %v269 = vrsqrt.pop %v253
    %v270 = vrsqrt.pop %v254
    %v271 = vrsqrt.pop %v255
    %v272 = vrsqrt.pop %v256
    %v273 = vrsqrt.pop %v257
    %v274 = vrsqrt.pop %v258
    %v275 = vrsqrt.pop %v259
    %v276 = vrsqrt.pop %v260
    %v277 = vrsqrt.pop %v261
    %v278 = vrsqrt.pop %v262
    %v279 = vrsqrt.pop %v263
    %v280 = vrsqrt.pop %v264
    %v281 = vrsqrt.pop %v265
    %v282 = vrsqrt.pop %v266
    %v283 = vmul.f32 %v155, %v267
    %v284 = vmul.f32 %v156, %v268
    %v285 = vmul.f32 %v157, %v269
    %v286 = vmul.f32 %v158, %v270
    %v287 = vmul.f32 %v159, %v271
    %v288 = vmul.f32 %v160, %v272
    %v289 = vmul.f32 %v161, %v273
    %v290 = vmul.f32 %v162, %v274
    %v291 = vmul.f32 %v163, %v275
    %v292 = vmul.f32 %v164, %v276
    %v293 = vmul.f32 %v165, %v277
    %v294 = vmul.f32 %v166, %v278
    %v295 = vmul.f32 %v167, %v279
    %v296 = vmul.f32 %v168, %v280
    %v297 = vmul.f32 %v169, %v281
    %v298 = vmul.f32 %v170, %v282
    %v299 = vld [vmem:[#allocation2] sm:$0x1]
    %v301 = vlaneseq
    %v302 = vshrl.u32 %v301, 7
    %v303 = vsub.s32 0, %v302
    %v304 = vrot.slane %v299, %v303
    %v306 = vmul.f32 %v283, %v304
    %v307 = vmul.f32 %v284, %v304
    %v308 = vmul.f32 %v285, %v304
    %v309 = vmul.f32 %v286, %v304
    %v310 = vmul.f32 %v287, %v304
    %v311 = vmul.f32 %v288, %v304
    %v312 = vmul.f32 %v289, %v304
    %v313 = vmul.f32 %v290, %v304
    %v314 = vmul.f32 %v291, %v304
    %v315 = vmul.f32 %v292, %v304
    %v316 = vmul.f32 %v293, %v304
    %v317 = vmul.f32 %v294, %v304
    %v318 = vmul.f32 %v295, %v304
    %v319 = vmul.f32 %v296, %v304
    %v320 = vmul.f32 %v297, %v304
    %v321 = vmul.f32 %v298, %v304
    %v322 = vld [vmem:[#allocation5] sm:$0x1]
    %v324 = vlaneseq
    %v325 = vshrl.u32 %v324, 7
    %v326 = vsub.s32 0, %v325
    %v327 = vrot.slane %v322, %v326
    %v329 = vadd.f32 %v306, %v327
    %v330 = vadd.f32 %v307, %v327
    %v331 = vadd.f32 %v308, %v327
    %v332 = vadd.f32 %v309, %v327
    %v333 = vadd.f32 %v310, %v327
    %v334 = vadd.f32 %v311, %v327
    %v335 = vadd.f32 %v312, %v327
    %v336 = vadd.f32 %v313, %v327
    %v337 = vadd.f32 %v314, %v327
    %v338 = vadd.f32 %v315, %v327
    %v339 = vadd.f32 %v316, %v327
    %v340 = vadd.f32 %v317, %v327
    %v341 = vadd.f32 %v318, %v327
    %v342 = vadd.f32 %v319, %v327
    %v343 = vadd.f32 %v320, %v327
    %v344 = vadd.f32 %v321, %v327
    %v345 = vpack.c.bf16 %v330, %v329
    %v346 = vpack.c.bf16 %v332, %v331
    %v347 = vpack.c.bf16 %v334, %v333
    %v348 = vpack.c.bf16 %v336, %v335
    %v349 = vpack.c.bf16 %v338, %v337
    %v350 = vpack.c.bf16 %v340, %v339
    %v351 = vpack.c.bf16 %v342, %v341
    %v352 = vpack.c.bf16 %v344, %v343
    %v353 = vld [vmem:[#allocation7] sm:$0xf]
    %v354 = vld [vmem:[#allocation7 + $0x4] sm:$0xf]
    %v355 = vld [vmem:[#allocation7 + $0x8] sm:$0xf]
    %v356 = vld [vmem:[#allocation7 + $0xc] sm:$0xf]
    %v357 = vld [vmem:[#allocation8] sm:$0x1]
    %v359 = vlaneseq
    %v360 = vshrl.u32 %v359, 7
    %v361 = vsub.s32 0, %v360
    %v362 = vrot.slane %v357, %v361
    %v368 = vunpack.c.l.b16 %v353
    %v369 = vunpack.c.l.b16 %v354
    %v370 = vunpack.c.l.b16 %v355
    %v371 = vunpack.c.l.b16 %v356
    %v372 = vpack.c.b16 %v369, %v368
    %v373 = vpack.c.b16 %v371, %v370
    %v377 = vsel %vm89, %v345, 0
    %v380 = vsel %vm89, %v346, 0
    %v383 = vsel %vm89, %v347, 0
    %v386 = vsel %vm89, %v348, 0
    %v389 = vsel %vm89, %v349, 0
    %v392 = vsel %vm89, %v350, 0
    %v395 = vsel %vm89, %v351, 0
    %v398 = vsel %vm89, %v352, 0
    %400 = vmatprep.subr.bf16.mxu0 0
    %401 = vmatpush1.bf16.msra.mxu0 %v372
    %402 = vmatprep.subr.bf16.mxu0 0
    %403 = vmatpush1.bf16.msra.mxu0 %v373
    %404 = vmatprep.subr.bf16.mxu0 0
    %405 = vmatpush1.bf16.msra.mxu0 0
    %406 = vmatprep.subr.bf16.mxu0 0
    %407 = vmatpush1.bf16.msra.mxu0 0
    %408 = vmatprep.subr.bf16.mxu0 0
    %409 = vmatpush1.bf16.msra.mxu0 0
    %410 = vmatprep.subr.bf16.mxu0 0
    %411 = vmatpush1.bf16.msra.mxu0 0
    %412 = vmatprep.subr.bf16.mxu0 0
    %413 = vmatpush1.bf16.msra.mxu0 0
    %414 = vmatprep.subr.bf16.mxu0 0
    %415 = vmatpush1.bf16.msra.mxu0 0
    %416 = vmatprep.subr.bf16.mxu0 0
    %417 = vmatpush1.bf16.msra.mxu0 0
    %418 = vmatprep.subr.bf16.mxu0 0
    %419 = vmatpush1.bf16.msra.mxu0 0
    %420 = vmatprep.subr.bf16.mxu0 0
    %421 = vmatpush1.bf16.msra.mxu0 0
    %422 = vmatprep.subr.bf16.mxu0 0
    %423 = vmatpush1.bf16.msra.mxu0 0
    %424 = vmatprep.subr.bf16.mxu0 0
    %425 = vmatpush1.bf16.msra.mxu0 0
    %426 = vmatprep.subr.bf16.mxu0 0
    %427 = vmatpush1.bf16.msra.mxu0 0
    %428 = vmatprep.subr.bf16.mxu0 0
    %429 = vmatpush1.bf16.msra.mxu0 0
    %430 = vmatprep.subr.bf16.mxu0 0
    %431 = vmatpush1.bf16.msra.mxu0 0
    %432 = vmatprep.mubr.bf16.mxu0 0
    %433 = vmatmul.mubr.bf16.gmra.mrb[0].mxu0 %v377
    %v434 = vpop.f32.mrb[0].mxu0
    %v435 = vadd.f32 %v362, %v434
    %v436 = vpop.f32.mrb[0].mxu0
    %v437 = vpop.f32.mrb[0].mxu0
    %v438 = vadd.f32 %v362, %v437
    %v439 = vpop.f32.mrb[0].mxu0
    %440 = vmatprep.mubr.bf16.mxu0 0
    %441 = vmatmul.mubr.bf16.gmra.mrb[0].mxu0 %v380
    %v442 = vpop.f32.mrb[0].mxu0
    %v443 = vadd.f32 %v362, %v442
    %v444 = vpop.f32.mrb[0].mxu0
    %v445 = vpop.f32.mrb[0].mxu0
    %v446 = vadd.f32 %v362, %v445
    %v447 = vpop.f32.mrb[0].mxu0
    %448 = vmatprep.mubr.bf16.mxu0 0
    %449 = vmatmul.mubr.bf16.gmra.mrb[0].mxu0 %v383
    %v450 = vpop.f32.mrb[0].mxu0
    %v451 = vadd.f32 %v362, %v450
    %v452 = vpop.f32.mrb[0].mxu0
    %v453 = vpop.f32.mrb[0].mxu0
    %v454 = vadd.f32 %v362, %v453
    %v455 = vpop.f32.mrb[0].mxu0
    %456 = vmatprep.mubr.bf16.mxu0 0
    %457 = vmatmul.mubr.bf16.gmra.mrb[0].mxu0 %v386
    %v458 = vpop.f32.mrb[0].mxu0
    %v459 = vadd.f32 %v362, %v458
    %v460 = vpop.f32.mrb[0].mxu0
    %v461 = vpop.f32.mrb[0].mxu0
    %v462 = vadd.f32 %v362, %v461
    %v463 = vpop.f32.mrb[0].mxu0
    %464 = vmatprep.mubr.bf16.mxu0 0
    %465 = vmatmul.mubr.bf16.gmra.mrb[0].mxu0 %v389
    %v466 = vpop.f32.mrb[0].mxu0
    %v467 = vadd.f32 %v362, %v466
    %v468 = vpop.f32.mrb[0].mxu0
    %v469 = vpop.f32.mrb[0].mxu0
    %v470 = vadd.f32 %v362, %v469
    %v471 = vpop.f32.mrb[0].mxu0
    %472 = vmatprep.mubr.bf16.mxu0 0
    %473 = vmatmul.mubr.bf16.gmra.mrb[0].mxu0 %v392
    %v474 = vpop.f32.mrb[0].mxu0
    %v475 = vadd.f32 %v362, %v474
    %v476 = vpop.f32.mrb[0].mxu0
    %v477 = vpop.f32.mrb[0].mxu0
    %v478 = vadd.f32 %v362, %v477
    %v479 = vpop.f32.mrb[0].mxu0
    %480 = vmatprep.mubr.bf16.mxu0 0
    %481 = vmatmul.mubr.bf16.gmra.mrb[0].mxu0 %v395
    %v482 = vpop.f32.mrb[0].mxu0
    %v483 = vadd.f32 %v362, %v482
    %v484 = vpop.f32.mrb[0].mxu0
    %v485 = vpop.f32.mrb[0].mxu0
    %v486 = vadd.f32 %v362, %v485
    %v487 = vpop.f32.mrb[0].mxu0
    %488 = vmatprep.mubr.bf16.mxu0 0
    %489 = vmatmul.mubr.bf16.gmra.mrb[0].mxu0 %v398
    %v490 = vpop.f32.mrb[0].mxu0
    %v491 = vadd.f32 %v362, %v490
    %v492 = vpop.f32.mrb[0].mxu0
    %v493 = vpop.f32.mrb[0].mxu0
    %v494 = vadd.f32 %v362, %v493
    %v495 = vpop.f32.mrb[0].mxu0
    %496 = vdwg.mxu0
    %497 = vst.msk [vmem:[%s5] sm:$0xff] %vm89, %v329
    %498 = vst.msk [vmem:[%s5 + $0x8] sm:$0xff] %vm89, %v330
    %499 = vst.msk [vmem:[%s5 + $0x10] sm:$0xff] %vm89, %v331
    %500 = vst.msk [vmem:[%s5 + $0x18] sm:$0xff] %vm89, %v332
    %501 = vst.msk [vmem:[%s5 + $0x20] sm:$0xff] %vm89, %v333
    %502 = vst.msk [vmem:[%s5 + $0x28] sm:$0xff] %vm89, %v334
    %503 = vst.msk [vmem:[%s5 + $0x30] sm:$0xff] %vm89, %v335
    %504 = vst.msk [vmem:[%s5 + $0x38] sm:$0xff] %vm89, %v336
    %505 = vst.msk [vmem:[%s5 + $0x40] sm:$0xff] %vm89, %v337
    %506 = vst.msk [vmem:[%s5 + $0x48] sm:$0xff] %vm89, %v338
    %507 = vst.msk [vmem:[%s5 + $0x50] sm:$0xff] %vm89, %v339
    %508 = vst.msk [vmem:[%s5 + $0x58] sm:$0xff] %vm89, %v340
    %509 = vst.msk [vmem:[%s5 + $0x60] sm:$0xff] %vm89, %v341
    %510 = vst.msk [vmem:[%s5 + $0x68] sm:$0xff] %vm89, %v342
    %511 = vst.msk [vmem:[%s5 + $0x70] sm:$0xff] %vm89, %v343
    %512 = vst.msk [vmem:[%s5 + $0x78] sm:$0xff] %vm89, %v344
    %v513 = vpack.c.bf16 %v438, %v435
    %v514 = vpack.c.bf16 %v446, %v443
    %v515 = vpack.c.bf16 %v454, %v451
    %v516 = vpack.c.bf16 %v462, %v459
    %v517 = vpack.c.bf16 %v470, %v467
    %v518 = vpack.c.bf16 %v478, %v475
    %v519 = vpack.c.bf16 %v486, %v483
    %v520 = vpack.c.bf16 %v494, %v491
    %v529 = vunpack.c.l.b16 %v513
    %v530 = vunpack.c.h.b16 %v513
    %v531 = vunpack.c.l.b16 %v514
    %v532 = vunpack.c.h.b16 %v514
    %v533 = vunpack.c.l.b16 %v515
    %v534 = vunpack.c.h.b16 %v515
    %v535 = vunpack.c.l.b16 %v516
    %v536 = vunpack.c.h.b16 %v516
    %v537 = vunpack.c.l.b16 %v517
    %v538 = vunpack.c.h.b16 %v517
    %v539 = vunpack.c.l.b16 %v518
    %v540 = vunpack.c.h.b16 %v518
    %v541 = vunpack.c.l.b16 %v519
    %v542 = vunpack.c.h.b16 %v519
    %v543 = vunpack.c.l.b16 %v520
    %v544 = vunpack.c.h.b16 %v520
    %v545 = vpack.c.b16 %v529, %v529
    %v546 = vpack.c.b16 %v530, %v530
    %v547 = vpack.c.b16 %v531, %v531
    %v548 = vpack.c.b16 %v532, %v532
    %v549 = vpack.c.b16 %v533, %v533
    %v550 = vpack.c.b16 %v534, %v534
    %v551 = vpack.c.b16 %v535, %v535
    %v552 = vpack.c.b16 %v536, %v536
    %v553 = vpack.c.b16 %v537, %v537
    %v554 = vpack.c.b16 %v538, %v538
    %v555 = vpack.c.b16 %v539, %v539
    %v556 = vpack.c.b16 %v540, %v540
    %v557 = vpack.c.b16 %v541, %v541
    %v558 = vpack.c.b16 %v542, %v542
    %v559 = vpack.c.b16 %v543, %v543
    %v560 = vpack.c.b16 %v544, %v544
    %vm577 = vcmask 781312
    %578 = vst.msk [vmem:[#allocation10] sm:$0xf] %vm577, %v545
    %579 = vst.msk [vmem:[#allocation10 + $0x4] sm:$0xf] %vm577, %v546
    %580 = vst.msk [vmem:[#allocation10 + $0x8] sm:$0xf] %vm577, %v547
    %581 = vst.msk [vmem:[#allocation10 + $0xc] sm:$0xf] %vm577, %v548
    %582 = vst.msk [vmem:[#allocation10 + $0x10] sm:$0xf] %vm577, %v549
    %583 = vst.msk [vmem:[#allocation10 + $0x14] sm:$0xf] %vm577, %v550
    %584 = vst.msk [vmem:[#allocation10 + $0x18] sm:$0xf] %vm577, %v551
    %585 = vst.msk [vmem:[#allocation10 + $0x1c] sm:$0xf] %vm577, %v552
    %586 = vst.msk [vmem:[#allocation10 + $0x20] sm:$0xf] %vm577, %v553
    %587 = vst.msk [vmem:[#allocation10 + $0x24] sm:$0xf] %vm577, %v554
    %588 = vst.msk [vmem:[#allocation10 + $0x28] sm:$0xf] %vm577, %v555
    %589 = vst.msk [vmem:[#allocation10 + $0x2c] sm:$0xf] %vm577, %v556
    %590 = vst.msk [vmem:[#allocation10 + $0x30] sm:$0xf] %vm577, %v557
    %591 = vst.msk [vmem:[#allocation10 + $0x34] sm:$0xf] %vm577, %v558
    %592 = vst.msk [vmem:[#allocation10 + $0x38] sm:$0xf] %vm577, %v559
    %593 = vst.msk [vmem:[#allocation10 + $0x3c] sm:$0xf] %vm577, %v560
    // Predicated region
    $region38: #{_lambda_.13} parent=1 // pred_check
      _
    $region39: #{_lambda_.13} parent=1 // pred_check_branch
      %595 = sbr.rel (0) target = $region41
    $region40: #{_lambda_.13} parent=1 // pred_region
      _
    $region41: #{_lambda_.13} parent=1 // pred_fallthru
      _
    // Predicated region
    $region42: #{_lambda_.13} parent=1 // pred_check
      _
    $region43: #{_lambda_.13} parent=1 // pred_check_branch
      %597 = sbr.rel (0) target = $region45
    $region44: #{_lambda_.13} parent=1 // pred_region
      %s599 = ssub.s32 1024, 1024
      %600 = vsyncadd [#allocation4], %s599
      %s601 = sshll.u32 [#allocation10], 4
      %s602 = int_to_ptr.vmem [resolvable:$true] %s601
      %607 = dma.vmem_to_hbm [thread:$0]  %s602, 1024, %s6, [#allocation4], 64, 64, 4
    $region45: #{_lambda_.13} parent=1 // pred_fallthru
      _
    // Predicated region
    $region46: #{_lambda_.13} parent=1 // pred_check
      _
    $region47: #{_lambda_.13} parent=1 // pred_check_branch
      %609 = sbr.rel (0) target = $region49
    $region48: #{_lambda_.13} parent=1 // pred_region
      _
    $region49: #{_lambda_.13} parent=1 // pred_fallthru
      _
    // Predicated region
    $region50: #{_lambda_.13} parent=1 // pred_check
      _
    $region51: #{_lambda_.13} parent=1 // pred_check_branch
      %611 = sbr.rel (0) target = $region53
    $region52: #{_lambda_.13} parent=1 // pred_region
      %612 = dma.done [#allocation4], 1024
    $region53: #{_lambda_.13} parent=1 // pred_fallthru
      _
    %613 = vsyncpa [#allocation3], 1
    %614 = vsyncpa [#allocation6], 1
    %615 = vsyncpa [#allocation9], 1
    %616 = vsyncpa [#allocation4], 1

// kernel: _lambda_.17
$region0: #{_lambda_.17}
  #allocation0 [shape = 'u32[]', space=smem, size = 0x4, offset = 0x4, fixed_abs, tag = 'smem constant byte address 0x4 - core index']
  #allocation1 [shape = 'u32[144,128]{1,0:T(1,128)}', space=vmem, size = 0x12000, scoped, tag = 'internal scratch']
  %s0 = inlined_call_operand.vmem [shape: f32[2,64,8], index: 0, kind: input, shape index: {}]
  %s1 = inlined_call_operand.vmem [shape: f32[2,16,8], index: 1, kind: input, shape index: {}]
  %s2 = inlined_call_operand.vmem [shape: f32[2,16,32], index: 2, kind: input, shape index: {}]
  %s3 = inlined_call_operand.vmem [shape: f32[1,16], index: 3, kind: input, shape index: {}]
  %s4 = inlined_call_operand.vmem [shape: f32[2,64,32], index: 4, kind: output, shape index: {0}]
  %s5 = inlined_call_operand.vmem [shape: f32[2,64,16], index: 5, kind: output, shape index: {1}]
  %s6 = inlined_call_operand.vmem [shape: s32[2,64,1], index: 6, kind: output, shape index: {2}]
  %7 = xla_tuple %s4, %s5, %s6
  %s8 = sld [smem:[#allocation0]]
  $region65: #{_lambda_.17} parent=0
    _
  %s10 = ssub.s32 1, %s8
  %s11 = scalar_select 0, %s10, %s8
  loop: start=0, step=1, limit=4
  $region2: #{_lambda_.17} parent=0 // loop_pre_header
    _
  $region3: #{_lambda_.17} parent=0 // loop_header
    %s13 = sphi 0, %s17
    %p14 = scmp.ge.s32.totalorder %s13, 4
    %s20 = sphi 0, %s32
    %s21 = sphi 0, %s28
    %s22 = sphi 0, %s20
    %s23 = sphi 0, %s21
    %s24 = sphi 0, %s22
    %s25 = sphi 0, %s23
    %s37 = sphi 0, %s39
    %s40 = sphi 0, %s37
    %s41 = sphi 0, %s40
    %s57 = sphi 0, %s41
    %s63 = sphi 0, %s65
    %s66 = sphi 0, %s63
    %s67 = sphi 0, %s66
    %s83 = sphi 0, %s67
    %s89 = sphi 0, %s91
    %s92 = sphi 0, %s89
    %s93 = sphi 0, %s92
    %s109 = sphi 0, %s93
    %s113 = sphi 0, %s113
    %s115 = sphi 0, %s113
    %s116 = sphi 0, %s115
    %s130 = sphi 0, %s116
    %s138 = sphi 0, %s140
    %s141 = sphi 0, %s138
    %s142 = sphi 0, %s141
    %s158 = sphi 0, %s142
    %s166 = sphi 0, %s168
    %s169 = sphi 0, %s166
    %s170 = sphi 0, %s169
    %s186 = sphi 0, %s170
    %s194 = sphi 0, %s196
    %s197 = sphi 0, %s194
    %s198 = sphi 0, %s197
    %s214 = sphi 0, %s198
  $region4: #{_lambda_.17} parent=0 // loop_header_branch
    %16 = sbr.rel (%p14) target = $region8
  $region5: #{_lambda_.17} parent=0 // loop_body
    %s18 = ssub.s32 %s13, 1
    %s19 = ssub.s32 %s13, 2
    %s26 = sadd.s32 1, %s21
    %p27 = scmp.ge.s32.totalorder %s26, 1
    %s28 = scalar_select %p27, 0, %s26
    %s29 = sadd.s32 1, %s20
    %s30 = scalar_select %p27, %s29, %s20
    %p31 = scmp.ge.s32.totalorder %s30, 2
    %s32 = scalar_select %p31, 0, %s30
    %s33 = ssub.s32 %s20, %s32
    %s34 = ssub.s32 %s21, %s28
    %s35 = sor.u32 %s33, %s34
    %p36 = scmp.eq.s32.totalorder %s35, 0
    %s38 = sadd.s32 %s37, 1
    %s39 = scalar_select %p36, %s37, %s38
    %p42 = pneg %p36
    %p43 = scmp.eq.s32.totalorder %s13, 1
    %p44 = por %p42, %p43
    %p45 = scmp.ne.s32.totalorder %s37, %s40
    %p46 = scmp.eq.s32.totalorder %s13, 0
    %p47 = por %p45, %p46
    %p48 = scmp.ne.s32.totalorder %s37, %s40
    %p49 = scmp.eq.s32.totalorder %s18, 1
    %p50 = por %p48, %p49
    %p51 = scmp.ne.s32.totalorder %s40, %s41
    %p52 = scmp.eq.s32.totalorder %s18, 0
    %p53 = por %p51, %p52
    %p54 = scmp.ne.s32.totalorder %s40, %s41
    %p55 = scmp.eq.s32.totalorder %s19, 1
    %p56 = por %p54, %p55
    %p58 = scmp.ne.s32.totalorder %s41, %s57
    %p59 = scmp.eq.s32.totalorder %s19, 0
    %p60 = por %p58, %p59
    %s61 = ssub.s32 %s20, %s32
    %p62 = scmp.eq.s32.totalorder %s61, 0
    %s64 = sadd.s32 %s63, 1
    %s65 = scalar_select %p62, %s63, %s64
    %p68 = pneg %p62
    %p69 = scmp.eq.s32.totalorder %s13, 1
    %p70 = por %p68, %p69
    %p71 = scmp.ne.s32.totalorder %s63, %s66
    %p72 = scmp.eq.s32.totalorder %s13, 0
    %p73 = por %p71, %p72
    %p74 = scmp.ne.s32.totalorder %s63, %s66
    %p75 = scmp.eq.s32.totalorder %s18, 1
    %p76 = por %p74, %p75
    %p77 = scmp.ne.s32.totalorder %s66, %s67
    %p78 = scmp.eq.s32.totalorder %s18, 0
    %p79 = por %p77, %p78
    %p80 = scmp.ne.s32.totalorder %s66, %s67
    %p81 = scmp.eq.s32.totalorder %s19, 1
    %p82 = por %p80, %p81
    %p84 = scmp.ne.s32.totalorder %s67, %s83
    %p85 = scmp.eq.s32.totalorder %s19, 0
    %p86 = por %p84, %p85
    %s87 = ssub.s32 %s20, %s32
    %p88 = scmp.eq.s32.totalorder %s87, 0
    %s90 = sadd.s32 %s89, 1
    %s91 = scalar_select %p88, %s89, %s90
    %p94 = pneg %p88
    %p95 = scmp.eq.s32.totalorder %s13, 1
    %p96 = por %p94, %p95
    %p97 = scmp.ne.s32.totalorder %s89, %s92
    %p98 = scmp.eq.s32.totalorder %s13, 0
    %p99 = por %p97, %p98
    %p100 = scmp.ne.s32.totalorder %s89, %s92
    %p101 = scmp.eq.s32.totalorder %s18, 1
    %p102 = por %p100, %p101
    %p103 = scmp.ne.s32.totalorder %s92, %s93
    %p104 = scmp.eq.s32.totalorder %s18, 0
    %p105 = por %p103, %p104
    %p106 = scmp.ne.s32.totalorder %s92, %s93
    %p107 = scmp.eq.s32.totalorder %s19, 1
    %p108 = por %p106, %p107
    %p110 = scmp.ne.s32.totalorder %s93, %s109
    %p111 = scmp.eq.s32.totalorder %s19, 0
    %p112 = por %p110, %p111
    %s114 = sadd.s32 %s113, 1
    %p117 = scmp.eq.s32.totalorder %s13, 1
    %p118 = scmp.ne.s32.totalorder %s113, %s115
    %p119 = scmp.eq.s32.totalorder %s13, 0
    %p120 = por %p118, %p119
    %p121 = scmp.ne.s32.totalorder %s113, %s115
    %p122 = scmp.eq.s32.totalorder %s18, 1
    %p123 = por %p121, %p122
    %p124 = scmp.ne.s32.totalorder %s115, %s116
    %p125 = scmp.eq.s32.totalorder %s18, 0
    %p126 = por %p124, %p125
    %p127 = scmp.ne.s32.totalorder %s115, %s116
    %p128 = scmp.eq.s32.totalorder %s19, 1
    %p129 = por %p127, %p128
    %p131 = scmp.ne.s32.totalorder %s116, %s130
    %p132 = scmp.eq.s32.totalorder %s19, 0
    %p133 = por %p131, %p132
    %s134 = ssub.s32 %s20, %s32
    %s135 = ssub.s32 %s21, %s28
    %s136 = sor.u32 %s134, %s135
    %p137 = scmp.eq.s32.totalorder %s136, 0
    %s139 = sadd.s32 %s138, 1
    %s140 = scalar_select %p137, %s138, %s139
    %p143 = pneg %p137
    %p144 = scmp.eq.s32.totalorder %s13, 1
    %p145 = por %p143, %p144
    %p146 = scmp.ne.s32.totalorder %s138, %s141
    %p147 = scmp.eq.s32.totalorder %s13, 0
    %p148 = por %p146, %p147
    %p149 = scmp.ne.s32.totalorder %s138, %s141
    %p150 = scmp.eq.s32.totalorder %s18, 1
    %p151 = por %p149, %p150
    %p152 = scmp.ne.s32.totalorder %s141, %s142
    %p153 = scmp.eq.s32.totalorder %s18, 0
    %p154 = por %p152, %p153
    %p155 = scmp.ne.s32.totalorder %s141, %s142
    %p156 = scmp.eq.s32.totalorder %s19, 1
    %p157 = por %p155, %p156
    %p159 = scmp.ne.s32.totalorder %s142, %s158
    %p160 = scmp.eq.s32.totalorder %s19, 0
    %p161 = por %p159, %p160
    %s162 = ssub.s32 %s20, %s32
    %s163 = ssub.s32 %s21, %s28
    %s164 = sor.u32 %s162, %s163
    %p165 = scmp.eq.s32.totalorder %s164, 0
    %s167 = sadd.s32 %s166, 1
    %s168 = scalar_select %p165, %s166, %s167
    %p171 = pneg %p165
    %p172 = scmp.eq.s32.totalorder %s13, 1
    %p173 = por %p171, %p172
    %p174 = scmp.ne.s32.totalorder %s166, %s169
    %p175 = scmp.eq.s32.totalorder %s13, 0
    %p176 = por %p174, %p175
    %p177 = scmp.ne.s32.totalorder %s166, %s169
    %p178 = scmp.eq.s32.totalorder %s18, 1
    %p179 = por %p177, %p178
    %p180 = scmp.ne.s32.totalorder %s169, %s170
    %p181 = scmp.eq.s32.totalorder %s18, 0
    %p182 = por %p180, %p181
    %p183 = scmp.ne.s32.totalorder %s169, %s170
    %p184 = scmp.eq.s32.totalorder %s19, 1
    %p185 = por %p183, %p184
    %p187 = scmp.ne.s32.totalorder %s170, %s186
    %p188 = scmp.eq.s32.totalorder %s19, 0
    %p189 = por %p187, %p188
    %s190 = ssub.s32 %s20, %s32
    %s191 = ssub.s32 %s21, %s28
    %s192 = sor.u32 %s190, %s191
    %p193 = scmp.eq.s32.totalorder %s192, 0
    %s195 = sadd.s32 %s194, 1
    %s196 = scalar_select %p193, %s194, %s195
    %p199 = pneg %p193
    %p200 = scmp.eq.s32.totalorder %s13, 1
    %p201 = por %p199, %p200
    %p202 = scmp.ne.s32.totalorder %s194, %s197
    %p203 = scmp.eq.s32.totalorder %s13, 0
    %p204 = por %p202, %p203
    %p205 = scmp.ne.s32.totalorder %s194, %s197
    %p206 = scmp.eq.s32.totalorder %s18, 1
    %p207 = por %p205, %p206
    %p208 = scmp.ne.s32.totalorder %s197, %s198
    %p209 = scmp.eq.s32.totalorder %s18, 0
    %p210 = por %p208, %p209
    %p211 = scmp.ne.s32.totalorder %s197, %s198
    %p212 = scmp.eq.s32.totalorder %s19, 1
    %p213 = por %p211, %p212
    %p215 = scmp.ne.s32.totalorder %s198, %s214
    %p216 = scmp.eq.s32.totalorder %s19, 0
    %p217 = por %p215, %p216
    %p218 = scmp.le.s32.totalorder 1, %s13
    %p219 = scmp.lt.s32.totalorder %s13, 3
    %p220 = pnand %p218, %p219
    %p221 = pneg %p220
    // Predicated region
    $region9: #{_lambda_.17} parent=5 // pred_check
      _
    $region10: #{_lambda_.17} parent=5 // pred_check_branch
      %223 = sbr.rel (%p220) target = $region12
    $region11: #{_lambda_.17} parent=5 // pred_region
      %s224 = ssub.s32 %s13, 1
      // Predicated region
      $region13: #{_lambda_.17} parent=11 // pred_check
        %p225 = pneg %p126
      $region14: #{_lambda_.17} parent=11 // pred_check_branch
        %227 = sbr.rel (%p225) target = $region16
      $region15: #{_lambda_.17} parent=11 // pred_region
        _
      $region16: #{_lambda_.17} parent=11 // pred_fallthru
        _
    $region12: #{_lambda_.17} parent=5 // pred_fallthru
      _
    %p228 = scmp.lt.s32.totalorder %s13, 2
    // Predicated region
    $region17: #{_lambda_.17} parent=5 // pred_check
      %p229 = pneg %p228
    $region18: #{_lambda_.17} parent=5 // pred_check_branch
      %231 = sbr.rel (%p229) target = $region20
    $region19: #{_lambda_.17} parent=5 // pred_region
      // Predicated region
      $region21: #{_lambda_.17} parent=19 // pred_check
        %p232 = pneg %p47
      $region22: #{_lambda_.17} parent=19 // pred_check_branch
        %234 = sbr.rel (%p232) target = $region24
      $region23: #{_lambda_.17} parent=19 // pred_region
        %s235 = smul.u32 8, %s21
        %p236 = scmp.lt.s32.totalorder %s20, 1
        %s237 = scalar_select %p236, %s20, 1
        %p238 = scmp.lt.s32.totalorder %s235, 7
        %s239 = scalar_select %p238, %s235, 7
        %s240 = smul.addr %s237, 8
        %s241 = sadd.s32 %s239, %s240
        %s242 = smul.addr %s241, 8
        %s243 = scalar_lea.vmem %s0, %s242
        %s244 = smul.u32 8, %s21
      $region24: #{_lambda_.17} parent=19 // pred_fallthru
        _
      // Predicated region
      $region25: #{_lambda_.17} parent=19 // pred_check
        %p245 = pneg %p73
      $region26: #{_lambda_.17} parent=19 // pred_check_branch
        %247 = sbr.rel (%p245) target = $region28
      $region27: #{_lambda_.17} parent=19 // pred_region
        %p248 = scmp.lt.s32.totalorder %s20, 1
        %s249 = scalar_select %p248, %s20, 1
        %s250 = smul.addr %s249, 2
        %s251 = smul.addr %s250, 8
        %s252 = scalar_lea.vmem %s1, %s251
      $region28: #{_lambda_.17} parent=19 // pred_fallthru
        _
      // Predicated region
      $region29: #{_lambda_.17} parent=19 // pred_check
        %p253 = pneg %p99
      $region30: #{_lambda_.17} parent=19 // pred_check_branch
        %255 = sbr.rel (%p253) target = $region32
      $region31: #{_lambda_.17} parent=19 // pred_region
        %p256 = scmp.lt.s32.totalorder %s20, 1
        %s257 = scalar_select %p256, %s20, 1
        %s258 = smul.addr %s257, 2
        %s259 = smul.addr %s258, 8
        %s260 = scalar_lea.vmem %s2, %s259
      $region32: #{_lambda_.17} parent=19 // pred_fallthru
        _
    $region20: #{_lambda_.17} parent=5 // pred_fallthru
      _
    %p261 = scmp.le.s32.totalorder 1, %s13
    %p262 = scmp.lt.s32.totalorder %s13, 3
    %p263 = pnand %p261, %p262
    %p264 = pneg %p263
    // Predicated region
    $region33: #{_lambda_.17} parent=5 // pred_check
      _
    $region34: #{_lambda_.17} parent=5 // pred_check_branch
      %266 = sbr.rel (%p263) target = $region36
    $region35: #{_lambda_.17} parent=5 // pred_region
      %s267 = ssub.s32 %s13, 1
      %s268 = smul.u32 8, %s23
      %p269 = scmp.lt.s32.totalorder %s22, 1
      %s270 = scalar_select %p269, %s22, 1
      %p271 = scmp.lt.s32.totalorder %s268, 7
      %s272 = scalar_select %p271, %s268, 7
      %s273 = smul.addr %s270, 8
      %s274 = sadd.s32 %s272, %s273
      %s275 = smul.addr %s274, 8
      %s276 = scalar_lea.vmem %s0, %s275
      %p277 = pneg %p53
      %p278 = pneg %p50
      %p279 = scmp.lt.s32.totalorder %s22, 1
      %s280 = scalar_select %p279, %s22, 1
      %s281 = smul.addr %s280, 2
      %s282 = smul.addr %s281, 8
      %s283 = scalar_lea.vmem %s1, %s282
      %p284 = pneg %p79
      %p285 = pneg %p76
      %p286 = scmp.lt.s32.totalorder %s22, 1
      %s287 = scalar_select %p286, %s22, 1
      %s288 = smul.addr %s287, 2
      %s289 = smul.addr %s288, 8
      %s290 = scalar_lea.vmem %s2, %s289
      %p291 = pneg %p105
      %p292 = pneg %p102
      %p293 = pneg %p126
      %p294 = pneg %p123
      %p295 = pneg %p154
      %p296 = pneg %p151
      %s297 = smul.u32 8, %s23
      %p298 = scmp.lt.s32.totalorder %s22, 1
      %s299 = scalar_select %p298, %s22, 1
      %p300 = scmp.lt.s32.totalorder %s297, 7
      %s301 = scalar_select %p300, %s297, 7
      %s302 = smul.addr %s299, 8
      %s303 = sadd.s32 %s301, %s302
      %s304 = smul.addr %s303, 8
      %s305 = scalar_lea.vmem %s4, %s304
      %p306 = pneg %p182
      %p307 = pneg %p179
      %s308 = smul.u32 8, %s23
      %p309 = scmp.lt.s32.totalorder %s22, 1
      %s310 = scalar_select %p309, %s22, 1
      %p311 = scmp.lt.s32.totalorder %s308, 7
      %s312 = scalar_select %p311, %s308, 7
      %s313 = smul.addr %s310, 8
      %s314 = sadd.s32 %s312, %s313
      %s315 = smul.addr %s314, 8
      %s316 = scalar_lea.vmem %s5, %s315
      %p317 = pneg %p210
      %p318 = pneg %p207
      %s319 = smul.u32 8, %s23
      %p320 = scmp.lt.s32.totalorder %s22, 1
      %s321 = scalar_select %p320, %s22, 1
      %p322 = scmp.lt.s32.totalorder %s319, 7
      %s323 = scalar_select %p322, %s319, 7
      %s324 = smul.addr %s321, 8
      %s325 = sadd.s32 %s323, %s324
      %s326 = smul.addr %s325, 8
      %s327 = scalar_lea.vmem %s6, %s326
      %s328 = smul.u32 8, %s23
      %p329 = scmp.lt.s32.totalorder %s22, 1
      %s330 = scalar_select %p329, %s22, 1
      %p331 = scmp.lt.s32.totalorder %s328, 7
      %s332 = scalar_select %p331, %s328, 7
      %s333 = smul.addr %s330, 8
      %s334 = sadd.s32 %s332, %s333
      %s335 = smul.addr %s334, 8
      %s336 = scalar_lea.vmem %s0, %s335
      %s337 = smul.u32 8, %s23
      %p338 = scmp.lt.s32.totalorder %s22, 1
      %s339 = scalar_select %p338, %s22, 1
      %s340 = smul.addr %s339, 2
      %s341 = smul.addr %s340, 8
      %s342 = scalar_lea.vmem %s1, %s341
      %p343 = scmp.lt.s32.totalorder %s22, 1
      %s344 = scalar_select %p343, %s22, 1
      %s345 = smul.addr %s344, 2
      %s346 = smul.addr %s345, 8
      %s347 = scalar_lea.vmem %s2, %s346
      %s348 = smul.u32 8, %s23
      %p349 = scmp.lt.s32.totalorder %s22, 1
      %s350 = scalar_select %p349, %s22, 1
      %p351 = scmp.lt.s32.totalorder %s348, 7
      %s352 = scalar_select %p351, %s348, 7
      %s353 = smul.addr %s350, 8
      %s354 = sadd.s32 %s352, %s353
      %s355 = smul.addr %s354, 8
      %s356 = scalar_lea.vmem %s4, %s355
      %s357 = smul.u32 8, %s23
      %s358 = smul.u32 8, %s23
      %p359 = scmp.lt.s32.totalorder %s22, 1
      %s360 = scalar_select %p359, %s22, 1
      %p361 = scmp.lt.s32.totalorder %s358, 7
      %s362 = scalar_select %p361, %s358, 7
      %s363 = smul.addr %s360, 8
      %s364 = sadd.s32 %s362, %s363
      %s365 = smul.addr %s364, 8
      %s366 = scalar_lea.vmem %s5, %s365
      %s367 = smul.u32 8, %s23
      %s368 = smul.u32 8, %s23
      %p369 = scmp.lt.s32.totalorder %s22, 1
      %s370 = scalar_select %p369, %s22, 1
      %p371 = scmp.lt.s32.totalorder %s368, 7
      %s372 = scalar_select %p371, %s368, 7
      %s373 = smul.addr %s370, 8
      %s374 = sadd.s32 %s372, %s373
      %s375 = smul.addr %s374, 8
      %s376 = scalar_lea.vmem %s6, %s375
      %s377 = smul.u32 8, %s23
      %v379 = vld [vmem:[%s336] sm:$0xff]
      %v380 = vld [vmem:[%s336 + $0x8] sm:$0xff]
      %v381 = vld [vmem:[%s336 + $0x10] sm:$0xff]
      %v382 = vld [vmem:[%s336 + $0x18] sm:$0xff]
      %v383 = vld [vmem:[%s336 + $0x20] sm:$0xff]
      %v384 = vld [vmem:[%s336 + $0x28] sm:$0xff]
      %v385 = vld [vmem:[%s336 + $0x30] sm:$0xff]
      %v386 = vld [vmem:[%s336 + $0x38] sm:$0xff]
      %v387 = vld [vmem:[%s342] sm:$0xff]
      %v388 = vld [vmem:[%s342 + $0x8] sm:$0xff]
      %v389 = vmul.f32 %v379, %v379
      %v390 = vmul.f32 %v380, %v380
      %v391 = vmul.f32 %v381, %v381
      %v392 = vmul.f32 %v382, %v382
      %v393 = vmul.f32 %v383, %v383
      %v394 = vmul.f32 %v384, %v384
      %v395 = vmul.f32 %v385, %v385
      %v396 = vmul.f32 %v386, %v386
      %vm397 = vcmask 64512
      %v398 = vsel %vm397, %v389, 0.0
      %399 = vadd.xlane.f32.xlu0 %v398
      %v400 = vpop.xlane.xlu0 %399
      %v401 = vsel %vm397, %v390, 0.0
      %402 = vadd.xlane.f32.xlu0 %v401
      %v403 = vpop.xlane.xlu0 %402
      %v404 = vsel %vm397, %v391, 0.0
      %405 = vadd.xlane.f32.xlu0 %v404
      %v406 = vpop.xlane.xlu0 %405
      %v407 = vsel %vm397, %v392, 0.0
      %408 = vadd.xlane.f32.xlu0 %v407
      %v409 = vpop.xlane.xlu0 %408
      %v410 = vsel %vm397, %v393, 0.0
      %411 = vadd.xlane.f32.xlu0 %v410
      %v412 = vpop.xlane.xlu0 %411
      %v413 = vsel %vm397, %v394, 0.0
      %414 = vadd.xlane.f32.xlu0 %v413
      %v415 = vpop.xlane.xlu0 %414
      %v416 = vsel %vm397, %v395, 0.0
      %417 = vadd.xlane.f32.xlu0 %v416
      %v418 = vpop.xlane.xlu0 %417
      %v419 = vsel %vm397, %v396, 0.0
      %420 = vadd.xlane.f32.xlu0 %v419
      %v421 = vpop.xlane.xlu0 %420
      %v422 = vmax.f32 %v400, 1e-24
      %v423 = vmax.f32 %v403, 1e-24
      %v424 = vmax.f32 %v406, 1e-24
      %v425 = vmax.f32 %v409, 1e-24
      %v426 = vmax.f32 %v412, 1e-24
      %v427 = vmax.f32 %v415, 1e-24
      %v428 = vmax.f32 %v418, 1e-24
      %v429 = vmax.f32 %v421, 1e-24
      %v430 = vrsqrt.pop %v422
      %v431 = vrsqrt.pop %v423
      %v432 = vrsqrt.pop %v424
      %v433 = vrsqrt.pop %v425
      %v434 = vrsqrt.pop %v426
      %v435 = vrsqrt.pop %v427
      %v436 = vrsqrt.pop %v428
      %v437 = vrsqrt.pop %v429
      %v438 = vmul.f32 %v379, %v430
      %v439 = vmul.f32 %v380, %v431
      %v440 = vmul.f32 %v381, %v432
      %v441 = vmul.f32 %v382, %v433
      %v442 = vmul.f32 %v383, %v434
      %v443 = vmul.f32 %v384, %v435
      %v444 = vmul.f32 %v385, %v436
      %v445 = vmul.f32 %v386, %v437
      %v446 = vmul.f32 %v387, %v387
      %v447 = vmul.f32 %v388, %v388
      %v448 = vsel %vm397, %v446, 0.0
      %449 = vadd.xlane.f32.xlu0 %v448
      %v450 = vpop.xlane.xlu0 %449
      %v451 = vsel %vm397, %v447, 0.0
      %452 = vadd.xlane.f32.xlu0 %v451
      %v453 = vpop.xlane.xlu0 %452
      %v454 = vmax.f32 %v450, 1e-24
      %v455 = vmax.f32 %v453, 1e-24
      %v456 = vrsqrt.pop %v454
      %v457 = vrsqrt.pop %v455
      %v458 = vmul.f32 %v387, %v456
      %v459 = vmul.f32 %v388, %v457
      %v461 = vsel %vm397, %v438, 0
      %v464 = vsel %vm397, %v439, 0
      %v467 = vsel %vm397, %v440, 0
      %v470 = vsel %vm397, %v441, 0
      %v473 = vsel %vm397, %v442, 0
      %v476 = vsel %vm397, %v443, 0
      %v479 = vsel %vm397, %v444, 0
      %v482 = vsel %vm397, %v445, 0
      %v485 = vsel %vm397, %v458, 0
      %v488 = vsel %vm397, %v459, 0
      %490 = vmatprep.subr.mxu0 0.0
      %491 = vmatpush1.xpose.msra.mxu0 %v485
      %492 = vmatprep.subr.mxu0 0.0
      %493 = vmatpush1.xpose.msra.mxu0 %v488
      %494 = vmatprep.subr.mxu0 0.0
      %495 = vmatpush1.xpose.msra.mxu0 0.0
      %496 = vmatprep.subr.mxu0 0.0
      %497 = vmatpush1.xpose.msra.mxu0 0.0
      %498 = vmatprep.subr.mxu0 0.0
      %499 = vmatpush1.xpose.msra.mxu0 0.0
      %500 = vmatprep.subr.mxu0 0.0
      %501 = vmatpush1.xpose.msra.mxu0 0.0
      %502 = vmatprep.subr.mxu0 0.0
      %503 = vmatpush1.xpose.msra.mxu0 0.0
      %504 = vmatprep.subr.mxu0 0.0
      %505 = vmatpush1.xpose.msra.mxu0 0.0
      %506 = vmatprep.subr.mxu0 0.0
      %507 = vmatpush1.xpose.msra.mxu0 0.0
      %508 = vmatprep.subr.mxu0 0.0
      %509 = vmatpush1.xpose.msra.mxu0 0.0
      %510 = vmatprep.subr.mxu0 0.0
      %511 = vmatpush1.xpose.msra.mxu0 0.0
      %512 = vmatprep.subr.mxu0 0.0
      %513 = vmatpush1.xpose.msra.mxu0 0.0
      %514 = vmatprep.subr.mxu0 0.0
      %515 = vmatpush1.xpose.msra.mxu0 0.0
      %516 = vmatprep.subr.mxu0 0.0
      %517 = vmatpush1.xpose.msra.mxu0 0.0
      %518 = vmatprep.subr.mxu0 0.0
      %519 = vmatpush1.xpose.msra.mxu0 0.0
      %520 = vmatprep.subr.mxu0 0.0
      %521 = vmatpush1.xpose.msra.mxu0 0.0
      %522 = vmatprep.subr.mxu0 0.0
      %523 = vmatpush1.xpose.msra.mxu0 0.0
      %524 = vmatprep.subr.mxu0 0.0
      %525 = vmatpush1.xpose.msra.mxu0 0.0
      %526 = vmatprep.subr.mxu0 0.0
      %527 = vmatpush1.xpose.msra.mxu0 0.0
      %528 = vmatprep.subr.mxu0 0.0
      %529 = vmatpush1.xpose.msra.mxu0 0.0
      %530 = vmatprep.subr.mxu0 0.0
      %531 = vmatpush1.xpose.msra.mxu0 0.0
      %532 = vmatprep.subr.mxu0 0.0
      %533 = vmatpush1.xpose.msra.mxu0 0.0
      %534 = vmatprep.subr.mxu0 0.0
      %535 = vmatpush1.xpose.msra.mxu0 0.0
      %536 = vmatprep.subr.mxu0 0.0
      %537 = vmatpush1.xpose.msra.mxu0 0.0
      %538 = vmatprep.subr.mxu0 0.0
      %539 = vmatpush1.xpose.msra.mxu0 0.0
      %540 = vmatprep.subr.mxu0 0.0
      %541 = vmatpush1.xpose.msra.mxu0 0.0
      %542 = vmatprep.subr.mxu0 0.0
      %543 = vmatpush1.xpose.msra.mxu0 0.0
      %544 = vmatprep.subr.mxu0 0.0
      %545 = vmatpush1.xpose.msra.mxu0 0.0
      %546 = vmatprep.subr.mxu0 0.0
      %547 = vmatpush1.xpose.msra.mxu0 0.0
      %548 = vmatprep.subr.mxu0 0.0
      %549 = vmatpush1.xpose.msra.mxu0 0.0
      %550 = vmatprep.subr.mxu0 0.0
      %551 = vmatpush1.xpose.msra.mxu0 0.0
      %552 = vmatprep.subr.mxu0 0.0
      %553 = vmatpush1.xpose.msra.mxu0 0.0
      %554 = vmatprep.mubr.f32.mxu0 0.0
      %555 = vmatmul.mubr.f32.gmra.mrb[0].mxu0 %v461
      %v556 = vpop.f32.mrb[0].mxu0
      %v557 = vadd.f32 0.0, %v556
      %v558 = vpop.f32.mrb[0].mxu0
      %559 = vmatprep.mubr.f32.mxu0 0.0
      %560 = vmatmul.mubr.f32.gmra.mrb[0].mxu0 %v464
      %v561 = vpop.f32.mrb[0].mxu0
      %v562 = vadd.f32 0.0, %v561
      %v563 = vpop.f32.mrb[0].mxu0
      %564 = vmatprep.mubr.f32.mxu0 0.0
      %565 = vmatmul.mubr.f32.gmra.mrb[0].mxu0 %v467
      %v566 = vpop.f32.mrb[0].mxu0
      %v567 = vadd.f32 0.0, %v566
      %v568 = vpop.f32.mrb[0].mxu0
      %569 = vmatprep.mubr.f32.mxu0 0.0
      %570 = vmatmul.mubr.f32.gmra.mrb[0].mxu0 %v470
      %v571 = vpop.f32.mrb[0].mxu0
      %v572 = vadd.f32 0.0, %v571
      %v573 = vpop.f32.mrb[0].mxu0
      %574 = vmatprep.mubr.f32.mxu0 0.0
      %575 = vmatmul.mubr.f32.gmra.mrb[0].mxu0 %v473
      %v576 = vpop.f32.mrb[0].mxu0
      %v577 = vadd.f32 0.0, %v576
      %v578 = vpop.f32.mrb[0].mxu0
      %579 = vmatprep.mubr.f32.mxu0 0.0
      %580 = vmatmul.mubr.f32.gmra.mrb[0].mxu0 %v476
      %v581 = vpop.f32.mrb[0].mxu0
      %v582 = vadd.f32 0.0, %v581
      %v583 = vpop.f32.mrb[0].mxu0
      %584 = vmatprep.mubr.f32.mxu0 0.0
      %585 = vmatmul.mubr.f32.gmra.mrb[0].mxu0 %v479
      %v586 = vpop.f32.mrb[0].mxu0
      %v587 = vadd.f32 0.0, %v586
      %v588 = vpop.f32.mrb[0].mxu0
      %589 = vmatprep.mubr.f32.mxu0 0.0
      %590 = vmatmul.mubr.f32.gmra.mrb[0].mxu0 %v482
      %v591 = vpop.f32.mrb[0].mxu0
      %v592 = vadd.f32 0.0, %v591
      %v593 = vpop.f32.mrb[0].mxu0
      %594 = vdwg.mxu0
      %v595 = vld [vmem:[%s3] sm:$0x1]
      %v596 = vmax.f32 %v595, 0.0
      %v597 = vmin.f32 %v596, 1.0
      %v598 = vmul.f32 %v597, 2.7725887
      %v599 = vadd.f32 %v598, 1.0
      %v601 = vlaneseq
      %v602 = vshrl.u32 %v601, 7
      %v603 = vsub.s32 0, %v602
      %v604 = vrot.slane %v599, %v603
      %v606 = vmul.f32 %v557, %v604
      %v607 = vmul.f32 %v562, %v604
      %v608 = vmul.f32 %v567, %v604
      %v609 = vmul.f32 %v572, %v604
      %v610 = vmul.f32 %v577, %v604
      %v611 = vmul.f32 %v582, %v604
      %v612 = vmul.f32 %v587, %v604
      %v613 = vmul.f32 %v592, %v604
      %vm614 = vcmask 130048
      %v615 = vsel %vm614, %v606, -inf
      %616 = vmax.xlane.f32.xlu0 %v615
      %v617 = vpop.xlane.xlu0 %616
      %v618 = vsel %vm614, %v607, -inf
      %619 = vmax.xlane.f32.xlu0 %v618
      %v620 = vpop.xlane.xlu0 %619
      %v621 = vsel %vm614, %v608, -inf
      %622 = vmax.xlane.f32.xlu0 %v621
      %v623 = vpop.xlane.xlu0 %622
      %v624 = vsel %vm614, %v609, -inf
      %625 = vmax.xlane.f32.xlu0 %v624
      %v626 = vpop.xlane.xlu0 %625
      %v627 = vsel %vm614, %v610, -inf
      %628 = vmax.xlane.f32.xlu0 %v627
      %v629 = vpop.xlane.xlu0 %628
      %v630 = vsel %vm614, %v611, -inf
      %631 = vmax.xlane.f32.xlu0 %v630
      %v632 = vpop.xlane.xlu0 %631
      %v633 = vsel %vm614, %v612, -inf
      %634 = vmax.xlane.f32.xlu0 %v633
      %v635 = vpop.xlane.xlu0 %634
      %v636 = vsel %vm614, %v613, -inf
      %637 = vmax.xlane.f32.xlu0 %v636
      %v638 = vpop.xlane.xlu0 %637
      %v639 = vsub.f32 %v606, %v617
      %v640 = vsub.f32 %v607, %v620
      %v641 = vsub.f32 %v608, %v623
      %v642 = vsub.f32 %v609, %v626
      %v643 = vsub.f32 %v610, %v629
      %v644 = vsub.f32 %v611, %v632
      %v645 = vsub.f32 %v612, %v635
      %v646 = vsub.f32 %v613, %v638
      %v647 = vmul.f32 %v639, 1.442695
      %v648 = vpow.pop %v647
      %v649 = vmul.f32 %v640, 1.442695
      %v650 = vpow.pop %v649
      %v651 = vmul.f32 %v641, 1.442695
      %v652 = vpow.pop %v651
      %v653 = vmul.f32 %v642, 1.442695
      %v654 = vpow.pop %v653
      %v655 = vmul.f32 %v643, 1.442695
      %v656 = vpow.pop %v655
      %v657 = vmul.f32 %v644, 1.442695
      %v658 = vpow.pop %v657
      %v659 = vmul.f32 %v645, 1.442695
      %v660 = vpow.pop %v659
      %v661 = vmul.f32 %v646, 1.442695
      %v662 = vpow.pop %v661
      %v663 = vsel %vm614, %v648, 0.0
      %664 = vadd.xlane.f32.xlu0 %v663
      %v665 = vpop.xlane.xlu0 %664
      %v666 = vsel %vm614, %v650, 0.0
      %667 = vadd.xlane.f32.xlu0 %v666
      %v668 = vpop.xlane.xlu0 %667
      %v669 = vsel %vm614, %v652, 0.0
      %670 = vadd.xlane.f32.xlu0 %v669
      %v671 = vpop.xlane.xlu0 %670
      %v672 = vsel %vm614, %v654, 0.0
      %673 = vadd.xlane.f32.xlu0 %v672
      %v674 = vpop.xlane.xlu0 %673
      %v675 = vsel %vm614, %v656, 0.0
      %676 = vadd.xlane.f32.xlu0 %v675
      %v677 = vpop.xlane.xlu0 %676
      %v678 = vsel %vm614, %v658, 0.0
      %679 = vadd.xlane.f32.xlu0 %v678
      %v680 = vpop.xlane.xlu0 %679
      %v681 = vsel %vm614, %v660, 0.0
      %682 = vadd.xlane.f32.xlu0 %v681
      %v683 = vpop.xlane.xlu0 %682
      %v684 = vsel %vm614, %v662, 0.0
      %685 = vadd.xlane.f32.xlu0 %v684
      %v686 = vpop.xlane.xlu0 %685
      %v687 = vrcp.pop %v665
      %v688 = vrcp.pop %v668
      %v689 = vrcp.pop %v671
      %v690 = vrcp.pop %v674
      %v691 = vrcp.pop %v677
      %v692 = vrcp.pop %v680
      %v693 = vrcp.pop %v683
      %v694 = vrcp.pop %v686
      %v695 = vmul.f32 %v648, %v687
      %v696 = vmul.f32 %v650, %v688
      %v697 = vmul.f32 %v652, %v689
      %v698 = vmul.f32 %v654, %v690
      %v699 = vmul.f32 %v656, %v691
      %v700 = vmul.f32 %v658, %v692
      %v701 = vmul.f32 %v660, %v693
      %v702 = vmul.f32 %v662, %v694
      %703 = vst.msk [vmem:[%s366] sm:$0xff] %vm614, %v695
      %704 = vst.msk [vmem:[%s366 + $0x8] sm:$0xff] %vm614, %v696
      %705 = vst.msk [vmem:[%s366 + $0x10] sm:$0xff] %vm614, %v697
      %706 = vst.msk [vmem:[%s366 + $0x18] sm:$0xff] %vm614, %v698
      %707 = vst.msk [vmem:[%s366 + $0x20] sm:$0xff] %vm614, %v699
      %708 = vst.msk [vmem:[%s366 + $0x28] sm:$0xff] %vm614, %v700
      %709 = vst.msk [vmem:[%s366 + $0x30] sm:$0xff] %vm614, %v701
      %710 = vst.msk [vmem:[%s366 + $0x38] sm:$0xff] %vm614, %v702
      %v711 = vlaneseq
      %v712 = vand.u32 %v711, 127
      %v713 = vsel %vm614, %v695, -inf
      %714 = vmax.xlane.f32.xlu0 %v713
      %v715 = vpop.xlane.xlu0 %714
      %v716 = vsel %vm614, %v696, -inf
      %717 = vmax.xlane.f32.xlu0 %v716
      %v718 = vpop.xlane.xlu0 %717
      %v719 = vsel %vm614, %v697, -inf
      %720 = vmax.xlane.f32.xlu0 %v719
      %v721 = vpop.xlane.xlu0 %720
      %v722 = vsel %vm614, %v698, -inf
      %723 = vmax.xlane.f32.xlu0 %v722
      %v724 = vpop.xlane.xlu0 %723
      %v725 = vsel %vm614, %v699, -inf
      %726 = vmax.xlane.f32.xlu0 %v725
      %v727 = vpop.xlane.xlu0 %726
      %v728 = vsel %vm614, %v700, -inf
      %729 = vmax.xlane.f32.xlu0 %v728
      %v730 = vpop.xlane.xlu0 %729
      %v731 = vsel %vm614, %v701, -inf
      %732 = vmax.xlane.f32.xlu0 %v731
      %v733 = vpop.xlane.xlu0 %732
      %v734 = vsel %vm614, %v702, -inf
      %735 = vmax.xlane.f32.xlu0 %v734
      %v736 = vpop.xlane.xlu0 %735
      %vm737 = vcmp.ge.f32.partialorder %v695, %v715
      %vm738 = vcmp.ge.f32.partialorder %v696, %v718
      %vm739 = vcmp.ge.f32.partialorder %v697, %v721
      %vm740 = vcmp.ge.f32.partialorder %v698, %v724
      %vm741 = vcmp.ge.f32.partialorder %v699, %v727
      %vm742 = vcmp.ge.f32.partialorder %v700, %v730
      %vm743 = vcmp.ge.f32.partialorder %v701, %v733
      %vm744 = vcmp.ge.f32.partialorder %v702, %v736
      %v745 = vsel %vm737, %v712, 16
      %v746 = vsel %vm738, %v712, 16
      %v747 = vsel %vm739, %v712, 16
      %v748 = vsel %vm740, %v712, 16
      %v749 = vsel %vm741, %v712, 16
      %v750 = vsel %vm742, %v712, 16
      %v751 = vsel %vm743, %v712, 16
      %v752 = vsel %vm744, %v712, 16
      %v753 = vsel %vm614, %v745, 2147483647
      %v754 = vand.u32 %v753, 65535
      %v755 = vshra.s32 %v753, 16
      %v756 = vcvt.s32.f32 %v754
      %v757 = vcvt.s32.f32 %v755
      %758 = vmin.xlane.f32.xlu0 %v757
      %v759 = vpop.xlane.xlu0 %758
      %vm760 = vcmp.eq.f32.partialorder %v757, %v759
      %v761 = vsel %vm760, %v756, inf
      %762 = vmin.xlane.f32.xlu0 %v761
      %v763 = vpop.xlane.xlu0 %762
      %v764 = vcvt.f32.s32 %v763
      %v765 = vcvt.f32.s32 %v759
      %v766 = vshll.u32 %v765, 16
      %v767 = vadd.s32 %v766, %v764
      %v768 = vsel %vm614, %v746, 2147483647
      %v769 = vand.u32 %v768, 65535
      %v770 = vshra.s32 %v768, 16
      %v771 = vcvt.s32.f32 %v769
      %v772 = vcvt.s32.f32 %v770
      %773 = vmin.xlane.f32.xlu0 %v772
      %v774 = vpop.xlane.xlu0 %773
      %vm775 = vcmp.eq.f32.partialorder %v772, %v774
      %v776 = vsel %vm775, %v771, inf
      %777 = vmin.xlane.f32.xlu0 %v776
      %v778 = vpop.xlane.xlu0 %777
      %v779 = vcvt.f32.s32 %v778
      %v780 = vcvt.f32.s32 %v774
      %v781 = vshll.u32 %v780, 16
      %v782 = vadd.s32 %v781, %v779
      %v783 = vsel %vm614, %v747, 2147483647
      %v784 = vand.u32 %v783, 65535
      %v785 = vshra.s32 %v783, 16
      %v786 = vcvt.s32.f32 %v784
      %v787 = vcvt.s32.f32 %v785
      %788 = vmin.xlane.f32.xlu0 %v787
      %v789 = vpop.xlane.xlu0 %788
      %vm790 = vcmp.eq.f32.partialorder %v787, %v789
      %v791 = vsel %vm790, %v786, inf
      %792 = vmin.xlane.f32.xlu0 %v791
      %v793 = vpop.xlane.xlu0 %792
      %v794 = vcvt.f32.s32 %v793
      %v795 = vcvt.f32.s32 %v789
      %v796 = vshll.u32 %v795, 16
      %v797 = vadd.s32 %v796, %v794
      %v798 = vsel %vm614, %v748, 2147483647
      %v799 = vand.u32 %v798, 65535
      %v800 = vshra.s32 %v798, 16
      %v801 = vcvt.s32.f32 %v799
      %v802 = vcvt.s32.f32 %v800
      %803 = vmin.xlane.f32.xlu0 %v802
      %v804 = vpop.xlane.xlu0 %803
      %vm805 = vcmp.eq.f32.partialorder %v802, %v804
      %v806 = vsel %vm805, %v801, inf
      %807 = vmin.xlane.f32.xlu0 %v806
      %v808 = vpop.xlane.xlu0 %807
      %v809 = vcvt.f32.s32 %v808
      %v810 = vcvt.f32.s32 %v804
      %v811 = vshll.u32 %v810, 16
      %v812 = vadd.s32 %v811, %v809
      %v813 = vsel %vm614, %v749, 2147483647
      %v814 = vand.u32 %v813, 65535
      %v815 = vshra.s32 %v813, 16
      %v816 = vcvt.s32.f32 %v814
      %v817 = vcvt.s32.f32 %v815
      %818 = vmin.xlane.f32.xlu0 %v817
      %v819 = vpop.xlane.xlu0 %818
      %vm820 = vcmp.eq.f32.partialorder %v817, %v819
      %v821 = vsel %vm820, %v816, inf
      %822 = vmin.xlane.f32.xlu0 %v821
      %v823 = vpop.xlane.xlu0 %822
      %v824 = vcvt.f32.s32 %v823
      %v825 = vcvt.f32.s32 %v819
      %v826 = vshll.u32 %v825, 16
      %v827 = vadd.s32 %v826, %v824
      %v828 = vsel %vm614, %v750, 2147483647
      %v829 = vand.u32 %v828, 65535
      %v830 = vshra.s32 %v828, 16
      %v831 = vcvt.s32.f32 %v829
      %v832 = vcvt.s32.f32 %v830
      %833 = vmin.xlane.f32.xlu0 %v832
      %v834 = vpop.xlane.xlu0 %833
      %vm835 = vcmp.eq.f32.partialorder %v832, %v834
      %v836 = vsel %vm835, %v831, inf
      %837 = vmin.xlane.f32.xlu0 %v836
      %v838 = vpop.xlane.xlu0 %837
      %v839 = vcvt.f32.s32 %v838
      %v840 = vcvt.f32.s32 %v834
      %v841 = vshll.u32 %v840, 16
      %v842 = vadd.s32 %v841, %v839
      %v843 = vsel %vm614, %v751, 2147483647
      %v844 = vand.u32 %v843, 65535
      %v845 = vshra.s32 %v843, 16
      %v846 = vcvt.s32.f32 %v844
      %v847 = vcvt.s32.f32 %v845
      %848 = vmin.xlane.f32.xlu0 %v847
      %v849 = vpop.xlane.xlu0 %848
      %vm850 = vcmp.eq.f32.partialorder %v847, %v849
      %v851 = vsel %vm850, %v846, inf
      %852 = vmin.xlane.f32.xlu0 %v851
      %v853 = vpop.xlane.xlu0 %852
      %v854 = vcvt.f32.s32 %v853
      %v855 = vcvt.f32.s32 %v849
      %v856 = vshll.u32 %v855, 16
      %v857 = vadd.s32 %v856, %v854
      %v858 = vsel %vm614, %v752, 2147483647
      %v859 = vand.u32 %v858, 65535
      %v860 = vshra.s32 %v858, 16
      %v861 = vcvt.s32.f32 %v859
      %v862 = vcvt.s32.f32 %v860
      %863 = vmin.xlane.f32.xlu0 %v862
      %v864 = vpop.xlane.xlu0 %863
      %vm865 = vcmp.eq.f32.partialorder %v862, %v864
      %v866 = vsel %vm865, %v861, inf
      %867 = vmin.xlane.f32.xlu0 %v866
      %v868 = vpop.xlane.xlu0 %867
      %v869 = vcvt.f32.s32 %v868
      %v870 = vcvt.f32.s32 %v864
      %v871 = vshll.u32 %v870, 16
      %v872 = vadd.s32 %v871, %v869
      %vm873 = vcmask 7168
      %874 = vst.msk [vmem:[%s376] sm:$0xff] %vm873, %v767
      %875 = vst.msk [vmem:[%s376 + $0x8] sm:$0xff] %vm873, %v782
      %876 = vst.msk [vmem:[%s376 + $0x10] sm:$0xff] %vm873, %v797
      %877 = vst.msk [vmem:[%s376 + $0x18] sm:$0xff] %vm873, %v812
      %878 = vst.msk [vmem:[%s376 + $0x20] sm:$0xff] %vm873, %v827
      %879 = vst.msk [vmem:[%s376 + $0x28] sm:$0xff] %vm873, %v842
      %880 = vst.msk [vmem:[%s376 + $0x30] sm:$0xff] %vm873, %v857
      %881 = vst.msk [vmem:[%s376 + $0x38] sm:$0xff] %vm873, %v872
      %v882 = vpack.c.bf16 %v696, %v695
      %v883 = vpack.c.bf16 %v698, %v697
      %v884 = vpack.c.bf16 %v700, %v699
      %v885 = vpack.c.bf16 %v702, %v701
      %v886 = vld [vmem:[%s347] sm:$0xff]
      %v887 = vld [vmem:[%s347 + $0x8] sm:$0xff]
      %v888 = vpack.c.bf16 %v887, %v886
      %v890 = vsel %vm614, %v882, 0
      %v893 = vsel %vm614, %v883, 0
      %v896 = vsel %vm614, %v884, 0
      %v899 = vsel %vm614, %v885, 0
      %901 = vmatprep.subr.bf16.mxu0 0
      %902 = vmatpush1.bf16.msra.mxu0 %v888
      %903 = vmatprep.subr.bf16.mxu0 0
      %904 = vmatpush1.bf16.msra.mxu0 0
      %905 = vmatprep.subr.bf16.mxu0 0
      %906 = vmatpush1.bf16.msra.mxu0 0
      %907 = vmatprep.subr.bf16.mxu0 0
      %908 = vmatpush1.bf16.msra.mxu0 0
      %909 = vmatprep.subr.bf16.mxu0 0
      %910 = vmatpush1.bf16.msra.mxu0 0
      %911 = vmatprep.subr.bf16.mxu0 0
      %912 = vmatpush1.bf16.msra.mxu0 0
      %913 = vmatprep.subr.bf16.mxu0 0
      %914 = vmatpush1.bf16.msra.mxu0 0
      %915 = vmatprep.subr.bf16.mxu0 0
      %916 = vmatpush1.bf16.msra.mxu0 0
      %917 = vmatprep.subr.bf16.mxu0 0
      %918 = vmatpush1.bf16.msra.mxu0 0
      %919 = vmatprep.subr.bf16.mxu0 0
      %920 = vmatpush1.bf16.msra.mxu0 0
      %921 = vmatprep.subr.bf16.mxu0 0
      %922 = vmatpush1.bf16.msra.mxu0 0
      %923 = vmatprep.subr.bf16.mxu0 0
      %924 = vmatpush1.bf16.msra.mxu0 0
      %925 = vmatprep.subr.bf16.mxu0 0
      %926 = vmatpush1.bf16.msra.mxu0 0
      %927 = vmatprep.subr.bf16.mxu0 0
      %928 = vmatpush1.bf16.msra.mxu0 0
      %929 = vmatprep.subr.bf16.mxu0 0
      %930 = vmatpush1.bf16.msra.mxu0 0
      %931 = vmatprep.subr.bf16.mxu0 0
      %932 = vmatpush1.bf16.msra.mxu0 0
      %933 = vmatprep.mubr.bf16.mxu0 0
      %934 = vmatmul.mubr.bf16.gmra.mrb[0].mxu0 %v890
      %v935 = vpop.f32.mrb[0].mxu0
      %v936 = vadd.f32 0.0, %v935
      %v937 = vpop.f32.mrb[0].mxu0
      %v938 = vpop.f32.mrb[0].mxu0
      %v939 = vadd.f32 0.0, %v938
      %v940 = vpop.f32.mrb[0].mxu0
      %941 = vmatprep.mubr.bf16.mxu0 0
      %942 = vmatmul.mubr.bf16.gmra.mrb[0].mxu0 %v893
      %v943 = vpop.f32.mrb[0].mxu0
      %v944 = vadd.f32 0.0, %v943
      %v945 = vpop.f32.mrb[0].mxu0
      %v946 = vpop.f32.mrb[0].mxu0
      %v947 = vadd.f32 0.0, %v946
      %v948 = vpop.f32.mrb[0].mxu0
      %949 = vmatprep.mubr.bf16.mxu0 0
      %950 = vmatmul.mubr.bf16.gmra.mrb[0].mxu0 %v896
      %v951 = vpop.f32.mrb[0].mxu0
      %v952 = vadd.f32 0.0, %v951
      %v953 = vpop.f32.mrb[0].mxu0
      %v954 = vpop.f32.mrb[0].mxu0
      %v955 = vadd.f32 0.0, %v954
      %v956 = vpop.f32.mrb[0].mxu0
      %957 = vmatprep.mubr.bf16.mxu0 0
      %958 = vmatmul.mubr.bf16.gmra.mrb[0].mxu0 %v899
      %v959 = vpop.f32.mrb[0].mxu0
      %v960 = vadd.f32 0.0, %v959
      %v961 = vpop.f32.mrb[0].mxu0
      %v962 = vpop.f32.mrb[0].mxu0
      %v963 = vadd.f32 0.0, %v962
      %v964 = vpop.f32.mrb[0].mxu0
      %965 = vdwg.mxu0
      %vm966 = vcmask 261120
      %967 = vst.msk [vmem:[%s356] sm:$0xff] %vm966, %v936
      %968 = vst.msk [vmem:[%s356 + $0x8] sm:$0xff] %vm966, %v939
      %969 = vst.msk [vmem:[%s356 + $0x10] sm:$0xff] %vm966, %v944
      %970 = vst.msk [vmem:[%s356 + $0x18] sm:$0xff] %vm966, %v947
      %971 = vst.msk [vmem:[%s356 + $0x20] sm:$0xff] %vm966, %v952
      %972 = vst.msk [vmem:[%s356 + $0x28] sm:$0xff] %vm966, %v955
      %973 = vst.msk [vmem:[%s356 + $0x30] sm:$0xff] %vm966, %v960
      %974 = vst.msk [vmem:[%s356 + $0x38] sm:$0xff] %vm966, %v963
      %s975 = smul.u32 8, %s23
      %p976 = scmp.lt.s32.totalorder %s22, 1
      %s977 = scalar_select %p976, %s22, 1
      %p978 = scmp.lt.s32.totalorder %s975, 7
      %s979 = scalar_select %p978, %s975, 7
      %s980 = smul.addr %s977, 8
      %s981 = sadd.s32 %s979, %s980
      %s982 = smul.addr %s981, 8
      %s983 = scalar_lea.vmem %s4, %s982
      %s984 = smul.u32 8, %s23
      %p985 = scmp.lt.s32.totalorder %s22, 1
      %s986 = scalar_select %p985, %s22, 1
      %p987 = scmp.lt.s32.totalorder %s984, 7
      %s988 = scalar_select %p987, %s984, 7
      %s989 = smul.addr %s986, 8
      %s990 = sadd.s32 %s988, %s989
      %s991 = smul.addr %s990, 8
      %s992 = scalar_lea.vmem %s5, %s991
      %s993 = smul.u32 8, %s23
      %p994 = scmp.lt.s32.totalorder %s22, 1
      %s995 = scalar_select %p994, %s22, 1
      %p996 = scmp.lt.s32.totalorder %s993, 7
      %s997 = scalar_select %p996, %s993, 7
      %s998 = smul.addr %s995, 8
      %s999 = sadd.s32 %s997, %s998
      %s1000 = smul.addr %s999, 8
      %s1001 = scalar_lea.vmem %s6, %s1000
      // Predicated region
      $region37: #{_lambda_.17} parent=35 // pred_check
        %p1002 = pneg %p151
      $region38: #{_lambda_.17} parent=35 // pred_check_branch
        %1004 = sbr.rel (%p1002) target = $region40
      $region39: #{_lambda_.17} parent=35 // pred_region
        %s1005 = smul.u32 8, %s23
      $region40: #{_lambda_.17} parent=35 // pred_fallthru
        _
      // Predicated region
      $region41: #{_lambda_.17} parent=35 // pred_check
        %p1006 = pneg %p179
      $region42: #{_lambda_.17} parent=35 // pred_check_branch
        %1008 = sbr.rel (%p1006) target = $region44
      $region43: #{_lambda_.17} parent=35 // pred_region
        %s1009 = smul.u32 8, %s23
      $region44: #{_lambda_.17} parent=35 // pred_fallthru
        _
      // Predicated region
      $region45: #{_lambda_.17} parent=35 // pred_check
        %p1010 = pneg %p207
      $region46: #{_lambda_.17} parent=35 // pred_check_branch
        %1012 = sbr.rel (%p1010) target = $region48
      $region47: #{_lambda_.17} parent=35 // pred_region
        %s1013 = smul.u32 8, %s23
      $region48: #{_lambda_.17} parent=35 // pred_fallthru
        _
    $region36: #{_lambda_.17} parent=5 // pred_fallthru
      _
    %p1014 = scmp.le.s32.totalorder 2, %s13
    // Predicated region
    $region49: #{_lambda_.17} parent=5 // pred_check
      %p1015 = pneg %p1014
    $region50: #{_lambda_.17} parent=5 // pred_check_branch
      %1017 = sbr.rel (%p1015) target = $region52
    $region51: #{_lambda_.17} parent=5 // pred_region
      %s1018 = ssub.s32 %s13, 2
      // Predicated region
      $region53: #{_lambda_.17} parent=51 // pred_check
        %p1019 = pneg %p157
      $region54: #{_lambda_.17} parent=51 // pred_check_branch
        %1021 = sbr.rel (%p1019) target = $region56
      $region55: #{_lambda_.17} parent=51 // pred_region
        %s1022 = smul.u32 8, %s25
        %p1023 = scmp.lt.s32.totalorder %s24, 1
        %s1024 = scalar_select %p1023, %s24, 1
        %p1025 = scmp.lt.s32.totalorder %s1022, 7
        %s1026 = scalar_select %p1025, %s1022, 7
        %s1027 = smul.addr %s1024, 8
        %s1028 = sadd.s32 %s1026, %s1027
        %s1029 = smul.addr %s1028, 8
        %s1030 = scalar_lea.vmem %s4, %s1029
      $region56: #{_lambda_.17} parent=51 // pred_fallthru
        _
      // Predicated region
      $region57: #{_lambda_.17} parent=51 // pred_check
        %p1031 = pneg %p185
      $region58: #{_lambda_.17} parent=51 // pred_check_branch
        %1033 = sbr.rel (%p1031) target = $region60
      $region59: #{_lambda_.17} parent=51 // pred_region
        %s1034 = smul.u32 8, %s25
        %p1035 = scmp.lt.s32.totalorder %s24, 1
        %s1036 = scalar_select %p1035, %s24, 1
        %p1037 = scmp.lt.s32.totalorder %s1034, 7
        %s1038 = scalar_select %p1037, %s1034, 7
        %s1039 = smul.addr %s1036, 8
        %s1040 = sadd.s32 %s1038, %s1039
        %s1041 = smul.addr %s1040, 8
        %s1042 = scalar_lea.vmem %s5, %s1041
      $region60: #{_lambda_.17} parent=51 // pred_fallthru
        _
      // Predicated region
      $region61: #{_lambda_.17} parent=51 // pred_check
        %p1043 = pneg %p213
      $region62: #{_lambda_.17} parent=51 // pred_check_branch
        %1045 = sbr.rel (%p1043) target = $region64
      $region63: #{_lambda_.17} parent=51 // pred_region
        %s1046 = smul.u32 8, %s25
        %p1047 = scmp.lt.s32.totalorder %s24, 1
        %s1048 = scalar_select %p1047, %s24, 1
        %p1049 = scmp.lt.s32.totalorder %s1046, 7
        %s1050 = scalar_select %p1049, %s1046, 7
        %s1051 = smul.addr %s1048, 8
        %s1052 = sadd.s32 %s1050, %s1051
        %s1053 = smul.addr %s1052, 8
        %s1054 = scalar_lea.vmem %s6, %s1053
      $region64: #{_lambda_.17} parent=51 // pred_fallthru
        _
    $region52: #{_lambda_.17} parent=5 // pred_fallthru
      _
  $region6: #{_lambda_.17} parent=0 // loop_footer
    %s17 = sadd.s32 1, %s13
  $region7: #{_lambda_.17} parent=0 // loop_footer_branch
    %12 = sbr.rel target = $region3
  $region8: #{_lambda_.17} parent=0 // loop_exit
    _

// kernel: _lambda_.20
$region0: #{_lambda_.20}
  #allocation0 [shape = 'u32[]', space=smem, size = 0x4, offset = 0x4, fixed_abs, tag = 'smem constant byte address 0x4 - core index']
  #allocation1 [shape = 'u32[144,128]{1,0:T(1,128)}', space=vmem, size = 0x12000, scoped, tag = 'internal scratch']
  %s0 = inlined_call_operand.vmem [shape: bf16[2,4,4,16,8], index: 0, kind: input, shape index: {}]
  %s1 = inlined_call_operand.vmem [shape: bf16[2,4,4,16,8], index: 1, kind: input, shape index: {}]
  %s2 = inlined_call_operand.vmem [shape: bf16[2,4,4,16,8], index: 2, kind: input, shape index: {}]
  %s3 = inlined_call_operand.vmem [shape: f32[4,16,16], index: 3, kind: input, shape index: {}]
  %s4 = inlined_call_operand.vmem [shape: f32[4,16,16], index: 4, kind: input, shape index: {}]
  %s5 = inlined_call_operand.vmem [shape: bf16[2,4,4,16,8], index: 5, kind: output, shape index: {}]
  %s6 = sld [smem:[#allocation0]]
  $region53: #{_lambda_.20} parent=0
    _
  %s8 = ssub.s32 1, %s6
  %s9 = scalar_select 0, %s8, %s6
  loop: start=0, step=1, limit=6
  $region2: #{_lambda_.20} parent=0 // loop_pre_header
    _
  $region3: #{_lambda_.20} parent=0 // loop_header
    %s11 = sphi 0, %s15
    %p12 = scmp.ge.s32.totalorder %s11, 6
    %s18 = sphi 0, %s30
    %s19 = sphi 0, %s26
    %s20 = sphi 0, %s18
    %s21 = sphi 0, %s19
    %s22 = sphi 0, %s20
    %s23 = sphi 0, %s21
    %s35 = sphi 0, %s37
    %s38 = sphi 0, %s35
    %s39 = sphi 0, %s38
    %s55 = sphi 0, %s39
    %s63 = sphi 0, %s65
    %s66 = sphi 0, %s63
    %s67 = sphi 0, %s66
    %s83 = sphi 0, %s67
    %s91 = sphi 0, %s93
    %s94 = sphi 0, %s91
    %s95 = sphi 0, %s94
    %s111 = sphi 0, %s95
    %s115 = sphi 0, %s115
    %s117 = sphi 0, %s115
    %s118 = sphi 0, %s117
    %s132 = sphi 0, %s118
    %s138 = sphi 0, %s140
    %s141 = sphi 0, %s138
    %s142 = sphi 0, %s141
    %s158 = sphi 0, %s142
    %s166 = sphi 0, %s168
    %s169 = sphi 0, %s166
    %s170 = sphi 0, %s169
    %s186 = sphi 0, %s170
  $region4: #{_lambda_.20} parent=0 // loop_header_branch
    %14 = sbr.rel (%p12) target = $region8
  $region5: #{_lambda_.20} parent=0 // loop_body
    %s16 = ssub.s32 %s11, 1
    %s17 = ssub.s32 %s11, 2
    %s24 = sadd.s32 1, %s19
    %p25 = scmp.ge.s32.totalorder %s24, 2
    %s26 = scalar_select %p25, 0, %s24
    %s27 = sadd.s32 1, %s18
    %s28 = scalar_select %p25, %s27, %s18
    %p29 = scmp.ge.s32.totalorder %s28, 2
    %s30 = scalar_select %p29, 0, %s28
    %s31 = ssub.s32 %s18, %s30
    %s32 = ssub.s32 %s19, %s26
    %s33 = sor.u32 %s31, %s32
    %p34 = scmp.eq.s32.totalorder %s33, 0
    %s36 = sadd.s32 %s35, 1
    %s37 = scalar_select %p34, %s35, %s36
    %p40 = pneg %p34
    %p41 = scmp.eq.s32.totalorder %s11, 3
    %p42 = por %p40, %p41
    %p43 = scmp.ne.s32.totalorder %s35, %s38
    %p44 = scmp.eq.s32.totalorder %s11, 0
    %p45 = por %p43, %p44
    %p46 = scmp.ne.s32.totalorder %s35, %s38
    %p47 = scmp.eq.s32.totalorder %s16, 3
    %p48 = por %p46, %p47
    %p49 = scmp.ne.s32.totalorder %s38, %s39
    %p50 = scmp.eq.s32.totalorder %s16, 0
    %p51 = por %p49, %p50
    %p52 = scmp.ne.s32.totalorder %s38, %s39
    %p53 = scmp.eq.s32.totalorder %s17, 3
    %p54 = por %p52, %p53
    %p56 = scmp.ne.s32.totalorder %s39, %s55
    %p57 = scmp.eq.s32.totalorder %s17, 0
    %p58 = por %p56, %p57
    %s59 = ssub.s32 %s18, %s30
    %s60 = ssub.s32 %s19, %s26
    %s61 = sor.u32 %s59, %s60
    %p62 = scmp.eq.s32.totalorder %s61, 0
    %s64 = sadd.s32 %s63, 1
    %s65 = scalar_select %p62, %s63, %s64
    %p68 = pneg %p62
    %p69 = scmp.eq.s32.totalorder %s11, 3
    %p70 = por %p68, %p69
    %p71 = scmp.ne.s32.totalorder %s63, %s66
    %p72 = scmp.eq.s32.totalorder %s11, 0
    %p73 = por %p71, %p72
    %p74 = scmp.ne.s32.totalorder %s63, %s66
    %p75 = scmp.eq.s32.totalorder %s16, 3
    %p76 = por %p74, %p75
    %p77 = scmp.ne.s32.totalorder %s66, %s67
    %p78 = scmp.eq.s32.totalorder %s16, 0
    %p79 = por %p77, %p78
    %p80 = scmp.ne.s32.totalorder %s66, %s67
    %p81 = scmp.eq.s32.totalorder %s17, 3
    %p82 = por %p80, %p81
    %p84 = scmp.ne.s32.totalorder %s67, %s83
    %p85 = scmp.eq.s32.totalorder %s17, 0
    %p86 = por %p84, %p85
    %s87 = ssub.s32 %s18, %s30
    %s88 = ssub.s32 %s19, %s26
    %s89 = sor.u32 %s87, %s88
    %p90 = scmp.eq.s32.totalorder %s89, 0
    %s92 = sadd.s32 %s91, 1
    %s93 = scalar_select %p90, %s91, %s92
    %p96 = pneg %p90
    %p97 = scmp.eq.s32.totalorder %s11, 3
    %p98 = por %p96, %p97
    %p99 = scmp.ne.s32.totalorder %s91, %s94
    %p100 = scmp.eq.s32.totalorder %s11, 0
    %p101 = por %p99, %p100
    %p102 = scmp.ne.s32.totalorder %s91, %s94
    %p103 = scmp.eq.s32.totalorder %s16, 3
    %p104 = por %p102, %p103
    %p105 = scmp.ne.s32.totalorder %s94, %s95
    %p106 = scmp.eq.s32.totalorder %s16, 0
    %p107 = por %p105, %p106
    %p108 = scmp.ne.s32.totalorder %s94, %s95
    %p109 = scmp.eq.s32.totalorder %s17, 3
    %p110 = por %p108, %p109
    %p112 = scmp.ne.s32.totalorder %s95, %s111
    %p113 = scmp.eq.s32.totalorder %s17, 0
    %p114 = por %p112, %p113
    %s116 = sadd.s32 %s115, 1
    %p119 = scmp.eq.s32.totalorder %s11, 3
    %p120 = scmp.ne.s32.totalorder %s115, %s117
    %p121 = scmp.eq.s32.totalorder %s11, 0
    %p122 = por %p120, %p121
    %p123 = scmp.ne.s32.totalorder %s115, %s117
    %p124 = scmp.eq.s32.totalorder %s16, 3
    %p125 = por %p123, %p124
    %p126 = scmp.ne.s32.totalorder %s117, %s118
    %p127 = scmp.eq.s32.totalorder %s16, 0
    %p128 = por %p126, %p127
    %p129 = scmp.ne.s32.totalorder %s117, %s118
    %p130 = scmp.eq.s32.totalorder %s17, 3
    %p131 = por %p129, %p130
    %p133 = scmp.ne.s32.totalorder %s118, %s132
    %p134 = scmp.eq.s32.totalorder %s17, 0
    %p135 = por %p133, %p134
    %s136 = ssub.s32 %s19, %s26
    %p137 = scmp.eq.s32.totalorder %s136, 0
    %s139 = sadd.s32 %s138, 1
    %s140 = scalar_select %p137, %s138, %s139
    %p143 = pneg %p137
    %p144 = scmp.eq.s32.totalorder %s11, 3
    %p145 = por %p143, %p144
    %p146 = scmp.ne.s32.totalorder %s138, %s141
    %p147 = scmp.eq.s32.totalorder %s11, 0
    %p148 = por %p146, %p147
    %p149 = scmp.ne.s32.totalorder %s138, %s141
    %p150 = scmp.eq.s32.totalorder %s16, 3
    %p151 = por %p149, %p150
    %p152 = scmp.ne.s32.totalorder %s141, %s142
    %p153 = scmp.eq.s32.totalorder %s16, 0
    %p154 = por %p152, %p153
    %p155 = scmp.ne.s32.totalorder %s141, %s142
    %p156 = scmp.eq.s32.totalorder %s17, 3
    %p157 = por %p155, %p156
    %p159 = scmp.ne.s32.totalorder %s142, %s158
    %p160 = scmp.eq.s32.totalorder %s17, 0
    %p161 = por %p159, %p160
    %s162 = ssub.s32 %s18, %s30
    %s163 = ssub.s32 %s19, %s26
    %s164 = sor.u32 %s162, %s163
    %p165 = scmp.eq.s32.totalorder %s164, 0
    %s167 = sadd.s32 %s166, 1
    %s168 = scalar_select %p165, %s166, %s167
    %p171 = pneg %p165
    %p172 = scmp.eq.s32.totalorder %s11, 3
    %p173 = por %p171, %p172
    %p174 = scmp.ne.s32.totalorder %s166, %s169
    %p175 = scmp.eq.s32.totalorder %s11, 0
    %p176 = por %p174, %p175
    %p177 = scmp.ne.s32.totalorder %s166, %s169
    %p178 = scmp.eq.s32.totalorder %s16, 3
    %p179 = por %p177, %p178
    %p180 = scmp.ne.s32.totalorder %s169, %s170
    %p181 = scmp.eq.s32.totalorder %s16, 0
    %p182 = por %p180, %p181
    %p183 = scmp.ne.s32.totalorder %s169, %s170
    %p184 = scmp.eq.s32.totalorder %s17, 3
    %p185 = por %p183, %p184
    %p187 = scmp.ne.s32.totalorder %s170, %s186
    %p188 = scmp.eq.s32.totalorder %s17, 0
    %p189 = por %p187, %p188
    %p190 = scmp.le.s32.totalorder 1, %s11
    %p191 = scmp.lt.s32.totalorder %s11, 5
    %p192 = pnand %p190, %p191
    %p193 = pneg %p192
    // Predicated region
    $region9: #{_lambda_.20} parent=5 // pred_check
      _
    $region10: #{_lambda_.20} parent=5 // pred_check_branch
      %195 = sbr.rel (%p192) target = $region12
    $region11: #{_lambda_.20} parent=5 // pred_region
      %s196 = ssub.s32 %s11, 1
      // Predicated region
      $region13: #{_lambda_.20} parent=11 // pred_check
        %p197 = pneg %p128
      $region14: #{_lambda_.20} parent=11 // pred_check_branch
        %199 = sbr.rel (%p197) target = $region16
      $region15: #{_lambda_.20} parent=11 // pred_region
        _
      $region16: #{_lambda_.20} parent=11 // pred_fallthru
        _
    $region12: #{_lambda_.20} parent=5 // pred_fallthru
      _
    %p200 = scmp.lt.s32.totalorder %s11, 4
    // Predicated region
    $region17: #{_lambda_.20} parent=5 // pred_check
      %p201 = pneg %p200
    $region18: #{_lambda_.20} parent=5 // pred_check_branch
      %203 = sbr.rel (%p201) target = $region20
    $region19: #{_lambda_.20} parent=5 // pred_region
      // Predicated region
      $region21: #{_lambda_.20} parent=19 // pred_check
        %p204 = pneg %p45
      $region22: #{_lambda_.20} parent=19 // pred_check_branch
        %206 = sbr.rel (%p204) target = $region24
      $region23: #{_lambda_.20} parent=19 // pred_region
        %s207 = smul.u32 2, %s19
        %p208 = scmp.lt.s32.totalorder %s18, 1
        %s209 = scalar_select %p208, %s18, 1
        %p210 = scmp.lt.s32.totalorder %s207, 3
        %s211 = scalar_select %p210, %s207, 3
        %s212 = smul.addr %s211, 8
        %s213 = smul.addr %s209, 32
        %s214 = sadd.s32 %s212, %s213
        %s215 = smul.addr %s214, 4
        %s216 = scalar_lea.vmem %s0, %s215
        %s217 = smul.u32 2, %s19
      $region24: #{_lambda_.20} parent=19 // pred_fallthru
        _
      // Predicated region
      $region25: #{_lambda_.20} parent=19 // pred_check
        %p218 = pneg %p73
      $region26: #{_lambda_.20} parent=19 // pred_check_branch
        %220 = sbr.rel (%p218) target = $region28
      $region27: #{_lambda_.20} parent=19 // pred_region
        %s221 = smul.u32 2, %s19
        %p222 = scmp.lt.s32.totalorder %s18, 1
        %s223 = scalar_select %p222, %s18, 1
        %p224 = scmp.lt.s32.totalorder %s221, 3
        %s225 = scalar_select %p224, %s221, 3
        %s226 = smul.addr %s225, 8
        %s227 = smul.addr %s223, 32
        %s228 = sadd.s32 %s226, %s227
        %s229 = smul.addr %s228, 4
        %s230 = scalar_lea.vmem %s1, %s229
        %s231 = smul.u32 2, %s19
      $region28: #{_lambda_.20} parent=19 // pred_fallthru
        _
      // Predicated region
      $region29: #{_lambda_.20} parent=19 // pred_check
        %p232 = pneg %p101
      $region30: #{_lambda_.20} parent=19 // pred_check_branch
        %234 = sbr.rel (%p232) target = $region32
      $region31: #{_lambda_.20} parent=19 // pred_region
        %s235 = smul.u32 2, %s19
        %p236 = scmp.lt.s32.totalorder %s18, 1
        %s237 = scalar_select %p236, %s18, 1
        %p238 = scmp.lt.s32.totalorder %s235, 3
        %s239 = scalar_select %p238, %s235, 3
        %s240 = smul.addr %s239, 8
        %s241 = smul.addr %s237, 32
        %s242 = sadd.s32 %s240, %s241
        %s243 = smul.addr %s242, 4
        %s244 = scalar_lea.vmem %s2, %s243
        %s245 = smul.u32 2, %s19
      $region32: #{_lambda_.20} parent=19 // pred_fallthru
        _
      // Predicated region
      $region33: #{_lambda_.20} parent=19 // pred_check
        %p246 = pneg %p148
      $region34: #{_lambda_.20} parent=19 // pred_check_branch
        %248 = sbr.rel (%p246) target = $region36
      $region35: #{_lambda_.20} parent=19 // pred_region
        %s249 = smul.u32 2, %s19
        %p250 = scmp.lt.s32.totalorder %s249, 3
        %s251 = scalar_select %p250, %s249, 3
        %s252 = smul.addr %s251, 2
        %s253 = smul.addr %s252, 8
        %s254 = scalar_lea.vmem %s4, %s253
        %s255 = smul.u32 2, %s19
      $region36: #{_lambda_.20} parent=19 // pred_fallthru
        _
    $region20: #{_lambda_.20} parent=5 // pred_fallthru
      _
    %p256 = scmp.le.s32.totalorder 1, %s11
    %p257 = scmp.lt.s32.totalorder %s11, 5
    %p258 = pnand %p256, %p257
    %p259 = pneg %p258
    // Predicated region
    $region37: #{_lambda_.20} parent=5 // pred_check
      _
    $region38: #{_lambda_.20} parent=5 // pred_check_branch
      %261 = sbr.rel (%p258) target = $region40
    $region39: #{_lambda_.20} parent=5 // pred_region
      %s262 = ssub.s32 %s11, 1
      %s263 = smul.u32 2, %s21
      %p264 = scmp.lt.s32.totalorder %s20, 1
      %s265 = scalar_select %p264, %s20, 1
      %p266 = scmp.lt.s32.totalorder %s263, 3
      %s267 = scalar_select %p266, %s263, 3
      %s268 = smul.addr %s267, 8
      %s269 = smul.addr %s265, 32
      %s270 = sadd.s32 %s268, %s269
      %s271 = smul.addr %s270, 4
      %s272 = scalar_lea.vmem %s0, %s271
      %p273 = pneg %p51
      %p274 = pneg %p48
      %s275 = smul.u32 2, %s21
      %p276 = scmp.lt.s32.totalorder %s20, 1
      %s277 = scalar_select %p276, %s20, 1
      %p278 = scmp.lt.s32.totalorder %s275, 3
      %s279 = scalar_select %p278, %s275, 3
      %s280 = smul.addr %s279, 8
      %s281 = smul.addr %s277, 32
      %s282 = sadd.s32 %s280, %s281
      %s283 = smul.addr %s282, 4
      %s284 = scalar_lea.vmem %s1, %s283
      %p285 = pneg %p79
      %p286 = pneg %p76
      %s287 = smul.u32 2, %s21
      %p288 = scmp.lt.s32.totalorder %s20, 1
      %s289 = scalar_select %p288, %s20, 1
      %p290 = scmp.lt.s32.totalorder %s287, 3
      %s291 = scalar_select %p290, %s287, 3
      %s292 = smul.addr %s291, 8
      %s293 = smul.addr %s289, 32
      %s294 = sadd.s32 %s292, %s293
      %s295 = smul.addr %s294, 4
      %s296 = scalar_lea.vmem %s2, %s295
      %p297 = pneg %p107
      %p298 = pneg %p104
      %p299 = pneg %p128
      %p300 = pneg %p125
      %s301 = smul.u32 2, %s21
      %p302 = scmp.lt.s32.totalorder %s301, 3
      %s303 = scalar_select %p302, %s301, 3
      %s304 = smul.addr %s303, 2
      %s305 = smul.addr %s304, 8
      %s306 = scalar_lea.vmem %s4, %s305
      %p307 = pneg %p154
      %p308 = pneg %p151
      %p309 = pneg %p182
      %p310 = pneg %p179
      %s311 = smul.u32 2, %s21
      %p312 = scmp.lt.s32.totalorder %s20, 1
      %s313 = scalar_select %p312, %s20, 1
      %p314 = scmp.lt.s32.totalorder %s311, 3
      %s315 = scalar_select %p314, %s311, 3
      %s316 = smul.addr %s315, 8
      %s317 = smul.addr %s313, 32
      %s318 = sadd.s32 %s316, %s317
      %s319 = smul.addr %s318, 4
      %s320 = scalar_lea.vmem %s5, %s319
      %s321 = smul.u32 2, %s21
      %p322 = scmp.lt.s32.totalorder %s20, 1
      %s323 = scalar_select %p322, %s20, 1
      %p324 = scmp.lt.s32.totalorder %s321, 3
      %s325 = scalar_select %p324, %s321, 3
      %s326 = smul.addr %s325, 8
      %s327 = smul.addr %s323, 32
      %s328 = sadd.s32 %s326, %s327
      %s329 = smul.addr %s328, 4
      %s330 = scalar_lea.vmem %s0, %s329
      %s331 = smul.u32 2, %s21
      %s332 = smul.u32 2, %s21
      %p333 = scmp.lt.s32.totalorder %s20, 1
      %s334 = scalar_select %p333, %s20, 1
      %p335 = scmp.lt.s32.totalorder %s332, 3
      %s336 = scalar_select %p335, %s332, 3
      %s337 = smul.addr %s336, 8
      %s338 = smul.addr %s334, 32
      %s339 = sadd.s32 %s337, %s338
      %s340 = smul.addr %s339, 4
      %s341 = scalar_lea.vmem %s1, %s340
      %s342 = smul.u32 2, %s21
      %s343 = smul.u32 2, %s21
      %p344 = scmp.lt.s32.totalorder %s20, 1
      %s345 = scalar_select %p344, %s20, 1
      %p346 = scmp.lt.s32.totalorder %s343, 3
      %s347 = scalar_select %p346, %s343, 3
      %s348 = smul.addr %s347, 8
      %s349 = smul.addr %s345, 32
      %s350 = sadd.s32 %s348, %s349
      %s351 = smul.addr %s350, 4
      %s352 = scalar_lea.vmem %s2, %s351
      %s353 = smul.u32 2, %s21
      %s354 = smul.u32 2, %s21
      %p355 = scmp.lt.s32.totalorder %s354, 3
      %s356 = scalar_select %p355, %s354, 3
      %s357 = smul.addr %s356, 2
      %s358 = smul.addr %s357, 8
      %s359 = scalar_lea.vmem %s4, %s358
      %s360 = smul.u32 2, %s21
      %s361 = smul.u32 2, %s21
      %p362 = scmp.lt.s32.totalorder %s20, 1
      %s363 = scalar_select %p362, %s20, 1
      %p364 = scmp.lt.s32.totalorder %s361, 3
      %s365 = scalar_select %p364, %s361, 3
      %s366 = smul.addr %s365, 8
      %s367 = smul.addr %s363, 32
      %s368 = sadd.s32 %s366, %s367
      %s369 = smul.addr %s368, 4
      %s370 = scalar_lea.vmem %s5, %s369
      %s371 = smul.u32 2, %s21
      %v373 = vld [vmem:[%s330] sm:$0xf]
      %v374 = vld [vmem:[%s330 + $0x4] sm:$0xf]
      %v375 = vld [vmem:[%s330 + $0x8] sm:$0xf]
      %v376 = vld [vmem:[%s330 + $0xc] sm:$0xf]
      %v377 = vld [vmem:[%s330 + $0x10] sm:$0xf]
      %v378 = vld [vmem:[%s330 + $0x14] sm:$0xf]
      %v379 = vld [vmem:[%s330 + $0x18] sm:$0xf]
      %v380 = vld [vmem:[%s330 + $0x1c] sm:$0xf]
      %v381 = vld [vmem:[%s330 + $0x20] sm:$0xf]
      %v382 = vld [vmem:[%s330 + $0x24] sm:$0xf]
      %v383 = vld [vmem:[%s330 + $0x28] sm:$0xf]
      %v384 = vld [vmem:[%s330 + $0x2c] sm:$0xf]
      %v385 = vld [vmem:[%s330 + $0x30] sm:$0xf]
      %v386 = vld [vmem:[%s330 + $0x34] sm:$0xf]
      %v387 = vld [vmem:[%s330 + $0x38] sm:$0xf]
      %v388 = vld [vmem:[%s330 + $0x3c] sm:$0xf]
      %v389 = vld [vmem:[%s341] sm:$0xf]
      %v390 = vld [vmem:[%s341 + $0x4] sm:$0xf]
      %v391 = vld [vmem:[%s341 + $0x8] sm:$0xf]
      %v392 = vld [vmem:[%s341 + $0xc] sm:$0xf]
      %v393 = vld [vmem:[%s341 + $0x10] sm:$0xf]
      %v394 = vld [vmem:[%s341 + $0x14] sm:$0xf]
      %v395 = vld [vmem:[%s341 + $0x18] sm:$0xf]
      %v396 = vld [vmem:[%s341 + $0x1c] sm:$0xf]
      %v397 = vld [vmem:[%s341 + $0x20] sm:$0xf]
      %v398 = vld [vmem:[%s341 + $0x24] sm:$0xf]
      %v399 = vld [vmem:[%s341 + $0x28] sm:$0xf]
      %v400 = vld [vmem:[%s341 + $0x2c] sm:$0xf]
      %v401 = vld [vmem:[%s341 + $0x30] sm:$0xf]
      %v402 = vld [vmem:[%s341 + $0x34] sm:$0xf]
      %v403 = vld [vmem:[%s341 + $0x38] sm:$0xf]
      %v404 = vld [vmem:[%s341 + $0x3c] sm:$0xf]
      %v405 = vld [vmem:[%s352] sm:$0xf]
      %v406 = vld [vmem:[%s352 + $0x4] sm:$0xf]
      %v407 = vld [vmem:[%s352 + $0x8] sm:$0xf]
      %v408 = vld [vmem:[%s352 + $0xc] sm:$0xf]
      %v409 = vld [vmem:[%s352 + $0x10] sm:$0xf]
      %v410 = vld [vmem:[%s352 + $0x14] sm:$0xf]
      %v411 = vld [vmem:[%s352 + $0x18] sm:$0xf]
      %v412 = vld [vmem:[%s352 + $0x1c] sm:$0xf]
      %v413 = vld [vmem:[%s352 + $0x20] sm:$0xf]
      %v414 = vld [vmem:[%s352 + $0x24] sm:$0xf]
      %v415 = vld [vmem:[%s352 + $0x28] sm:$0xf]
      %v416 = vld [vmem:[%s352 + $0x2c] sm:$0xf]
      %v417 = vld [vmem:[%s352 + $0x30] sm:$0xf]
      %v418 = vld [vmem:[%s352 + $0x34] sm:$0xf]
      %v419 = vld [vmem:[%s352 + $0x38] sm:$0xf]
      %v420 = vld [vmem:[%s352 + $0x3c] sm:$0xf]
      %v423 = vunpack.c.l.b16 %v373
      %v424 = vunpack.c.l.b16 %v374
      %v425 = vpack.c.b16 %v424, %v423
      %v428 = vunpack.c.l.b16 %v389
      %v429 = vunpack.c.l.b16 %v390
      %v430 = vpack.c.b16 %v429, %v428
      %vm431 = vcmask 64512
      %v433 = vsel %vm431, %v425, 0
      %v436 = vsel %vm431, %v430, 0
      %438 = vmatprep.subr.bf16.mxu0 0
      %439 = vmatpush1.bf16.xpose.msra.mxu0 %v436
      %440 = vmatprep.subr.bf16.mxu0 0
      %441 = vmatpush1.bf16.xpose.msra.mxu0 0
      %442 = vmatprep.subr.bf16.mxu0 0
      %443 = vmatpush1.bf16.xpose.msra.mxu0 0
      %444 = vmatprep.subr.bf16.mxu0 0
      %445 = vmatpush1.bf16.xpose.msra.mxu0 0
      %446 = vmatprep.subr.bf16.mxu0 0
      %447 = vmatpush1.bf16.xpose.msra.mxu0 0
      %448 = vmatprep.subr.bf16.mxu0 0
      %449 = vmatpush1.bf16.xpose.msra.mxu0 0
      %450 = vmatprep.subr.bf16.mxu0 0
      %451 = vmatpush1.bf16.xpose.msra.mxu0 0
      %452 = vmatprep.subr.bf16.mxu0 0
      %453 = vmatpush1.bf16.xpose.msra.mxu0 0
      %454 = vmatprep.subr.bf16.mxu0 0
      %455 = vmatpush1.bf16.xpose.msra.mxu0 0
      %456 = vmatprep.subr.bf16.mxu0 0
      %457 = vmatpush1.bf16.xpose.msra.mxu0 0
      %458 = vmatprep.subr.bf16.mxu0 0
      %459 = vmatpush1.bf16.xpose.msra.mxu0 0
      %460 = vmatprep.subr.bf16.mxu0 0
      %461 = vmatpush1.bf16.xpose.msra.mxu0 0
      %462 = vmatprep.subr.bf16.mxu0 0
      %463 = vmatpush1.bf16.xpose.msra.mxu0 0
      %464 = vmatprep.subr.bf16.mxu0 0
      %465 = vmatpush1.bf16.xpose.msra.mxu0 0
      %466 = vmatprep.subr.bf16.mxu0 0
      %467 = vmatpush1.bf16.xpose.msra.mxu0 0
      %468 = vmatprep.subr.bf16.mxu0 0
      %469 = vmatpush1.bf16.xpose.msra.mxu0 0
      %470 = vmatprep.mubr.bf16.mxu0 0
      %471 = vmatmul.mubr.bf16.gmra.mrb[0].mxu0 %v433
      %v472 = vpop.f32.mrb[0].mxu0
      %v473 = vadd.f32 0.0, %v472
      %v474 = vpop.f32.mrb[0].mxu0
      %v475 = vpop.f32.mrb[0].mxu0
      %v476 = vadd.f32 0.0, %v475
      %v477 = vpop.f32.mrb[0].mxu0
      %478 = vdwg.mxu0
      %v481 = vunpack.c.l.b16 %v375
      %v482 = vunpack.c.l.b16 %v376
      %v483 = vpack.c.b16 %v482, %v481
      %v486 = vunpack.c.l.b16 %v391
      %v487 = vunpack.c.l.b16 %v392
      %v488 = vpack.c.b16 %v487, %v486
      %v490 = vsel %vm431, %v483, 0
      %v493 = vsel %vm431, %v488, 0
      %495 = vmatprep.subr.bf16.mxu0 0
      %496 = vmatpush1.bf16.xpose.msra.mxu0 %v493
      %497 = vmatprep.subr.bf16.mxu0 0
      %498 = vmatpush1.bf16.xpose.msra.mxu0 0
      %499 = vmatprep.subr.bf16.mxu0 0
      %500 = vmatpush1.bf16.xpose.msra.mxu0 0
      %501 = vmatprep.subr.bf16.mxu0 0
      %502 = vmatpush1.bf16.xpose.msra.mxu0 0
      %503 = vmatprep.subr.bf16.mxu0 0
      %504 = vmatpush1.bf16.xpose.msra.mxu0 0
      %505 = vmatprep.subr.bf16.mxu0 0
      %506 = vmatpush1.bf16.xpose.msra.mxu0 0
      %507 = vmatprep.subr.bf16.mxu0 0
      %508 = vmatpush1.bf16.xpose.msra.mxu0 0
      %509 = vmatprep.subr.bf16.mxu0 0
      %510 = vmatpush1.bf16.xpose.msra.mxu0 0
      %511 = vmatprep.subr.bf16.mxu0 0
      %512 = vmatpush1.bf16.xpose.msra.mxu0 0
      %513 = vmatprep.subr.bf16.mxu0 0
      %514 = vmatpush1.bf16.xpose.msra.mxu0 0
      %515 = vmatprep.subr.bf16.mxu0 0
      %516 = vmatpush1.bf16.xpose.msra.mxu0 0
      %517 = vmatprep.subr.bf16.mxu0 0
      %518 = vmatpush1.bf16.xpose.msra.mxu0 0
      %519 = vmatprep.subr.bf16.mxu0 0
      %520 = vmatpush1.bf16.xpose.msra.mxu0 0
      %521 = vmatprep.subr.bf16.mxu0 0
      %522 = vmatpush1.bf16.xpose.msra.mxu0 0
      %523 = vmatprep.subr.bf16.mxu0 0
      %524 = vmatpush1.bf16.xpose.msra.mxu0 0
      %525 = vmatprep.subr.bf16.mxu0 0
      %526 = vmatpush1.bf16.xpose.msra.mxu0 0
      %527 = vmatprep.mubr.bf16.mxu0 0
      %528 = vmatmul.mubr.bf16.gmra.mrb[0].mxu0 %v490
      %v529 = vpop.f32.mrb[0].mxu0
      %v530 = vadd.f32 0.0, %v529
      %v531 = vpop.f32.mrb[0].mxu0
      %v532 = vpop.f32.mrb[0].mxu0
      %v533 = vadd.f32 0.0, %v532
      %v534 = vpop.f32.mrb[0].mxu0
      %535 = vdwg.mxu0
      %v538 = vunpack.c.l.b16 %v377
      %v539 = vunpack.c.l.b16 %v378
      %v540 = vpack.c.b16 %v539, %v538
      %v543 = vunpack.c.l.b16 %v393
      %v544 = vunpack.c.l.b16 %v394
      %v545 = vpack.c.b16 %v544, %v543
      %v547 = vsel %vm431, %v540, 0
      %v550 = vsel %vm431, %v545, 0
      %552 = vmatprep.subr.bf16.mxu0 0
      %553 = vmatpush1.bf16.xpose.msra.mxu0 %v550
      %554 = vmatprep.subr.bf16.mxu0 0
      %555 = vmatpush1.bf16.xpose.msra.mxu0 0
      %556 = vmatprep.subr.bf16.mxu0 0
      %557 = vmatpush1.bf16.xpose.msra.mxu0 0
      %558 = vmatprep.subr.bf16.mxu0 0
      %559 = vmatpush1.bf16.xpose.msra.mxu0 0
      %560 = vmatprep.subr.bf16.mxu0 0
      %561 = vmatpush1.bf16.xpose.msra.mxu0 0
      %562 = vmatprep.subr.bf16.mxu0 0
      %563 = vmatpush1.bf16.xpose.msra.mxu0 0
      %564 = vmatprep.subr.bf16.mxu0 0
      %565 = vmatpush1.bf16.xpose.msra.mxu0 0
      %566 = vmatprep.subr.bf16.mxu0 0
      %567 = vmatpush1.bf16.xpose.msra.mxu0 0
      %568 = vmatprep.subr.bf16.mxu0 0
      %569 = vmatpush1.bf16.xpose.msra.mxu0 0
      %570 = vmatprep.subr.bf16.mxu0 0
      %571 = vmatpush1.bf16.xpose.msra.mxu0 0
      %572 = vmatprep.subr.bf16.mxu0 0
      %573 = vmatpush1.bf16.xpose.msra.mxu0 0
      %574 = vmatprep.subr.bf16.mxu0 0
      %575 = vmatpush1.bf16.xpose.msra.mxu0 0
      %576 = vmatprep.subr.bf16.mxu0 0
      %577 = vmatpush1.bf16.xpose.msra.mxu0 0
      %578 = vmatprep.subr.bf16.mxu0 0
      %579 = vmatpush1.bf16.xpose.msra.mxu0 0
      %580 = vmatprep.subr.bf16.mxu0 0
      %581 = vmatpush1.bf16.xpose.msra.mxu0 0
      %582 = vmatprep.subr.bf16.mxu0 0
      %583 = vmatpush1.bf16.xpose.msra.mxu0 0
      %584 = vmatprep.mubr.bf16.mxu0 0
      %585 = vmatmul.mubr.bf16.gmra.mrb[0].mxu0 %v547
      %v586 = vpop.f32.mrb[0].mxu0
      %v587 = vadd.f32 0.0, %v586
      %v588 = vpop.f32.mrb[0].mxu0
      %v589 = vpop.f32.mrb[0].mxu0
      %v590 = vadd.f32 0.0, %v589
      %v591 = vpop.f32.mrb[0].mxu0
      %592 = vdwg.mxu0
      %v595 = vunpack.c.l.b16 %v379
      %v596 = vunpack.c.l.b16 %v380
      %v597 = vpack.c.b16 %v596, %v595
      %v600 = vunpack.c.l.b16 %v395
      %v601 = vunpack.c.l.b16 %v396
      %v602 = vpack.c.b16 %v601, %v600
      %v604 = vsel %vm431, %v597, 0
      %v607 = vsel %vm431, %v602, 0
      %609 = vmatprep.subr.bf16.mxu0 0
      %610 = vmatpush1.bf16.xpose.msra.mxu0 %v607
      %611 = vmatprep.subr.bf16.mxu0 0
      %612 = vmatpush1.bf16.xpose.msra.mxu0 0
      %613 = vmatprep.subr.bf16.mxu0 0
      %614 = vmatpush1.bf16.xpose.msra.mxu0 0
      %615 = vmatprep.subr.bf16.mxu0 0
      %616 = vmatpush1.bf16.xpose.msra.mxu0 0
      %617 = vmatprep.subr.bf16.mxu0 0
      %618 = vmatpush1.bf16.xpose.msra.mxu0 0
      %619 = vmatprep.subr.bf16.mxu0 0
      %620 = vmatpush1.bf16.xpose.msra.mxu0 0
      %621 = vmatprep.subr.bf16.mxu0 0
      %622 = vmatpush1.bf16.xpose.msra.mxu0 0
      %623 = vmatprep.subr.bf16.mxu0 0
      %624 = vmatpush1.bf16.xpose.msra.mxu0 0
      %625 = vmatprep.subr.bf16.mxu0 0
      %626 = vmatpush1.bf16.xpose.msra.mxu0 0
      %627 = vmatprep.subr.bf16.mxu0 0
      %628 = vmatpush1.bf16.xpose.msra.mxu0 0
      %629 = vmatprep.subr.bf16.mxu0 0
      %630 = vmatpush1.bf16.xpose.msra.mxu0 0
      %631 = vmatprep.subr.bf16.mxu0 0
      %632 = vmatpush1.bf16.xpose.msra.mxu0 0
      %633 = vmatprep.subr.bf16.mxu0 0
      %634 = vmatpush1.bf16.xpose.msra.mxu0 0
      %635 = vmatprep.subr.bf16.mxu0 0
      %636 = vmatpush1.bf16.xpose.msra.mxu0 0
      %637 = vmatprep.subr.bf16.mxu0 0
      %638 = vmatpush1.bf16.xpose.msra.mxu0 0
      %639 = vmatprep.subr.bf16.mxu0 0
      %640 = vmatpush1.bf16.xpose.msra.mxu0 0
      %641 = vmatprep.mubr.bf16.mxu0 0
      %642 = vmatmul.mubr.bf16.gmra.mrb[0].mxu0 %v604
      %v643 = vpop.f32.mrb[0].mxu0
      %v644 = vadd.f32 0.0, %v643
      %v645 = vpop.f32.mrb[0].mxu0
      %v646 = vpop.f32.mrb[0].mxu0
      %v647 = vadd.f32 0.0, %v646
      %v648 = vpop.f32.mrb[0].mxu0
      %649 = vdwg.mxu0
      %v652 = vunpack.c.l.b16 %v381
      %v653 = vunpack.c.l.b16 %v382
      %v654 = vpack.c.b16 %v653, %v652
      %v657 = vunpack.c.l.b16 %v397
      %v658 = vunpack.c.l.b16 %v398
      %v659 = vpack.c.b16 %v658, %v657
      %v661 = vsel %vm431, %v654, 0
      %v664 = vsel %vm431, %v659, 0
      %666 = vmatprep.subr.bf16.mxu0 0
      %667 = vmatpush1.bf16.xpose.msra.mxu0 %v664
      %668 = vmatprep.subr.bf16.mxu0 0
      %669 = vmatpush1.bf16.xpose.msra.mxu0 0
      %670 = vmatprep.subr.bf16.mxu0 0
      %671 = vmatpush1.bf16.xpose.msra.mxu0 0
      %672 = vmatprep.subr.bf16.mxu0 0
      %673 = vmatpush1.bf16.xpose.msra.mxu0 0
      %674 = vmatprep.subr.bf16.mxu0 0
      %675 = vmatpush1.bf16.xpose.msra.mxu0 0
      %676 = vmatprep.subr.bf16.mxu0 0
      %677 = vmatpush1.bf16.xpose.msra.mxu0 0
      %678 = vmatprep.subr.bf16.mxu0 0
      %679 = vmatpush1.bf16.xpose.msra.mxu0 0
      %680 = vmatprep.subr.bf16.mxu0 0
      %681 = vmatpush1.bf16.xpose.msra.mxu0 0
      %682 = vmatprep.subr.bf16.mxu0 0
      %683 = vmatpush1.bf16.xpose.msra.mxu0 0
      %684 = vmatprep.subr.bf16.mxu0 0
      %685 = vmatpush1.bf16.xpose.msra.mxu0 0
      %686 = vmatprep.subr.bf16.mxu0 0
      %687 = vmatpush1.bf16.xpose.msra.mxu0 0
      %688 = vmatprep.subr.bf16.mxu0 0
      %689 = vmatpush1.bf16.xpose.msra.mxu0 0
      %690 = vmatprep.subr.bf16.mxu0 0
      %691 = vmatpush1.bf16.xpose.msra.mxu0 0
      %692 = vmatprep.subr.bf16.mxu0 0
      %693 = vmatpush1.bf16.xpose.msra.mxu0 0
      %694 = vmatprep.subr.bf16.mxu0 0
      %695 = vmatpush1.bf16.xpose.msra.mxu0 0
      %696 = vmatprep.subr.bf16.mxu0 0
      %697 = vmatpush1.bf16.xpose.msra.mxu0 0
      %698 = vmatprep.mubr.bf16.mxu0 0
      %699 = vmatmul.mubr.bf16.gmra.mrb[0].mxu0 %v661
      %v700 = vpop.f32.mrb[0].mxu0
      %v701 = vadd.f32 0.0, %v700
      %v702 = vpop.f32.mrb[0].mxu0
      %v703 = vpop.f32.mrb[0].mxu0
      %v704 = vadd.f32 0.0, %v703
      %v705 = vpop.f32.mrb[0].mxu0
      %706 = vdwg.mxu0
      %v709 = vunpack.c.l.b16 %v383
      %v710 = vunpack.c.l.b16 %v384
      %v711 = vpack.c.b16 %v710, %v709
      %v714 = vunpack.c.l.b16 %v399
      %v715 = vunpack.c.l.b16 %v400
      %v716 = vpack.c.b16 %v715, %v714
      %v718 = vsel %vm431, %v711, 0
      %v721 = vsel %vm431, %v716, 0
      %723 = vmatprep.subr.bf16.mxu0 0
      %724 = vmatpush1.bf16.xpose.msra.mxu0 %v721
      %725 = vmatprep.subr.bf16.mxu0 0
      %726 = vmatpush1.bf16.xpose.msra.mxu0 0
      %727 = vmatprep.subr.bf16.mxu0 0
      %728 = vmatpush1.bf16.xpose.msra.mxu0 0
      %729 = vmatprep.subr.bf16.mxu0 0
      %730 = vmatpush1.bf16.xpose.msra.mxu0 0
      %731 = vmatprep.subr.bf16.mxu0 0
      %732 = vmatpush1.bf16.xpose.msra.mxu0 0
      %733 = vmatprep.subr.bf16.mxu0 0
      %734 = vmatpush1.bf16.xpose.msra.mxu0 0
      %735 = vmatprep.subr.bf16.mxu0 0
      %736 = vmatpush1.bf16.xpose.msra.mxu0 0
      %737 = vmatprep.subr.bf16.mxu0 0
      %738 = vmatpush1.bf16.xpose.msra.mxu0 0
      %739 = vmatprep.subr.bf16.mxu0 0
      %740 = vmatpush1.bf16.xpose.msra.mxu0 0
      %741 = vmatprep.subr.bf16.mxu0 0
      %742 = vmatpush1.bf16.xpose.msra.mxu0 0
      %743 = vmatprep.subr.bf16.mxu0 0
      %744 = vmatpush1.bf16.xpose.msra.mxu0 0
      %745 = vmatprep.subr.bf16.mxu0 0
      %746 = vmatpush1.bf16.xpose.msra.mxu0 0
      %747 = vmatprep.subr.bf16.mxu0 0
      %748 = vmatpush1.bf16.xpose.msra.mxu0 0
      %749 = vmatprep.subr.bf16.mxu0 0
      %750 = vmatpush1.bf16.xpose.msra.mxu0 0
      %751 = vmatprep.subr.bf16.mxu0 0
      %752 = vmatpush1.bf16.xpose.msra.mxu0 0
      %753 = vmatprep.subr.bf16.mxu0 0
      %754 = vmatpush1.bf16.xpose.msra.mxu0 0
      %755 = vmatprep.mubr.bf16.mxu0 0
      %756 = vmatmul.mubr.bf16.gmra.mrb[0].mxu0 %v718
      %v757 = vpop.f32.mrb[0].mxu0
      %v758 = vadd.f32 0.0, %v757
      %v759 = vpop.f32.mrb[0].mxu0
      %v760 = vpop.f32.mrb[0].mxu0
      %v761 = vadd.f32 0.0, %v760
      %v762 = vpop.f32.mrb[0].mxu0
      %763 = vdwg.mxu0
      %v766 = vunpack.c.l.b16 %v385
      %v767 = vunpack.c.l.b16 %v386
      %v768 = vpack.c.b16 %v767, %v766
      %v771 = vunpack.c.l.b16 %v401
      %v772 = vunpack.c.l.b16 %v402
      %v773 = vpack.c.b16 %v772, %v771
      %v775 = vsel %vm431, %v768, 0
      %v778 = vsel %vm431, %v773, 0
      %780 = vmatprep.subr.bf16.mxu0 0
      %781 = vmatpush1.bf16.xpose.msra.mxu0 %v778
      %782 = vmatprep.subr.bf16.mxu0 0
      %783 = vmatpush1.bf16.xpose.msra.mxu0 0
      %784 = vmatprep.subr.bf16.mxu0 0
      %785 = vmatpush1.bf16.xpose.msra.mxu0 0
      %786 = vmatprep.subr.bf16.mxu0 0
      %787 = vmatpush1.bf16.xpose.msra.mxu0 0
      %788 = vmatprep.subr.bf16.mxu0 0
      %789 = vmatpush1.bf16.xpose.msra.mxu0 0
      %790 = vmatprep.subr.bf16.mxu0 0
      %791 = vmatpush1.bf16.xpose.msra.mxu0 0
      %792 = vmatprep.subr.bf16.mxu0 0
      %793 = vmatpush1.bf16.xpose.msra.mxu0 0
      %794 = vmatprep.subr.bf16.mxu0 0
      %795 = vmatpush1.bf16.xpose.msra.mxu0 0
      %796 = vmatprep.subr.bf16.mxu0 0
      %797 = vmatpush1.bf16.xpose.msra.mxu0 0
      %798 = vmatprep.subr.bf16.mxu0 0
      %799 = vmatpush1.bf16.xpose.msra.mxu0 0
      %800 = vmatprep.subr.bf16.mxu0 0
      %801 = vmatpush1.bf16.xpose.msra.mxu0 0
      %802 = vmatprep.subr.bf16.mxu0 0
      %803 = vmatpush1.bf16.xpose.msra.mxu0 0
      %804 = vmatprep.subr.bf16.mxu0 0
      %805 = vmatpush1.bf16.xpose.msra.mxu0 0
      %806 = vmatprep.subr.bf16.mxu0 0
      %807 = vmatpush1.bf16.xpose.msra.mxu0 0
      %808 = vmatprep.subr.bf16.mxu0 0
      %809 = vmatpush1.bf16.xpose.msra.mxu0 0
      %810 = vmatprep.subr.bf16.mxu0 0
      %811 = vmatpush1.bf16.xpose.msra.mxu0 0
      %812 = vmatprep.mubr.bf16.mxu0 0
      %813 = vmatmul.mubr.bf16.gmra.mrb[0].mxu0 %v775
      %v814 = vpop.f32.mrb[0].mxu0
      %v815 = vadd.f32 0.0, %v814
      %v816 = vpop.f32.mrb[0].mxu0
      %v817 = vpop.f32.mrb[0].mxu0
      %v818 = vadd.f32 0.0, %v817
      %v819 = vpop.f32.mrb[0].mxu0
      %820 = vdwg.mxu0
      %v823 = vunpack.c.l.b16 %v387
      %v824 = vunpack.c.l.b16 %v388
      %v825 = vpack.c.b16 %v824, %v823
      %v828 = vunpack.c.l.b16 %v403
      %v829 = vunpack.c.l.b16 %v404
      %v830 = vpack.c.b16 %v829, %v828
      %v832 = vsel %vm431, %v825, 0
      %v835 = vsel %vm431, %v830, 0
      %837 = vmatprep.subr.bf16.mxu0 0
      %838 = vmatpush1.bf16.xpose.msra.mxu0 %v835
      %839 = vmatprep.subr.bf16.mxu0 0
      %840 = vmatpush1.bf16.xpose.msra.mxu0 0
      %841 = vmatprep.subr.bf16.mxu0 0
      %842 = vmatpush1.bf16.xpose.msra.mxu0 0
      %843 = vmatprep.subr.bf16.mxu0 0
      %844 = vmatpush1.bf16.xpose.msra.mxu0 0
      %845 = vmatprep.subr.bf16.mxu0 0
      %846 = vmatpush1.bf16.xpose.msra.mxu0 0
      %847 = vmatprep.subr.bf16.mxu0 0
      %848 = vmatpush1.bf16.xpose.msra.mxu0 0
      %849 = vmatprep.subr.bf16.mxu0 0
      %850 = vmatpush1.bf16.xpose.msra.mxu0 0
      %851 = vmatprep.subr.bf16.mxu0 0
      %852 = vmatpush1.bf16.xpose.msra.mxu0 0
      %853 = vmatprep.subr.bf16.mxu0 0
      %854 = vmatpush1.bf16.xpose.msra.mxu0 0
      %855 = vmatprep.subr.bf16.mxu0 0
      %856 = vmatpush1.bf16.xpose.msra.mxu0 0
      %857 = vmatprep.subr.bf16.mxu0 0
      %858 = vmatpush1.bf16.xpose.msra.mxu0 0
      %859 = vmatprep.subr.bf16.mxu0 0
      %860 = vmatpush1.bf16.xpose.msra.mxu0 0
      %861 = vmatprep.subr.bf16.mxu0 0
      %862 = vmatpush1.bf16.xpose.msra.mxu0 0
      %863 = vmatprep.subr.bf16.mxu0 0
      %864 = vmatpush1.bf16.xpose.msra.mxu0 0
      %865 = vmatprep.subr.bf16.mxu0 0
      %866 = vmatpush1.bf16.xpose.msra.mxu0 0
      %867 = vmatprep.subr.bf16.mxu0 0
      %868 = vmatpush1.bf16.xpose.msra.mxu0 0
      %869 = vmatprep.mubr.bf16.mxu0 0
      %870 = vmatmul.mubr.bf16.gmra.mrb[0].mxu0 %v832
      %v871 = vpop.f32.mrb[0].mxu0
      %v872 = vadd.f32 0.0, %v871
      %v873 = vpop.f32.mrb[0].mxu0
      %v874 = vpop.f32.mrb[0].mxu0
      %v875 = vadd.f32 0.0, %v874
      %v876 = vpop.f32.mrb[0].mxu0
      %877 = vdwg.mxu0
      %v878 = vmul.f32 %v473, 0.35355338
      %v879 = vmul.f32 %v476, 0.35355338
      %v880 = vmul.f32 %v530, 0.35355338
      %v881 = vmul.f32 %v533, 0.35355338
      %v882 = vmul.f32 %v587, 0.35355338
      %v883 = vmul.f32 %v590, 0.35355338
      %v884 = vmul.f32 %v644, 0.35355338
      %v885 = vmul.f32 %v647, 0.35355338
      %v886 = vmul.f32 %v701, 0.35355338
      %v887 = vmul.f32 %v704, 0.35355338
      %v888 = vmul.f32 %v758, 0.35355338
      %v889 = vmul.f32 %v761, 0.35355338
      %v890 = vmul.f32 %v815, 0.35355338
      %v891 = vmul.f32 %v818, 0.35355338
      %v892 = vmul.f32 %v872, 0.35355338
      %v893 = vmul.f32 %v875, 0.35355338
      %v894 = vld [vmem:[%s3] sm:$0xff]
      %v895 = vld [vmem:[%s3 + $0x8] sm:$0xff]
      %v896 = vld [vmem:[%s3 + $0x10] sm:$0xff]
      %v897 = vld [vmem:[%s3 + $0x18] sm:$0xff]
      %v898 = vld [vmem:[%s3 + $0x20] sm:$0xff]
      %v899 = vld [vmem:[%s3 + $0x28] sm:$0xff]
      %v900 = vld [vmem:[%s3 + $0x30] sm:$0xff]
      %v901 = vld [vmem:[%s3 + $0x38] sm:$0xff]
      %v902 = vadd.f32 %v878, %v894
      %v903 = vadd.f32 %v879, %v895
      %v904 = vadd.f32 %v880, %v896
      %v905 = vadd.f32 %v881, %v897
      %v906 = vadd.f32 %v882, %v898
      %v907 = vadd.f32 %v883, %v899
      %v908 = vadd.f32 %v884, %v900
      %v909 = vadd.f32 %v885, %v901
      %v910 = vadd.f32 %v886, %v894
      %v911 = vadd.f32 %v887, %v895
      %v912 = vadd.f32 %v888, %v896
      %v913 = vadd.f32 %v889, %v897
      %v914 = vadd.f32 %v890, %v898
      %v915 = vadd.f32 %v891, %v899
      %v916 = vadd.f32 %v892, %v900
      %v917 = vadd.f32 %v893, %v901
      %v918 = vld [vmem:[%s359] sm:$0xff]
      %v919 = vld [vmem:[%s359 + $0x8] sm:$0xff]
      %v920 = vld [vmem:[%s359 + $0x10] sm:$0xff]
      %v921 = vld [vmem:[%s359 + $0x18] sm:$0xff]
      %v922 = vadd.f32 %v902, %v918
      %v923 = vadd.f32 %v903, %v919
      %v924 = vadd.f32 %v904, %v918
      %v925 = vadd.f32 %v905, %v919
      %v926 = vadd.f32 %v906, %v918
      %v927 = vadd.f32 %v907, %v919
      %v928 = vadd.f32 %v908, %v918
      %v929 = vadd.f32 %v909, %v919
      %v930 = vadd.f32 %v910, %v920
      %v931 = vadd.f32 %v911, %v921
      %v932 = vadd.f32 %v912, %v920
      %v933 = vadd.f32 %v913, %v921
      %v934 = vadd.f32 %v914, %v920
      %v935 = vadd.f32 %v915, %v921
      %v936 = vadd.f32 %v916, %v920
      %v937 = vadd.f32 %v917, %v921
      %vm938 = vcmask 130048
      %v939 = vsel %vm938, %v922, -inf
      %940 = vmax.xlane.f32.xlu0 %v939
      %v941 = vpop.xlane.xlu0 %940
      %v942 = vsel %vm938, %v923, -inf
      %943 = vmax.xlane.f32.xlu0 %v942
      %v944 = vpop.xlane.xlu0 %943
      %v945 = vsel %vm938, %v924, -inf
      %946 = vmax.xlane.f32.xlu0 %v945
      %v947 = vpop.xlane.xlu0 %946
      %v948 = vsel %vm938, %v925, -inf
      %949 = vmax.xlane.f32.xlu0 %v948
      %v950 = vpop.xlane.xlu0 %949
      %v951 = vsel %vm938, %v926, -inf
      %952 = vmax.xlane.f32.xlu0 %v951
      %v953 = vpop.xlane.xlu0 %952
      %v954 = vsel %vm938, %v927, -inf
      %955 = vmax.xlane.f32.xlu0 %v954
      %v956 = vpop.xlane.xlu0 %955
      %v957 = vsel %vm938, %v928, -inf
      %958 = vmax.xlane.f32.xlu0 %v957
      %v959 = vpop.xlane.xlu0 %958
      %v960 = vsel %vm938, %v929, -inf
      %961 = vmax.xlane.f32.xlu0 %v960
      %v962 = vpop.xlane.xlu0 %961
      %v963 = vsel %vm938, %v930, -inf
      %964 = vmax.xlane.f32.xlu0 %v963
      %v965 = vpop.xlane.xlu0 %964
      %v966 = vsel %vm938, %v931, -inf
      %967 = vmax.xlane.f32.xlu0 %v966
      %v968 = vpop.xlane.xlu0 %967
      %v969 = vsel %vm938, %v932, -inf
      %970 = vmax.xlane.f32.xlu0 %v969
      %v971 = vpop.xlane.xlu0 %970
      %v972 = vsel %vm938, %v933, -inf
      %973 = vmax.xlane.f32.xlu0 %v972
      %v974 = vpop.xlane.xlu0 %973
      %v975 = vsel %vm938, %v934, -inf
      %976 = vmax.xlane.f32.xlu0 %v975
      %v977 = vpop.xlane.xlu0 %976
      %v978 = vsel %vm938, %v935, -inf
      %979 = vmax.xlane.f32.xlu0 %v978
      %v980 = vpop.xlane.xlu0 %979
      %v981 = vsel %vm938, %v936, -inf
      %982 = vmax.xlane.f32.xlu0 %v981
      %v983 = vpop.xlane.xlu0 %982
      %v984 = vsel %vm938, %v937, -inf
      %985 = vmax.xlane.f32.xlu0 %v984
      %v986 = vpop.xlane.xlu0 %985
      %v987 = vsub.f32 %v922, %v941
      %v988 = vsub.f32 %v923, %v944
      %v989 = vsub.f32 %v924, %v947
      %v990 = vsub.f32 %v925, %v950
      %v991 = vsub.f32 %v926, %v953
      %v992 = vsub.f32 %v927, %v956
      %v993 = vsub.f32 %v928, %v959
      %v994 = vsub.f32 %v929, %v962
      %v995 = vsub.f32 %v930, %v965
      %v996 = vsub.f32 %v931, %v968
      %v997 = vsub.f32 %v932, %v971
      %v998 = vsub.f32 %v933, %v974
      %v999 = vsub.f32 %v934, %v977
      %v1000 = vsub.f32 %v935, %v980
      %v1001 = vsub.f32 %v936, %v983
      %v1002 = vsub.f32 %v937, %v986
      %v1003 = vmul.f32 %v987, 1.442695
      %v1004 = vpow.pop %v1003
      %v1005 = vmul.f32 %v988, 1.442695
      %v1006 = vpow.pop %v1005
      %v1007 = vmul.f32 %v989, 1.442695
      %v1008 = vpow.pop %v1007
      %v1009 = vmul.f32 %v990, 1.442695
      %v1010 = vpow.pop %v1009
      %v1011 = vmul.f32 %v991, 1.442695
      %v1012 = vpow.pop %v1011
      %v1013 = vmul.f32 %v992, 1.442695
      %v1014 = vpow.pop %v1013
      %v1015 = vmul.f32 %v993, 1.442695
      %v1016 = vpow.pop %v1015
      %v1017 = vmul.f32 %v994, 1.442695
      %v1018 = vpow.pop %v1017
      %v1019 = vmul.f32 %v995, 1.442695
      %v1020 = vpow.pop %v1019
      %v1021 = vmul.f32 %v996, 1.442695
      %v1022 = vpow.pop %v1021
      %v1023 = vmul.f32 %v997, 1.442695
      %v1024 = vpow.pop %v1023
      %v1025 = vmul.f32 %v998, 1.442695
      %v1026 = vpow.pop %v1025
      %v1027 = vmul.f32 %v999, 1.442695
      %v1028 = vpow.pop %v1027
      %v1029 = vmul.f32 %v1000, 1.442695
      %v1030 = vpow.pop %v1029
      %v1031 = vmul.f32 %v1001, 1.442695
      %v1032 = vpow.pop %v1031
      %v1033 = vmul.f32 %v1002, 1.442695
      %v1034 = vpow.pop %v1033
      %v1035 = vsel %vm938, %v1004, 0.0
      %1036 = vadd.xlane.f32.xlu0 %v1035
      %v1037 = vpop.xlane.xlu0 %1036
      %v1038 = vsel %vm938, %v1006, 0.0
      %1039 = vadd.xlane.f32.xlu0 %v1038
      %v1040 = vpop.xlane.xlu0 %1039
      %v1041 = vsel %vm938, %v1008, 0.0
      %1042 = vadd.xlane.f32.xlu0 %v1041
      %v1043 = vpop.xlane.xlu0 %1042
      %v1044 = vsel %vm938, %v1010, 0.0
      %1045 = vadd.xlane.f32.xlu0 %v1044
      %v1046 = vpop.xlane.xlu0 %1045
      %v1047 = vsel %vm938, %v1012, 0.0
      %1048 = vadd.xlane.f32.xlu0 %v1047
      %v1049 = vpop.xlane.xlu0 %1048
      %v1050 = vsel %vm938, %v1014, 0.0
      %1051 = vadd.xlane.f32.xlu0 %v1050
      %v1052 = vpop.xlane.xlu0 %1051
      %v1053 = vsel %vm938, %v1016, 0.0
      %1054 = vadd.xlane.f32.xlu0 %v1053
      %v1055 = vpop.xlane.xlu0 %1054
      %v1056 = vsel %vm938, %v1018, 0.0
      %1057 = vadd.xlane.f32.xlu0 %v1056
      %v1058 = vpop.xlane.xlu0 %1057
      %v1059 = vsel %vm938, %v1020, 0.0
      %1060 = vadd.xlane.f32.xlu0 %v1059
      %v1061 = vpop.xlane.xlu0 %1060
      %v1062 = vsel %vm938, %v1022, 0.0
      %1063 = vadd.xlane.f32.xlu0 %v1062
      %v1064 = vpop.xlane.xlu0 %1063
      %v1065 = vsel %vm938, %v1024, 0.0
      %1066 = vadd.xlane.f32.xlu0 %v1065
      %v1067 = vpop.xlane.xlu0 %1066
      %v1068 = vsel %vm938, %v1026, 0.0
      %1069 = vadd.xlane.f32.xlu0 %v1068
      %v1070 = vpop.xlane.xlu0 %1069
      %v1071 = vsel %vm938, %v1028, 0.0
      %1072 = vadd.xlane.f32.xlu0 %v1071
      %v1073 = vpop.xlane.xlu0 %1072
      %v1074 = vsel %vm938, %v1030, 0.0
      %1075 = vadd.xlane.f32.xlu0 %v1074
      %v1076 = vpop.xlane.xlu0 %1075
      %v1077 = vsel %vm938, %v1032, 0.0
      %1078 = vadd.xlane.f32.xlu0 %v1077
      %v1079 = vpop.xlane.xlu0 %1078
      %v1080 = vsel %vm938, %v1034, 0.0
      %1081 = vadd.xlane.f32.xlu0 %v1080
      %v1082 = vpop.xlane.xlu0 %1081
      %v1083 = vrcp.pop %v1037
      %v1084 = vrcp.pop %v1040
      %v1085 = vrcp.pop %v1043
      %v1086 = vrcp.pop %v1046
      %v1087 = vrcp.pop %v1049
      %v1088 = vrcp.pop %v1052
      %v1089 = vrcp.pop %v1055
      %v1090 = vrcp.pop %v1058
      %v1091 = vrcp.pop %v1061
      %v1092 = vrcp.pop %v1064
      %v1093 = vrcp.pop %v1067
      %v1094 = vrcp.pop %v1070
      %v1095 = vrcp.pop %v1073
      %v1096 = vrcp.pop %v1076
      %v1097 = vrcp.pop %v1079
      %v1098 = vrcp.pop %v1082
      %v1099 = vmul.f32 %v1004, %v1083
      %v1100 = vmul.f32 %v1006, %v1084
      %v1101 = vmul.f32 %v1008, %v1085
      %v1102 = vmul.f32 %v1010, %v1086
      %v1103 = vmul.f32 %v1012, %v1087
      %v1104 = vmul.f32 %v1014, %v1088
      %v1105 = vmul.f32 %v1016, %v1089
      %v1106 = vmul.f32 %v1018, %v1090
      %v1107 = vmul.f32 %v1020, %v1091
      %v1108 = vmul.f32 %v1022, %v1092
      %v1109 = vmul.f32 %v1024, %v1093
      %v1110 = vmul.f32 %v1026, %v1094
      %v1111 = vmul.f32 %v1028, %v1095
      %v1112 = vmul.f32 %v1030, %v1096
      %v1113 = vmul.f32 %v1032, %v1097
      %v1114 = vmul.f32 %v1034, %v1098
      %v1115 = vpack.c.bf16 %v1100, %v1099
      %v1116 = vpack.c.bf16 %v1102, %v1101
      %v1117 = vpack.c.bf16 %v1104, %v1103
      %v1118 = vpack.c.bf16 %v1106, %v1105
      %v1119 = vpack.c.bf16 %v1108, %v1107
      %v1120 = vpack.c.bf16 %v1110, %v1109
      %v1121 = vpack.c.bf16 %v1112, %v1111
      %v1122 = vpack.c.bf16 %v1114, %v1113
      %v1125 = vunpack.c.l.b16 %v405
      %v1126 = vunpack.c.l.b16 %v406
      %v1127 = vpack.c.b16 %v1126, %v1125
      %v1130 = vsel %vm938, %v1115, 0
      %1132 = vmatprep.subr.bf16.mxu0 0
      %1133 = vmatpush1.bf16.msra.mxu0 %v1127
      %1134 = vmatprep.subr.bf16.mxu0 0
      %1135 = vmatpush1.bf16.msra.mxu0 0
      %1136 = vmatprep.subr.bf16.mxu0 0
      %1137 = vmatpush1.bf16.msra.mxu0 0
      %1138 = vmatprep.subr.bf16.mxu0 0
      %1139 = vmatpush1.bf16.msra.mxu0 0
      %1140 = vmatprep.subr.bf16.mxu0 0
      %1141 = vmatpush1.bf16.msra.mxu0 0
      %1142 = vmatprep.subr.bf16.mxu0 0
      %1143 = vmatpush1.bf16.msra.mxu0 0
      %1144 = vmatprep.subr.bf16.mxu0 0
      %1145 = vmatpush1.bf16.msra.mxu0 0
      %1146 = vmatprep.subr.bf16.mxu0 0
      %1147 = vmatpush1.bf16.msra.mxu0 0
      %1148 = vmatprep.subr.bf16.mxu0 0
      %1149 = vmatpush1.bf16.msra.mxu0 0
      %1150 = vmatprep.subr.bf16.mxu0 0
      %1151 = vmatpush1.bf16.msra.mxu0 0
      %1152 = vmatprep.subr.bf16.mxu0 0
      %1153 = vmatpush1.bf16.msra.mxu0 0
      %1154 = vmatprep.subr.bf16.mxu0 0
      %1155 = vmatpush1.bf16.msra.mxu0 0
      %1156 = vmatprep.subr.bf16.mxu0 0
      %1157 = vmatpush1.bf16.msra.mxu0 0
      %1158 = vmatprep.subr.bf16.mxu0 0
      %1159 = vmatpush1.bf16.msra.mxu0 0
      %1160 = vmatprep.subr.bf16.mxu0 0
      %1161 = vmatpush1.bf16.msra.mxu0 0
      %1162 = vmatprep.subr.bf16.mxu0 0
      %1163 = vmatpush1.bf16.msra.mxu0 0
      %1164 = vmatprep.mubr.bf16.mxu0 0
      %1165 = vmatmul.mubr.bf16.gmra.mrb[0].mxu0 %v1130
      %v1166 = vpop.f32.mrb[0].mxu0
      %v1167 = vadd.f32 0.0, %v1166
      %v1168 = vpop.f32.mrb[0].mxu0
      %v1169 = vpop.f32.mrb[0].mxu0
      %v1170 = vadd.f32 0.0, %v1169
      %v1171 = vpop.f32.mrb[0].mxu0
      %1172 = vdwg.mxu0
      %v1175 = vunpack.c.l.b16 %v407
      %v1176 = vunpack.c.l.b16 %v408
      %v1177 = vpack.c.b16 %v1176, %v1175
      %v1180 = vsel %vm938, %v1116, 0
      %1182 = vmatprep.subr.bf16.mxu0 0
      %1183 = vmatpush1.bf16.msra.mxu0 %v1177
      %1184 = vmatprep.subr.bf16.mxu0 0
      %1185 = vmatpush1.bf16.msra.mxu0 0
      %1186 = vmatprep.subr.bf16.mxu0 0
      %1187 = vmatpush1.bf16.msra.mxu0 0
      %1188 = vmatprep.subr.bf16.mxu0 0
      %1189 = vmatpush1.bf16.msra.mxu0 0
      %1190 = vmatprep.subr.bf16.mxu0 0
      %1191 = vmatpush1.bf16.msra.mxu0 0
      %1192 = vmatprep.subr.bf16.mxu0 0
      %1193 = vmatpush1.bf16.msra.mxu0 0
      %1194 = vmatprep.subr.bf16.mxu0 0
      %1195 = vmatpush1.bf16.msra.mxu0 0
      %1196 = vmatprep.subr.bf16.mxu0 0
      %1197 = vmatpush1.bf16.msra.mxu0 0
      %1198 = vmatprep.subr.bf16.mxu0 0
      %1199 = vmatpush1.bf16.msra.mxu0 0
      %1200 = vmatprep.subr.bf16.mxu0 0
      %1201 = vmatpush1.bf16.msra.mxu0 0
      %1202 = vmatprep.subr.bf16.mxu0 0
      %1203 = vmatpush1.bf16.msra.mxu0 0
      %1204 = vmatprep.subr.bf16.mxu0 0
      %1205 = vmatpush1.bf16.msra.mxu0 0
      %1206 = vmatprep.subr.bf16.mxu0 0
      %1207 = vmatpush1.bf16.msra.mxu0 0
      %1208 = vmatprep.subr.bf16.mxu0 0
      %1209 = vmatpush1.bf16.msra.mxu0 0
      %1210 = vmatprep.subr.bf16.mxu0 0
      %1211 = vmatpush1.bf16.msra.mxu0 0
      %1212 = vmatprep.subr.bf16.mxu0 0
      %1213 = vmatpush1.bf16.msra.mxu0 0
      %1214 = vmatprep.mubr.bf16.mxu0 0
      %1215 = vmatmul.mubr.bf16.gmra.mrb[0].mxu0 %v1180
      %v1216 = vpop.f32.mrb[0].mxu0
      %v1217 = vadd.f32 0.0, %v1216
      %v1218 = vpop.f32.mrb[0].mxu0
      %v1219 = vpop.f32.mrb[0].mxu0
      %v1220 = vadd.f32 0.0, %v1219
      %v1221 = vpop.f32.mrb[0].mxu0
      %1222 = vdwg.mxu0
      %v1225 = vunpack.c.l.b16 %v409
      %v1226 = vunpack.c.l.b16 %v410
      %v1227 = vpack.c.b16 %v1226, %v1225
      %v1230 = vsel %vm938, %v1117, 0
      %1232 = vmatprep.subr.bf16.mxu0 0
      %1233 = vmatpush1.bf16.msra.mxu0 %v1227
      %1234 = vmatprep.subr.bf16.mxu0 0
      %1235 = vmatpush1.bf16.msra.mxu0 0
      %1236 = vmatprep.subr.bf16.mxu0 0
      %1237 = vmatpush1.bf16.msra.mxu0 0
      %1238 = vmatprep.subr.bf16.mxu0 0
      %1239 = vmatpush1.bf16.msra.mxu0 0
      %1240 = vmatprep.subr.bf16.mxu0 0
      %1241 = vmatpush1.bf16.msra.mxu0 0
      %1242 = vmatprep.subr.bf16.mxu0 0
      %1243 = vmatpush1.bf16.msra.mxu0 0
      %1244 = vmatprep.subr.bf16.mxu0 0
      %1245 = vmatpush1.bf16.msra.mxu0 0
      %1246 = vmatprep.subr.bf16.mxu0 0
      %1247 = vmatpush1.bf16.msra.mxu0 0
      %1248 = vmatprep.subr.bf16.mxu0 0
      %1249 = vmatpush1.bf16.msra.mxu0 0
      %1250 = vmatprep.subr.bf16.mxu0 0
      %1251 = vmatpush1.bf16.msra.mxu0 0
      %1252 = vmatprep.subr.bf16.mxu0 0
      %1253 = vmatpush1.bf16.msra.mxu0 0
      %1254 = vmatprep.subr.bf16.mxu0 0
      %1255 = vmatpush1.bf16.msra.mxu0 0
      %1256 = vmatprep.subr.bf16.mxu0 0
      %1257 = vmatpush1.bf16.msra.mxu0 0
      %1258 = vmatprep.subr.bf16.mxu0 0
      %1259 = vmatpush1.bf16.msra.mxu0 0
      %1260 = vmatprep.subr.bf16.mxu0 0
      %1261 = vmatpush1.bf16.msra.mxu0 0
      %1262 = vmatprep.subr.bf16.mxu0 0
      %1263 = vmatpush1.bf16.msra.mxu0 0
      %1264 = vmatprep.mubr.bf16.mxu0 0
      %1265 = vmatmul.mubr.bf16.gmra.mrb[0].mxu0 %v1230
      %v1266 = vpop.f32.mrb[0].mxu0
      %v1267 = vadd.f32 0.0, %v1266
      %v1268 = vpop.f32.mrb[0].mxu0
      %v1269 = vpop.f32.mrb[0].mxu0
      %v1270 = vadd.f32 0.0, %v1269
      %v1271 = vpop.f32.mrb[0].mxu0
      %1272 = vdwg.mxu0
      %v1275 = vunpack.c.l.b16 %v411
      %v1276 = vunpack.c.l.b16 %v412
      %v1277 = vpack.c.b16 %v1276, %v1275
      %v1280 = vsel %vm938, %v1118, 0
      %1282 = vmatprep.subr.bf16.mxu0 0
      %1283 = vmatpush1.bf16.msra.mxu0 %v1277
      %1284 = vmatprep.subr.bf16.mxu0 0
      %1285 = vmatpush1.bf16.msra.mxu0 0
      %1286 = vmatprep.subr.bf16.mxu0 0
      %1287 = vmatpush1.bf16.msra.mxu0 0
      %1288 = vmatprep.subr.bf16.mxu0 0
      %1289 = vmatpush1.bf16.msra.mxu0 0
      %1290 = vmatprep.subr.bf16.mxu0 0
      %1291 = vmatpush1.bf16.msra.mxu0 0
      %1292 = vmatprep.subr.bf16.mxu0 0
      %1293 = vmatpush1.bf16.msra.mxu0 0
      %1294 = vmatprep.subr.bf16.mxu0 0
      %1295 = vmatpush1.bf16.msra.mxu0 0
      %1296 = vmatprep.subr.bf16.mxu0 0
      %1297 = vmatpush1.bf16.msra.mxu0 0
      %1298 = vmatprep.subr.bf16.mxu0 0
      %1299 = vmatpush1.bf16.msra.mxu0 0
      %1300 = vmatprep.subr.bf16.mxu0 0
      %1301 = vmatpush1.bf16.msra.mxu0 0
      %1302 = vmatprep.subr.bf16.mxu0 0
      %1303 = vmatpush1.bf16.msra.mxu0 0
      %1304 = vmatprep.subr.bf16.mxu0 0
      %1305 = vmatpush1.bf16.msra.mxu0 0
      %1306 = vmatprep.subr.bf16.mxu0 0
      %1307 = vmatpush1.bf16.msra.mxu0 0
      %1308 = vmatprep.subr.bf16.mxu0 0
      %1309 = vmatpush1.bf16.msra.mxu0 0
      %1310 = vmatprep.subr.bf16.mxu0 0
      %1311 = vmatpush1.bf16.msra.mxu0 0
      %1312 = vmatprep.subr.bf16.mxu0 0
      %1313 = vmatpush1.bf16.msra.mxu0 0
      %1314 = vmatprep.mubr.bf16.mxu0 0
      %1315 = vmatmul.mubr.bf16.gmra.mrb[0].mxu0 %v1280
      %v1316 = vpop.f32.mrb[0].mxu0
      %v1317 = vadd.f32 0.0, %v1316
      %v1318 = vpop.f32.mrb[0].mxu0
      %v1319 = vpop.f32.mrb[0].mxu0
      %v1320 = vadd.f32 0.0, %v1319
      %v1321 = vpop.f32.mrb[0].mxu0
      %1322 = vdwg.mxu0
      %v1325 = vunpack.c.l.b16 %v413
      %v1326 = vunpack.c.l.b16 %v414
      %v1327 = vpack.c.b16 %v1326, %v1325
      %v1330 = vsel %vm938, %v1119, 0
      %1332 = vmatprep.subr.bf16.mxu0 0
      %1333 = vmatpush1.bf16.msra.mxu0 %v1327
      %1334 = vmatprep.subr.bf16.mxu0 0
      %1335 = vmatpush1.bf16.msra.mxu0 0
      %1336 = vmatprep.subr.bf16.mxu0 0
      %1337 = vmatpush1.bf16.msra.mxu0 0
      %1338 = vmatprep.subr.bf16.mxu0 0
      %1339 = vmatpush1.bf16.msra.mxu0 0
      %1340 = vmatprep.subr.bf16.mxu0 0
      %1341 = vmatpush1.bf16.msra.mxu0 0
      %1342 = vmatprep.subr.bf16.mxu0 0
      %1343 = vmatpush1.bf16.msra.mxu0 0
      %1344 = vmatprep.subr.bf16.mxu0 0
      %1345 = vmatpush1.bf16.msra.mxu0 0
      %1346 = vmatprep.subr.bf16.mxu0 0
      %1347 = vmatpush1.bf16.msra.mxu0 0
      %1348 = vmatprep.subr.bf16.mxu0 0
      %1349 = vmatpush1.bf16.msra.mxu0 0
      %1350 = vmatprep.subr.bf16.mxu0 0
      %1351 = vmatpush1.bf16.msra.mxu0 0
      %1352 = vmatprep.subr.bf16.mxu0 0
      %1353 = vmatpush1.bf16.msra.mxu0 0
      %1354 = vmatprep.subr.bf16.mxu0 0
      %1355 = vmatpush1.bf16.msra.mxu0 0
      %1356 = vmatprep.subr.bf16.mxu0 0
      %1357 = vmatpush1.bf16.msra.mxu0 0
      %1358 = vmatprep.subr.bf16.mxu0 0
      %1359 = vmatpush1.bf16.msra.mxu0 0
      %1360 = vmatprep.subr.bf16.mxu0 0
      %1361 = vmatpush1.bf16.msra.mxu0 0
      %1362 = vmatprep.subr.bf16.mxu0 0
      %1363 = vmatpush1.bf16.msra.mxu0 0
      %1364 = vmatprep.mubr.bf16.mxu0 0
      %1365 = vmatmul.mubr.bf16.gmra.mrb[0].mxu0 %v1330
      %v1366 = vpop.f32.mrb[0].mxu0
      %v1367 = vadd.f32 0.0, %v1366
      %v1368 = vpop.f32.mrb[0].mxu0
      %v1369 = vpop.f32.mrb[0].mxu0
      %v1370 = vadd.f32 0.0, %v1369
      %v1371 = vpop.f32.mrb[0].mxu0
      %1372 = vdwg.mxu0
      %v1375 = vunpack.c.l.b16 %v415
      %v1376 = vunpack.c.l.b16 %v416
      %v1377 = vpack.c.b16 %v1376, %v1375
      %v1380 = vsel %vm938, %v1120, 0
      %1382 = vmatprep.subr.bf16.mxu0 0
      %1383 = vmatpush1.bf16.msra.mxu0 %v1377
      %1384 = vmatprep.subr.bf16.mxu0 0
      %1385 = vmatpush1.bf16.msra.mxu0 0
      %1386 = vmatprep.subr.bf16.mxu0 0
      %1387 = vmatpush1.bf16.msra.mxu0 0
      %1388 = vmatprep.subr.bf16.mxu0 0
      %1389 = vmatpush1.bf16.msra.mxu0 0
      %1390 = vmatprep.subr.bf16.mxu0 0
      %1391 = vmatpush1.bf16.msra.mxu0 0
      %1392 = vmatprep.subr.bf16.mxu0 0
      %1393 = vmatpush1.bf16.msra.mxu0 0
      %1394 = vmatprep.subr.bf16.mxu0 0
      %1395 = vmatpush1.bf16.msra.mxu0 0
      %1396 = vmatprep.subr.bf16.mxu0 0
      %1397 = vmatpush1.bf16.msra.mxu0 0
      %1398 = vmatprep.subr.bf16.mxu0 0
      %1399 = vmatpush1.bf16.msra.mxu0 0
      %1400 = vmatprep.subr.bf16.mxu0 0
      %1401 = vmatpush1.bf16.msra.mxu0 0
      %1402 = vmatprep.subr.bf16.mxu0 0
      %1403 = vmatpush1.bf16.msra.mxu0 0
      %1404 = vmatprep.subr.bf16.mxu0 0
      %1405 = vmatpush1.bf16.msra.mxu0 0
      %1406 = vmatprep.subr.bf16.mxu0 0
      %1407 = vmatpush1.bf16.msra.mxu0 0
      %1408 = vmatprep.subr.bf16.mxu0 0
      %1409 = vmatpush1.bf16.msra.mxu0 0
      %1410 = vmatprep.subr.bf16.mxu0 0
      %1411 = vmatpush1.bf16.msra.mxu0 0
      %1412 = vmatprep.subr.bf16.mxu0 0
      %1413 = vmatpush1.bf16.msra.mxu0 0
      %1414 = vmatprep.mubr.bf16.mxu0 0
      %1415 = vmatmul.mubr.bf16.gmra.mrb[0].mxu0 %v1380
      %v1416 = vpop.f32.mrb[0].mxu0
      %v1417 = vadd.f32 0.0, %v1416
      %v1418 = vpop.f32.mrb[0].mxu0
      %v1419 = vpop.f32.mrb[0].mxu0
      %v1420 = vadd.f32 0.0, %v1419
      %v1421 = vpop.f32.mrb[0].mxu0
      %1422 = vdwg.mxu0
      %v1425 = vunpack.c.l.b16 %v417
      %v1426 = vunpack.c.l.b16 %v418
      %v1427 = vpack.c.b16 %v1426, %v1425
      %v1430 = vsel %vm938, %v1121, 0
      %1432 = vmatprep.subr.bf16.mxu0 0
      %1433 = vmatpush1.bf16.msra.mxu0 %v1427
      %1434 = vmatprep.subr.bf16.mxu0 0
      %1435 = vmatpush1.bf16.msra.mxu0 0
      %1436 = vmatprep.subr.bf16.mxu0 0
      %1437 = vmatpush1.bf16.msra.mxu0 0
      %1438 = vmatprep.subr.bf16.mxu0 0
      %1439 = vmatpush1.bf16.msra.mxu0 0
      %1440 = vmatprep.subr.bf16.mxu0 0
      %1441 = vmatpush1.bf16.msra.mxu0 0
      %1442 = vmatprep.subr.bf16.mxu0 0
      %1443 = vmatpush1.bf16.msra.mxu0 0
      %1444 = vmatprep.subr.bf16.mxu0 0
      %1445 = vmatpush1.bf16.msra.mxu0 0
      %1446 = vmatprep.subr.bf16.mxu0 0
      %1447 = vmatpush1.bf16.msra.mxu0 0
      %1448 = vmatprep.subr.bf16.mxu0 0
      %1449 = vmatpush1.bf16.msra.mxu0 0
      %1450 = vmatprep.subr.bf16.mxu0 0
      %1451 = vmatpush1.bf16.msra.mxu0 0
      %1452 = vmatprep.subr.bf16.mxu0 0
      %1453 = vmatpush1.bf16.msra.mxu0 0
      %1454 = vmatprep.subr.bf16.mxu0 0
      %1455 = vmatpush1.bf16.msra.mxu0 0
      %1456 = vmatprep.subr.bf16.mxu0 0
      %1457 = vmatpush1.bf16.msra.mxu0 0
      %1458 = vmatprep.subr.bf16.mxu0 0
      %1459 = vmatpush1.bf16.msra.mxu0 0
      %1460 = vmatprep.subr.bf16.mxu0 0
      %1461 = vmatpush1.bf16.msra.mxu0 0
      %1462 = vmatprep.subr.bf16.mxu0 0
      %1463 = vmatpush1.bf16.msra.mxu0 0
      %1464 = vmatprep.mubr.bf16.mxu0 0
      %1465 = vmatmul.mubr.bf16.gmra.mrb[0].mxu0 %v1430
      %v1466 = vpop.f32.mrb[0].mxu0
      %v1467 = vadd.f32 0.0, %v1466
      %v1468 = vpop.f32.mrb[0].mxu0
      %v1469 = vpop.f32.mrb[0].mxu0
      %v1470 = vadd.f32 0.0, %v1469
      %v1471 = vpop.f32.mrb[0].mxu0
      %1472 = vdwg.mxu0
      %v1475 = vunpack.c.l.b16 %v419
      %v1476 = vunpack.c.l.b16 %v420
      %v1477 = vpack.c.b16 %v1476, %v1475
      %v1480 = vsel %vm938, %v1122, 0
      %1482 = vmatprep.subr.bf16.mxu0 0
      %1483 = vmatpush1.bf16.msra.mxu0 %v1477
      %1484 = vmatprep.subr.bf16.mxu0 0
      %1485 = vmatpush1.bf16.msra.mxu0 0
      %1486 = vmatprep.subr.bf16.mxu0 0
      %1487 = vmatpush1.bf16.msra.mxu0 0
      %1488 = vmatprep.subr.bf16.mxu0 0
      %1489 = vmatpush1.bf16.msra.mxu0 0
      %1490 = vmatprep.subr.bf16.mxu0 0
      %1491 = vmatpush1.bf16.msra.mxu0 0
      %1492 = vmatprep.subr.bf16.mxu0 0
      %1493 = vmatpush1.bf16.msra.mxu0 0
      %1494 = vmatprep.subr.bf16.mxu0 0
      %1495 = vmatpush1.bf16.msra.mxu0 0
      %1496 = vmatprep.subr.bf16.mxu0 0
      %1497 = vmatpush1.bf16.msra.mxu0 0
      %1498 = vmatprep.subr.bf16.mxu0 0
      %1499 = vmatpush1.bf16.msra.mxu0 0
      %1500 = vmatprep.subr.bf16.mxu0 0
      %1501 = vmatpush1.bf16.msra.mxu0 0
      %1502 = vmatprep.subr.bf16.mxu0 0
      %1503 = vmatpush1.bf16.msra.mxu0 0
      %1504 = vmatprep.subr.bf16.mxu0 0
      %1505 = vmatpush1.bf16.msra.mxu0 0
      %1506 = vmatprep.subr.bf16.mxu0 0
      %1507 = vmatpush1.bf16.msra.mxu0 0
      %1508 = vmatprep.subr.bf16.mxu0 0
      %1509 = vmatpush1.bf16.msra.mxu0 0
      %1510 = vmatprep.subr.bf16.mxu0 0
      %1511 = vmatpush1.bf16.msra.mxu0 0
      %1512 = vmatprep.subr.bf16.mxu0 0
      %1513 = vmatpush1.bf16.msra.mxu0 0
      %1514 = vmatprep.mubr.bf16.mxu0 0
      %1515 = vmatmul.mubr.bf16.gmra.mrb[0].mxu0 %v1480
      %v1516 = vpop.f32.mrb[0].mxu0
      %v1517 = vadd.f32 0.0, %v1516
      %v1518 = vpop.f32.mrb[0].mxu0
      %v1519 = vpop.f32.mrb[0].mxu0
      %v1520 = vadd.f32 0.0, %v1519
      %v1521 = vpop.f32.mrb[0].mxu0
      %1522 = vdwg.mxu0
      %v1523 = vpack.c.bf16 %v1170, %v1167
      %v1524 = vpack.c.bf16 %v1220, %v1217
      %v1525 = vpack.c.bf16 %v1270, %v1267
      %v1526 = vpack.c.bf16 %v1320, %v1317
      %v1527 = vpack.c.bf16 %v1370, %v1367
      %v1528 = vpack.c.bf16 %v1420, %v1417
      %v1529 = vpack.c.bf16 %v1470, %v1467
      %v1530 = vpack.c.bf16 %v1520, %v1517
      %v1539 = vunpack.c.l.b16 %v1523
      %v1540 = vunpack.c.h.b16 %v1523
      %v1541 = vunpack.c.l.b16 %v1524
      %v1542 = vunpack.c.h.b16 %v1524
      %v1543 = vunpack.c.l.b16 %v1525
      %v1544 = vunpack.c.h.b16 %v1525
      %v1545 = vunpack.c.l.b16 %v1526
      %v1546 = vunpack.c.h.b16 %v1526
      %v1547 = vunpack.c.l.b16 %v1527
      %v1548 = vunpack.c.h.b16 %v1527
      %v1549 = vunpack.c.l.b16 %v1528
      %v1550 = vunpack.c.h.b16 %v1528
      %v1551 = vunpack.c.l.b16 %v1529
      %v1552 = vunpack.c.h.b16 %v1529
      %v1553 = vunpack.c.l.b16 %v1530
      %v1554 = vunpack.c.h.b16 %v1530
      %v1555 = vpack.c.b16 %v1539, %v1539
      %v1556 = vpack.c.b16 %v1540, %v1540
      %v1557 = vpack.c.b16 %v1541, %v1541
      %v1558 = vpack.c.b16 %v1542, %v1542
      %v1559 = vpack.c.b16 %v1543, %v1543
      %v1560 = vpack.c.b16 %v1544, %v1544
      %v1561 = vpack.c.b16 %v1545, %v1545
      %v1562 = vpack.c.b16 %v1546, %v1546
      %v1563 = vpack.c.b16 %v1547, %v1547
      %v1564 = vpack.c.b16 %v1548, %v1548
      %v1565 = vpack.c.b16 %v1549, %v1549
      %v1566 = vpack.c.b16 %v1550, %v1550
      %v1567 = vpack.c.b16 %v1551, %v1551
      %v1568 = vpack.c.b16 %v1552, %v1552
      %v1569 = vpack.c.b16 %v1553, %v1553
      %v1570 = vpack.c.b16 %v1554, %v1554
      %vm1587 = vcmask 60416
      %1588 = vst.msk [vmem:[%s370] sm:$0xf] %vm1587, %v1555
      %1589 = vst.msk [vmem:[%s370 + $0x4] sm:$0xf] %vm1587, %v1556
      %1590 = vst.msk [vmem:[%s370 + $0x8] sm:$0xf] %vm1587, %v1557
      %1591 = vst.msk [vmem:[%s370 + $0xc] sm:$0xf] %vm1587, %v1558
      %1592 = vst.msk [vmem:[%s370 + $0x10] sm:$0xf] %vm1587, %v1559
      %1593 = vst.msk [vmem:[%s370 + $0x14] sm:$0xf] %vm1587, %v1560
      %1594 = vst.msk [vmem:[%s370 + $0x18] sm:$0xf] %vm1587, %v1561
      %1595 = vst.msk [vmem:[%s370 + $0x1c] sm:$0xf] %vm1587, %v1562
      %1596 = vst.msk [vmem:[%s370 + $0x20] sm:$0xf] %vm1587, %v1563
      %1597 = vst.msk [vmem:[%s370 + $0x24] sm:$0xf] %vm1587, %v1564
      %1598 = vst.msk [vmem:[%s370 + $0x28] sm:$0xf] %vm1587, %v1565
      %1599 = vst.msk [vmem:[%s370 + $0x2c] sm:$0xf] %vm1587, %v1566
      %1600 = vst.msk [vmem:[%s370 + $0x30] sm:$0xf] %vm1587, %v1567
      %1601 = vst.msk [vmem:[%s370 + $0x34] sm:$0xf] %vm1587, %v1568
      %1602 = vst.msk [vmem:[%s370 + $0x38] sm:$0xf] %vm1587, %v1569
      %1603 = vst.msk [vmem:[%s370 + $0x3c] sm:$0xf] %vm1587, %v1570
      %s1604 = smul.u32 2, %s21
      %p1605 = scmp.lt.s32.totalorder %s20, 1
      %s1606 = scalar_select %p1605, %s20, 1
      %p1607 = scmp.lt.s32.totalorder %s1604, 3
      %s1608 = scalar_select %p1607, %s1604, 3
      %s1609 = smul.addr %s1608, 8
      %s1610 = smul.addr %s1606, 32
      %s1611 = sadd.s32 %s1609, %s1610
      %s1612 = smul.addr %s1611, 4
      %s1613 = scalar_lea.vmem %s5, %s1612
      // Predicated region
      $region41: #{_lambda_.20} parent=39 // pred_check
        %p1614 = pneg %p179
      $region42: #{_lambda_.20} parent=39 // pred_check_branch
        %1616 = sbr.rel (%p1614) target = $region44
      $region43: #{_lambda_.20} parent=39 // pred_region
        %s1617 = smul.u32 2, %s21
      $region44: #{_lambda_.20} parent=39 // pred_fallthru
        _
    $region40: #{_lambda_.20} parent=5 // pred_fallthru
      _
    %p1618 = scmp.le.s32.totalorder 2, %s11
    // Predicated region
    $region45: #{_lambda_.20} parent=5 // pred_check
      %p1619 = pneg %p1618
    $region46: #{_lambda_.20} parent=5 // pred_check_branch
      %1621 = sbr.rel (%p1619) target = $region48
    $region47: #{_lambda_.20} parent=5 // pred_region
      %s1622 = ssub.s32 %s11, 2
      // Predicated region
      $region49: #{_lambda_.20} parent=47 // pred_check
        %p1623 = pneg %p185
      $region50: #{_lambda_.20} parent=47 // pred_check_branch
        %1625 = sbr.rel (%p1623) target = $region52
      $region51: #{_lambda_.20} parent=47 // pred_region
        %s1626 = smul.u32 2, %s23
        %p1627 = scmp.lt.s32.totalorder %s22, 1
        %s1628 = scalar_select %p1627, %s22, 1
        %p1629 = scmp.lt.s32.totalorder %s1626, 3
        %s1630 = scalar_select %p1629, %s1626, 3
        %s1631 = smul.addr %s1630, 8
        %s1632 = smul.addr %s1628, 32
        %s1633 = sadd.s32 %s1631, %s1632
        %s1634 = smul.addr %s1633, 4
        %s1635 = scalar_lea.vmem %s5, %s1634
      $region52: #{_lambda_.20} parent=47 // pred_fallthru
        _
    $region48: #{_lambda_.20} parent=5 // pred_fallthru
      _
  $region6: #{_lambda_.20} parent=0 // loop_footer
    %s15 = sadd.s32 1, %s11
  $region7: #{_lambda_.20} parent=0 // loop_footer_branch
    %10 = sbr.rel target = $region3
  $region8: #{_lambda_.20} parent=0 // loop_exit
    _

// kernel: _lambda_.21
$region0: #{_lambda_.21}
  #allocation0 [shape = 'u32[]', space=smem, size = 0x4, offset = 0x4, fixed_abs, tag = 'smem constant byte address 0x4 - core index']
  #allocation1 [shape = 'u32[144,128]{1,0:T(1,128)}', space=vmem, size = 0x12000, scoped, tag = 'internal scratch']
  %s0 = inlined_call_operand.vmem [shape: bf16[128,32], index: 0, kind: input, shape index: {}]
  %s1 = inlined_call_operand.vmem [shape: bf16[32,32], index: 1, kind: input, shape index: {}]
  %s2 = inlined_call_operand.vmem [shape: f32[1,32], index: 2, kind: input, shape index: {}]
  %s3 = inlined_call_operand.vmem [shape: f32[128,32], index: 3, kind: output, shape index: {}]
  %s4 = sld [smem:[#allocation0]]
  $region22: #{_lambda_.21} parent=0
    _
  %s6 = ssub.s32 1, %s4
  %s7 = scalar_select 0, %s6, %s4
  // Predicated region
  $region2: #{_lambda_.21} parent=0 // pred_check
    _
  $region3: #{_lambda_.21} parent=0 // pred_check_branch
    %9 = sbr.rel (0) target = $region5
  $region4: #{_lambda_.21} parent=0 // pred_region
    _
  $region5: #{_lambda_.21} parent=0 // pred_fallthru
    _
  // Predicated region
  $region6: #{_lambda_.21} parent=0 // pred_check
    _
  $region7: #{_lambda_.21} parent=0 // pred_check_branch
    %11 = sbr.rel (0) target = $region9
  $region8: #{_lambda_.21} parent=0 // pred_region
    _
  $region9: #{_lambda_.21} parent=0 // pred_fallthru
    _
  // Predicated region
  $region10: #{_lambda_.21} parent=0 // pred_check
    _
  $region11: #{_lambda_.21} parent=0 // pred_check_branch
    %13 = sbr.rel (0) target = $region13
  $region12: #{_lambda_.21} parent=0 // pred_region
    _
  $region13: #{_lambda_.21} parent=0 // pred_fallthru
    _
  %v15 = vld [vmem:[%s0] sm:$0xf]
  %v16 = vld [vmem:[%s0 + $0x4] sm:$0xf]
  %v17 = vld [vmem:[%s0 + $0x8] sm:$0xf]
  %v18 = vld [vmem:[%s0 + $0xc] sm:$0xf]
  %v19 = vld [vmem:[%s0 + $0x10] sm:$0xf]
  %v20 = vld [vmem:[%s0 + $0x14] sm:$0xf]
  %v21 = vld [vmem:[%s0 + $0x18] sm:$0xf]
  %v22 = vld [vmem:[%s0 + $0x1c] sm:$0xf]
  %v23 = vld [vmem:[%s0 + $0x20] sm:$0xf]
  %v24 = vld [vmem:[%s0 + $0x24] sm:$0xf]
  %v25 = vld [vmem:[%s0 + $0x28] sm:$0xf]
  %v26 = vld [vmem:[%s0 + $0x2c] sm:$0xf]
  %v27 = vld [vmem:[%s0 + $0x30] sm:$0xf]
  %v28 = vld [vmem:[%s0 + $0x34] sm:$0xf]
  %v29 = vld [vmem:[%s0 + $0x38] sm:$0xf]
  %v30 = vld [vmem:[%s0 + $0x3c] sm:$0xf]
  %v31 = vld [vmem:[%s1] sm:$0xf]
  %v32 = vld [vmem:[%s1 + $0x4] sm:$0xf]
  %v33 = vld [vmem:[%s1 + $0x8] sm:$0xf]
  %v34 = vld [vmem:[%s1 + $0xc] sm:$0xf]
  %v35 = vld [vmem:[%s2] sm:$0x1]
  %v37 = vlaneseq
  %v38 = vshrl.u32 %v37, 7
  %v39 = vsub.s32 0, %v38
  %v40 = vrot.slane %v35, %v39
  %v58 = vunpack.c.l.b16 %v15
  %v59 = vunpack.c.l.b16 %v16
  %v60 = vunpack.c.l.b16 %v17
  %v61 = vunpack.c.l.b16 %v18
  %v62 = vunpack.c.l.b16 %v19
  %v63 = vunpack.c.l.b16 %v20
  %v64 = vunpack.c.l.b16 %v21
  %v65 = vunpack.c.l.b16 %v22
  %v66 = vunpack.c.l.b16 %v23
  %v67 = vunpack.c.l.b16 %v24
  %v68 = vunpack.c.l.b16 %v25
  %v69 = vunpack.c.l.b16 %v26
  %v70 = vunpack.c.l.b16 %v27
  %v71 = vunpack.c.l.b16 %v28
  %v72 = vunpack.c.l.b16 %v29
  %v73 = vunpack.c.l.b16 %v30
  %v74 = vpack.c.b16 %v59, %v58
  %v75 = vpack.c.b16 %v61, %v60
  %v76 = vpack.c.b16 %v63, %v62
  %v77 = vpack.c.b16 %v65, %v64
  %v78 = vpack.c.b16 %v67, %v66
  %v79 = vpack.c.b16 %v69, %v68
  %v80 = vpack.c.b16 %v71, %v70
  %v81 = vpack.c.b16 %v73, %v72
  %v86 = vunpack.c.l.b16 %v31
  %v87 = vunpack.c.l.b16 %v32
  %v88 = vunpack.c.l.b16 %v33
  %v89 = vunpack.c.l.b16 %v34
  %v90 = vpack.c.b16 %v87, %v86
  %v91 = vpack.c.b16 %v89, %v88
  %vm94 = vcmask 261120
  %v96 = vsel %vm94, %v74, 0
  %v99 = vsel %vm94, %v75, 0
  %v102 = vsel %vm94, %v76, 0
  %v105 = vsel %vm94, %v77, 0
  %v108 = vsel %vm94, %v78, 0
  %v111 = vsel %vm94, %v79, 0
  %v114 = vsel %vm94, %v80, 0
  %v117 = vsel %vm94, %v81, 0
  %119 = vmatprep.subr.bf16.mxu0 0
  %120 = vmatpush1.bf16.msra.mxu0 %v90
  %121 = vmatprep.subr.bf16.mxu0 0
  %122 = vmatpush1.bf16.msra.mxu0 %v91
  %123 = vmatprep.subr.bf16.mxu0 0
  %124 = vmatpush1.bf16.msra.mxu0 0
  %125 = vmatprep.subr.bf16.mxu0 0
  %126 = vmatpush1.bf16.msra.mxu0 0
  %127 = vmatprep.subr.bf16.mxu0 0
  %128 = vmatpush1.bf16.msra.mxu0 0
  %129 = vmatprep.subr.bf16.mxu0 0
  %130 = vmatpush1.bf16.msra.mxu0 0
  %131 = vmatprep.subr.bf16.mxu0 0
  %132 = vmatpush1.bf16.msra.mxu0 0
  %133 = vmatprep.subr.bf16.mxu0 0
  %134 = vmatpush1.bf16.msra.mxu0 0
  %135 = vmatprep.subr.bf16.mxu0 0
  %136 = vmatpush1.bf16.msra.mxu0 0
  %137 = vmatprep.subr.bf16.mxu0 0
  %138 = vmatpush1.bf16.msra.mxu0 0
  %139 = vmatprep.subr.bf16.mxu0 0
  %140 = vmatpush1.bf16.msra.mxu0 0
  %141 = vmatprep.subr.bf16.mxu0 0
  %142 = vmatpush1.bf16.msra.mxu0 0
  %143 = vmatprep.subr.bf16.mxu0 0
  %144 = vmatpush1.bf16.msra.mxu0 0
  %145 = vmatprep.subr.bf16.mxu0 0
  %146 = vmatpush1.bf16.msra.mxu0 0
  %147 = vmatprep.subr.bf16.mxu0 0
  %148 = vmatpush1.bf16.msra.mxu0 0
  %149 = vmatprep.subr.bf16.mxu0 0
  %150 = vmatpush1.bf16.msra.mxu0 0
  %151 = vmatprep.mubr.bf16.mxu0 0
  %152 = vmatmul.mubr.bf16.gmra.mrb[0].mxu0 %v96
  %v153 = vpop.f32.mrb[0].mxu0
  %v154 = vadd.f32 %v40, %v153
  %v155 = vpop.f32.mrb[0].mxu0
  %v156 = vpop.f32.mrb[0].mxu0
  %v157 = vadd.f32 %v40, %v156
  %v158 = vpop.f32.mrb[0].mxu0
  %159 = vmatprep.mubr.bf16.mxu0 0
  %160 = vmatmul.mubr.bf16.gmra.mrb[0].mxu0 %v99
  %v161 = vpop.f32.mrb[0].mxu0
  %v162 = vadd.f32 %v40, %v161
  %v163 = vpop.f32.mrb[0].mxu0
  %v164 = vpop.f32.mrb[0].mxu0
  %v165 = vadd.f32 %v40, %v164
  %v166 = vpop.f32.mrb[0].mxu0
  %167 = vmatprep.mubr.bf16.mxu0 0
  %168 = vmatmul.mubr.bf16.gmra.mrb[0].mxu0 %v102
  %v169 = vpop.f32.mrb[0].mxu0
  %v170 = vadd.f32 %v40, %v169
  %v171 = vpop.f32.mrb[0].mxu0
  %v172 = vpop.f32.mrb[0].mxu0
  %v173 = vadd.f32 %v40, %v172
  %v174 = vpop.f32.mrb[0].mxu0
  %175 = vmatprep.mubr.bf16.mxu0 0
  %176 = vmatmul.mubr.bf16.gmra.mrb[0].mxu0 %v105
  %v177 = vpop.f32.mrb[0].mxu0
  %v178 = vadd.f32 %v40, %v177
  %v179 = vpop.f32.mrb[0].mxu0
  %v180 = vpop.f32.mrb[0].mxu0
  %v181 = vadd.f32 %v40, %v180
  %v182 = vpop.f32.mrb[0].mxu0
  %183 = vmatprep.mubr.bf16.mxu0 0
  %184 = vmatmul.mubr.bf16.gmra.mrb[0].mxu0 %v108
  %v185 = vpop.f32.mrb[0].mxu0
  %v186 = vadd.f32 %v40, %v185
  %v187 = vpop.f32.mrb[0].mxu0
  %v188 = vpop.f32.mrb[0].mxu0
  %v189 = vadd.f32 %v40, %v188
  %v190 = vpop.f32.mrb[0].mxu0
  %191 = vmatprep.mubr.bf16.mxu0 0
  %192 = vmatmul.mubr.bf16.gmra.mrb[0].mxu0 %v111
  %v193 = vpop.f32.mrb[0].mxu0
  %v194 = vadd.f32 %v40, %v193
  %v195 = vpop.f32.mrb[0].mxu0
  %v196 = vpop.f32.mrb[0].mxu0
  %v197 = vadd.f32 %v40, %v196
  %v198 = vpop.f32.mrb[0].mxu0
  %199 = vmatprep.mubr.bf16.mxu0 0
  %200 = vmatmul.mubr.bf16.gmra.mrb[0].mxu0 %v114
  %v201 = vpop.f32.mrb[0].mxu0
  %v202 = vadd.f32 %v40, %v201
  %v203 = vpop.f32.mrb[0].mxu0
  %v204 = vpop.f32.mrb[0].mxu0
  %v205 = vadd.f32 %v40, %v204
  %v206 = vpop.f32.mrb[0].mxu0
  %207 = vmatprep.mubr.bf16.mxu0 0
  %208 = vmatmul.mubr.bf16.gmra.mrb[0].mxu0 %v117
  %v209 = vpop.f32.mrb[0].mxu0
  %v210 = vadd.f32 %v40, %v209
  %v211 = vpop.f32.mrb[0].mxu0
  %v212 = vpop.f32.mrb[0].mxu0
  %v213 = vadd.f32 %v40, %v212
  %v214 = vpop.f32.mrb[0].mxu0
  %215 = vdwg.mxu0
  %216 = vst.msk [vmem:[%s3] sm:$0xff] %vm94, %v154
  %217 = vst.msk [vmem:[%s3 + $0x8] sm:$0xff] %vm94, %v157
  %218 = vst.msk [vmem:[%s3 + $0x10] sm:$0xff] %vm94, %v162
  %219 = vst.msk [vmem:[%s3 + $0x18] sm:$0xff] %vm94, %v165
  %220 = vst.msk [vmem:[%s3 + $0x20] sm:$0xff] %vm94, %v170
  %221 = vst.msk [vmem:[%s3 + $0x28] sm:$0xff] %vm94, %v173
  %222 = vst.msk [vmem:[%s3 + $0x30] sm:$0xff] %vm94, %v178
  %223 = vst.msk [vmem:[%s3 + $0x38] sm:$0xff] %vm94, %v181
  %224 = vst.msk [vmem:[%s3 + $0x40] sm:$0xff] %vm94, %v186
  %225 = vst.msk [vmem:[%s3 + $0x48] sm:$0xff] %vm94, %v189
  %226 = vst.msk [vmem:[%s3 + $0x50] sm:$0xff] %vm94, %v194
  %227 = vst.msk [vmem:[%s3 + $0x58] sm:$0xff] %vm94, %v197
  %228 = vst.msk [vmem:[%s3 + $0x60] sm:$0xff] %vm94, %v202
  %229 = vst.msk [vmem:[%s3 + $0x68] sm:$0xff] %vm94, %v205
  %230 = vst.msk [vmem:[%s3 + $0x70] sm:$0xff] %vm94, %v210
  %231 = vst.msk [vmem:[%s3 + $0x78] sm:$0xff] %vm94, %v213
  // Predicated region
  $region14: #{_lambda_.21} parent=0 // pred_check
    _
  $region15: #{_lambda_.21} parent=0 // pred_check_branch
    %233 = sbr.rel (0) target = $region17
  $region16: #{_lambda_.21} parent=0 // pred_region
    _
  $region17: #{_lambda_.21} parent=0 // pred_fallthru
    _
  // Predicated region
  $region18: #{_lambda_.21} parent=0 // pred_check
    _
  $region19: #{_lambda_.21} parent=0 // pred_check_branch
    %235 = sbr.rel (0) target = $region21
  $region20: #{_lambda_.21} parent=0 // pred_region
    _
  $region21: #{_lambda_.21} parent=0 // pred_fallthru
    _

// kernel: _lambda_.18
$region0: #{_lambda_.18}
  #allocation0 [shape = 'u32[]', space=smem, size = 0x4, offset = 0x4, fixed_abs, tag = 'smem constant byte address 0x4 - core index']
  #allocation1 [shape = 'u32[144,128]{1,0:T(1,128)}', space=vmem, size = 0x12000, scoped, tag = 'internal scratch']
  #allocation2 [shape = 'f32[1,1]{1,0:T(1,128)S(1)}', space=vmem, size = 0x200, scoped, tag = 'scoped memory for _lambda_.18']
  %s0 = inlined_call_operand.vmem [shape: bf16[2,16,16,8], index: 0, kind: input, shape index: {}]
  %s1 = inlined_call_operand.vmem [shape: bf16[2,16,16,8], index: 1, kind: input, shape index: {}]
  %s2 = inlined_call_operand.vmem [shape: bf16[2,16,16,8], index: 2, kind: input, shape index: {}]
  %s3 = inlined_call_operand.<no memory space> [shape: f32[1,1], index: 3, kind: input, shape index: {}]
  %s4 = inlined_call_operand.vmem [shape: bf16[2,16,16,8], index: 4, kind: output, shape index: {}]
  %s5 = sld [smem:[#allocation0]]
  $region49: #{_lambda_.18} parent=0
    _
  %s7 = ssub.s32 1, %s5
  %s8 = scalar_select 0, %s7, %s5
  %v9 = vstv %s3
  %10 = vst [vmem:[#allocation2] sm:$0x1] %v9
  loop: start=0, step=1, limit=6
  $region2: #{_lambda_.18} parent=0 // loop_pre_header
    _
  $region3: #{_lambda_.18} parent=0 // loop_header
    %s12 = sphi 0, %s16
    %p13 = scmp.ge.s32.totalorder %s12, 6
    %s19 = sphi 0, %s31
    %s20 = sphi 0, %s27
    %s21 = sphi 0, %s19
    %s22 = sphi 0, %s20
    %s23 = sphi 0, %s21
    %s24 = sphi 0, %s22
    %s36 = sphi 0, %s38
    %s39 = sphi 0, %s36
    %s40 = sphi 0, %s39
    %s56 = sphi 0, %s40
    %s64 = sphi 0, %s66
    %s67 = sphi 0, %s64
    %s68 = sphi 0, %s67
    %s84 = sphi 0, %s68
    %s92 = sphi 0, %s94
    %s95 = sphi 0, %s92
    %s96 = sphi 0, %s95
    %s112 = sphi 0, %s96
    %s116 = sphi 0, %s116
    %s118 = sphi 0, %s116
    %s119 = sphi 0, %s118
    %s133 = sphi 0, %s119
    %s141 = sphi 0, %s143
    %s144 = sphi 0, %s141
    %s145 = sphi 0, %s144
    %s161 = sphi 0, %s145
  $region4: #{_lambda_.18} parent=0 // loop_header_branch
    %15 = sbr.rel (%p13) target = $region8
  $region5: #{_lambda_.18} parent=0 // loop_body
    %s17 = ssub.s32 %s12, 1
    %s18 = ssub.s32 %s12, 2
    %s25 = sadd.s32 1, %s20
    %p26 = scmp.ge.s32.totalorder %s25, 2
    %s27 = scalar_select %p26, 0, %s25
    %s28 = sadd.s32 1, %s19
    %s29 = scalar_select %p26, %s28, %s19
    %p30 = scmp.ge.s32.totalorder %s29, 2
    %s31 = scalar_select %p30, 0, %s29
    %s32 = ssub.s32 %s19, %s31
    %s33 = ssub.s32 %s20, %s27
    %s34 = sor.u32 %s32, %s33
    %p35 = scmp.eq.s32.totalorder %s34, 0
    %s37 = sadd.s32 %s36, 1
    %s38 = scalar_select %p35, %s36, %s37
    %p41 = pneg %p35
    %p42 = scmp.eq.s32.totalorder %s12, 3
    %p43 = por %p41, %p42
    %p44 = scmp.ne.s32.totalorder %s36, %s39
    %p45 = scmp.eq.s32.totalorder %s12, 0
    %p46 = por %p44, %p45
    %p47 = scmp.ne.s32.totalorder %s36, %s39
    %p48 = scmp.eq.s32.totalorder %s17, 3
    %p49 = por %p47, %p48
    %p50 = scmp.ne.s32.totalorder %s39, %s40
    %p51 = scmp.eq.s32.totalorder %s17, 0
    %p52 = por %p50, %p51
    %p53 = scmp.ne.s32.totalorder %s39, %s40
    %p54 = scmp.eq.s32.totalorder %s18, 3
    %p55 = por %p53, %p54
    %p57 = scmp.ne.s32.totalorder %s40, %s56
    %p58 = scmp.eq.s32.totalorder %s18, 0
    %p59 = por %p57, %p58
    %s60 = ssub.s32 %s19, %s31
    %s61 = ssub.s32 %s20, %s27
    %s62 = sor.u32 %s60, %s61
    %p63 = scmp.eq.s32.totalorder %s62, 0
    %s65 = sadd.s32 %s64, 1
    %s66 = scalar_select %p63, %s64, %s65
    %p69 = pneg %p63
    %p70 = scmp.eq.s32.totalorder %s12, 3
    %p71 = por %p69, %p70
    %p72 = scmp.ne.s32.totalorder %s64, %s67
    %p73 = scmp.eq.s32.totalorder %s12, 0
    %p74 = por %p72, %p73
    %p75 = scmp.ne.s32.totalorder %s64, %s67
    %p76 = scmp.eq.s32.totalorder %s17, 3
    %p77 = por %p75, %p76
    %p78 = scmp.ne.s32.totalorder %s67, %s68
    %p79 = scmp.eq.s32.totalorder %s17, 0
    %p80 = por %p78, %p79
    %p81 = scmp.ne.s32.totalorder %s67, %s68
    %p82 = scmp.eq.s32.totalorder %s18, 3
    %p83 = por %p81, %p82
    %p85 = scmp.ne.s32.totalorder %s68, %s84
    %p86 = scmp.eq.s32.totalorder %s18, 0
    %p87 = por %p85, %p86
    %s88 = ssub.s32 %s19, %s31
    %s89 = ssub.s32 %s20, %s27
    %s90 = sor.u32 %s88, %s89
    %p91 = scmp.eq.s32.totalorder %s90, 0
    %s93 = sadd.s32 %s92, 1
    %s94 = scalar_select %p91, %s92, %s93
    %p97 = pneg %p91
    %p98 = scmp.eq.s32.totalorder %s12, 3
    %p99 = por %p97, %p98
    %p100 = scmp.ne.s32.totalorder %s92, %s95
    %p101 = scmp.eq.s32.totalorder %s12, 0
    %p102 = por %p100, %p101
    %p103 = scmp.ne.s32.totalorder %s92, %s95
    %p104 = scmp.eq.s32.totalorder %s17, 3
    %p105 = por %p103, %p104
    %p106 = scmp.ne.s32.totalorder %s95, %s96
    %p107 = scmp.eq.s32.totalorder %s17, 0
    %p108 = por %p106, %p107
    %p109 = scmp.ne.s32.totalorder %s95, %s96
    %p110 = scmp.eq.s32.totalorder %s18, 3
    %p111 = por %p109, %p110
    %p113 = scmp.ne.s32.totalorder %s96, %s112
    %p114 = scmp.eq.s32.totalorder %s18, 0
    %p115 = por %p113, %p114
    %s117 = sadd.s32 %s116, 1
    %p120 = scmp.eq.s32.totalorder %s12, 3
    %p121 = scmp.ne.s32.totalorder %s116, %s118
    %p122 = scmp.eq.s32.totalorder %s12, 0
    %p123 = por %p121, %p122
    %p124 = scmp.ne.s32.totalorder %s116, %s118
    %p125 = scmp.eq.s32.totalorder %s17, 3
    %p126 = por %p124, %p125
    %p127 = scmp.ne.s32.totalorder %s118, %s119
    %p128 = scmp.eq.s32.totalorder %s17, 0
    %p129 = por %p127, %p128
    %p130 = scmp.ne.s32.totalorder %s118, %s119
    %p131 = scmp.eq.s32.totalorder %s18, 3
    %p132 = por %p130, %p131
    %p134 = scmp.ne.s32.totalorder %s119, %s133
    %p135 = scmp.eq.s32.totalorder %s18, 0
    %p136 = por %p134, %p135
    %s137 = ssub.s32 %s19, %s31
    %s138 = ssub.s32 %s20, %s27
    %s139 = sor.u32 %s137, %s138
    %p140 = scmp.eq.s32.totalorder %s139, 0
    %s142 = sadd.s32 %s141, 1
    %s143 = scalar_select %p140, %s141, %s142
    %p146 = pneg %p140
    %p147 = scmp.eq.s32.totalorder %s12, 3
    %p148 = por %p146, %p147
    %p149 = scmp.ne.s32.totalorder %s141, %s144
    %p150 = scmp.eq.s32.totalorder %s12, 0
    %p151 = por %p149, %p150
    %p152 = scmp.ne.s32.totalorder %s141, %s144
    %p153 = scmp.eq.s32.totalorder %s17, 3
    %p154 = por %p152, %p153
    %p155 = scmp.ne.s32.totalorder %s144, %s145
    %p156 = scmp.eq.s32.totalorder %s17, 0
    %p157 = por %p155, %p156
    %p158 = scmp.ne.s32.totalorder %s144, %s145
    %p159 = scmp.eq.s32.totalorder %s18, 3
    %p160 = por %p158, %p159
    %p162 = scmp.ne.s32.totalorder %s145, %s161
    %p163 = scmp.eq.s32.totalorder %s18, 0
    %p164 = por %p162, %p163
    %p165 = scmp.le.s32.totalorder 1, %s12
    %p166 = scmp.lt.s32.totalorder %s12, 5
    %p167 = pnand %p165, %p166
    %p168 = pneg %p167
    // Predicated region
    $region9: #{_lambda_.18} parent=5 // pred_check
      _
    $region10: #{_lambda_.18} parent=5 // pred_check_branch
      %170 = sbr.rel (%p167) target = $region12
    $region11: #{_lambda_.18} parent=5 // pred_region
      %s171 = ssub.s32 %s12, 1
      // Predicated region
      $region13: #{_lambda_.18} parent=11 // pred_check
        %p172 = pneg %p129
      $region14: #{_lambda_.18} parent=11 // pred_check_branch
        %174 = sbr.rel (%p172) target = $region16
      $region15: #{_lambda_.18} parent=11 // pred_region
        _
      $region16: #{_lambda_.18} parent=11 // pred_fallthru
        _
    $region12: #{_lambda_.18} parent=5 // pred_fallthru
      _
    %p175 = scmp.lt.s32.totalorder %s12, 4
    // Predicated region
    $region17: #{_lambda_.18} parent=5 // pred_check
      %p176 = pneg %p175
    $region18: #{_lambda_.18} parent=5 // pred_check_branch
      %178 = sbr.rel (%p176) target = $region20
    $region19: #{_lambda_.18} parent=5 // pred_region
      // Predicated region
      $region21: #{_lambda_.18} parent=19 // pred_check
        %p179 = pneg %p46
      $region22: #{_lambda_.18} parent=19 // pred_check_branch
        %181 = sbr.rel (%p179) target = $region24
      $region23: #{_lambda_.18} parent=19 // pred_region
        %s182 = smul.u32 8, %s20
        %p183 = scmp.lt.s32.totalorder %s19, 1
        %s184 = scalar_select %p183, %s19, 1
        %p185 = scmp.lt.s32.totalorder %s182, 15
        %s186 = scalar_select %p185, %s182, 15
        %s187 = smul.addr %s186, 2
        %s188 = smul.addr %s184, 32
        %s189 = sadd.s32 %s187, %s188
        %s190 = smul.addr %s189, 4
        %s191 = scalar_lea.vmem %s0, %s190
        %s192 = smul.u32 8, %s20
      $region24: #{_lambda_.18} parent=19 // pred_fallthru
        _
      // Predicated region
      $region25: #{_lambda_.18} parent=19 // pred_check
        %p193 = pneg %p74
      $region26: #{_lambda_.18} parent=19 // pred_check_branch
        %195 = sbr.rel (%p193) target = $region28
      $region27: #{_lambda_.18} parent=19 // pred_region
        %s196 = smul.u32 8, %s20
        %p197 = scmp.lt.s32.totalorder %s19, 1
        %s198 = scalar_select %p197, %s19, 1
        %p199 = scmp.lt.s32.totalorder %s196, 15
        %s200 = scalar_select %p199, %s196, 15
        %s201 = smul.addr %s200, 2
        %s202 = smul.addr %s198, 32
        %s203 = sadd.s32 %s201, %s202
        %s204 = smul.addr %s203, 4
        %s205 = scalar_lea.vmem %s1, %s204
        %s206 = smul.u32 8, %s20
      $region28: #{_lambda_.18} parent=19 // pred_fallthru
        _
      // Predicated region
      $region29: #{_lambda_.18} parent=19 // pred_check
        %p207 = pneg %p102
      $region30: #{_lambda_.18} parent=19 // pred_check_branch
        %209 = sbr.rel (%p207) target = $region32
      $region31: #{_lambda_.18} parent=19 // pred_region
        %s210 = smul.u32 8, %s20
        %p211 = scmp.lt.s32.totalorder %s19, 1
        %s212 = scalar_select %p211, %s19, 1
        %p213 = scmp.lt.s32.totalorder %s210, 15
        %s214 = scalar_select %p213, %s210, 15
        %s215 = smul.addr %s214, 2
        %s216 = smul.addr %s212, 32
        %s217 = sadd.s32 %s215, %s216
        %s218 = smul.addr %s217, 4
        %s219 = scalar_lea.vmem %s2, %s218
        %s220 = smul.u32 8, %s20
      $region32: #{_lambda_.18} parent=19 // pred_fallthru
        _
    $region20: #{_lambda_.18} parent=5 // pred_fallthru
      _
    %p221 = scmp.le.s32.totalorder 1, %s12
    %p222 = scmp.lt.s32.totalorder %s12, 5
    %p223 = pnand %p221, %p222
    %p224 = pneg %p223
    // Predicated region
    $region33: #{_lambda_.18} parent=5 // pred_check
      _
    $region34: #{_lambda_.18} parent=5 // pred_check_branch
      %226 = sbr.rel (%p223) target = $region36
    $region35: #{_lambda_.18} parent=5 // pred_region
      %s227 = ssub.s32 %s12, 1
      %s228 = smul.u32 8, %s22
      %p229 = scmp.lt.s32.totalorder %s21, 1
      %s230 = scalar_select %p229, %s21, 1
      %p231 = scmp.lt.s32.totalorder %s228, 15
      %s232 = scalar_select %p231, %s228, 15
      %s233 = smul.addr %s232, 2
      %s234 = smul.addr %s230, 32
      %s235 = sadd.s32 %s233, %s234
      %s236 = smul.addr %s235, 4
      %s237 = scalar_lea.vmem %s0, %s236
      %p238 = pneg %p52
      %p239 = pneg %p49
      %s240 = smul.u32 8, %s22
      %p241 = scmp.lt.s32.totalorder %s21, 1
      %s242 = scalar_select %p241, %s21, 1
      %p243 = scmp.lt.s32.totalorder %s240, 15
      %s244 = scalar_select %p243, %s240, 15
      %s245 = smul.addr %s244, 2
      %s246 = smul.addr %s242, 32
      %s247 = sadd.s32 %s245, %s246
      %s248 = smul.addr %s247, 4
      %s249 = scalar_lea.vmem %s1, %s248
      %p250 = pneg %p80
      %p251 = pneg %p77
      %s252 = smul.u32 8, %s22
      %p253 = scmp.lt.s32.totalorder %s21, 1
      %s254 = scalar_select %p253, %s21, 1
      %p255 = scmp.lt.s32.totalorder %s252, 15
      %s256 = scalar_select %p255, %s252, 15
      %s257 = smul.addr %s256, 2
      %s258 = smul.addr %s254, 32
      %s259 = sadd.s32 %s257, %s258
      %s260 = smul.addr %s259, 4
      %s261 = scalar_lea.vmem %s2, %s260
      %p262 = pneg %p108
      %p263 = pneg %p105
      %p264 = pneg %p129
      %p265 = pneg %p126
      %p266 = pneg %p157
      %p267 = pneg %p154
      %s268 = smul.u32 8, %s22
      %p269 = scmp.lt.s32.totalorder %s21, 1
      %s270 = scalar_select %p269, %s21, 1
      %p271 = scmp.lt.s32.totalorder %s268, 15
      %s272 = scalar_select %p271, %s268, 15
      %s273 = smul.addr %s272, 2
      %s274 = smul.addr %s270, 32
      %s275 = sadd.s32 %s273, %s274
      %s276 = smul.addr %s275, 4
      %s277 = scalar_lea.vmem %s4, %s276
      %s278 = smul.u32 8, %s22
      %p279 = scmp.lt.s32.totalorder %s21, 1
      %s280 = scalar_select %p279, %s21, 1
      %p281 = scmp.lt.s32.totalorder %s278, 15
      %s282 = scalar_select %p281, %s278, 15
      %s283 = smul.addr %s282, 2
      %s284 = smul.addr %s280, 32
      %s285 = sadd.s32 %s283, %s284
      %s286 = smul.addr %s285, 4
      %s287 = scalar_lea.vmem %s0, %s286
      %s288 = smul.u32 8, %s22
      %s289 = smul.u32 8, %s22
      %p290 = scmp.lt.s32.totalorder %s21, 1
      %s291 = scalar_select %p290, %s21, 1
      %p292 = scmp.lt.s32.totalorder %s289, 15
      %s293 = scalar_select %p292, %s289, 15
      %s294 = smul.addr %s293, 2
      %s295 = smul.addr %s291, 32
      %s296 = sadd.s32 %s294, %s295
      %s297 = smul.addr %s296, 4
      %s298 = scalar_lea.vmem %s1, %s297
      %s299 = smul.u32 8, %s22
      %s300 = smul.u32 8, %s22
      %p301 = scmp.lt.s32.totalorder %s21, 1
      %s302 = scalar_select %p301, %s21, 1
      %p303 = scmp.lt.s32.totalorder %s300, 15
      %s304 = scalar_select %p303, %s300, 15
      %s305 = smul.addr %s304, 2
      %s306 = smul.addr %s302, 32
      %s307 = sadd.s32 %s305, %s306
      %s308 = smul.addr %s307, 4
      %s309 = scalar_lea.vmem %s2, %s308
      %s310 = smul.u32 8, %s22
      %s311 = smul.u32 8, %s22
      %p312 = scmp.lt.s32.totalorder %s21, 1
      %s313 = scalar_select %p312, %s21, 1
      %p314 = scmp.lt.s32.totalorder %s311, 15
      %s315 = scalar_select %p314, %s311, 15
      %s316 = smul.addr %s315, 2
      %s317 = smul.addr %s313, 32
      %s318 = sadd.s32 %s316, %s317
      %s319 = smul.addr %s318, 4
      %s320 = scalar_lea.vmem %s4, %s319
      %s321 = smul.u32 8, %s22
      %v323 = vld [vmem:[%s287] sm:$0xf]
      %v324 = vld [vmem:[%s287 + $0x4] sm:$0xf]
      %v325 = vld [vmem:[%s287 + $0x8] sm:$0xf]
      %v326 = vld [vmem:[%s287 + $0xc] sm:$0xf]
      %v327 = vld [vmem:[%s287 + $0x10] sm:$0xf]
      %v328 = vld [vmem:[%s287 + $0x14] sm:$0xf]
      %v329 = vld [vmem:[%s287 + $0x18] sm:$0xf]
      %v330 = vld [vmem:[%s287 + $0x1c] sm:$0xf]
      %v331 = vld [vmem:[%s287 + $0x20] sm:$0xf]
      %v332 = vld [vmem:[%s287 + $0x24] sm:$0xf]
      %v333 = vld [vmem:[%s287 + $0x28] sm:$0xf]
      %v334 = vld [vmem:[%s287 + $0x2c] sm:$0xf]
      %v335 = vld [vmem:[%s287 + $0x30] sm:$0xf]
      %v336 = vld [vmem:[%s287 + $0x34] sm:$0xf]
      %v337 = vld [vmem:[%s287 + $0x38] sm:$0xf]
      %v338 = vld [vmem:[%s287 + $0x3c] sm:$0xf]
      %v339 = vld [vmem:[%s298] sm:$0xf]
      %v340 = vld [vmem:[%s298 + $0x4] sm:$0xf]
      %v341 = vld [vmem:[%s298 + $0x8] sm:$0xf]
      %v342 = vld [vmem:[%s298 + $0xc] sm:$0xf]
      %v343 = vld [vmem:[%s298 + $0x10] sm:$0xf]
      %v344 = vld [vmem:[%s298 + $0x14] sm:$0xf]
      %v345 = vld [vmem:[%s298 + $0x18] sm:$0xf]
      %v346 = vld [vmem:[%s298 + $0x1c] sm:$0xf]
      %v347 = vld [vmem:[%s298 + $0x20] sm:$0xf]
      %v348 = vld [vmem:[%s298 + $0x24] sm:$0xf]
      %v349 = vld [vmem:[%s298 + $0x28] sm:$0xf]
      %v350 = vld [vmem:[%s298 + $0x2c] sm:$0xf]
      %v351 = vld [vmem:[%s298 + $0x30] sm:$0xf]
      %v352 = vld [vmem:[%s298 + $0x34] sm:$0xf]
      %v353 = vld [vmem:[%s298 + $0x38] sm:$0xf]
      %v354 = vld [vmem:[%s298 + $0x3c] sm:$0xf]
      %v355 = vld [vmem:[%s309] sm:$0xf]
      %v356 = vld [vmem:[%s309 + $0x4] sm:$0xf]
      %v357 = vld [vmem:[%s309 + $0x8] sm:$0xf]
      %v358 = vld [vmem:[%s309 + $0xc] sm:$0xf]
      %v359 = vld [vmem:[%s309 + $0x10] sm:$0xf]
      %v360 = vld [vmem:[%s309 + $0x14] sm:$0xf]
      %v361 = vld [vmem:[%s309 + $0x18] sm:$0xf]
      %v362 = vld [vmem:[%s309 + $0x1c] sm:$0xf]
      %v363 = vld [vmem:[%s309 + $0x20] sm:$0xf]
      %v364 = vld [vmem:[%s309 + $0x24] sm:$0xf]
      %v365 = vld [vmem:[%s309 + $0x28] sm:$0xf]
      %v366 = vld [vmem:[%s309 + $0x2c] sm:$0xf]
      %v367 = vld [vmem:[%s309 + $0x30] sm:$0xf]
      %v368 = vld [vmem:[%s309 + $0x34] sm:$0xf]
      %v369 = vld [vmem:[%s309 + $0x38] sm:$0xf]
      %v370 = vld [vmem:[%s309 + $0x3c] sm:$0xf]
      %v373 = vunpack.c.l.b16 %v323
      %v374 = vunpack.c.l.b16 %v324
      %v375 = vpack.c.b16 %v374, %v373
      %v378 = vunpack.c.l.b16 %v339
      %v379 = vunpack.c.l.b16 %v340
      %v380 = vpack.c.b16 %v379, %v378
      %vm381 = vcmask 64512
      %v383 = vsel %vm381, %v375, 0
      %v386 = vsel %vm381, %v380, 0
      %388 = vmatprep.subr.bf16.mxu0 0
      %389 = vmatpush1.bf16.xpose.msra.mxu0 %v386
      %390 = vmatprep.subr.bf16.mxu0 0
      %391 = vmatpush1.bf16.xpose.msra.mxu0 0
      %392 = vmatprep.subr.bf16.mxu0 0
      %393 = vmatpush1.bf16.xpose.msra.mxu0 0
      %394 = vmatprep.subr.bf16.mxu0 0
      %395 = vmatpush1.bf16.xpose.msra.mxu0 0
      %396 = vmatprep.subr.bf16.mxu0 0
      %397 = vmatpush1.bf16.xpose.msra.mxu0 0
      %398 = vmatprep.subr.bf16.mxu0 0
      %399 = vmatpush1.bf16.xpose.msra.mxu0 0
      %400 = vmatprep.subr.bf16.mxu0 0
      %401 = vmatpush1.bf16.xpose.msra.mxu0 0
      %402 = vmatprep.subr.bf16.mxu0 0
      %403 = vmatpush1.bf16.xpose.msra.mxu0 0
      %404 = vmatprep.subr.bf16.mxu0 0
      %405 = vmatpush1.bf16.xpose.msra.mxu0 0
      %406 = vmatprep.subr.bf16.mxu0 0
      %407 = vmatpush1.bf16.xpose.msra.mxu0 0
      %408 = vmatprep.subr.bf16.mxu0 0
      %409 = vmatpush1.bf16.xpose.msra.mxu0 0
      %410 = vmatprep.subr.bf16.mxu0 0
      %411 = vmatpush1.bf16.xpose.msra.mxu0 0
      %412 = vmatprep.subr.bf16.mxu0 0
      %413 = vmatpush1.bf16.xpose.msra.mxu0 0
      %414 = vmatprep.subr.bf16.mxu0 0
      %415 = vmatpush1.bf16.xpose.msra.mxu0 0
      %416 = vmatprep.subr.bf16.mxu0 0
      %417 = vmatpush1.bf16.xpose.msra.mxu0 0
      %418 = vmatprep.subr.bf16.mxu0 0
      %419 = vmatpush1.bf16.xpose.msra.mxu0 0
      %420 = vmatprep.mubr.bf16.mxu0 0
      %421 = vmatmul.mubr.bf16.gmra.mrb[0].mxu0 %v383
      %v422 = vpop.f32.mrb[0].mxu0
      %v423 = vadd.f32 0.0, %v422
      %v424 = vpop.f32.mrb[0].mxu0
      %v425 = vpop.f32.mrb[0].mxu0
      %v426 = vadd.f32 0.0, %v425
      %v427 = vpop.f32.mrb[0].mxu0
      %428 = vdwg.mxu0
      %v431 = vunpack.c.l.b16 %v325
      %v432 = vunpack.c.l.b16 %v326
      %v433 = vpack.c.b16 %v432, %v431
      %v436 = vunpack.c.l.b16 %v341
      %v437 = vunpack.c.l.b16 %v342
      %v438 = vpack.c.b16 %v437, %v436
      %v440 = vsel %vm381, %v433, 0
      %v443 = vsel %vm381, %v438, 0
      %445 = vmatprep.subr.bf16.mxu0 0
      %446 = vmatpush1.bf16.xpose.msra.mxu0 %v443
      %447 = vmatprep.subr.bf16.mxu0 0
      %448 = vmatpush1.bf16.xpose.msra.mxu0 0
      %449 = vmatprep.subr.bf16.mxu0 0
      %450 = vmatpush1.bf16.xpose.msra.mxu0 0
      %451 = vmatprep.subr.bf16.mxu0 0
      %452 = vmatpush1.bf16.xpose.msra.mxu0 0
      %453 = vmatprep.subr.bf16.mxu0 0
      %454 = vmatpush1.bf16.xpose.msra.mxu0 0
      %455 = vmatprep.subr.bf16.mxu0 0
      %456 = vmatpush1.bf16.xpose.msra.mxu0 0
      %457 = vmatprep.subr.bf16.mxu0 0
      %458 = vmatpush1.bf16.xpose.msra.mxu0 0
      %459 = vmatprep.subr.bf16.mxu0 0
      %460 = vmatpush1.bf16.xpose.msra.mxu0 0
      %461 = vmatprep.subr.bf16.mxu0 0
      %462 = vmatpush1.bf16.xpose.msra.mxu0 0
      %463 = vmatprep.subr.bf16.mxu0 0
      %464 = vmatpush1.bf16.xpose.msra.mxu0 0
      %465 = vmatprep.subr.bf16.mxu0 0
      %466 = vmatpush1.bf16.xpose.msra.mxu0 0
      %467 = vmatprep.subr.bf16.mxu0 0
      %468 = vmatpush1.bf16.xpose.msra.mxu0 0
      %469 = vmatprep.subr.bf16.mxu0 0
      %470 = vmatpush1.bf16.xpose.msra.mxu0 0
      %471 = vmatprep.subr.bf16.mxu0 0
      %472 = vmatpush1.bf16.xpose.msra.mxu0 0
      %473 = vmatprep.subr.bf16.mxu0 0
      %474 = vmatpush1.bf16.xpose.msra.mxu0 0
      %475 = vmatprep.subr.bf16.mxu0 0
      %476 = vmatpush1.bf16.xpose.msra.mxu0 0
      %477 = vmatprep.mubr.bf16.mxu0 0
      %478 = vmatmul.mubr.bf16.gmra.mrb[0].mxu0 %v440
      %v479 = vpop.f32.mrb[0].mxu0
      %v480 = vadd.f32 0.0, %v479
      %v481 = vpop.f32.mrb[0].mxu0
      %v482 = vpop.f32.mrb[0].mxu0
      %v483 = vadd.f32 0.0, %v482
      %v484 = vpop.f32.mrb[0].mxu0
      %485 = vdwg.mxu0
      %v488 = vunpack.c.l.b16 %v327
      %v489 = vunpack.c.l.b16 %v328
      %v490 = vpack.c.b16 %v489, %v488
      %v493 = vunpack.c.l.b16 %v343
      %v494 = vunpack.c.l.b16 %v344
      %v495 = vpack.c.b16 %v494, %v493
      %v497 = vsel %vm381, %v490, 0
      %v500 = vsel %vm381, %v495, 0
      %502 = vmatprep.subr.bf16.mxu0 0
      %503 = vmatpush1.bf16.xpose.msra.mxu0 %v500
      %504 = vmatprep.subr.bf16.mxu0 0
      %505 = vmatpush1.bf16.xpose.msra.mxu0 0
      %506 = vmatprep.subr.bf16.mxu0 0
      %507 = vmatpush1.bf16.xpose.msra.mxu0 0
      %508 = vmatprep.subr.bf16.mxu0 0
      %509 = vmatpush1.bf16.xpose.msra.mxu0 0
      %510 = vmatprep.subr.bf16.mxu0 0
      %511 = vmatpush1.bf16.xpose.msra.mxu0 0
      %512 = vmatprep.subr.bf16.mxu0 0
      %513 = vmatpush1.bf16.xpose.msra.mxu0 0
      %514 = vmatprep.subr.bf16.mxu0 0
      %515 = vmatpush1.bf16.xpose.msra.mxu0 0
      %516 = vmatprep.subr.bf16.mxu0 0
      %517 = vmatpush1.bf16.xpose.msra.mxu0 0
      %518 = vmatprep.subr.bf16.mxu0 0
      %519 = vmatpush1.bf16.xpose.msra.mxu0 0
      %520 = vmatprep.subr.bf16.mxu0 0
      %521 = vmatpush1.bf16.xpose.msra.mxu0 0
      %522 = vmatprep.subr.bf16.mxu0 0
      %523 = vmatpush1.bf16.xpose.msra.mxu0 0
      %524 = vmatprep.subr.bf16.mxu0 0
      %525 = vmatpush1.bf16.xpose.msra.mxu0 0
      %526 = vmatprep.subr.bf16.mxu0 0
      %527 = vmatpush1.bf16.xpose.msra.mxu0 0
      %528 = vmatprep.subr.bf16.mxu0 0
      %529 = vmatpush1.bf16.xpose.msra.mxu0 0
      %530 = vmatprep.subr.bf16.mxu0 0
      %531 = vmatpush1.bf16.xpose.msra.mxu0 0
      %532 = vmatprep.subr.bf16.mxu0 0
      %533 = vmatpush1.bf16.xpose.msra.mxu0 0
      %534 = vmatprep.mubr.bf16.mxu0 0
      %535 = vmatmul.mubr.bf16.gmra.mrb[0].mxu0 %v497
      %v536 = vpop.f32.mrb[0].mxu0
      %v537 = vadd.f32 0.0, %v536
      %v538 = vpop.f32.mrb[0].mxu0
      %v539 = vpop.f32.mrb[0].mxu0
      %v540 = vadd.f32 0.0, %v539
      %v541 = vpop.f32.mrb[0].mxu0
      %542 = vdwg.mxu0
      %v545 = vunpack.c.l.b16 %v329
      %v546 = vunpack.c.l.b16 %v330
      %v547 = vpack.c.b16 %v546, %v545
      %v550 = vunpack.c.l.b16 %v345
      %v551 = vunpack.c.l.b16 %v346
      %v552 = vpack.c.b16 %v551, %v550
      %v554 = vsel %vm381, %v547, 0
      %v557 = vsel %vm381, %v552, 0
      %559 = vmatprep.subr.bf16.mxu0 0
      %560 = vmatpush1.bf16.xpose.msra.mxu0 %v557
      %561 = vmatprep.subr.bf16.mxu0 0
      %562 = vmatpush1.bf16.xpose.msra.mxu0 0
      %563 = vmatprep.subr.bf16.mxu0 0
      %564 = vmatpush1.bf16.xpose.msra.mxu0 0
      %565 = vmatprep.subr.bf16.mxu0 0
      %566 = vmatpush1.bf16.xpose.msra.mxu0 0
      %567 = vmatprep.subr.bf16.mxu0 0
      %568 = vmatpush1.bf16.xpose.msra.mxu0 0
      %569 = vmatprep.subr.bf16.mxu0 0
      %570 = vmatpush1.bf16.xpose.msra.mxu0 0
      %571 = vmatprep.subr.bf16.mxu0 0
      %572 = vmatpush1.bf16.xpose.msra.mxu0 0
      %573 = vmatprep.subr.bf16.mxu0 0
      %574 = vmatpush1.bf16.xpose.msra.mxu0 0
      %575 = vmatprep.subr.bf16.mxu0 0
      %576 = vmatpush1.bf16.xpose.msra.mxu0 0
      %577 = vmatprep.subr.bf16.mxu0 0
      %578 = vmatpush1.bf16.xpose.msra.mxu0 0
      %579 = vmatprep.subr.bf16.mxu0 0
      %580 = vmatpush1.bf16.xpose.msra.mxu0 0
      %581 = vmatprep.subr.bf16.mxu0 0
      %582 = vmatpush1.bf16.xpose.msra.mxu0 0
      %583 = vmatprep.subr.bf16.mxu0 0
      %584 = vmatpush1.bf16.xpose.msra.mxu0 0
      %585 = vmatprep.subr.bf16.mxu0 0
      %586 = vmatpush1.bf16.xpose.msra.mxu0 0
      %587 = vmatprep.subr.bf16.mxu0 0
      %588 = vmatpush1.bf16.xpose.msra.mxu0 0
      %589 = vmatprep.subr.bf16.mxu0 0
      %590 = vmatpush1.bf16.xpose.msra.mxu0 0
      %591 = vmatprep.mubr.bf16.mxu0 0
      %592 = vmatmul.mubr.bf16.gmra.mrb[0].mxu0 %v554
      %v593 = vpop.f32.mrb[0].mxu0
      %v594 = vadd.f32 0.0, %v593
      %v595 = vpop.f32.mrb[0].mxu0
      %v596 = vpop.f32.mrb[0].mxu0
      %v597 = vadd.f32 0.0, %v596
      %v598 = vpop.f32.mrb[0].mxu0
      %599 = vdwg.mxu0
      %v602 = vunpack.c.l.b16 %v331
      %v603 = vunpack.c.l.b16 %v332
      %v604 = vpack.c.b16 %v603, %v602
      %v607 = vunpack.c.l.b16 %v347
      %v608 = vunpack.c.l.b16 %v348
      %v609 = vpack.c.b16 %v608, %v607
      %v611 = vsel %vm381, %v604, 0
      %v614 = vsel %vm381, %v609, 0
      %616 = vmatprep.subr.bf16.mxu0 0
      %617 = vmatpush1.bf16.xpose.msra.mxu0 %v614
      %618 = vmatprep.subr.bf16.mxu0 0
      %619 = vmatpush1.bf16.xpose.msra.mxu0 0
      %620 = vmatprep.subr.bf16.mxu0 0
      %621 = vmatpush1.bf16.xpose.msra.mxu0 0
      %622 = vmatprep.subr.bf16.mxu0 0
      %623 = vmatpush1.bf16.xpose.msra.mxu0 0
      %624 = vmatprep.subr.bf16.mxu0 0
      %625 = vmatpush1.bf16.xpose.msra.mxu0 0
      %626 = vmatprep.subr.bf16.mxu0 0
      %627 = vmatpush1.bf16.xpose.msra.mxu0 0
      %628 = vmatprep.subr.bf16.mxu0 0
      %629 = vmatpush1.bf16.xpose.msra.mxu0 0
      %630 = vmatprep.subr.bf16.mxu0 0
      %631 = vmatpush1.bf16.xpose.msra.mxu0 0
      %632 = vmatprep.subr.bf16.mxu0 0
      %633 = vmatpush1.bf16.xpose.msra.mxu0 0
      %634 = vmatprep.subr.bf16.mxu0 0
      %635 = vmatpush1.bf16.xpose.msra.mxu0 0
      %636 = vmatprep.subr.bf16.mxu0 0
      %637 = vmatpush1.bf16.xpose.msra.mxu0 0
      %638 = vmatprep.subr.bf16.mxu0 0
      %639 = vmatpush1.bf16.xpose.msra.mxu0 0
      %640 = vmatprep.subr.bf16.mxu0 0
      %641 = vmatpush1.bf16.xpose.msra.mxu0 0
      %642 = vmatprep.subr.bf16.mxu0 0
      %643 = vmatpush1.bf16.xpose.msra.mxu0 0
      %644 = vmatprep.subr.bf16.mxu0 0
      %645 = vmatpush1.bf16.xpose.msra.mxu0 0
      %646 = vmatprep.subr.bf16.mxu0 0
      %647 = vmatpush1.bf16.xpose.msra.mxu0 0
      %648 = vmatprep.mubr.bf16.mxu0 0
      %649 = vmatmul.mubr.bf16.gmra.mrb[0].mxu0 %v611
      %v650 = vpop.f32.mrb[0].mxu0
      %v651 = vadd.f32 0.0, %v650
      %v652 = vpop.f32.mrb[0].mxu0
      %v653 = vpop.f32.mrb[0].mxu0
      %v654 = vadd.f32 0.0, %v653
      %v655 = vpop.f32.mrb[0].mxu0
      %656 = vdwg.mxu0
      %v659 = vunpack.c.l.b16 %v333
      %v660 = vunpack.c.l.b16 %v334
      %v661 = vpack.c.b16 %v660, %v659
      %v664 = vunpack.c.l.b16 %v349
      %v665 = vunpack.c.l.b16 %v350
      %v666 = vpack.c.b16 %v665, %v664
      %v668 = vsel %vm381, %v661, 0
      %v671 = vsel %vm381, %v666, 0
      %673 = vmatprep.subr.bf16.mxu0 0
      %674 = vmatpush1.bf16.xpose.msra.mxu0 %v671
      %675 = vmatprep.subr.bf16.mxu0 0
      %676 = vmatpush1.bf16.xpose.msra.mxu0 0
      %677 = vmatprep.subr.bf16.mxu0 0
      %678 = vmatpush1.bf16.xpose.msra.mxu0 0
      %679 = vmatprep.subr.bf16.mxu0 0
      %680 = vmatpush1.bf16.xpose.msra.mxu0 0
      %681 = vmatprep.subr.bf16.mxu0 0
      %682 = vmatpush1.bf16.xpose.msra.mxu0 0
      %683 = vmatprep.subr.bf16.mxu0 0
      %684 = vmatpush1.bf16.xpose.msra.mxu0 0
      %685 = vmatprep.subr.bf16.mxu0 0
      %686 = vmatpush1.bf16.xpose.msra.mxu0 0
      %687 = vmatprep.subr.bf16.mxu0 0
      %688 = vmatpush1.bf16.xpose.msra.mxu0 0
      %689 = vmatprep.subr.bf16.mxu0 0
      %690 = vmatpush1.bf16.xpose.msra.mxu0 0
      %691 = vmatprep.subr.bf16.mxu0 0
      %692 = vmatpush1.bf16.xpose.msra.mxu0 0
      %693 = vmatprep.subr.bf16.mxu0 0
      %694 = vmatpush1.bf16.xpose.msra.mxu0 0
      %695 = vmatprep.subr.bf16.mxu0 0
      %696 = vmatpush1.bf16.xpose.msra.mxu0 0
      %697 = vmatprep.subr.bf16.mxu0 0
      %698 = vmatpush1.bf16.xpose.msra.mxu0 0
      %699 = vmatprep.subr.bf16.mxu0 0
      %700 = vmatpush1.bf16.xpose.msra.mxu0 0
      %701 = vmatprep.subr.bf16.mxu0 0
      %702 = vmatpush1.bf16.xpose.msra.mxu0 0
      %703 = vmatprep.subr.bf16.mxu0 0
      %704 = vmatpush1.bf16.xpose.msra.mxu0 0
      %705 = vmatprep.mubr.bf16.mxu0 0
      %706 = vmatmul.mubr.bf16.gmra.mrb[0].mxu0 %v668
      %v707 = vpop.f32.mrb[0].mxu0
      %v708 = vadd.f32 0.0, %v707
      %v709 = vpop.f32.mrb[0].mxu0
      %v710 = vpop.f32.mrb[0].mxu0
      %v711 = vadd.f32 0.0, %v710
      %v712 = vpop.f32.mrb[0].mxu0
      %713 = vdwg.mxu0
      %v716 = vunpack.c.l.b16 %v335
      %v717 = vunpack.c.l.b16 %v336
      %v718 = vpack.c.b16 %v717, %v716
      %v721 = vunpack.c.l.b16 %v351
      %v722 = vunpack.c.l.b16 %v352
      %v723 = vpack.c.b16 %v722, %v721
      %v725 = vsel %vm381, %v718, 0
      %v728 = vsel %vm381, %v723, 0
      %730 = vmatprep.subr.bf16.mxu0 0
      %731 = vmatpush1.bf16.xpose.msra.mxu0 %v728
      %732 = vmatprep.subr.bf16.mxu0 0
      %733 = vmatpush1.bf16.xpose.msra.mxu0 0
      %734 = vmatprep.subr.bf16.mxu0 0
      %735 = vmatpush1.bf16.xpose.msra.mxu0 0
      %736 = vmatprep.subr.bf16.mxu0 0
      %737 = vmatpush1.bf16.xpose.msra.mxu0 0
      %738 = vmatprep.subr.bf16.mxu0 0
      %739 = vmatpush1.bf16.xpose.msra.mxu0 0
      %740 = vmatprep.subr.bf16.mxu0 0
      %741 = vmatpush1.bf16.xpose.msra.mxu0 0
      %742 = vmatprep.subr.bf16.mxu0 0
      %743 = vmatpush1.bf16.xpose.msra.mxu0 0
      %744 = vmatprep.subr.bf16.mxu0 0
      %745 = vmatpush1.bf16.xpose.msra.mxu0 0
      %746 = vmatprep.subr.bf16.mxu0 0
      %747 = vmatpush1.bf16.xpose.msra.mxu0 0
      %748 = vmatprep.subr.bf16.mxu0 0
      %749 = vmatpush1.bf16.xpose.msra.mxu0 0
      %750 = vmatprep.subr.bf16.mxu0 0
      %751 = vmatpush1.bf16.xpose.msra.mxu0 0
      %752 = vmatprep.subr.bf16.mxu0 0
      %753 = vmatpush1.bf16.xpose.msra.mxu0 0
      %754 = vmatprep.subr.bf16.mxu0 0
      %755 = vmatpush1.bf16.xpose.msra.mxu0 0
      %756 = vmatprep.subr.bf16.mxu0 0
      %757 = vmatpush1.bf16.xpose.msra.mxu0 0
      %758 = vmatprep.subr.bf16.mxu0 0
      %759 = vmatpush1.bf16.xpose.msra.mxu0 0
      %760 = vmatprep.subr.bf16.mxu0 0
      %761 = vmatpush1.bf16.xpose.msra.mxu0 0
      %762 = vmatprep.mubr.bf16.mxu0 0
      %763 = vmatmul.mubr.bf16.gmra.mrb[0].mxu0 %v725
      %v764 = vpop.f32.mrb[0].mxu0
      %v765 = vadd.f32 0.0, %v764
      %v766 = vpop.f32.mrb[0].mxu0
      %v767 = vpop.f32.mrb[0].mxu0
      %v768 = vadd.f32 0.0, %v767
      %v769 = vpop.f32.mrb[0].mxu0
      %770 = vdwg.mxu0
      %v773 = vunpack.c.l.b16 %v337
      %v774 = vunpack.c.l.b16 %v338
      %v775 = vpack.c.b16 %v774, %v773
      %v778 = vunpack.c.l.b16 %v353
      %v779 = vunpack.c.l.b16 %v354
      %v780 = vpack.c.b16 %v779, %v778
      %v782 = vsel %vm381, %v775, 0
      %v785 = vsel %vm381, %v780, 0
      %787 = vmatprep.subr.bf16.mxu0 0
      %788 = vmatpush1.bf16.xpose.msra.mxu0 %v785
      %789 = vmatprep.subr.bf16.mxu0 0
      %790 = vmatpush1.bf16.xpose.msra.mxu0 0
      %791 = vmatprep.subr.bf16.mxu0 0
      %792 = vmatpush1.bf16.xpose.msra.mxu0 0
      %793 = vmatprep.subr.bf16.mxu0 0
      %794 = vmatpush1.bf16.xpose.msra.mxu0 0
      %795 = vmatprep.subr.bf16.mxu0 0
      %796 = vmatpush1.bf16.xpose.msra.mxu0 0
      %797 = vmatprep.subr.bf16.mxu0 0
      %798 = vmatpush1.bf16.xpose.msra.mxu0 0
      %799 = vmatprep.subr.bf16.mxu0 0
      %800 = vmatpush1.bf16.xpose.msra.mxu0 0
      %801 = vmatprep.subr.bf16.mxu0 0
      %802 = vmatpush1.bf16.xpose.msra.mxu0 0
      %803 = vmatprep.subr.bf16.mxu0 0
      %804 = vmatpush1.bf16.xpose.msra.mxu0 0
      %805 = vmatprep.subr.bf16.mxu0 0
      %806 = vmatpush1.bf16.xpose.msra.mxu0 0
      %807 = vmatprep.subr.bf16.mxu0 0
      %808 = vmatpush1.bf16.xpose.msra.mxu0 0
      %809 = vmatprep.subr.bf16.mxu0 0
      %810 = vmatpush1.bf16.xpose.msra.mxu0 0
      %811 = vmatprep.subr.bf16.mxu0 0
      %812 = vmatpush1.bf16.xpose.msra.mxu0 0
      %813 = vmatprep.subr.bf16.mxu0 0
      %814 = vmatpush1.bf16.xpose.msra.mxu0 0
      %815 = vmatprep.subr.bf16.mxu0 0
      %816 = vmatpush1.bf16.xpose.msra.mxu0 0
      %817 = vmatprep.subr.bf16.mxu0 0
      %818 = vmatpush1.bf16.xpose.msra.mxu0 0
      %819 = vmatprep.mubr.bf16.mxu0 0
      %820 = vmatmul.mubr.bf16.gmra.mrb[0].mxu0 %v782
      %v821 = vpop.f32.mrb[0].mxu0
      %v822 = vadd.f32 0.0, %v821
      %v823 = vpop.f32.mrb[0].mxu0
      %v824 = vpop.f32.mrb[0].mxu0
      %v825 = vadd.f32 0.0, %v824
      %v826 = vpop.f32.mrb[0].mxu0
      %827 = vdwg.mxu0
      %v828 = vld [vmem:[#allocation2] sm:$0x1]
      %v830 = vlaneseq
      %v831 = vshrl.u32 %v830, 7
      %v832 = vsub.s32 0, %v831
      %v833 = vrot.slane %v828, %v832
      %834 = vset.pattern.permute.xlu0 0
      %835 = vperm.xlu0 %834, %v833
      %v836 = vpop.permute.xlu0 %835
      %v838 = vmul.f32 %v423, %v836
      %v839 = vmul.f32 %v426, %v836
      %v840 = vmul.f32 %v480, %v836
      %v841 = vmul.f32 %v483, %v836
      %v842 = vmul.f32 %v537, %v836
      %v843 = vmul.f32 %v540, %v836
      %v844 = vmul.f32 %v594, %v836
      %v845 = vmul.f32 %v597, %v836
      %v846 = vmul.f32 %v651, %v836
      %v847 = vmul.f32 %v654, %v836
      %v848 = vmul.f32 %v708, %v836
      %v849 = vmul.f32 %v711, %v836
      %v850 = vmul.f32 %v765, %v836
      %v851 = vmul.f32 %v768, %v836
      %v852 = vmul.f32 %v822, %v836
      %v853 = vmul.f32 %v825, %v836
      %vm854 = vcmask 130048
      %v855 = vsel %vm854, %v838, -inf
      %856 = vmax.xlane.f32.xlu0 %v855
      %v857 = vpop.xlane.xlu0 %856
      %v858 = vsel %vm854, %v839, -inf
      %859 = vmax.xlane.f32.xlu0 %v858
      %v860 = vpop.xlane.xlu0 %859
      %v861 = vsel %vm854, %v840, -inf
      %862 = vmax.xlane.f32.xlu0 %v861
      %v863 = vpop.xlane.xlu0 %862
      %v864 = vsel %vm854, %v841, -inf
      %865 = vmax.xlane.f32.xlu0 %v864
      %v866 = vpop.xlane.xlu0 %865
      %v867 = vsel %vm854, %v842, -inf
      %868 = vmax.xlane.f32.xlu0 %v867
      %v869 = vpop.xlane.xlu0 %868
      %v870 = vsel %vm854, %v843, -inf
      %871 = vmax.xlane.f32.xlu0 %v870
      %v872 = vpop.xlane.xlu0 %871
      %v873 = vsel %vm854, %v844, -inf
      %874 = vmax.xlane.f32.xlu0 %v873
      %v875 = vpop.xlane.xlu0 %874
      %v876 = vsel %vm854, %v845, -inf
      %877 = vmax.xlane.f32.xlu0 %v876
      %v878 = vpop.xlane.xlu0 %877
      %v879 = vsel %vm854, %v846, -inf
      %880 = vmax.xlane.f32.xlu0 %v879
      %v881 = vpop.xlane.xlu0 %880
      %v882 = vsel %vm854, %v847, -inf
      %883 = vmax.xlane.f32.xlu0 %v882
      %v884 = vpop.xlane.xlu0 %883
      %v885 = vsel %vm854, %v848, -inf
      %886 = vmax.xlane.f32.xlu0 %v885
      %v887 = vpop.xlane.xlu0 %886
      %v888 = vsel %vm854, %v849, -inf
      %889 = vmax.xlane.f32.xlu0 %v888
      %v890 = vpop.xlane.xlu0 %889
      %v891 = vsel %vm854, %v850, -inf
      %892 = vmax.xlane.f32.xlu0 %v891
      %v893 = vpop.xlane.xlu0 %892
      %v894 = vsel %vm854, %v851, -inf
      %895 = vmax.xlane.f32.xlu0 %v894
      %v896 = vpop.xlane.xlu0 %895
      %v897 = vsel %vm854, %v852, -inf
      %898 = vmax.xlane.f32.xlu0 %v897
      %v899 = vpop.xlane.xlu0 %898
      %v900 = vsel %vm854, %v853, -inf
      %901 = vmax.xlane.f32.xlu0 %v900
      %v902 = vpop.xlane.xlu0 %901
      %v903 = vsub.f32 %v838, %v857
      %v904 = vsub.f32 %v839, %v860
      %v905 = vsub.f32 %v840, %v863
      %v906 = vsub.f32 %v841, %v866
      %v907 = vsub.f32 %v842, %v869
      %v908 = vsub.f32 %v843, %v872
      %v909 = vsub.f32 %v844, %v875
      %v910 = vsub.f32 %v845, %v878
      %v911 = vsub.f32 %v846, %v881
      %v912 = vsub.f32 %v847, %v884
      %v913 = vsub.f32 %v848, %v887
      %v914 = vsub.f32 %v849, %v890
      %v915 = vsub.f32 %v850, %v893
      %v916 = vsub.f32 %v851, %v896
      %v917 = vsub.f32 %v852, %v899
      %v918 = vsub.f32 %v853, %v902
      %v919 = vmul.f32 %v903, 1.442695
      %v920 = vpow.pop %v919
      %v921 = vmul.f32 %v904, 1.442695
      %v922 = vpow.pop %v921
      %v923 = vmul.f32 %v905, 1.442695
      %v924 = vpow.pop %v923
      %v925 = vmul.f32 %v906, 1.442695
      %v926 = vpow.pop %v925
      %v927 = vmul.f32 %v907, 1.442695
      %v928 = vpow.pop %v927
      %v929 = vmul.f32 %v908, 1.442695
      %v930 = vpow.pop %v929
      %v931 = vmul.f32 %v909, 1.442695
      %v932 = vpow.pop %v931
      %v933 = vmul.f32 %v910, 1.442695
      %v934 = vpow.pop %v933
      %v935 = vmul.f32 %v911, 1.442695
      %v936 = vpow.pop %v935
      %v937 = vmul.f32 %v912, 1.442695
      %v938 = vpow.pop %v937
      %v939 = vmul.f32 %v913, 1.442695
      %v940 = vpow.pop %v939
      %v941 = vmul.f32 %v914, 1.442695
      %v942 = vpow.pop %v941
      %v943 = vmul.f32 %v915, 1.442695
      %v944 = vpow.pop %v943
      %v945 = vmul.f32 %v916, 1.442695
      %v946 = vpow.pop %v945
      %v947 = vmul.f32 %v917, 1.442695
      %v948 = vpow.pop %v947
      %v949 = vmul.f32 %v918, 1.442695
      %v950 = vpow.pop %v949
      %v951 = vsel %vm854, %v920, 0.0
      %952 = vadd.xlane.f32.xlu0 %v951
      %v953 = vpop.xlane.xlu0 %952
      %v954 = vsel %vm854, %v922, 0.0
      %955 = vadd.xlane.f32.xlu0 %v954
      %v956 = vpop.xlane.xlu0 %955
      %v957 = vsel %vm854, %v924, 0.0
      %958 = vadd.xlane.f32.xlu0 %v957
      %v959 = vpop.xlane.xlu0 %958
      %v960 = vsel %vm854, %v926, 0.0
      %961 = vadd.xlane.f32.xlu0 %v960
      %v962 = vpop.xlane.xlu0 %961
      %v963 = vsel %vm854, %v928, 0.0
      %964 = vadd.xlane.f32.xlu0 %v963
      %v965 = vpop.xlane.xlu0 %964
      %v966 = vsel %vm854, %v930, 0.0
      %967 = vadd.xlane.f32.xlu0 %v966
      %v968 = vpop.xlane.xlu0 %967
      %v969 = vsel %vm854, %v932, 0.0
      %970 = vadd.xlane.f32.xlu0 %v969
      %v971 = vpop.xlane.xlu0 %970
      %v972 = vsel %vm854, %v934, 0.0
      %973 = vadd.xlane.f32.xlu0 %v972
      %v974 = vpop.xlane.xlu0 %973
      %v975 = vsel %vm854, %v936, 0.0
      %976 = vadd.xlane.f32.xlu0 %v975
      %v977 = vpop.xlane.xlu0 %976
      %v978 = vsel %vm854, %v938, 0.0
      %979 = vadd.xlane.f32.xlu0 %v978
      %v980 = vpop.xlane.xlu0 %979
      %v981 = vsel %vm854, %v940, 0.0
      %982 = vadd.xlane.f32.xlu0 %v981
      %v983 = vpop.xlane.xlu0 %982
      %v984 = vsel %vm854, %v942, 0.0
      %985 = vadd.xlane.f32.xlu0 %v984
      %v986 = vpop.xlane.xlu0 %985
      %v987 = vsel %vm854, %v944, 0.0
      %988 = vadd.xlane.f32.xlu0 %v987
      %v989 = vpop.xlane.xlu0 %988
      %v990 = vsel %vm854, %v946, 0.0
      %991 = vadd.xlane.f32.xlu0 %v990
      %v992 = vpop.xlane.xlu0 %991
      %v993 = vsel %vm854, %v948, 0.0
      %994 = vadd.xlane.f32.xlu0 %v993
      %v995 = vpop.xlane.xlu0 %994
      %v996 = vsel %vm854, %v950, 0.0
      %997 = vadd.xlane.f32.xlu0 %v996
      %v998 = vpop.xlane.xlu0 %997
      %v999 = vrcp.pop %v953
      %v1000 = vrcp.pop %v956
      %v1001 = vrcp.pop %v959
      %v1002 = vrcp.pop %v962
      %v1003 = vrcp.pop %v965
      %v1004 = vrcp.pop %v968
      %v1005 = vrcp.pop %v971
      %v1006 = vrcp.pop %v974
      %v1007 = vrcp.pop %v977
      %v1008 = vrcp.pop %v980
      %v1009 = vrcp.pop %v983
      %v1010 = vrcp.pop %v986
      %v1011 = vrcp.pop %v989
      %v1012 = vrcp.pop %v992
      %v1013 = vrcp.pop %v995
      %v1014 = vrcp.pop %v998
      %v1015 = vmul.f32 %v920, %v999
      %v1016 = vmul.f32 %v922, %v1000
      %v1017 = vmul.f32 %v924, %v1001
      %v1018 = vmul.f32 %v926, %v1002
      %v1019 = vmul.f32 %v928, %v1003
      %v1020 = vmul.f32 %v930, %v1004
      %v1021 = vmul.f32 %v932, %v1005
      %v1022 = vmul.f32 %v934, %v1006
      %v1023 = vmul.f32 %v936, %v1007
      %v1024 = vmul.f32 %v938, %v1008
      %v1025 = vmul.f32 %v940, %v1009
      %v1026 = vmul.f32 %v942, %v1010
      %v1027 = vmul.f32 %v944, %v1011
      %v1028 = vmul.f32 %v946, %v1012
      %v1029 = vmul.f32 %v948, %v1013
      %v1030 = vmul.f32 %v950, %v1014
      %v1031 = vpack.c.bf16 %v1016, %v1015
      %v1032 = vpack.c.bf16 %v1018, %v1017
      %v1033 = vpack.c.bf16 %v1020, %v1019
      %v1034 = vpack.c.bf16 %v1022, %v1021
      %v1035 = vpack.c.bf16 %v1024, %v1023
      %v1036 = vpack.c.bf16 %v1026, %v1025
      %v1037 = vpack.c.bf16 %v1028, %v1027
      %v1038 = vpack.c.bf16 %v1030, %v1029
      %v1041 = vunpack.c.l.b16 %v355
      %v1042 = vunpack.c.l.b16 %v356
      %v1043 = vpack.c.b16 %v1042, %v1041
      %v1046 = vsel %vm854, %v1031, 0
      %1048 = vmatprep.subr.bf16.mxu0 0
      %1049 = vmatpush1.bf16.msra.mxu0 %v1043
      %1050 = vmatprep.subr.bf16.mxu0 0
      %1051 = vmatpush1.bf16.msra.mxu0 0
      %1052 = vmatprep.subr.bf16.mxu0 0
      %1053 = vmatpush1.bf16.msra.mxu0 0
      %1054 = vmatprep.subr.bf16.mxu0 0
      %1055 = vmatpush1.bf16.msra.mxu0 0
      %1056 = vmatprep.subr.bf16.mxu0 0
      %1057 = vmatpush1.bf16.msra.mxu0 0
      %1058 = vmatprep.subr.bf16.mxu0 0
      %1059 = vmatpush1.bf16.msra.mxu0 0
      %1060 = vmatprep.subr.bf16.mxu0 0
      %1061 = vmatpush1.bf16.msra.mxu0 0
      %1062 = vmatprep.subr.bf16.mxu0 0
      %1063 = vmatpush1.bf16.msra.mxu0 0
      %1064 = vmatprep.subr.bf16.mxu0 0
      %1065 = vmatpush1.bf16.msra.mxu0 0
      %1066 = vmatprep.subr.bf16.mxu0 0
      %1067 = vmatpush1.bf16.msra.mxu0 0
      %1068 = vmatprep.subr.bf16.mxu0 0
      %1069 = vmatpush1.bf16.msra.mxu0 0
      %1070 = vmatprep.subr.bf16.mxu0 0
      %1071 = vmatpush1.bf16.msra.mxu0 0
      %1072 = vmatprep.subr.bf16.mxu0 0
      %1073 = vmatpush1.bf16.msra.mxu0 0
      %1074 = vmatprep.subr.bf16.mxu0 0
      %1075 = vmatpush1.bf16.msra.mxu0 0
      %1076 = vmatprep.subr.bf16.mxu0 0
      %1077 = vmatpush1.bf16.msra.mxu0 0
      %1078 = vmatprep.subr.bf16.mxu0 0
      %1079 = vmatpush1.bf16.msra.mxu0 0
      %1080 = vmatprep.mubr.bf16.mxu0 0
      %1081 = vmatmul.mubr.bf16.gmra.mrb[0].mxu0 %v1046
      %v1082 = vpop.f32.mrb[0].mxu0
      %v1083 = vadd.f32 0.0, %v1082
      %v1084 = vpop.f32.mrb[0].mxu0
      %v1085 = vpop.f32.mrb[0].mxu0
      %v1086 = vadd.f32 0.0, %v1085
      %v1087 = vpop.f32.mrb[0].mxu0
      %1088 = vdwg.mxu0
      %v1091 = vunpack.c.l.b16 %v357
      %v1092 = vunpack.c.l.b16 %v358
      %v1093 = vpack.c.b16 %v1092, %v1091
      %v1096 = vsel %vm854, %v1032, 0
      %1098 = vmatprep.subr.bf16.mxu0 0
      %1099 = vmatpush1.bf16.msra.mxu0 %v1093
      %1100 = vmatprep.subr.bf16.mxu0 0
      %1101 = vmatpush1.bf16.msra.mxu0 0
      %1102 = vmatprep.subr.bf16.mxu0 0
      %1103 = vmatpush1.bf16.msra.mxu0 0
      %1104 = vmatprep.subr.bf16.mxu0 0
      %1105 = vmatpush1.bf16.msra.mxu0 0
      %1106 = vmatprep.subr.bf16.mxu0 0
      %1107 = vmatpush1.bf16.msra.mxu0 0
      %1108 = vmatprep.subr.bf16.mxu0 0
      %1109 = vmatpush1.bf16.msra.mxu0 0
      %1110 = vmatprep.subr.bf16.mxu0 0
      %1111 = vmatpush1.bf16.msra.mxu0 0
      %1112 = vmatprep.subr.bf16.mxu0 0
      %1113 = vmatpush1.bf16.msra.mxu0 0
      %1114 = vmatprep.subr.bf16.mxu0 0
      %1115 = vmatpush1.bf16.msra.mxu0 0
      %1116 = vmatprep.subr.bf16.mxu0 0
      %1117 = vmatpush1.bf16.msra.mxu0 0
      %1118 = vmatprep.subr.bf16.mxu0 0
      %1119 = vmatpush1.bf16.msra.mxu0 0
      %1120 = vmatprep.subr.bf16.mxu0 0
      %1121 = vmatpush1.bf16.msra.mxu0 0
      %1122 = vmatprep.subr.bf16.mxu0 0
      %1123 = vmatpush1.bf16.msra.mxu0 0
      %1124 = vmatprep.subr.bf16.mxu0 0
      %1125 = vmatpush1.bf16.msra.mxu0 0
      %1126 = vmatprep.subr.bf16.mxu0 0
      %1127 = vmatpush1.bf16.msra.mxu0 0
      %1128 = vmatprep.subr.bf16.mxu0 0
      %1129 = vmatpush1.bf16.msra.mxu0 0
      %1130 = vmatprep.mubr.bf16.mxu0 0
      %1131 = vmatmul.mubr.bf16.gmra.mrb[0].mxu0 %v1096
      %v1132 = vpop.f32.mrb[0].mxu0
      %v1133 = vadd.f32 0.0, %v1132
      %v1134 = vpop.f32.mrb[0].mxu0
      %v1135 = vpop.f32.mrb[0].mxu0
      %v1136 = vadd.f32 0.0, %v1135
      %v1137 = vpop.f32.mrb[0].mxu0
      %1138 = vdwg.mxu0
      %v1141 = vunpack.c.l.b16 %v359
      %v1142 = vunpack.c.l.b16 %v360
      %v1143 = vpack.c.b16 %v1142, %v1141
      %v1146 = vsel %vm854, %v1033, 0
      %1148 = vmatprep.subr.bf16.mxu0 0
      %1149 = vmatpush1.bf16.msra.mxu0 %v1143
      %1150 = vmatprep.subr.bf16.mxu0 0
      %1151 = vmatpush1.bf16.msra.mxu0 0
      %1152 = vmatprep.subr.bf16.mxu0 0
      %1153 = vmatpush1.bf16.msra.mxu0 0
      %1154 = vmatprep.subr.bf16.mxu0 0
      %1155 = vmatpush1.bf16.msra.mxu0 0
      %1156 = vmatprep.subr.bf16.mxu0 0
      %1157 = vmatpush1.bf16.msra.mxu0 0
      %1158 = vmatprep.subr.bf16.mxu0 0
      %1159 = vmatpush1.bf16.msra.mxu0 0
      %1160 = vmatprep.subr.bf16.mxu0 0
      %1161 = vmatpush1.bf16.msra.mxu0 0
      %1162 = vmatprep.subr.bf16.mxu0 0
      %1163 = vmatpush1.bf16.msra.mxu0 0
      %1164 = vmatprep.subr.bf16.mxu0 0
      %1165 = vmatpush1.bf16.msra.mxu0 0
      %1166 = vmatprep.subr.bf16.mxu0 0
      %1167 = vmatpush1.bf16.msra.mxu0 0
      %1168 = vmatprep.subr.bf16.mxu0 0
      %1169 = vmatpush1.bf16.msra.mxu0 0
      %1170 = vmatprep.subr.bf16.mxu0 0
      %1171 = vmatpush1.bf16.msra.mxu0 0
      %1172 = vmatprep.subr.bf16.mxu0 0
      %1173 = vmatpush1.bf16.msra.mxu0 0
      %1174 = vmatprep.subr.bf16.mxu0 0
      %1175 = vmatpush1.bf16.msra.mxu0 0
      %1176 = vmatprep.subr.bf16.mxu0 0
      %1177 = vmatpush1.bf16.msra.mxu0 0
      %1178 = vmatprep.subr.bf16.mxu0 0
      %1179 = vmatpush1.bf16.msra.mxu0 0
      %1180 = vmatprep.mubr.bf16.mxu0 0
      %1181 = vmatmul.mubr.bf16.gmra.mrb[0].mxu0 %v1146
      %v1182 = vpop.f32.mrb[0].mxu0
      %v1183 = vadd.f32 0.0, %v1182
      %v1184 = vpop.f32.mrb[0].mxu0
      %v1185 = vpop.f32.mrb[0].mxu0
      %v1186 = vadd.f32 0.0, %v1185
      %v1187 = vpop.f32.mrb[0].mxu0
      %1188 = vdwg.mxu0
      %v1191 = vunpack.c.l.b16 %v361
      %v1192 = vunpack.c.l.b16 %v362
      %v1193 = vpack.c.b16 %v1192, %v1191
      %v1196 = vsel %vm854, %v1034, 0
      %1198 = vmatprep.subr.bf16.mxu0 0
      %1199 = vmatpush1.bf16.msra.mxu0 %v1193
      %1200 = vmatprep.subr.bf16.mxu0 0
      %1201 = vmatpush1.bf16.msra.mxu0 0
      %1202 = vmatprep.subr.bf16.mxu0 0
      %1203 = vmatpush1.bf16.msra.mxu0 0
      %1204 = vmatprep.subr.bf16.mxu0 0
      %1205 = vmatpush1.bf16.msra.mxu0 0
      %1206 = vmatprep.subr.bf16.mxu0 0
      %1207 = vmatpush1.bf16.msra.mxu0 0
      %1208 = vmatprep.subr.bf16.mxu0 0
      %1209 = vmatpush1.bf16.msra.mxu0 0
      %1210 = vmatprep.subr.bf16.mxu0 0
      %1211 = vmatpush1.bf16.msra.mxu0 0
      %1212 = vmatprep.subr.bf16.mxu0 0
      %1213 = vmatpush1.bf16.msra.mxu0 0
      %1214 = vmatprep.subr.bf16.mxu0 0
      %1215 = vmatpush1.bf16.msra.mxu0 0
      %1216 = vmatprep.subr.bf16.mxu0 0
      %1217 = vmatpush1.bf16.msra.mxu0 0
      %1218 = vmatprep.subr.bf16.mxu0 0
      %1219 = vmatpush1.bf16.msra.mxu0 0
      %1220 = vmatprep.subr.bf16.mxu0 0
      %1221 = vmatpush1.bf16.msra.mxu0 0
      %1222 = vmatprep.subr.bf16.mxu0 0
      %1223 = vmatpush1.bf16.msra.mxu0 0
      %1224 = vmatprep.subr.bf16.mxu0 0
      %1225 = vmatpush1.bf16.msra.mxu0 0
      %1226 = vmatprep.subr.bf16.mxu0 0
      %1227 = vmatpush1.bf16.msra.mxu0 0
      %1228 = vmatprep.subr.bf16.mxu0 0
      %1229 = vmatpush1.bf16.msra.mxu0 0
      %1230 = vmatprep.mubr.bf16.mxu0 0
      %1231 = vmatmul.mubr.bf16.gmra.mrb[0].mxu0 %v1196
      %v1232 = vpop.f32.mrb[0].mxu0
      %v1233 = vadd.f32 0.0, %v1232
      %v1234 = vpop.f32.mrb[0].mxu0
      %v1235 = vpop.f32.mrb[0].mxu0
      %v1236 = vadd.f32 0.0, %v1235
      %v1237 = vpop.f32.mrb[0].mxu0
      %1238 = vdwg.mxu0
      %v1241 = vunpack.c.l.b16 %v363
      %v1242 = vunpack.c.l.b16 %v364
      %v1243 = vpack.c.b16 %v1242, %v1241
      %v1246 = vsel %vm854, %v1035, 0
      %1248 = vmatprep.subr.bf16.mxu0 0
      %1249 = vmatpush1.bf16.msra.mxu0 %v1243
      %1250 = vmatprep.subr.bf16.mxu0 0
      %1251 = vmatpush1.bf16.msra.mxu0 0
      %1252 = vmatprep.subr.bf16.mxu0 0
      %1253 = vmatpush1.bf16.msra.mxu0 0
      %1254 = vmatprep.subr.bf16.mxu0 0
      %1255 = vmatpush1.bf16.msra.mxu0 0
      %1256 = vmatprep.subr.bf16.mxu0 0
      %1257 = vmatpush1.bf16.msra.mxu0 0
      %1258 = vmatprep.subr.bf16.mxu0 0
      %1259 = vmatpush1.bf16.msra.mxu0 0
      %1260 = vmatprep.subr.bf16.mxu0 0
      %1261 = vmatpush1.bf16.msra.mxu0 0
      %1262 = vmatprep.subr.bf16.mxu0 0
      %1263 = vmatpush1.bf16.msra.mxu0 0
      %1264 = vmatprep.subr.bf16.mxu0 0
      %1265 = vmatpush1.bf16.msra.mxu0 0
      %1266 = vmatprep.subr.bf16.mxu0 0
      %1267 = vmatpush1.bf16.msra.mxu0 0
      %1268 = vmatprep.subr.bf16.mxu0 0
      %1269 = vmatpush1.bf16.msra.mxu0 0
      %1270 = vmatprep.subr.bf16.mxu0 0
      %1271 = vmatpush1.bf16.msra.mxu0 0
      %1272 = vmatprep.subr.bf16.mxu0 0
      %1273 = vmatpush1.bf16.msra.mxu0 0
      %1274 = vmatprep.subr.bf16.mxu0 0
      %1275 = vmatpush1.bf16.msra.mxu0 0
      %1276 = vmatprep.subr.bf16.mxu0 0
      %1277 = vmatpush1.bf16.msra.mxu0 0
      %1278 = vmatprep.subr.bf16.mxu0 0
      %1279 = vmatpush1.bf16.msra.mxu0 0
      %1280 = vmatprep.mubr.bf16.mxu0 0
      %1281 = vmatmul.mubr.bf16.gmra.mrb[0].mxu0 %v1246
      %v1282 = vpop.f32.mrb[0].mxu0
      %v1283 = vadd.f32 0.0, %v1282
      %v1284 = vpop.f32.mrb[0].mxu0
      %v1285 = vpop.f32.mrb[0].mxu0
      %v1286 = vadd.f32 0.0, %v1285
      %v1287 = vpop.f32.mrb[0].mxu0
      %1288 = vdwg.mxu0
      %v1291 = vunpack.c.l.b16 %v365
      %v1292 = vunpack.c.l.b16 %v366
      %v1293 = vpack.c.b16 %v1292, %v1291
      %v1296 = vsel %vm854, %v1036, 0
      %1298 = vmatprep.subr.bf16.mxu0 0
      %1299 = vmatpush1.bf16.msra.mxu0 %v1293
      %1300 = vmatprep.subr.bf16.mxu0 0
      %1301 = vmatpush1.bf16.msra.mxu0 0
      %1302 = vmatprep.subr.bf16.mxu0 0
      %1303 = vmatpush1.bf16.msra.mxu0 0
      %1304 = vmatprep.subr.bf16.mxu0 0
      %1305 = vmatpush1.bf16.msra.mxu0 0
      %1306 = vmatprep.subr.bf16.mxu0 0
      %1307 = vmatpush1.bf16.msra.mxu0 0
      %1308 = vmatprep.subr.bf16.mxu0 0
      %1309 = vmatpush1.bf16.msra.mxu0 0
      %1310 = vmatprep.subr.bf16.mxu0 0
      %1311 = vmatpush1.bf16.msra.mxu0 0
      %1312 = vmatprep.subr.bf16.mxu0 0
      %1313 = vmatpush1.bf16.msra.mxu0 0
      %1314 = vmatprep.subr.bf16.mxu0 0
      %1315 = vmatpush1.bf16.msra.mxu0 0
      %1316 = vmatprep.subr.bf16.mxu0 0
      %1317 = vmatpush1.bf16.msra.mxu0 0
      %1318 = vmatprep.subr.bf16.mxu0 0
      %1319 = vmatpush1.bf16.msra.mxu0 0
      %1320 = vmatprep.subr.bf16.mxu0 0
      %1321 = vmatpush1.bf16.msra.mxu0 0
      %1322 = vmatprep.subr.bf16.mxu0 0
      %1323 = vmatpush1.bf16.msra.mxu0 0
      %1324 = vmatprep.subr.bf16.mxu0 0
      %1325 = vmatpush1.bf16.msra.mxu0 0
      %1326 = vmatprep.subr.bf16.mxu0 0
      %1327 = vmatpush1.bf16.msra.mxu0 0
      %1328 = vmatprep.subr.bf16.mxu0 0
      %1329 = vmatpush1.bf16.msra.mxu0 0
      %1330 = vmatprep.mubr.bf16.mxu0 0
      %1331 = vmatmul.mubr.bf16.gmra.mrb[0].mxu0 %v1296
      %v1332 = vpop.f32.mrb[0].mxu0
      %v1333 = vadd.f32 0.0, %v1332
      %v1334 = vpop.f32.mrb[0].mxu0
      %v1335 = vpop.f32.mrb[0].mxu0
      %v1336 = vadd.f32 0.0, %v1335
      %v1337 = vpop.f32.mrb[0].mxu0
      %1338 = vdwg.mxu0
      %v1341 = vunpack.c.l.b16 %v367
      %v1342 = vunpack.c.l.b16 %v368
      %v1343 = vpack.c.b16 %v1342, %v1341
      %v1346 = vsel %vm854, %v1037, 0
      %1348 = vmatprep.subr.bf16.mxu0 0
      %1349 = vmatpush1.bf16.msra.mxu0 %v1343
      %1350 = vmatprep.subr.bf16.mxu0 0
      %1351 = vmatpush1.bf16.msra.mxu0 0
      %1352 = vmatprep.subr.bf16.mxu0 0
      %1353 = vmatpush1.bf16.msra.mxu0 0
      %1354 = vmatprep.subr.bf16.mxu0 0
      %1355 = vmatpush1.bf16.msra.mxu0 0
      %1356 = vmatprep.subr.bf16.mxu0 0
      %1357 = vmatpush1.bf16.msra.mxu0 0
      %1358 = vmatprep.subr.bf16.mxu0 0
      %1359 = vmatpush1.bf16.msra.mxu0 0
      %1360 = vmatprep.subr.bf16.mxu0 0
      %1361 = vmatpush1.bf16.msra.mxu0 0
      %1362 = vmatprep.subr.bf16.mxu0 0
      %1363 = vmatpush1.bf16.msra.mxu0 0
      %1364 = vmatprep.subr.bf16.mxu0 0
      %1365 = vmatpush1.bf16.msra.mxu0 0
      %1366 = vmatprep.subr.bf16.mxu0 0
      %1367 = vmatpush1.bf16.msra.mxu0 0
      %1368 = vmatprep.subr.bf16.mxu0 0
      %1369 = vmatpush1.bf16.msra.mxu0 0
      %1370 = vmatprep.subr.bf16.mxu0 0
      %1371 = vmatpush1.bf16.msra.mxu0 0
      %1372 = vmatprep.subr.bf16.mxu0 0
      %1373 = vmatpush1.bf16.msra.mxu0 0
      %1374 = vmatprep.subr.bf16.mxu0 0
      %1375 = vmatpush1.bf16.msra.mxu0 0
      %1376 = vmatprep.subr.bf16.mxu0 0
      %1377 = vmatpush1.bf16.msra.mxu0 0
      %1378 = vmatprep.subr.bf16.mxu0 0
      %1379 = vmatpush1.bf16.msra.mxu0 0
      %1380 = vmatprep.mubr.bf16.mxu0 0
      %1381 = vmatmul.mubr.bf16.gmra.mrb[0].mxu0 %v1346
      %v1382 = vpop.f32.mrb[0].mxu0
      %v1383 = vadd.f32 0.0, %v1382
      %v1384 = vpop.f32.mrb[0].mxu0
      %v1385 = vpop.f32.mrb[0].mxu0
      %v1386 = vadd.f32 0.0, %v1385
      %v1387 = vpop.f32.mrb[0].mxu0
      %1388 = vdwg.mxu0
      %v1391 = vunpack.c.l.b16 %v369
      %v1392 = vunpack.c.l.b16 %v370
      %v1393 = vpack.c.b16 %v1392, %v1391
      %v1396 = vsel %vm854, %v1038, 0
      %1398 = vmatprep.subr.bf16.mxu0 0
      %1399 = vmatpush1.bf16.msra.mxu0 %v1393
      %1400 = vmatprep.subr.bf16.mxu0 0
      %1401 = vmatpush1.bf16.msra.mxu0 0
      %1402 = vmatprep.subr.bf16.mxu0 0
      %1403 = vmatpush1.bf16.msra.mxu0 0
      %1404 = vmatprep.subr.bf16.mxu0 0
      %1405 = vmatpush1.bf16.msra.mxu0 0
      %1406 = vmatprep.subr.bf16.mxu0 0
      %1407 = vmatpush1.bf16.msra.mxu0 0
      %1408 = vmatprep.subr.bf16.mxu0 0
      %1409 = vmatpush1.bf16.msra.mxu0 0
      %1410 = vmatprep.subr.bf16.mxu0 0
      %1411 = vmatpush1.bf16.msra.mxu0 0
      %1412 = vmatprep.subr.bf16.mxu0 0
      %1413 = vmatpush1.bf16.msra.mxu0 0
      %1414 = vmatprep.subr.bf16.mxu0 0
      %1415 = vmatpush1.bf16.msra.mxu0 0
      %1416 = vmatprep.subr.bf16.mxu0 0
      %1417 = vmatpush1.bf16.msra.mxu0 0
      %1418 = vmatprep.subr.bf16.mxu0 0
      %1419 = vmatpush1.bf16.msra.mxu0 0
      %1420 = vmatprep.subr.bf16.mxu0 0
      %1421 = vmatpush1.bf16.msra.mxu0 0
      %1422 = vmatprep.subr.bf16.mxu0 0
      %1423 = vmatpush1.bf16.msra.mxu0 0
      %1424 = vmatprep.subr.bf16.mxu0 0
      %1425 = vmatpush1.bf16.msra.mxu0 0
      %1426 = vmatprep.subr.bf16.mxu0 0
      %1427 = vmatpush1.bf16.msra.mxu0 0
      %1428 = vmatprep.subr.bf16.mxu0 0
      %1429 = vmatpush1.bf16.msra.mxu0 0
      %1430 = vmatprep.mubr.bf16.mxu0 0
      %1431 = vmatmul.mubr.bf16.gmra.mrb[0].mxu0 %v1396
      %v1432 = vpop.f32.mrb[0].mxu0
      %v1433 = vadd.f32 0.0, %v1432
      %v1434 = vpop.f32.mrb[0].mxu0
      %v1435 = vpop.f32.mrb[0].mxu0
      %v1436 = vadd.f32 0.0, %v1435
      %v1437 = vpop.f32.mrb[0].mxu0
      %1438 = vdwg.mxu0
      %v1439 = vpack.c.bf16 %v1086, %v1083
      %v1440 = vpack.c.bf16 %v1136, %v1133
      %v1441 = vpack.c.bf16 %v1186, %v1183
      %v1442 = vpack.c.bf16 %v1236, %v1233
      %v1443 = vpack.c.bf16 %v1286, %v1283
      %v1444 = vpack.c.bf16 %v1336, %v1333
      %v1445 = vpack.c.bf16 %v1386, %v1383
      %v1446 = vpack.c.bf16 %v1436, %v1433
      %v1455 = vunpack.c.l.b16 %v1439
      %v1456 = vunpack.c.h.b16 %v1439
      %v1457 = vunpack.c.l.b16 %v1440
      %v1458 = vunpack.c.h.b16 %v1440
      %v1459 = vunpack.c.l.b16 %v1441
      %v1460 = vunpack.c.h.b16 %v1441
      %v1461 = vunpack.c.l.b16 %v1442
      %v1462 = vunpack.c.h.b16 %v1442
      %v1463 = vunpack.c.l.b16 %v1443
      %v1464 = vunpack.c.h.b16 %v1443
      %v1465 = vunpack.c.l.b16 %v1444
      %v1466 = vunpack.c.h.b16 %v1444
      %v1467 = vunpack.c.l.b16 %v1445
      %v1468 = vunpack.c.h.b16 %v1445
      %v1469 = vunpack.c.l.b16 %v1446
      %v1470 = vunpack.c.h.b16 %v1446
      %v1471 = vpack.c.b16 %v1455, %v1455
      %v1472 = vpack.c.b16 %v1456, %v1456
      %v1473 = vpack.c.b16 %v1457, %v1457
      %v1474 = vpack.c.b16 %v1458, %v1458
      %v1475 = vpack.c.b16 %v1459, %v1459
      %v1476 = vpack.c.b16 %v1460, %v1460
      %v1477 = vpack.c.b16 %v1461, %v1461
      %v1478 = vpack.c.b16 %v1462, %v1462
      %v1479 = vpack.c.b16 %v1463, %v1463
      %v1480 = vpack.c.b16 %v1464, %v1464
      %v1481 = vpack.c.b16 %v1465, %v1465
      %v1482 = vpack.c.b16 %v1466, %v1466
      %v1483 = vpack.c.b16 %v1467, %v1467
      %v1484 = vpack.c.b16 %v1468, %v1468
      %v1485 = vpack.c.b16 %v1469, %v1469
      %v1486 = vpack.c.b16 %v1470, %v1470
      %vm1503 = vcmask 60416
      %1504 = vst.msk [vmem:[%s320] sm:$0xf] %vm1503, %v1471
      %1505 = vst.msk [vmem:[%s320 + $0x4] sm:$0xf] %vm1503, %v1472
      %1506 = vst.msk [vmem:[%s320 + $0x8] sm:$0xf] %vm1503, %v1473
      %1507 = vst.msk [vmem:[%s320 + $0xc] sm:$0xf] %vm1503, %v1474
      %1508 = vst.msk [vmem:[%s320 + $0x10] sm:$0xf] %vm1503, %v1475
      %1509 = vst.msk [vmem:[%s320 + $0x14] sm:$0xf] %vm1503, %v1476
      %1510 = vst.msk [vmem:[%s320 + $0x18] sm:$0xf] %vm1503, %v1477
      %1511 = vst.msk [vmem:[%s320 + $0x1c] sm:$0xf] %vm1503, %v1478
      %1512 = vst.msk [vmem:[%s320 + $0x20] sm:$0xf] %vm1503, %v1479
      %1513 = vst.msk [vmem:[%s320 + $0x24] sm:$0xf] %vm1503, %v1480
      %1514 = vst.msk [vmem:[%s320 + $0x28] sm:$0xf] %vm1503, %v1481
      %1515 = vst.msk [vmem:[%s320 + $0x2c] sm:$0xf] %vm1503, %v1482
      %1516 = vst.msk [vmem:[%s320 + $0x30] sm:$0xf] %vm1503, %v1483
      %1517 = vst.msk [vmem:[%s320 + $0x34] sm:$0xf] %vm1503, %v1484
      %1518 = vst.msk [vmem:[%s320 + $0x38] sm:$0xf] %vm1503, %v1485
      %1519 = vst.msk [vmem:[%s320 + $0x3c] sm:$0xf] %vm1503, %v1486
      %s1520 = smul.u32 8, %s22
      %p1521 = scmp.lt.s32.totalorder %s21, 1
      %s1522 = scalar_select %p1521, %s21, 1
      %p1523 = scmp.lt.s32.totalorder %s1520, 15
      %s1524 = scalar_select %p1523, %s1520, 15
      %s1525 = smul.addr %s1524, 2
      %s1526 = smul.addr %s1522, 32
      %s1527 = sadd.s32 %s1525, %s1526
      %s1528 = smul.addr %s1527, 4
      %s1529 = scalar_lea.vmem %s4, %s1528
      // Predicated region
      $region37: #{_lambda_.18} parent=35 // pred_check
        %p1530 = pneg %p154
      $region38: #{_lambda_.18} parent=35 // pred_check_branch
        %1532 = sbr.rel (%p1530) target = $region40
      $region39: #{_lambda_.18} parent=35 // pred_region
        %s1533 = smul.u32 8, %s22
      $region40: #{_lambda_.18} parent=35 // pred_fallthru
        _
    $region36: #{_lambda_.18} parent=5 // pred_fallthru
      _
    %p1534 = scmp.le.s32.totalorder 2, %s12
    // Predicated region
    $region41: #{_lambda_.18} parent=5 // pred_check
      %p1535 = pneg %p1534
    $region42: #{_lambda_.18} parent=5 // pred_check_branch
      %1537 = sbr.rel (%p1535) target = $region44
    $region43: #{_lambda_.18} parent=5 // pred_region
      %s1538 = ssub.s32 %s12, 2
      // Predicated region
      $region45: #{_lambda_.18} parent=43 // pred_check
        %p1539 = pneg %p160
      $region46: #{_lambda_.18} parent=43 // pred_check_branch
        %1541 = sbr.rel (%p1539) target = $region48
      $region47: #{_lambda_.18} parent=43 // pred_region
        %s1542 = smul.u32 8, %s24
        %p1543 = scmp.lt.s32.totalorder %s23, 1
        %s1544 = scalar_select %p1543, %s23, 1
        %p1545 = scmp.lt.s32.totalorder %s1542, 15
        %s1546 = scalar_select %p1545, %s1542, 15
        %s1547 = smul.addr %s1546, 2
        %s1548 = smul.addr %s1544, 32
        %s1549 = sadd.s32 %s1547, %s1548
        %s1550 = smul.addr %s1549, 4
        %s1551 = scalar_lea.vmem %s4, %s1550
      $region48: #{_lambda_.18} parent=43 // pred_fallthru
        _
    $region44: #{_lambda_.18} parent=5 // pred_fallthru
      _
  $region6: #{_lambda_.18} parent=0 // loop_footer
    %s16 = sadd.s32 1, %s12
  $region7: #{_lambda_.18} parent=0 // loop_footer_branch
    %11 = sbr.rel target = $region3
  $region8: #{_lambda_.18} parent=0 // loop_exit
    _

// kernel: _lambda_.22
$region0: #{_lambda_.22}
  #allocation0 [shape = 'u32[]', space=smem, size = 0x4, offset = 0x4, fixed_abs, tag = 'smem constant byte address 0x4 - core index']
  #allocation1 [shape = 'u32[144,128]{1,0:T(1,128)}', space=vmem, size = 0x12000, scoped, tag = 'internal scratch']
  %s0 = inlined_call_operand.vmem [shape: f32[128,32], index: 0, kind: input, shape index: {}]
  %s1 = inlined_call_operand.vmem [shape: f32[1,32], index: 1, kind: input, shape index: {}]
  %s2 = inlined_call_operand.vmem [shape: f32[1,32], index: 2, kind: input, shape index: {}]
  %s3 = inlined_call_operand.vmem [shape: bf16[32,64], index: 3, kind: input, shape index: {}]
  %s4 = inlined_call_operand.vmem [shape: f32[1,64], index: 4, kind: input, shape index: {}]
  %s5 = inlined_call_operand.vmem [shape: bf16[128,64], index: 5, kind: output, shape index: {}]
  %s6 = sld [smem:[#allocation0]]
  $region30: #{_lambda_.22} parent=0
    _
  %s8 = ssub.s32 1, %s6
  %s9 = scalar_select 0, %s8, %s6
  // Predicated region
  $region2: #{_lambda_.22} parent=0 // pred_check
    _
  $region3: #{_lambda_.22} parent=0 // pred_check_branch
    %11 = sbr.rel (0) target = $region5
  $region4: #{_lambda_.22} parent=0 // pred_region
    _
  $region5: #{_lambda_.22} parent=0 // pred_fallthru
    _
  // Predicated region
  $region6: #{_lambda_.22} parent=0 // pred_check
    _
  $region7: #{_lambda_.22} parent=0 // pred_check_branch
    %13 = sbr.rel (0) target = $region9
  $region8: #{_lambda_.22} parent=0 // pred_region
    _
  $region9: #{_lambda_.22} parent=0 // pred_fallthru
    _
  // Predicated region
  $region10: #{_lambda_.22} parent=0 // pred_check
    _
  $region11: #{_lambda_.22} parent=0 // pred_check_branch
    %15 = sbr.rel (0) target = $region13
  $region12: #{_lambda_.22} parent=0 // pred_region
    _
  $region13: #{_lambda_.22} parent=0 // pred_fallthru
    _
  // Predicated region
  $region14: #{_lambda_.22} parent=0 // pred_check
    _
  $region15: #{_lambda_.22} parent=0 // pred_check_branch
    %17 = sbr.rel (0) target = $region17
  $region16: #{_lambda_.22} parent=0 // pred_region
    _
  $region17: #{_lambda_.22} parent=0 // pred_fallthru
    _
  // Predicated region
  $region18: #{_lambda_.22} parent=0 // pred_check
    _
  $region19: #{_lambda_.22} parent=0 // pred_check_branch
    %19 = sbr.rel (0) target = $region21
  $region20: #{_lambda_.22} parent=0 // pred_region
    _
  $region21: #{_lambda_.22} parent=0 // pred_fallthru
    _
  %v21 = vld [vmem:[%s0] sm:$0xff]
  %v22 = vld [vmem:[%s0 + $0x8] sm:$0xff]
  %v23 = vld [vmem:[%s0 + $0x10] sm:$0xff]
  %v24 = vld [vmem:[%s0 + $0x18] sm:$0xff]
  %v25 = vld [vmem:[%s0 + $0x20] sm:$0xff]
  %v26 = vld [vmem:[%s0 + $0x28] sm:$0xff]
  %v27 = vld [vmem:[%s0 + $0x30] sm:$0xff]
  %v28 = vld [vmem:[%s0 + $0x38] sm:$0xff]
  %v29 = vld [vmem:[%s0 + $0x40] sm:$0xff]
  %v30 = vld [vmem:[%s0 + $0x48] sm:$0xff]
  %v31 = vld [vmem:[%s0 + $0x50] sm:$0xff]
  %v32 = vld [vmem:[%s0 + $0x58] sm:$0xff]
  %v33 = vld [vmem:[%s0 + $0x60] sm:$0xff]
  %v34 = vld [vmem:[%s0 + $0x68] sm:$0xff]
  %v35 = vld [vmem:[%s0 + $0x70] sm:$0xff]
  %v36 = vld [vmem:[%s0 + $0x78] sm:$0xff]
  %vm37 = vcmask 261120
  %v38 = vsel %vm37, %v21, 0.0
  %39 = vadd.xlane.f32.xlu0 %v38
  %v40 = vpop.xlane.xlu0 %39
  %v41 = vsel %vm37, %v22, 0.0
  %42 = vadd.xlane.f32.xlu0 %v41
  %v43 = vpop.xlane.xlu0 %42
  %v44 = vsel %vm37, %v23, 0.0
  %45 = vadd.xlane.f32.xlu0 %v44
  %v46 = vpop.xlane.xlu0 %45
  %v47 = vsel %vm37, %v24, 0.0
  %48 = vadd.xlane.f32.xlu0 %v47
  %v49 = vpop.xlane.xlu0 %48
  %v50 = vsel %vm37, %v25, 0.0
  %51 = vadd.xlane.f32.xlu0 %v50
  %v52 = vpop.xlane.xlu0 %51
  %v53 = vsel %vm37, %v26, 0.0
  %54 = vadd.xlane.f32.xlu0 %v53
  %v55 = vpop.xlane.xlu0 %54
  %v56 = vsel %vm37, %v27, 0.0
  %57 = vadd.xlane.f32.xlu0 %v56
  %v58 = vpop.xlane.xlu0 %57
  %v59 = vsel %vm37, %v28, 0.0
  %60 = vadd.xlane.f32.xlu0 %v59
  %v61 = vpop.xlane.xlu0 %60
  %v62 = vsel %vm37, %v29, 0.0
  %63 = vadd.xlane.f32.xlu0 %v62
  %v64 = vpop.xlane.xlu0 %63
  %v65 = vsel %vm37, %v30, 0.0
  %66 = vadd.xlane.f32.xlu0 %v65
  %v67 = vpop.xlane.xlu0 %66
  %v68 = vsel %vm37, %v31, 0.0
  %69 = vadd.xlane.f32.xlu0 %v68
  %v70 = vpop.xlane.xlu0 %69
  %v71 = vsel %vm37, %v32, 0.0
  %72 = vadd.xlane.f32.xlu0 %v71
  %v73 = vpop.xlane.xlu0 %72
  %v74 = vsel %vm37, %v33, 0.0
  %75 = vadd.xlane.f32.xlu0 %v74
  %v76 = vpop.xlane.xlu0 %75
  %v77 = vsel %vm37, %v34, 0.0
  %78 = vadd.xlane.f32.xlu0 %v77
  %v79 = vpop.xlane.xlu0 %78
  %v80 = vsel %vm37, %v35, 0.0
  %81 = vadd.xlane.f32.xlu0 %v80
  %v82 = vpop.xlane.xlu0 %81
  %v83 = vsel %vm37, %v36, 0.0
  %84 = vadd.xlane.f32.xlu0 %v83
  %v85 = vpop.xlane.xlu0 %84
  %v86 = vrcp.pop 32.0
  %v87 = vmul.f32 %v40, %v86
  %v88 = vmul.f32 %v43, %v86
  %v89 = vmul.f32 %v46, %v86
  %v90 = vmul.f32 %v49, %v86
  %v91 = vmul.f32 %v52, %v86
  %v92 = vmul.f32 %v55, %v86
  %v93 = vmul.f32 %v58, %v86
  %v94 = vmul.f32 %v61, %v86
  %v95 = vmul.f32 %v64, %v86
  %v96 = vmul.f32 %v67, %v86
  %v97 = vmul.f32 %v70, %v86
  %v98 = vmul.f32 %v73, %v86
  %v99 = vmul.f32 %v76, %v86
  %v100 = vmul.f32 %v79, %v86
  %v101 = vmul.f32 %v82, %v86
  %v102 = vmul.f32 %v85, %v86
  %v103 = vsub.f32 %v21, %v87
  %v104 = vsub.f32 %v22, %v88
  %v105 = vsub.f32 %v23, %v89
  %v106 = vsub.f32 %v24, %v90
  %v107 = vsub.f32 %v25, %v91
  %v108 = vsub.f32 %v26, %v92
  %v109 = vsub.f32 %v27, %v93
  %v110 = vsub.f32 %v28, %v94
  %v111 = vsub.f32 %v29, %v95
  %v112 = vsub.f32 %v30, %v96
  %v113 = vsub.f32 %v31, %v97
  %v114 = vsub.f32 %v32, %v98
  %v115 = vsub.f32 %v33, %v99
  %v116 = vsub.f32 %v34, %v100
  %v117 = vsub.f32 %v35, %v101
  %v118 = vsub.f32 %v36, %v102
  %v119 = vmul.f32 %v103, %v103
  %v120 = vmul.f32 %v104, %v104
  %v121 = vmul.f32 %v105, %v105
  %v122 = vmul.f32 %v106, %v106
  %v123 = vmul.f32 %v107, %v107
  %v124 = vmul.f32 %v108, %v108
  %v125 = vmul.f32 %v109, %v109
  %v126 = vmul.f32 %v110, %v110
  %v127 = vmul.f32 %v111, %v111
  %v128 = vmul.f32 %v112, %v112
  %v129 = vmul.f32 %v113, %v113
  %v130 = vmul.f32 %v114, %v114
  %v131 = vmul.f32 %v115, %v115
  %v132 = vmul.f32 %v116, %v116
  %v133 = vmul.f32 %v117, %v117
  %v134 = vmul.f32 %v118, %v118
  %v135 = vsel %vm37, %v119, 0.0
  %136 = vadd.xlane.f32.xlu0 %v135
  %v137 = vpop.xlane.xlu0 %136
  %v138 = vsel %vm37, %v120, 0.0
  %139 = vadd.xlane.f32.xlu0 %v138
  %v140 = vpop.xlane.xlu0 %139
  %v141 = vsel %vm37, %v121, 0.0
  %142 = vadd.xlane.f32.xlu0 %v141
  %v143 = vpop.xlane.xlu0 %142
  %v144 = vsel %vm37, %v122, 0.0
  %145 = vadd.xlane.f32.xlu0 %v144
  %v146 = vpop.xlane.xlu0 %145
  %v147 = vsel %vm37, %v123, 0.0
  %148 = vadd.xlane.f32.xlu0 %v147
  %v149 = vpop.xlane.xlu0 %148
  %v150 = vsel %vm37, %v124, 0.0
  %151 = vadd.xlane.f32.xlu0 %v150
  %v152 = vpop.xlane.xlu0 %151
  %v153 = vsel %vm37, %v125, 0.0
  %154 = vadd.xlane.f32.xlu0 %v153
  %v155 = vpop.xlane.xlu0 %154
  %v156 = vsel %vm37, %v126, 0.0
  %157 = vadd.xlane.f32.xlu0 %v156
  %v158 = vpop.xlane.xlu0 %157
  %v159 = vsel %vm37, %v127, 0.0
  %160 = vadd.xlane.f32.xlu0 %v159
  %v161 = vpop.xlane.xlu0 %160
  %v162 = vsel %vm37, %v128, 0.0
  %163 = vadd.xlane.f32.xlu0 %v162
  %v164 = vpop.xlane.xlu0 %163
  %v165 = vsel %vm37, %v129, 0.0
  %166 = vadd.xlane.f32.xlu0 %v165
  %v167 = vpop.xlane.xlu0 %166
  %v168 = vsel %vm37, %v130, 0.0
  %169 = vadd.xlane.f32.xlu0 %v168
  %v170 = vpop.xlane.xlu0 %169
  %v171 = vsel %vm37, %v131, 0.0
  %172 = vadd.xlane.f32.xlu0 %v171
  %v173 = vpop.xlane.xlu0 %172
  %v174 = vsel %vm37, %v132, 0.0
  %175 = vadd.xlane.f32.xlu0 %v174
  %v176 = vpop.xlane.xlu0 %175
  %v177 = vsel %vm37, %v133, 0.0
  %178 = vadd.xlane.f32.xlu0 %v177
  %v179 = vpop.xlane.xlu0 %178
  %v180 = vsel %vm37, %v134, 0.0
  %181 = vadd.xlane.f32.xlu0 %v180
  %v182 = vpop.xlane.xlu0 %181
  %v183 = vmul.f32 %v137, %v86
  %v184 = vmul.f32 %v140, %v86
  %v185 = vmul.f32 %v143, %v86
  %v186 = vmul.f32 %v146, %v86
  %v187 = vmul.f32 %v149, %v86
  %v188 = vmul.f32 %v152, %v86
  %v189 = vmul.f32 %v155, %v86
  %v190 = vmul.f32 %v158, %v86
  %v191 = vmul.f32 %v161, %v86
  %v192 = vmul.f32 %v164, %v86
  %v193 = vmul.f32 %v167, %v86
  %v194 = vmul.f32 %v170, %v86
  %v195 = vmul.f32 %v173, %v86
  %v196 = vmul.f32 %v176, %v86
  %v197 = vmul.f32 %v179, %v86
  %v198 = vmul.f32 %v182, %v86
  %v199 = vadd.f32 %v183, 1e-05
  %v200 = vadd.f32 %v184, 1e-05
  %v201 = vadd.f32 %v185, 1e-05
  %v202 = vadd.f32 %v186, 1e-05
  %v203 = vadd.f32 %v187, 1e-05
  %v204 = vadd.f32 %v188, 1e-05
  %v205 = vadd.f32 %v189, 1e-05
  %v206 = vadd.f32 %v190, 1e-05
  %v207 = vadd.f32 %v191, 1e-05
  %v208 = vadd.f32 %v192, 1e-05
  %v209 = vadd.f32 %v193, 1e-05
  %v210 = vadd.f32 %v194, 1e-05
  %v211 = vadd.f32 %v195, 1e-05
  %v212 = vadd.f32 %v196, 1e-05
  %v213 = vadd.f32 %v197, 1e-05
  %v214 = vadd.f32 %v198, 1e-05
  %v215 = vrsqrt.pop %v199
  %v216 = vrsqrt.pop %v200
  %v217 = vrsqrt.pop %v201
  %v218 = vrsqrt.pop %v202
  %v219 = vrsqrt.pop %v203
  %v220 = vrsqrt.pop %v204
  %v221 = vrsqrt.pop %v205
  %v222 = vrsqrt.pop %v206
  %v223 = vrsqrt.pop %v207
  %v224 = vrsqrt.pop %v208
  %v225 = vrsqrt.pop %v209
  %v226 = vrsqrt.pop %v210
  %v227 = vrsqrt.pop %v211
  %v228 = vrsqrt.pop %v212
  %v229 = vrsqrt.pop %v213
  %v230 = vrsqrt.pop %v214
  %v231 = vmul.f32 %v103, %v215
  %v232 = vmul.f32 %v104, %v216
  %v233 = vmul.f32 %v105, %v217
  %v234 = vmul.f32 %v106, %v218
  %v235 = vmul.f32 %v107, %v219
  %v236 = vmul.f32 %v108, %v220
  %v237 = vmul.f32 %v109, %v221
  %v238 = vmul.f32 %v110, %v222
  %v239 = vmul.f32 %v111, %v223
  %v240 = vmul.f32 %v112, %v224
  %v241 = vmul.f32 %v113, %v225
  %v242 = vmul.f32 %v114, %v226
  %v243 = vmul.f32 %v115, %v227
  %v244 = vmul.f32 %v116, %v228
  %v245 = vmul.f32 %v117, %v229
  %v246 = vmul.f32 %v118, %v230
  %v247 = vld [vmem:[%s1] sm:$0x1]
  %v249 = vlaneseq
  %v250 = vshrl.u32 %v249, 7
  %v251 = vsub.s32 0, %v250
  %v252 = vrot.slane %v247, %v251
  %v254 = vmul.f32 %v231, %v252
  %v255 = vmul.f32 %v232, %v252
  %v256 = vmul.f32 %v233, %v252
  %v257 = vmul.f32 %v234, %v252
  %v258 = vmul.f32 %v235, %v252
  %v259 = vmul.f32 %v236, %v252
  %v260 = vmul.f32 %v237, %v252
  %v261 = vmul.f32 %v238, %v252
  %v262 = vmul.f32 %v239, %v252
  %v263 = vmul.f32 %v240, %v252
  %v264 = vmul.f32 %v241, %v252
  %v265 = vmul.f32 %v242, %v252
  %v266 = vmul.f32 %v243, %v252
  %v267 = vmul.f32 %v244, %v252
  %v268 = vmul.f32 %v245, %v252
  %v269 = vmul.f32 %v246, %v252
  %v270 = vld [vmem:[%s2] sm:$0x1]
  %v272 = vlaneseq
  %v273 = vshrl.u32 %v272, 7
  %v274 = vsub.s32 0, %v273
  %v275 = vrot.slane %v270, %v274
  %v277 = vadd.f32 %v254, %v275
  %v278 = vadd.f32 %v255, %v275
  %v279 = vadd.f32 %v256, %v275
  %v280 = vadd.f32 %v257, %v275
  %v281 = vadd.f32 %v258, %v275
  %v282 = vadd.f32 %v259, %v275
  %v283 = vadd.f32 %v260, %v275
  %v284 = vadd.f32 %v261, %v275
  %v285 = vadd.f32 %v262, %v275
  %v286 = vadd.f32 %v263, %v275
  %v287 = vadd.f32 %v264, %v275
  %v288 = vadd.f32 %v265, %v275
  %v289 = vadd.f32 %v266, %v275
  %v290 = vadd.f32 %v267, %v275
  %v291 = vadd.f32 %v268, %v275
  %v292 = vadd.f32 %v269, %v275
  %v293 = vpack.c.bf16 %v278, %v277
  %v294 = vpack.c.bf16 %v280, %v279
  %v295 = vpack.c.bf16 %v282, %v281
  %v296 = vpack.c.bf16 %v284, %v283
  %v297 = vpack.c.bf16 %v286, %v285
  %v298 = vpack.c.bf16 %v288, %v287
  %v299 = vpack.c.bf16 %v290, %v289
  %v300 = vpack.c.bf16 %v292, %v291
  %v301 = vld [vmem:[%s3] sm:$0xf]
  %v302 = vld [vmem:[%s3 + $0x4] sm:$0xf]
  %v303 = vld [vmem:[%s3 + $0x8] sm:$0xf]
  %v304 = vld [vmem:[%s3 + $0xc] sm:$0xf]
  %v305 = vld [vmem:[%s4] sm:$0x1]
  %v307 = vlaneseq
  %v308 = vshrl.u32 %v307, 7
  %v309 = vsub.s32 0, %v308
  %v310 = vrot.slane %v305, %v309
  %v316 = vunpack.c.l.b16 %v301
  %v317 = vunpack.c.l.b16 %v302
  %v318 = vunpack.c.l.b16 %v303
  %v319 = vunpack.c.l.b16 %v304
  %v320 = vpack.c.b16 %v317, %v316
  %v321 = vpack.c.b16 %v319, %v318
  %v325 = vsel %vm37, %v293, 0
  %v328 = vsel %vm37, %v294, 0
  %v331 = vsel %vm37, %v295, 0
  %v334 = vsel %vm37, %v296, 0
  %v337 = vsel %vm37, %v297, 0
  %v340 = vsel %vm37, %v298, 0
  %v343 = vsel %vm37, %v299, 0
  %v346 = vsel %vm37, %v300, 0
  %348 = vmatprep.subr.bf16.mxu0 0
  %349 = vmatpush1.bf16.msra.mxu0 %v320
  %350 = vmatprep.subr.bf16.mxu0 0
  %351 = vmatpush1.bf16.msra.mxu0 %v321
  %352 = vmatprep.subr.bf16.mxu0 0
  %353 = vmatpush1.bf16.msra.mxu0 0
  %354 = vmatprep.subr.bf16.mxu0 0
  %355 = vmatpush1.bf16.msra.mxu0 0
  %356 = vmatprep.subr.bf16.mxu0 0
  %357 = vmatpush1.bf16.msra.mxu0 0
  %358 = vmatprep.subr.bf16.mxu0 0
  %359 = vmatpush1.bf16.msra.mxu0 0
  %360 = vmatprep.subr.bf16.mxu0 0
  %361 = vmatpush1.bf16.msra.mxu0 0
  %362 = vmatprep.subr.bf16.mxu0 0
  %363 = vmatpush1.bf16.msra.mxu0 0
  %364 = vmatprep.subr.bf16.mxu0 0
  %365 = vmatpush1.bf16.msra.mxu0 0
  %366 = vmatprep.subr.bf16.mxu0 0
  %367 = vmatpush1.bf16.msra.mxu0 0
  %368 = vmatprep.subr.bf16.mxu0 0
  %369 = vmatpush1.bf16.msra.mxu0 0
  %370 = vmatprep.subr.bf16.mxu0 0
  %371 = vmatpush1.bf16.msra.mxu0 0
  %372 = vmatprep.subr.bf16.mxu0 0
  %373 = vmatpush1.bf16.msra.mxu0 0
  %374 = vmatprep.subr.bf16.mxu0 0
  %375 = vmatpush1.bf16.msra.mxu0 0
  %376 = vmatprep.subr.bf16.mxu0 0
  %377 = vmatpush1.bf16.msra.mxu0 0
  %378 = vmatprep.subr.bf16.mxu0 0
  %379 = vmatpush1.bf16.msra.mxu0 0
  %380 = vmatprep.mubr.bf16.mxu0 0
  %381 = vmatmul.mubr.bf16.gmra.mrb[0].mxu0 %v325
  %v382 = vpop.f32.mrb[0].mxu0
  %v383 = vadd.f32 %v310, %v382
  %v384 = vpop.f32.mrb[0].mxu0
  %v385 = vpop.f32.mrb[0].mxu0
  %v386 = vadd.f32 %v310, %v385
  %v387 = vpop.f32.mrb[0].mxu0
  %388 = vmatprep.mubr.bf16.mxu0 0
  %389 = vmatmul.mubr.bf16.gmra.mrb[0].mxu0 %v328
  %v390 = vpop.f32.mrb[0].mxu0
  %v391 = vadd.f32 %v310, %v390
  %v392 = vpop.f32.mrb[0].mxu0
  %v393 = vpop.f32.mrb[0].mxu0
  %v394 = vadd.f32 %v310, %v393
  %v395 = vpop.f32.mrb[0].mxu0
  %396 = vmatprep.mubr.bf16.mxu0 0
  %397 = vmatmul.mubr.bf16.gmra.mrb[0].mxu0 %v331
  %v398 = vpop.f32.mrb[0].mxu0
  %v399 = vadd.f32 %v310, %v398
  %v400 = vpop.f32.mrb[0].mxu0
  %v401 = vpop.f32.mrb[0].mxu0
  %v402 = vadd.f32 %v310, %v401
  %v403 = vpop.f32.mrb[0].mxu0
  %404 = vmatprep.mubr.bf16.mxu0 0
  %405 = vmatmul.mubr.bf16.gmra.mrb[0].mxu0 %v334
  %v406 = vpop.f32.mrb[0].mxu0
  %v407 = vadd.f32 %v310, %v406
  %v408 = vpop.f32.mrb[0].mxu0
  %v409 = vpop.f32.mrb[0].mxu0
  %v410 = vadd.f32 %v310, %v409
  %v411 = vpop.f32.mrb[0].mxu0
  %412 = vmatprep.mubr.bf16.mxu0 0
  %413 = vmatmul.mubr.bf16.gmra.mrb[0].mxu0 %v337
  %v414 = vpop.f32.mrb[0].mxu0
  %v415 = vadd.f32 %v310, %v414
  %v416 = vpop.f32.mrb[0].mxu0
  %v417 = vpop.f32.mrb[0].mxu0
  %v418 = vadd.f32 %v310, %v417
  %v419 = vpop.f32.mrb[0].mxu0
  %420 = vmatprep.mubr.bf16.mxu0 0
  %421 = vmatmul.mubr.bf16.gmra.mrb[0].mxu0 %v340
  %v422 = vpop.f32.mrb[0].mxu0
  %v423 = vadd.f32 %v310, %v422
  %v424 = vpop.f32.mrb[0].mxu0
  %v425 = vpop.f32.mrb[0].mxu0
  %v426 = vadd.f32 %v310, %v425
  %v427 = vpop.f32.mrb[0].mxu0
  %428 = vmatprep.mubr.bf16.mxu0 0
  %429 = vmatmul.mubr.bf16.gmra.mrb[0].mxu0 %v343
  %v430 = vpop.f32.mrb[0].mxu0
  %v431 = vadd.f32 %v310, %v430
  %v432 = vpop.f32.mrb[0].mxu0
  %v433 = vpop.f32.mrb[0].mxu0
  %v434 = vadd.f32 %v310, %v433
  %v435 = vpop.f32.mrb[0].mxu0
  %436 = vmatprep.mubr.bf16.mxu0 0
  %437 = vmatmul.mubr.bf16.gmra.mrb[0].mxu0 %v346
  %v438 = vpop.f32.mrb[0].mxu0
  %v439 = vadd.f32 %v310, %v438
  %v440 = vpop.f32.mrb[0].mxu0
  %v441 = vpop.f32.mrb[0].mxu0
  %v442 = vadd.f32 %v310, %v441
  %v443 = vpop.f32.mrb[0].mxu0
  %444 = vdwg.mxu0
  %v445 = vmul.f32 %v383, 0.5
  %v446 = vmul.f32 %v386, 0.5
  %v447 = vmul.f32 %v391, 0.5
  %v448 = vmul.f32 %v394, 0.5
  %v449 = vmul.f32 %v399, 0.5
  %v450 = vmul.f32 %v402, 0.5
  %v451 = vmul.f32 %v407, 0.5
  %v452 = vmul.f32 %v410, 0.5
  %v453 = vmul.f32 %v415, 0.5
  %v454 = vmul.f32 %v418, 0.5
  %v455 = vmul.f32 %v423, 0.5
  %v456 = vmul.f32 %v426, 0.5
  %v457 = vmul.f32 %v431, 0.5
  %v458 = vmul.f32 %v434, 0.5
  %v459 = vmul.f32 %v439, 0.5
  %v460 = vmul.f32 %v442, 0.5
  %v461 = vmul.f32 %v383, 0.70710677
  %v462 = vmul.f32 %v386, 0.70710677
  %v463 = vmul.f32 %v391, 0.70710677
  %v464 = vmul.f32 %v394, 0.70710677
  %v465 = vmul.f32 %v399, 0.70710677
  %v466 = vmul.f32 %v402, 0.70710677
  %v467 = vmul.f32 %v407, 0.70710677
  %v468 = vmul.f32 %v410, 0.70710677
  %v469 = vmul.f32 %v415, 0.70710677
  %v470 = vmul.f32 %v418, 0.70710677
  %v471 = vmul.f32 %v423, 0.70710677
  %v472 = vmul.f32 %v426, 0.70710677
  %v473 = vmul.f32 %v431, 0.70710677
  %v474 = vmul.f32 %v434, 0.70710677
  %v475 = vmul.f32 %v439, 0.70710677
  %v476 = vmul.f32 %v442, 0.70710677
  %vm477 = vcmp.lt.f32.partialorder %v461, 0.0
  %vm478 = vcmp.lt.f32.partialorder %v462, 0.0
  %vm479 = vcmp.lt.f32.partialorder %v463, 0.0
  %vm480 = vcmp.lt.f32.partialorder %v464, 0.0
  %vm481 = vcmp.lt.f32.partialorder %v465, 0.0
  %vm482 = vcmp.lt.f32.partialorder %v466, 0.0
  %vm483 = vcmp.lt.f32.partialorder %v467, 0.0
  %vm484 = vcmp.lt.f32.partialorder %v468, 0.0
  %vm485 = vcmp.lt.f32.partialorder %v469, 0.0
  %vm486 = vcmp.lt.f32.partialorder %v470, 0.0
  %vm487 = vcmp.lt.f32.partialorder %v471, 0.0
  %vm488 = vcmp.lt.f32.partialorder %v472, 0.0
  %vm489 = vcmp.lt.f32.partialorder %v473, 0.0
  %vm490 = vcmp.lt.f32.partialorder %v474, 0.0
  %vm491 = vcmp.lt.f32.partialorder %v475, 0.0
  %vm492 = vcmp.lt.f32.partialorder %v476, 0.0
  %v493 = vsel %vm477, -1.0, 1.0
  %v494 = vsel %vm478, -1.0, 1.0
  %v495 = vsel %vm479, -1.0, 1.0
  %v496 = vsel %vm480, -1.0, 1.0
  %v497 = vsel %vm481, -1.0, 1.0
  %v498 = vsel %vm482, -1.0, 1.0
  %v499 = vsel %vm483, -1.0, 1.0
  %v500 = vsel %vm484, -1.0, 1.0
  %v501 = vsel %vm485, -1.0, 1.0
  %v502 = vsel %vm486, -1.0, 1.0
  %v503 = vsel %vm487, -1.0, 1.0
  %v504 = vsel %vm488, -1.0, 1.0
  %v505 = vsel %vm489, -1.0, 1.0
  %v506 = vsel %vm490, -1.0, 1.0
  %v507 = vsel %vm491, -1.0, 1.0
  %v508 = vsel %vm492, -1.0, 1.0
  %v509 = vand.u32 2147483647, %v461
  %v510 = vand.u32 2147483647, %v462
  %v511 = vand.u32 2147483647, %v463
  %v512 = vand.u32 2147483647, %v464
  %v513 = vand.u32 2147483647, %v465
  %v514 = vand.u32 2147483647, %v466
  %v515 = vand.u32 2147483647, %v467
  %v516 = vand.u32 2147483647, %v468
  %v517 = vand.u32 2147483647, %v469
  %v518 = vand.u32 2147483647, %v470
  %v519 = vand.u32 2147483647, %v471
  %v520 = vand.u32 2147483647, %v472
  %v521 = vand.u32 2147483647, %v473
  %v522 = vand.u32 2147483647, %v474
  %v523 = vand.u32 2147483647, %v475
  %v524 = vand.u32 2147483647, %v476
  %v525 = vmul.f32 %v509, 0.3275911
  %v526 = vmul.f32 %v510, 0.3275911
  %v527 = vmul.f32 %v511, 0.3275911
  %v528 = vmul.f32 %v512, 0.3275911
  %v529 = vmul.f32 %v513, 0.3275911
  %v530 = vmul.f32 %v514, 0.3275911
  %v531 = vmul.f32 %v515, 0.3275911
  %v532 = vmul.f32 %v516, 0.3275911
  %v533 = vmul.f32 %v517, 0.3275911
  %v534 = vmul.f32 %v518, 0.3275911
  %v535 = vmul.f32 %v519, 0.3275911
  %v536 = vmul.f32 %v520, 0.3275911
  %v537 = vmul.f32 %v521, 0.3275911
  %v538 = vmul.f32 %v522, 0.3275911
  %v539 = vmul.f32 %v523, 0.3275911
  %v540 = vmul.f32 %v524, 0.3275911
  %v541 = vadd.f32 %v525, 1.0
  %v542 = vadd.f32 %v526, 1.0
  %v543 = vadd.f32 %v527, 1.0
  %v544 = vadd.f32 %v528, 1.0
  %v545 = vadd.f32 %v529, 1.0
  %v546 = vadd.f32 %v530, 1.0
  %v547 = vadd.f32 %v531, 1.0
  %v548 = vadd.f32 %v532, 1.0
  %v549 = vadd.f32 %v533, 1.0
  %v550 = vadd.f32 %v534, 1.0
  %v551 = vadd.f32 %v535, 1.0
  %v552 = vadd.f32 %v536, 1.0
  %v553 = vadd.f32 %v537, 1.0
  %v554 = vadd.f32 %v538, 1.0
  %v555 = vadd.f32 %v539, 1.0
  %v556 = vadd.f32 %v540, 1.0
  %v557 = vrcp.pop %v541
  %v558 = vmul.f32 1.0, %v557
  %v559 = vrcp.pop %v542
  %v560 = vmul.f32 1.0, %v559
  %v561 = vrcp.pop %v543
  %v562 = vmul.f32 1.0, %v561
  %v563 = vrcp.pop %v544
  %v564 = vmul.f32 1.0, %v563
  %v565 = vrcp.pop %v545
  %v566 = vmul.f32 1.0, %v565
  %v567 = vrcp.pop %v546
  %v568 = vmul.f32 1.0, %v567
  %v569 = vrcp.pop %v547
  %v570 = vmul.f32 1.0, %v569
  %v571 = vrcp.pop %v548
  %v572 = vmul.f32 1.0, %v571
  %v573 = vrcp.pop %v549
  %v574 = vmul.f32 1.0, %v573
  %v575 = vrcp.pop %v550
  %v576 = vmul.f32 1.0, %v575
  %v577 = vrcp.pop %v551
  %v578 = vmul.f32 1.0, %v577
  %v579 = vrcp.pop %v552
  %v580 = vmul.f32 1.0, %v579
  %v581 = vrcp.pop %v553
  %v582 = vmul.f32 1.0, %v581
  %v583 = vrcp.pop %v554
  %v584 = vmul.f32 1.0, %v583
  %v585 = vrcp.pop %v555
  %v586 = vmul.f32 1.0, %v585
  %v587 = vrcp.pop %v556
  %v588 = vmul.f32 1.0, %v587
  %v589 = vmul.f32 %v558, 1.0614054
  %v590 = vmul.f32 %v560, 1.0614054
  %v591 = vmul.f32 %v562, 1.0614054
  %v592 = vmul.f32 %v564, 1.0614054
  %v593 = vmul.f32 %v566, 1.0614054
  %v594 = vmul.f32 %v568, 1.0614054
  %v595 = vmul.f32 %v570, 1.0614054
  %v596 = vmul.f32 %v572, 1.0614054
  %v597 = vmul.f32 %v574, 1.0614054
  %v598 = vmul.f32 %v576, 1.0614054
  %v599 = vmul.f32 %v578, 1.0614054
  %v600 = vmul.f32 %v580, 1.0614054
  %v601 = vmul.f32 %v582, 1.0614054
  %v602 = vmul.f32 %v584, 1.0614054
  %v603 = vmul.f32 %v586, 1.0614054
  %v604 = vmul.f32 %v588, 1.0614054
  %v605 = vadd.f32 %v589, -1.4531521
  %v606 = vadd.f32 %v590, -1.4531521
  %v607 = vadd.f32 %v591, -1.4531521
  %v608 = vadd.f32 %v592, -1.4531521
  %v609 = vadd.f32 %v593, -1.4531521
  %v610 = vadd.f32 %v594, -1.4531521
  %v611 = vadd.f32 %v595, -1.4531521
  %v612 = vadd.f32 %v596, -1.4531521
  %v613 = vadd.f32 %v597, -1.4531521
  %v614 = vadd.f32 %v598, -1.4531521
  %v615 = vadd.f32 %v599, -1.4531521
  %v616 = vadd.f32 %v600, -1.4531521
  %v617 = vadd.f32 %v601, -1.4531521
  %v618 = vadd.f32 %v602, -1.4531521
  %v619 = vadd.f32 %v603, -1.4531521
  %v620 = vadd.f32 %v604, -1.4531521
  %v621 = vmul.f32 %v605, %v558
  %v622 = vmul.f32 %v606, %v560
  %v623 = vmul.f32 %v607, %v562
  %v624 = vmul.f32 %v608, %v564
  %v625 = vmul.f32 %v609, %v566
  %v626 = vmul.f32 %v610, %v568
  %v627 = vmul.f32 %v611, %v570
  %v628 = vmul.f32 %v612, %v572
  %v629 = vmul.f32 %v613, %v574
  %v630 = vmul.f32 %v614, %v576
  %v631 = vmul.f32 %v615, %v578
  %v632 = vmul.f32 %v616, %v580
  %v633 = vmul.f32 %v617, %v582
  %v634 = vmul.f32 %v618, %v584
  %v635 = vmul.f32 %v619, %v586
  %v636 = vmul.f32 %v620, %v588
  %v637 = vadd.f32 %v621, 1.4214138
  %v638 = vadd.f32 %v622, 1.4214138
  %v639 = vadd.f32 %v623, 1.4214138
  %v640 = vadd.f32 %v624, 1.4214138
  %v641 = vadd.f32 %v625, 1.4214138
  %v642 = vadd.f32 %v626, 1.4214138
  %v643 = vadd.f32 %v627, 1.4214138
  %v644 = vadd.f32 %v628, 1.4214138
  %v645 = vadd.f32 %v629, 1.4214138
  %v646 = vadd.f32 %v630, 1.4214138
  %v647 = vadd.f32 %v631, 1.4214138
  %v648 = vadd.f32 %v632, 1.4214138
  %v649 = vadd.f32 %v633, 1.4214138
  %v650 = vadd.f32 %v634, 1.4214138
  %v651 = vadd.f32 %v635, 1.4214138
  %v652 = vadd.f32 %v636, 1.4214138
  %v653 = vmul.f32 %v637, %v558
  %v654 = vmul.f32 %v638, %v560
  %v655 = vmul.f32 %v639, %v562
  %v656 = vmul.f32 %v640, %v564
  %v657 = vmul.f32 %v641, %v566
  %v658 = vmul.f32 %v642, %v568
  %v659 = vmul.f32 %v643, %v570
  %v660 = vmul.f32 %v644, %v572
  %v661 = vmul.f32 %v645, %v574
  %v662 = vmul.f32 %v646, %v576
  %v663 = vmul.f32 %v647, %v578
  %v664 = vmul.f32 %v648, %v580
  %v665 = vmul.f32 %v649, %v582
  %v666 = vmul.f32 %v650, %v584
  %v667 = vmul.f32 %v651, %v586
  %v668 = vmul.f32 %v652, %v588
  %v669 = vadd.f32 %v653, -0.28449672
  %v670 = vadd.f32 %v654, -0.28449672
  %v671 = vadd.f32 %v655, -0.28449672
  %v672 = vadd.f32 %v656, -0.28449672
  %v673 = vadd.f32 %v657, -0.28449672
  %v674 = vadd.f32 %v658, -0.28449672
  %v675 = vadd.f32 %v659, -0.28449672
  %v676 = vadd.f32 %v660, -0.28449672
  %v677 = vadd.f32 %v661, -0.28449672
  %v678 = vadd.f32 %v662, -0.28449672
  %v679 = vadd.f32 %v663, -0.28449672
  %v680 = vadd.f32 %v664, -0.28449672
  %v681 = vadd.f32 %v665, -0.28449672
  %v682 = vadd.f32 %v666, -0.28449672
  %v683 = vadd.f32 %v667, -0.28449672
  %v684 = vadd.f32 %v668, -0.28449672
  %v685 = vmul.f32 %v669, %v558
  %v686 = vmul.f32 %v670, %v560
  %v687 = vmul.f32 %v671, %v562
  %v688 = vmul.f32 %v672, %v564
  %v689 = vmul.f32 %v673, %v566
  %v690 = vmul.f32 %v674, %v568
  %v691 = vmul.f32 %v675, %v570
  %v692 = vmul.f32 %v676, %v572
  %v693 = vmul.f32 %v677, %v574
  %v694 = vmul.f32 %v678, %v576
  %v695 = vmul.f32 %v679, %v578
  %v696 = vmul.f32 %v680, %v580
  %v697 = vmul.f32 %v681, %v582
  %v698 = vmul.f32 %v682, %v584
  %v699 = vmul.f32 %v683, %v586
  %v700 = vmul.f32 %v684, %v588
  %v701 = vadd.f32 %v685, 0.2548296
  %v702 = vadd.f32 %v686, 0.2548296
  %v703 = vadd.f32 %v687, 0.2548296
  %v704 = vadd.f32 %v688, 0.2548296
  %v705 = vadd.f32 %v689, 0.2548296
  %v706 = vadd.f32 %v690, 0.2548296
  %v707 = vadd.f32 %v691, 0.2548296
  %v708 = vadd.f32 %v692, 0.2548296
  %v709 = vadd.f32 %v693, 0.2548296
  %v710 = vadd.f32 %v694, 0.2548296
  %v711 = vadd.f32 %v695, 0.2548296
  %v712 = vadd.f32 %v696, 0.2548296
  %v713 = vadd.f32 %v697, 0.2548296
  %v714 = vadd.f32 %v698, 0.2548296
  %v715 = vadd.f32 %v699, 0.2548296
  %v716 = vadd.f32 %v700, 0.2548296
  %v717 = vmul.f32 %v701, %v558
  %v718 = vmul.f32 %v702, %v560
  %v719 = vmul.f32 %v703, %v562
  %v720 = vmul.f32 %v704, %v564
  %v721 = vmul.f32 %v705, %v566
  %v722 = vmul.f32 %v706, %v568
  %v723 = vmul.f32 %v707, %v570
  %v724 = vmul.f32 %v708, %v572
  %v725 = vmul.f32 %v709, %v574
  %v726 = vmul.f32 %v710, %v576
  %v727 = vmul.f32 %v711, %v578
  %v728 = vmul.f32 %v712, %v580
  %v729 = vmul.f32 %v713, %v582
  %v730 = vmul.f32 %v714, %v584
  %v731 = vmul.f32 %v715, %v586
  %v732 = vmul.f32 %v716, %v588
  %v733 = vsub.f32 0.0, %v509
  %v734 = vsub.f32 0.0, %v510
  %v735 = vsub.f32 0.0, %v511
  %v736 = vsub.f32 0.0, %v512
  %v737 = vsub.f32 0.0, %v513
  %v738 = vsub.f32 0.0, %v514
  %v739 = vsub.f32 0.0, %v515
  %v740 = vsub.f32 0.0, %v516
  %v741 = vsub.f32 0.0, %v517
  %v742 = vsub.f32 0.0, %v518
  %v743 = vsub.f32 0.0, %v519
  %v744 = vsub.f32 0.0, %v520
  %v745 = vsub.f32 0.0, %v521
  %v746 = vsub.f32 0.0, %v522
  %v747 = vsub.f32 0.0, %v523
  %v748 = vsub.f32 0.0, %v524
  %v749 = vmul.f32 %v733, %v509
  %v750 = vmul.f32 %v734, %v510
  %v751 = vmul.f32 %v735, %v511
  %v752 = vmul.f32 %v736, %v512
  %v753 = vmul.f32 %v737, %v513
  %v754 = vmul.f32 %v738, %v514
  %v755 = vmul.f32 %v739, %v515
  %v756 = vmul.f32 %v740, %v516
  %v757 = vmul.f32 %v741, %v517
  %v758 = vmul.f32 %v742, %v518
  %v759 = vmul.f32 %v743, %v519
  %v760 = vmul.f32 %v744, %v520
  %v761 = vmul.f32 %v745, %v521
  %v762 = vmul.f32 %v746, %v522
  %v763 = vmul.f32 %v747, %v523
  %v764 = vmul.f32 %v748, %v524
  %v765 = vmul.f32 %v749, 1.442695
  %v766 = vpow.pop %v765
  %v767 = vmul.f32 %v750, 1.442695
  %v768 = vpow.pop %v767
  %v769 = vmul.f32 %v751, 1.442695
  %v770 = vpow.pop %v769
  %v771 = vmul.f32 %v752, 1.442695
  %v772 = vpow.pop %v771
  %v773 = vmul.f32 %v753, 1.442695
  %v774 = vpow.pop %v773
  %v775 = vmul.f32 %v754, 1.442695
  %v776 = vpow.pop %v775
  %v777 = vmul.f32 %v755, 1.442695
  %v778 = vpow.pop %v777
  %v779 = vmul.f32 %v756, 1.442695
  %v780 = vpow.pop %v779
  %v781 = vmul.f32 %v757, 1.442695
  %v782 = vpow.pop %v781
  %v783 = vmul.f32 %v758, 1.442695
  %v784 = vpow.pop %v783
  %v785 = vmul.f32 %v759, 1.442695
  %v786 = vpow.pop %v785
  %v787 = vmul.f32 %v760, 1.442695
  %v788 = vpow.pop %v787
  %v789 = vmul.f32 %v761, 1.442695
  %v790 = vpow.pop %v789
  %v791 = vmul.f32 %v762, 1.442695
  %v792 = vpow.pop %v791
  %v793 = vmul.f32 %v763, 1.442695
  %v794 = vpow.pop %v793
  %v795 = vmul.f32 %v764, 1.442695
  %v796 = vpow.pop %v795
  %v797 = vmul.f32 %v717, %v766
  %v798 = vmul.f32 %v718, %v768
  %v799 = vmul.f32 %v719, %v770
  %v800 = vmul.f32 %v720, %v772
  %v801 = vmul.f32 %v721, %v774
  %v802 = vmul.f32 %v722, %v776
  %v803 = vmul.f32 %v723, %v778
  %v804 = vmul.f32 %v724, %v780
  %v805 = vmul.f32 %v725, %v782
  %v806 = vmul.f32 %v726, %v784
  %v807 = vmul.f32 %v727, %v786
  %v808 = vmul.f32 %v728, %v788
  %v809 = vmul.f32 %v729, %v790
  %v810 = vmul.f32 %v730, %v792
  %v811 = vmul.f32 %v731, %v794
  %v812 = vmul.f32 %v732, %v796
  %v813 = vsub.f32 1.0, %v797
  %v814 = vsub.f32 1.0, %v798
  %v815 = vsub.f32 1.0, %v799
  %v816 = vsub.f32 1.0, %v800
  %v817 = vsub.f32 1.0, %v801
  %v818 = vsub.f32 1.0, %v802
  %v819 = vsub.f32 1.0, %v803
  %v820 = vsub.f32 1.0, %v804
  %v821 = vsub.f32 1.0, %v805
  %v822 = vsub.f32 1.0, %v806
  %v823 = vsub.f32 1.0, %v807
  %v824 = vsub.f32 1.0, %v808
  %v825 = vsub.f32 1.0, %v809
  %v826 = vsub.f32 1.0, %v810
  %v827 = vsub.f32 1.0, %v811
  %v828 = vsub.f32 1.0, %v812
  %v829 = vmul.f32 %v493, %v813
  %v830 = vmul.f32 %v494, %v814
  %v831 = vmul.f32 %v495, %v815
  %v832 = vmul.f32 %v496, %v816
  %v833 = vmul.f32 %v497, %v817
  %v834 = vmul.f32 %v498, %v818
  %v835 = vmul.f32 %v499, %v819
  %v836 = vmul.f32 %v500, %v820
  %v837 = vmul.f32 %v501, %v821
  %v838 = vmul.f32 %v502, %v822
  %v839 = vmul.f32 %v503, %v823
  %v840 = vmul.f32 %v504, %v824
  %v841 = vmul.f32 %v505, %v825
  %v842 = vmul.f32 %v506, %v826
  %v843 = vmul.f32 %v507, %v827
  %v844 = vmul.f32 %v508, %v828
  %v845 = vadd.f32 %v829, 1.0
  %v846 = vadd.f32 %v830, 1.0
  %v847 = vadd.f32 %v831, 1.0
  %v848 = vadd.f32 %v832, 1.0
  %v849 = vadd.f32 %v833, 1.0
  %v850 = vadd.f32 %v834, 1.0
  %v851 = vadd.f32 %v835, 1.0
  %v852 = vadd.f32 %v836, 1.0
  %v853 = vadd.f32 %v837, 1.0
  %v854 = vadd.f32 %v838, 1.0
  %v855 = vadd.f32 %v839, 1.0
  %v856 = vadd.f32 %v840, 1.0
  %v857 = vadd.f32 %v841, 1.0
  %v858 = vadd.f32 %v842, 1.0
  %v859 = vadd.f32 %v843, 1.0
  %v860 = vadd.f32 %v844, 1.0
  %v861 = vmul.f32 %v445, %v845
  %v862 = vmul.f32 %v446, %v846
  %v863 = vmul.f32 %v447, %v847
  %v864 = vmul.f32 %v448, %v848
  %v865 = vmul.f32 %v449, %v849
  %v866 = vmul.f32 %v450, %v850
  %v867 = vmul.f32 %v451, %v851
  %v868 = vmul.f32 %v452, %v852
  %v869 = vmul.f32 %v453, %v853
  %v870 = vmul.f32 %v454, %v854
  %v871 = vmul.f32 %v455, %v855
  %v872 = vmul.f32 %v456, %v856
  %v873 = vmul.f32 %v457, %v857
  %v874 = vmul.f32 %v458, %v858
  %v875 = vmul.f32 %v459, %v859
  %v876 = vmul.f32 %v460, %v860
  %v877 = vpack.c.bf16 %v862, %v861
  %v878 = vpack.c.bf16 %v864, %v863
  %v879 = vpack.c.bf16 %v866, %v865
  %v880 = vpack.c.bf16 %v868, %v867
  %v881 = vpack.c.bf16 %v870, %v869
  %v882 = vpack.c.bf16 %v872, %v871
  %v883 = vpack.c.bf16 %v874, %v873
  %v884 = vpack.c.bf16 %v876, %v875
  %v893 = vunpack.c.l.b16 %v877
  %v894 = vunpack.c.h.b16 %v877
  %v895 = vunpack.c.l.b16 %v878
  %v896 = vunpack.c.h.b16 %v878
  %v897 = vunpack.c.l.b16 %v879
  %v898 = vunpack.c.h.b16 %v879
  %v899 = vunpack.c.l.b16 %v880
  %v900 = vunpack.c.h.b16 %v880
  %v901 = vunpack.c.l.b16 %v881
  %v902 = vunpack.c.h.b16 %v881
  %v903 = vunpack.c.l.b16 %v882
  %v904 = vunpack.c.h.b16 %v882
  %v905 = vunpack.c.l.b16 %v883
  %v906 = vunpack.c.h.b16 %v883
  %v907 = vunpack.c.l.b16 %v884
  %v908 = vunpack.c.h.b16 %v884
  %v909 = vpack.c.b16 %v893, %v893
  %v910 = vpack.c.b16 %v894, %v894
  %v911 = vpack.c.b16 %v895, %v895
  %v912 = vpack.c.b16 %v896, %v896
  %v913 = vpack.c.b16 %v897, %v897
  %v914 = vpack.c.b16 %v898, %v898
  %v915 = vpack.c.b16 %v899, %v899
  %v916 = vpack.c.b16 %v900, %v900
  %v917 = vpack.c.b16 %v901, %v901
  %v918 = vpack.c.b16 %v902, %v902
  %v919 = vpack.c.b16 %v903, %v903
  %v920 = vpack.c.b16 %v904, %v904
  %v921 = vpack.c.b16 %v905, %v905
  %v922 = vpack.c.b16 %v906, %v906
  %v923 = vpack.c.b16 %v907, %v907
  %v924 = vpack.c.b16 %v908, %v908
  %vm941 = vcmask 519168
  %942 = vst.msk [vmem:[%s5] sm:$0xf] %vm941, %v909
  %943 = vst.msk [vmem:[%s5 + $0x4] sm:$0xf] %vm941, %v910
  %944 = vst.msk [vmem:[%s5 + $0x8] sm:$0xf] %vm941, %v911
  %945 = vst.msk [vmem:[%s5 + $0xc] sm:$0xf] %vm941, %v912
  %946 = vst.msk [vmem:[%s5 + $0x10] sm:$0xf] %vm941, %v913
  %947 = vst.msk [vmem:[%s5 + $0x14] sm:$0xf] %vm941, %v914
  %948 = vst.msk [vmem:[%s5 + $0x18] sm:$0xf] %vm941, %v915
  %949 = vst.msk [vmem:[%s5 + $0x1c] sm:$0xf] %vm941, %v916
  %950 = vst.msk [vmem:[%s5 + $0x20] sm:$0xf] %vm941, %v917
  %951 = vst.msk [vmem:[%s5 + $0x24] sm:$0xf] %vm941, %v918
  %952 = vst.msk [vmem:[%s5 + $0x28] sm:$0xf] %vm941, %v919
  %953 = vst.msk [vmem:[%s5 + $0x2c] sm:$0xf] %vm941, %v920
  %954 = vst.msk [vmem:[%s5 + $0x30] sm:$0xf] %vm941, %v921
  %955 = vst.msk [vmem:[%s5 + $0x34] sm:$0xf] %vm941, %v922
  %956 = vst.msk [vmem:[%s5 + $0x38] sm:$0xf] %vm941, %v923
  %957 = vst.msk [vmem:[%s5 + $0x3c] sm:$0xf] %vm941, %v924
  // Predicated region
  $region22: #{_lambda_.22} parent=0 // pred_check
    _
  $region23: #{_lambda_.22} parent=0 // pred_check_branch
    %959 = sbr.rel (0) target = $region25
  $region24: #{_lambda_.22} parent=0 // pred_region
    _
  $region25: #{_lambda_.22} parent=0 // pred_fallthru
    _
  // Predicated region
  $region26: #{_lambda_.22} parent=0 // pred_check
    _
  $region27: #{_lambda_.22} parent=0 // pred_check_branch
    %961 = sbr.rel (0) target = $region29
  $region28: #{_lambda_.22} parent=0 // pred_region
    _
  $region29: #{_lambda_.22} parent=0 // pred_fallthru
    _

// kernel: _lambda_.24
$region0: #{_lambda_.24}
  #allocation0 [shape = 'u32[]', space=smem, size = 0x4, offset = 0x4, fixed_abs, tag = 'smem constant byte address 0x4 - core index']
  #allocation1 [shape = 'u32[144,128]{1,0:T(1,128)}', space=vmem, size = 0x12000, scoped, tag = 'internal scratch']
  %s0 = inlined_call_operand.vmem [shape: bf16[128,64], index: 0, kind: input, shape index: {}]
  %s1 = inlined_call_operand.vmem [shape: bf16[64,32], index: 1, kind: input, shape index: {}]
  %s2 = inlined_call_operand.vmem [shape: f32[1,32], index: 2, kind: input, shape index: {}]
  %s3 = inlined_call_operand.vmem [shape: f32[128,32], index: 3, kind: input, shape index: {}]
  %s4 = inlined_call_operand.vmem [shape: f32[128,32], index: 4, kind: output, shape index: {}]
  %s5 = sld [smem:[#allocation0]]
  $region26: #{_lambda_.24} parent=0
    _
  %s7 = ssub.s32 1, %s5
  %s8 = scalar_select 0, %s7, %s5
  // Predicated region
  $region2: #{_lambda_.24} parent=0 // pred_check
    _
  $region3: #{_lambda_.24} parent=0 // pred_check_branch
    %10 = sbr.rel (0) target = $region5
  $region4: #{_lambda_.24} parent=0 // pred_region
    _
  $region5: #{_lambda_.24} parent=0 // pred_fallthru
    _
  // Predicated region
  $region6: #{_lambda_.24} parent=0 // pred_check
    _
  $region7: #{_lambda_.24} parent=0 // pred_check_branch
    %12 = sbr.rel (0) target = $region9
  $region8: #{_lambda_.24} parent=0 // pred_region
    _
  $region9: #{_lambda_.24} parent=0 // pred_fallthru
    _
  // Predicated region
  $region10: #{_lambda_.24} parent=0 // pred_check
    _
  $region11: #{_lambda_.24} parent=0 // pred_check_branch
    %14 = sbr.rel (0) target = $region13
  $region12: #{_lambda_.24} parent=0 // pred_region
    _
  $region13: #{_lambda_.24} parent=0 // pred_fallthru
    _
  // Predicated region
  $region14: #{_lambda_.24} parent=0 // pred_check
    _
  $region15: #{_lambda_.24} parent=0 // pred_check_branch
    %16 = sbr.rel (0) target = $region17
  $region16: #{_lambda_.24} parent=0 // pred_region
    _
  $region17: #{_lambda_.24} parent=0 // pred_fallthru
    _
  %v18 = vld [vmem:[%s0] sm:$0xf]
  %v19 = vld [vmem:[%s0 + $0x4] sm:$0xf]
  %v20 = vld [vmem:[%s0 + $0x8] sm:$0xf]
  %v21 = vld [vmem:[%s0 + $0xc] sm:$0xf]
  %v22 = vld [vmem:[%s0 + $0x10] sm:$0xf]
  %v23 = vld [vmem:[%s0 + $0x14] sm:$0xf]
  %v24 = vld [vmem:[%s0 + $0x18] sm:$0xf]
  %v25 = vld [vmem:[%s0 + $0x1c] sm:$0xf]
  %v26 = vld [vmem:[%s0 + $0x20] sm:$0xf]
  %v27 = vld [vmem:[%s0 + $0x24] sm:$0xf]
  %v28 = vld [vmem:[%s0 + $0x28] sm:$0xf]
  %v29 = vld [vmem:[%s0 + $0x2c] sm:$0xf]
  %v30 = vld [vmem:[%s0 + $0x30] sm:$0xf]
  %v31 = vld [vmem:[%s0 + $0x34] sm:$0xf]
  %v32 = vld [vmem:[%s0 + $0x38] sm:$0xf]
  %v33 = vld [vmem:[%s0 + $0x3c] sm:$0xf]
  %v34 = vld [vmem:[%s1] sm:$0xf]
  %v35 = vld [vmem:[%s1 + $0x4] sm:$0xf]
  %v36 = vld [vmem:[%s1 + $0x8] sm:$0xf]
  %v37 = vld [vmem:[%s1 + $0xc] sm:$0xf]
  %v38 = vld [vmem:[%s1 + $0x10] sm:$0xf]
  %v39 = vld [vmem:[%s1 + $0x14] sm:$0xf]
  %v40 = vld [vmem:[%s1 + $0x18] sm:$0xf]
  %v41 = vld [vmem:[%s1 + $0x1c] sm:$0xf]
  %v42 = vld [vmem:[%s2] sm:$0x1]
  %v44 = vlaneseq
  %v45 = vshrl.u32 %v44, 7
  %v46 = vsub.s32 0, %v45
  %v47 = vrot.slane %v42, %v46
  %v65 = vunpack.c.l.b16 %v18
  %v66 = vunpack.c.l.b16 %v19
  %v67 = vunpack.c.l.b16 %v20
  %v68 = vunpack.c.l.b16 %v21
  %v69 = vunpack.c.l.b16 %v22
  %v70 = vunpack.c.l.b16 %v23
  %v71 = vunpack.c.l.b16 %v24
  %v72 = vunpack.c.l.b16 %v25
  %v73 = vunpack.c.l.b16 %v26
  %v74 = vunpack.c.l.b16 %v27
  %v75 = vunpack.c.l.b16 %v28
  %v76 = vunpack.c.l.b16 %v29
  %v77 = vunpack.c.l.b16 %v30
  %v78 = vunpack.c.l.b16 %v31
  %v79 = vunpack.c.l.b16 %v32
  %v80 = vunpack.c.l.b16 %v33
  %v81 = vpack.c.b16 %v66, %v65
  %v82 = vpack.c.b16 %v68, %v67
  %v83 = vpack.c.b16 %v70, %v69
  %v84 = vpack.c.b16 %v72, %v71
  %v85 = vpack.c.b16 %v74, %v73
  %v86 = vpack.c.b16 %v76, %v75
  %v87 = vpack.c.b16 %v78, %v77
  %v88 = vpack.c.b16 %v80, %v79
  %v97 = vunpack.c.l.b16 %v34
  %v98 = vunpack.c.l.b16 %v35
  %v99 = vunpack.c.l.b16 %v36
  %v100 = vunpack.c.l.b16 %v37
  %v101 = vunpack.c.l.b16 %v38
  %v102 = vunpack.c.l.b16 %v39
  %v103 = vunpack.c.l.b16 %v40
  %v104 = vunpack.c.l.b16 %v41
  %v105 = vpack.c.b16 %v98, %v97
  %v106 = vpack.c.b16 %v100, %v99
  %v107 = vpack.c.b16 %v102, %v101
  %v108 = vpack.c.b16 %v104, %v103
  %vm113 = vcmask 523264
  %v115 = vsel %vm113, %v81, 0
  %v118 = vsel %vm113, %v82, 0
  %v121 = vsel %vm113, %v83, 0
  %v124 = vsel %vm113, %v84, 0
  %v127 = vsel %vm113, %v85, 0
  %v130 = vsel %vm113, %v86, 0
  %v133 = vsel %vm113, %v87, 0
  %v136 = vsel %vm113, %v88, 0
  %138 = vmatprep.subr.bf16.mxu0 0
  %139 = vmatpush1.bf16.msra.mxu0 %v105
  %140 = vmatprep.subr.bf16.mxu0 0
  %141 = vmatpush1.bf16.msra.mxu0 %v106
  %142 = vmatprep.subr.bf16.mxu0 0
  %143 = vmatpush1.bf16.msra.mxu0 %v107
  %144 = vmatprep.subr.bf16.mxu0 0
  %145 = vmatpush1.bf16.msra.mxu0 %v108
  %146 = vmatprep.subr.bf16.mxu0 0
  %147 = vmatpush1.bf16.msra.mxu0 0
  %148 = vmatprep.subr.bf16.mxu0 0
  %149 = vmatpush1.bf16.msra.mxu0 0
  %150 = vmatprep.subr.bf16.mxu0 0
  %151 = vmatpush1.bf16.msra.mxu0 0
  %152 = vmatprep.subr.bf16.mxu0 0
  %153 = vmatpush1.bf16.msra.mxu0 0
  %154 = vmatprep.subr.bf16.mxu0 0
  %155 = vmatpush1.bf16.msra.mxu0 0
  %156 = vmatprep.subr.bf16.mxu0 0
  %157 = vmatpush1.bf16.msra.mxu0 0
  %158 = vmatprep.subr.bf16.mxu0 0
  %159 = vmatpush1.bf16.msra.mxu0 0
  %160 = vmatprep.subr.bf16.mxu0 0
  %161 = vmatpush1.bf16.msra.mxu0 0
  %162 = vmatprep.subr.bf16.mxu0 0
  %163 = vmatpush1.bf16.msra.mxu0 0
  %164 = vmatprep.subr.bf16.mxu0 0
  %165 = vmatpush1.bf16.msra.mxu0 0
  %166 = vmatprep.subr.bf16.mxu0 0
  %167 = vmatpush1.bf16.msra.mxu0 0
  %168 = vmatprep.subr.bf16.mxu0 0
  %169 = vmatpush1.bf16.msra.mxu0 0
  %170 = vmatprep.mubr.bf16.mxu0 0
  %171 = vmatmul.mubr.bf16.gmra.mrb[0].mxu0 %v115
  %v172 = vpop.f32.mrb[0].mxu0
  %v173 = vadd.f32 %v47, %v172
  %v174 = vpop.f32.mrb[0].mxu0
  %v175 = vpop.f32.mrb[0].mxu0
  %v176 = vadd.f32 %v47, %v175
  %v177 = vpop.f32.mrb[0].mxu0
  %178 = vmatprep.mubr.bf16.mxu0 0
  %179 = vmatmul.mubr.bf16.gmra.mrb[0].mxu0 %v118
  %v180 = vpop.f32.mrb[0].mxu0
  %v181 = vadd.f32 %v47, %v180
  %v182 = vpop.f32.mrb[0].mxu0
  %v183 = vpop.f32.mrb[0].mxu0
  %v184 = vadd.f32 %v47, %v183
  %v185 = vpop.f32.mrb[0].mxu0
  %186 = vmatprep.mubr.bf16.mxu0 0
  %187 = vmatmul.mubr.bf16.gmra.mrb[0].mxu0 %v121
  %v188 = vpop.f32.mrb[0].mxu0
  %v189 = vadd.f32 %v47, %v188
  %v190 = vpop.f32.mrb[0].mxu0
  %v191 = vpop.f32.mrb[0].mxu0
  %v192 = vadd.f32 %v47, %v191
  %v193 = vpop.f32.mrb[0].mxu0
  %194 = vmatprep.mubr.bf16.mxu0 0
  %195 = vmatmul.mubr.bf16.gmra.mrb[0].mxu0 %v124
  %v196 = vpop.f32.mrb[0].mxu0
  %v197 = vadd.f32 %v47, %v196
  %v198 = vpop.f32.mrb[0].mxu0
  %v199 = vpop.f32.mrb[0].mxu0
  %v200 = vadd.f32 %v47, %v199
  %v201 = vpop.f32.mrb[0].mxu0
  %202 = vmatprep.mubr.bf16.mxu0 0
  %203 = vmatmul.mubr.bf16.gmra.mrb[0].mxu0 %v127
  %v204 = vpop.f32.mrb[0].mxu0
  %v205 = vadd.f32 %v47, %v204
  %v206 = vpop.f32.mrb[0].mxu0
  %v207 = vpop.f32.mrb[0].mxu0
  %v208 = vadd.f32 %v47, %v207
  %v209 = vpop.f32.mrb[0].mxu0
  %210 = vmatprep.mubr.bf16.mxu0 0
  %211 = vmatmul.mubr.bf16.gmra.mrb[0].mxu0 %v130
  %v212 = vpop.f32.mrb[0].mxu0
  %v213 = vadd.f32 %v47, %v212
  %v214 = vpop.f32.mrb[0].mxu0
  %v215 = vpop.f32.mrb[0].mxu0
  %v216 = vadd.f32 %v47, %v215
  %v217 = vpop.f32.mrb[0].mxu0
  %218 = vmatprep.mubr.bf16.mxu0 0
  %219 = vmatmul.mubr.bf16.gmra.mrb[0].mxu0 %v133
  %v220 = vpop.f32.mrb[0].mxu0
  %v221 = vadd.f32 %v47, %v220
  %v222 = vpop.f32.mrb[0].mxu0
  %v223 = vpop.f32.mrb[0].mxu0
  %v224 = vadd.f32 %v47, %v223
  %v225 = vpop.f32.mrb[0].mxu0
  %226 = vmatprep.mubr.bf16.mxu0 0
  %227 = vmatmul.mubr.bf16.gmra.mrb[0].mxu0 %v136
  %v228 = vpop.f32.mrb[0].mxu0
  %v229 = vadd.f32 %v47, %v228
  %v230 = vpop.f32.mrb[0].mxu0
  %v231 = vpop.f32.mrb[0].mxu0
  %v232 = vadd.f32 %v47, %v231
  %v233 = vpop.f32.mrb[0].mxu0
  %234 = vdwg.mxu0
  %v235 = vld [vmem:[%s3] sm:$0xff]
  %v236 = vld [vmem:[%s3 + $0x8] sm:$0xff]
  %v237 = vld [vmem:[%s3 + $0x10] sm:$0xff]
  %v238 = vld [vmem:[%s3 + $0x18] sm:$0xff]
  %v239 = vld [vmem:[%s3 + $0x20] sm:$0xff]
  %v240 = vld [vmem:[%s3 + $0x28] sm:$0xff]
  %v241 = vld [vmem:[%s3 + $0x30] sm:$0xff]
  %v242 = vld [vmem:[%s3 + $0x38] sm:$0xff]
  %v243 = vld [vmem:[%s3 + $0x40] sm:$0xff]
  %v244 = vld [vmem:[%s3 + $0x48] sm:$0xff]
  %v245 = vld [vmem:[%s3 + $0x50] sm:$0xff]
  %v246 = vld [vmem:[%s3 + $0x58] sm:$0xff]
  %v247 = vld [vmem:[%s3 + $0x60] sm:$0xff]
  %v248 = vld [vmem:[%s3 + $0x68] sm:$0xff]
  %v249 = vld [vmem:[%s3 + $0x70] sm:$0xff]
  %v250 = vld [vmem:[%s3 + $0x78] sm:$0xff]
  %v251 = vadd.f32 %v173, %v235
  %v252 = vadd.f32 %v176, %v236
  %v253 = vadd.f32 %v181, %v237
  %v254 = vadd.f32 %v184, %v238
  %v255 = vadd.f32 %v189, %v239
  %v256 = vadd.f32 %v192, %v240
  %v257 = vadd.f32 %v197, %v241
  %v258 = vadd.f32 %v200, %v242
  %v259 = vadd.f32 %v205, %v243
  %v260 = vadd.f32 %v208, %v244
  %v261 = vadd.f32 %v213, %v245
  %v262 = vadd.f32 %v216, %v246
  %v263 = vadd.f32 %v221, %v247
  %v264 = vadd.f32 %v224, %v248
  %v265 = vadd.f32 %v229, %v249
  %v266 = vadd.f32 %v232, %v250
  %vm267 = vcmask 261120
  %268 = vst.msk [vmem:[%s4] sm:$0xff] %vm267, %v251
  %269 = vst.msk [vmem:[%s4 + $0x8] sm:$0xff] %vm267, %v252
  %270 = vst.msk [vmem:[%s4 + $0x10] sm:$0xff] %vm267, %v253
  %271 = vst.msk [vmem:[%s4 + $0x18] sm:$0xff] %vm267, %v254
  %272 = vst.msk [vmem:[%s4 + $0x20] sm:$0xff] %vm267, %v255
  %273 = vst.msk [vmem:[%s4 + $0x28] sm:$0xff] %vm267, %v256
  %274 = vst.msk [vmem:[%s4 + $0x30] sm:$0xff] %vm267, %v257
  %275 = vst.msk [vmem:[%s4 + $0x38] sm:$0xff] %vm267, %v258
  %276 = vst.msk [vmem:[%s4 + $0x40] sm:$0xff] %vm267, %v259
  %277 = vst.msk [vmem:[%s4 + $0x48] sm:$0xff] %vm267, %v260
  %278 = vst.msk [vmem:[%s4 + $0x50] sm:$0xff] %vm267, %v261
  %279 = vst.msk [vmem:[%s4 + $0x58] sm:$0xff] %vm267, %v262
  %280 = vst.msk [vmem:[%s4 + $0x60] sm:$0xff] %vm267, %v263
  %281 = vst.msk [vmem:[%s4 + $0x68] sm:$0xff] %vm267, %v264
  %282 = vst.msk [vmem:[%s4 + $0x70] sm:$0xff] %vm267, %v265
  %283 = vst.msk [vmem:[%s4 + $0x78] sm:$0xff] %vm267, %v266
  // Predicated region
  $region18: #{_lambda_.24} parent=0 // pred_check
    _
  $region19: #{_lambda_.24} parent=0 // pred_check_branch
    %285 = sbr.rel (0) target = $region21
  $region20: #{_lambda_.24} parent=0 // pred_region
    _
  $region21: #{_lambda_.24} parent=0 // pred_fallthru
    _
  // Predicated region
  $region22: #{_lambda_.24} parent=0 // pred_check
    _
  $region23: #{_lambda_.24} parent=0 // pred_check_branch
    %287 = sbr.rel (0) target = $region25
  $region24: #{_lambda_.24} parent=0 // pred_region
    _
  $region25: #{_lambda_.24} parent=0 // pred_fallthru
    _

// kernel: _lambda_.25
$region0: #{_lambda_.25}
  #allocation0 [shape = 'u32[]', space=smem, size = 0x4, offset = 0x4, fixed_abs, tag = 'smem constant byte address 0x4 - core index']
  #allocation1 [shape = 'u32[144,128]{1,0:T(1,128)}', space=vmem, size = 0x12000, scoped, tag = 'internal scratch']
  %s0 = inlined_call_operand.vmem [shape: f32[2,64,16], index: 0, kind: input, shape index: {}]
  %s1 = inlined_call_operand.vmem [shape: f32[2,64,32], index: 1, kind: input, shape index: {}]
  %s2 = inlined_call_operand.vmem [shape: f32[2,16,32], index: 2, kind: input, shape index: {}, may-alias: {2,6}]
  %s3 = inlined_call_operand.vmem [shape: f32[1,16], index: 3, kind: input, shape index: {}]
  %s4 = inlined_call_operand.vmem [shape: f32[1,16], index: 4, kind: input, shape index: {}]
  %s5 = inlined_call_operand.vmem [shape: f32[16,1], index: 5, kind: input, shape index: {}]
  %s6 = inlined_call_operand.vmem [shape: f32[2,16,32], index: 6, kind: output, shape index: {}, may-alias: {2,6}]
  %s7 = sld [smem:[#allocation0]]
  $region57: #{_lambda_.25} parent=0
    _
  %s9 = ssub.s32 1, %s7
  %s10 = scalar_select 0, %s9, %s7
  loop: start=0, step=1, limit=4
  $region2: #{_lambda_.25} parent=0 // loop_pre_header
    _
  $region3: #{_lambda_.25} parent=0 // loop_header
    %s12 = sphi 0, %s16
    %p13 = scmp.ge.s32.totalorder %s12, 4
    %s22 = sphi 0, %s24
    %s25 = sphi 0, %s22
    %s26 = sphi 0, %s25
    %s42 = sphi 0, %s26
    %s48 = sphi 0, %s50
    %s51 = sphi 0, %s48
    %s52 = sphi 0, %s51
    %s68 = sphi 0, %s52
    %s74 = sphi 0, %s76
    %s77 = sphi 0, %s74
    %s78 = sphi 0, %s77
    %s94 = sphi 0, %s78
    %s98 = sphi 0, %s98
    %s100 = sphi 0, %s98
    %s101 = sphi 0, %s100
    %s115 = sphi 0, %s101
    %s119 = sphi 0, %s119
    %s121 = sphi 0, %s119
    %s122 = sphi 0, %s121
    %s136 = sphi 0, %s122
    %s140 = sphi 0, %s140
    %s142 = sphi 0, %s140
    %s143 = sphi 0, %s142
    %s157 = sphi 0, %s143
    %s163 = sphi 0, %s165
    %s166 = sphi 0, %s163
    %s167 = sphi 0, %s166
    %s183 = sphi 0, %s167
  $region4: #{_lambda_.25} parent=0 // loop_header_branch
    %15 = sbr.rel (%p13) target = $region8
  $region5: #{_lambda_.25} parent=0 // loop_body
    %s17 = ssub.s32 %s12, 1
    %s18 = ssub.s32 %s12, 2
    %s19 = sadd.s32 %s12, 1
    %s20 = ssub.s32 %s12, %s19
    %p21 = scmp.eq.s32.totalorder %s20, 0
    %s23 = sadd.s32 %s22, 1
    %s24 = scalar_select %p21, %s22, %s23
    %p27 = pneg %p21
    %p28 = scmp.eq.s32.totalorder %s12, 1
    %p29 = por %p27, %p28
    %p30 = scmp.ne.s32.totalorder %s22, %s25
    %p31 = scmp.eq.s32.totalorder %s12, 0
    %p32 = por %p30, %p31
    %p33 = scmp.ne.s32.totalorder %s22, %s25
    %p34 = scmp.eq.s32.totalorder %s17, 1
    %p35 = por %p33, %p34
    %p36 = scmp.ne.s32.totalorder %s25, %s26
    %p37 = scmp.eq.s32.totalorder %s17, 0
    %p38 = por %p36, %p37
    %p39 = scmp.ne.s32.totalorder %s25, %s26
    %p40 = scmp.eq.s32.totalorder %s18, 1
    %p41 = por %p39, %p40
    %p43 = scmp.ne.s32.totalorder %s26, %s42
    %p44 = scmp.eq.s32.totalorder %s18, 0
    %p45 = por %p43, %p44
    %s46 = ssub.s32 %s12, %s19
    %p47 = scmp.eq.s32.totalorder %s46, 0
    %s49 = sadd.s32 %s48, 1
    %s50 = scalar_select %p47, %s48, %s49
    %p53 = pneg %p47
    %p54 = scmp.eq.s32.totalorder %s12, 1
    %p55 = por %p53, %p54
    %p56 = scmp.ne.s32.totalorder %s48, %s51
    %p57 = scmp.eq.s32.totalorder %s12, 0
    %p58 = por %p56, %p57
    %p59 = scmp.ne.s32.totalorder %s48, %s51
    %p60 = scmp.eq.s32.totalorder %s17, 1
    %p61 = por %p59, %p60
    %p62 = scmp.ne.s32.totalorder %s51, %s52
    %p63 = scmp.eq.s32.totalorder %s17, 0
    %p64 = por %p62, %p63
    %p65 = scmp.ne.s32.totalorder %s51, %s52
    %p66 = scmp.eq.s32.totalorder %s18, 1
    %p67 = por %p65, %p66
    %p69 = scmp.ne.s32.totalorder %s52, %s68
    %p70 = scmp.eq.s32.totalorder %s18, 0
    %p71 = por %p69, %p70
    %s72 = ssub.s32 %s12, %s19
    %p73 = scmp.eq.s32.totalorder %s72, 0
    %s75 = sadd.s32 %s74, 1
    %s76 = scalar_select %p73, %s74, %s75
    %p79 = pneg %p73
    %p80 = scmp.eq.s32.totalorder %s12, 1
    %p81 = por %p79, %p80
    %p82 = scmp.ne.s32.totalorder %s74, %s77
    %p83 = scmp.eq.s32.totalorder %s12, 0
    %p84 = por %p82, %p83
    %p85 = scmp.ne.s32.totalorder %s74, %s77
    %p86 = scmp.eq.s32.totalorder %s17, 1
    %p87 = por %p85, %p86
    %p88 = scmp.ne.s32.totalorder %s77, %s78
    %p89 = scmp.eq.s32.totalorder %s17, 0
    %p90 = por %p88, %p89
    %p91 = scmp.ne.s32.totalorder %s77, %s78
    %p92 = scmp.eq.s32.totalorder %s18, 1
    %p93 = por %p91, %p92
    %p95 = scmp.ne.s32.totalorder %s78, %s94
    %p96 = scmp.eq.s32.totalorder %s18, 0
    %p97 = por %p95, %p96
    %s99 = sadd.s32 %s98, 1
    %p102 = scmp.eq.s32.totalorder %s12, 1
    %p103 = scmp.ne.s32.totalorder %s98, %s100
    %p104 = scmp.eq.s32.totalorder %s12, 0
    %p105 = por %p103, %p104
    %p106 = scmp.ne.s32.totalorder %s98, %s100
    %p107 = scmp.eq.s32.totalorder %s17, 1
    %p108 = por %p106, %p107
    %p109 = scmp.ne.s32.totalorder %s100, %s101
    %p110 = scmp.eq.s32.totalorder %s17, 0
    %p111 = por %p109, %p110
    %p112 = scmp.ne.s32.totalorder %s100, %s101
    %p113 = scmp.eq.s32.totalorder %s18, 1
    %p114 = por %p112, %p113
    %p116 = scmp.ne.s32.totalorder %s101, %s115
    %p117 = scmp.eq.s32.totalorder %s18, 0
    %p118 = por %p116, %p117
    %s120 = sadd.s32 %s119, 1
    %p123 = scmp.eq.s32.totalorder %s12, 1
    %p124 = scmp.ne.s32.totalorder %s119, %s121
    %p125 = scmp.eq.s32.totalorder %s12, 0
    %p126 = por %p124, %p125
    %p127 = scmp.ne.s32.totalorder %s119, %s121
    %p128 = scmp.eq.s32.totalorder %s17, 1
    %p129 = por %p127, %p128
    %p130 = scmp.ne.s32.totalorder %s121, %s122
    %p131 = scmp.eq.s32.totalorder %s17, 0
    %p132 = por %p130, %p131
    %p133 = scmp.ne.s32.totalorder %s121, %s122
    %p134 = scmp.eq.s32.totalorder %s18, 1
    %p135 = por %p133, %p134
    %p137 = scmp.ne.s32.totalorder %s122, %s136
    %p138 = scmp.eq.s32.totalorder %s18, 0
    %p139 = por %p137, %p138
    %s141 = sadd.s32 %s140, 1
    %p144 = scmp.eq.s32.totalorder %s12, 1
    %p145 = scmp.ne.s32.totalorder %s140, %s142
    %p146 = scmp.eq.s32.totalorder %s12, 0
    %p147 = por %p145, %p146
    %p148 = scmp.ne.s32.totalorder %s140, %s142
    %p149 = scmp.eq.s32.totalorder %s17, 1
    %p150 = por %p148, %p149
    %p151 = scmp.ne.s32.totalorder %s142, %s143
    %p152 = scmp.eq.s32.totalorder %s17, 0
    %p153 = por %p151, %p152
    %p154 = scmp.ne.s32.totalorder %s142, %s143
    %p155 = scmp.eq.s32.totalorder %s18, 1
    %p156 = por %p154, %p155
    %p158 = scmp.ne.s32.totalorder %s143, %s157
    %p159 = scmp.eq.s32.totalorder %s18, 0
    %p160 = por %p158, %p159
    %s161 = ssub.s32 %s12, %s19
    %p162 = scmp.eq.s32.totalorder %s161, 0
    %s164 = sadd.s32 %s163, 1
    %s165 = scalar_select %p162, %s163, %s164
    %p168 = pneg %p162
    %p169 = scmp.eq.s32.totalorder %s12, 1
    %p170 = por %p168, %p169
    %p171 = scmp.ne.s32.totalorder %s163, %s166
    %p172 = scmp.eq.s32.totalorder %s12, 0
    %p173 = por %p171, %p172
    %p174 = scmp.ne.s32.totalorder %s163, %s166
    %p175 = scmp.eq.s32.totalorder %s17, 1
    %p176 = por %p174, %p175
    %p177 = scmp.ne.s32.totalorder %s166, %s167
    %p178 = scmp.eq.s32.totalorder %s17, 0
    %p179 = por %p177, %p178
    %p180 = scmp.ne.s32.totalorder %s166, %s167
    %p181 = scmp.eq.s32.totalorder %s18, 1
    %p182 = por %p180, %p181
    %p184 = scmp.ne.s32.totalorder %s167, %s183
    %p185 = scmp.eq.s32.totalorder %s18, 0
    %p186 = por %p184, %p185
    %p187 = scmp.le.s32.totalorder 1, %s12
    %p188 = scmp.lt.s32.totalorder %s12, 3
    %p189 = pnand %p187, %p188
    %p190 = pneg %p189
    // Predicated region
    $region9: #{_lambda_.25} parent=5 // pred_check
      _
    $region10: #{_lambda_.25} parent=5 // pred_check_branch
      %192 = sbr.rel (%p189) target = $region12
    $region11: #{_lambda_.25} parent=5 // pred_region
      %s193 = ssub.s32 %s12, 1
      // Predicated region
      $region13: #{_lambda_.25} parent=11 // pred_check
        %p194 = pneg %p111
      $region14: #{_lambda_.25} parent=11 // pred_check_branch
        %196 = sbr.rel (%p194) target = $region16
      $region15: #{_lambda_.25} parent=11 // pred_region
        _
      $region16: #{_lambda_.25} parent=11 // pred_fallthru
        _
      // Predicated region
      $region17: #{_lambda_.25} parent=11 // pred_check
        %p197 = pneg %p132
      $region18: #{_lambda_.25} parent=11 // pred_check_branch
        %199 = sbr.rel (%p197) target = $region20
      $region19: #{_lambda_.25} parent=11 // pred_region
        _
      $region20: #{_lambda_.25} parent=11 // pred_fallthru
        _
      // Predicated region
      $region21: #{_lambda_.25} parent=11 // pred_check
        %p200 = pneg %p153
      $region22: #{_lambda_.25} parent=11 // pred_check_branch
        %202 = sbr.rel (%p200) target = $region24
      $region23: #{_lambda_.25} parent=11 // pred_region
        _
      $region24: #{_lambda_.25} parent=11 // pred_fallthru
        _
    $region12: #{_lambda_.25} parent=5 // pred_fallthru
      _
    %p203 = scmp.lt.s32.totalorder %s12, 2
    // Predicated region
    $region25: #{_lambda_.25} parent=5 // pred_check
      %p204 = pneg %p203
    $region26: #{_lambda_.25} parent=5 // pred_check_branch
      %206 = sbr.rel (%p204) target = $region28
    $region27: #{_lambda_.25} parent=5 // pred_region
      // Predicated region
      $region29: #{_lambda_.25} parent=27 // pred_check
        %p207 = pneg %p32
      $region30: #{_lambda_.25} parent=27 // pred_check_branch
        %209 = sbr.rel (%p207) target = $region32
      $region31: #{_lambda_.25} parent=27 // pred_region
        %p210 = scmp.lt.s32.totalorder %s12, 1
        %s211 = scalar_select %p210, %s12, 1
        %s212 = smul.addr %s211, 8
        %s213 = smul.addr %s212, 8
        %s214 = scalar_lea.vmem %s0, %s213
      $region32: #{_lambda_.25} parent=27 // pred_fallthru
        _
      // Predicated region
      $region33: #{_lambda_.25} parent=27 // pred_check
        %p215 = pneg %p58
      $region34: #{_lambda_.25} parent=27 // pred_check_branch
        %217 = sbr.rel (%p215) target = $region36
      $region35: #{_lambda_.25} parent=27 // pred_region
        %p218 = scmp.lt.s32.totalorder %s12, 1
        %s219 = scalar_select %p218, %s12, 1
        %s220 = smul.addr %s219, 8
        %s221 = smul.addr %s220, 8
        %s222 = scalar_lea.vmem %s1, %s221
      $region36: #{_lambda_.25} parent=27 // pred_fallthru
        _
      // Predicated region
      $region37: #{_lambda_.25} parent=27 // pred_check
        %p223 = pneg %p84
      $region38: #{_lambda_.25} parent=27 // pred_check_branch
        %225 = sbr.rel (%p223) target = $region40
      $region39: #{_lambda_.25} parent=27 // pred_region
        %p226 = scmp.lt.s32.totalorder %s12, 1
        %s227 = scalar_select %p226, %s12, 1
        %s228 = smul.addr %s227, 2
        %s229 = smul.addr %s228, 8
        %s230 = scalar_lea.vmem %s2, %s229
      $region40: #{_lambda_.25} parent=27 // pred_fallthru
        _
    $region28: #{_lambda_.25} parent=5 // pred_fallthru
      _
    %p231 = scmp.le.s32.totalorder 1, %s12
    %p232 = scmp.lt.s32.totalorder %s12, 3
    %p233 = pnand %p231, %p232
    %p234 = pneg %p233
    // Predicated region
    $region41: #{_lambda_.25} parent=5 // pred_check
      _
    $region42: #{_lambda_.25} parent=5 // pred_check_branch
      %236 = sbr.rel (%p233) target = $region44
    $region43: #{_lambda_.25} parent=5 // pred_region
      %s237 = ssub.s32 %s12, 1
      %p238 = scmp.lt.s32.totalorder %s17, 1
      %s239 = scalar_select %p238, %s17, 1
      %s240 = smul.addr %s239, 8
      %s241 = smul.addr %s240, 8
      %s242 = scalar_lea.vmem %s0, %s241
      %p243 = pneg %p38
      %p244 = pneg %p35
      %p245 = scmp.lt.s32.totalorder %s17, 1
      %s246 = scalar_select %p245, %s17, 1
      %s247 = smul.addr %s246, 8
      %s248 = smul.addr %s247, 8
      %s249 = scalar_lea.vmem %s1, %s248
      %p250 = pneg %p64
      %p251 = pneg %p61
      %p252 = scmp.lt.s32.totalorder %s17, 1
      %s253 = scalar_select %p252, %s17, 1
      %s254 = smul.addr %s253, 2
      %s255 = smul.addr %s254, 8
      %s256 = scalar_lea.vmem %s2, %s255
      %p257 = pneg %p90
      %p258 = pneg %p87
      %p259 = pneg %p111
      %p260 = pneg %p108
      %p261 = pneg %p132
      %p262 = pneg %p129
      %p263 = pneg %p153
      %p264 = pneg %p150
      %p265 = pneg %p179
      %p266 = pneg %p176
      %p267 = scmp.lt.s32.totalorder %s17, 1
      %s268 = scalar_select %p267, %s17, 1
      %s269 = smul.addr %s268, 2
      %s270 = smul.addr %s269, 8
      %s271 = scalar_lea.vmem %s6, %s270
      %p272 = scmp.lt.s32.totalorder %s17, 1
      %s273 = scalar_select %p272, %s17, 1
      %s274 = smul.addr %s273, 8
      %s275 = smul.addr %s274, 8
      %s276 = scalar_lea.vmem %s0, %s275
      %p277 = scmp.lt.s32.totalorder %s17, 1
      %s278 = scalar_select %p277, %s17, 1
      %s279 = smul.addr %s278, 8
      %s280 = smul.addr %s279, 8
      %s281 = scalar_lea.vmem %s1, %s280
      %p282 = scmp.lt.s32.totalorder %s17, 1
      %s283 = scalar_select %p282, %s17, 1
      %s284 = smul.addr %s283, 2
      %s285 = smul.addr %s284, 8
      %s286 = scalar_lea.vmem %s2, %s285
      %p287 = scmp.lt.s32.totalorder %s17, 1
      %s288 = scalar_select %p287, %s17, 1
      %s289 = smul.addr %s288, 2
      %s290 = smul.addr %s289, 8
      %s291 = scalar_lea.vmem %s6, %s290
      %v293 = vld [vmem:[%s276] sm:$0xff]
      %v294 = vld [vmem:[%s276 + $0x8] sm:$0xff]
      %v295 = vld [vmem:[%s276 + $0x10] sm:$0xff]
      %v296 = vld [vmem:[%s276 + $0x18] sm:$0xff]
      %v297 = vld [vmem:[%s276 + $0x20] sm:$0xff]
      %v298 = vld [vmem:[%s276 + $0x28] sm:$0xff]
      %v299 = vld [vmem:[%s276 + $0x30] sm:$0xff]
      %v300 = vld [vmem:[%s276 + $0x38] sm:$0xff]
      %vm301 = vcmask 130048
      %v302 = vsel %vm301, %v293, 0.0
      %v303 = vsel %vm301, %v294, 0.0
      %v304 = vadd.f32 %v302, %v303
      %v305 = vsel %vm301, %v295, 0.0
      %v306 = vadd.f32 %v304, %v305
      %v307 = vsel %vm301, %v296, 0.0
      %v308 = vadd.f32 %v306, %v307
      %v309 = vsel %vm301, %v297, 0.0
      %v310 = vadd.f32 %v308, %v309
      %v311 = vsel %vm301, %v298, 0.0
      %v312 = vadd.f32 %v310, %v311
      %v313 = vsel %vm301, %v299, 0.0
      %v314 = vadd.f32 %v312, %v313
      %v315 = vsel %vm301, %v300, 0.0
      %v316 = vadd.f32 %v314, %v315
      %v317 = vrot.slane %v316, 4
      %v318 = vadd.f32 %v316, %v317
      %v319 = vrot.slane %v318, 2
      %v320 = vadd.f32 %v318, %v319
      %v321 = vrot.slane %v320, 1
      %v322 = vadd.f32 %v320, %v321
      %v323 = vrcp.pop 64.0
      %v324 = vmul.f32 %v322, %v323
      %v325 = vsub.f32 %v293, %v324
      %v326 = vsub.f32 %v294, %v324
      %v327 = vsub.f32 %v295, %v324
      %v328 = vsub.f32 %v296, %v324
      %v329 = vsub.f32 %v297, %v324
      %v330 = vsub.f32 %v298, %v324
      %v331 = vsub.f32 %v299, %v324
      %v332 = vsub.f32 %v300, %v324
      %v333 = vmul.f32 %v325, %v325
      %v334 = vmul.f32 %v326, %v326
      %v335 = vmul.f32 %v327, %v327
      %v336 = vmul.f32 %v328, %v328
      %v337 = vmul.f32 %v329, %v329
      %v338 = vmul.f32 %v330, %v330
      %v339 = vmul.f32 %v331, %v331
      %v340 = vmul.f32 %v332, %v332
      %v341 = vsel %vm301, %v333, 0.0
      %v342 = vsel %vm301, %v334, 0.0
      %v343 = vadd.f32 %v341, %v342
      %v344 = vsel %vm301, %v335, 0.0
      %v345 = vadd.f32 %v343, %v344
      %v346 = vsel %vm301, %v336, 0.0
      %v347 = vadd.f32 %v345, %v346
      %v348 = vsel %vm301, %v337, 0.0
      %v349 = vadd.f32 %v347, %v348
      %v350 = vsel %vm301, %v338, 0.0
      %v351 = vadd.f32 %v349, %v350
      %v352 = vsel %vm301, %v339, 0.0
      %v353 = vadd.f32 %v351, %v352
      %v354 = vsel %vm301, %v340, 0.0
      %v355 = vadd.f32 %v353, %v354
      %v356 = vrot.slane %v355, 4
      %v357 = vadd.f32 %v355, %v356
      %v358 = vrot.slane %v357, 2
      %v359 = vadd.f32 %v357, %v358
      %v360 = vrot.slane %v359, 1
      %v361 = vadd.f32 %v359, %v360
      %v362 = vmul.f32 %v361, %v323
      %v363 = vadd.f32 %v362, 1e-05
      %v364 = vrsqrt.pop %v363
      %v365 = vmul.f32 %v325, %v364
      %v366 = vmul.f32 %v326, %v364
      %v367 = vmul.f32 %v327, %v364
      %v368 = vmul.f32 %v328, %v364
      %v369 = vmul.f32 %v329, %v364
      %v370 = vmul.f32 %v330, %v364
      %v371 = vmul.f32 %v331, %v364
      %v372 = vmul.f32 %v332, %v364
      %v373 = vld [vmem:[%s3] sm:$0x1]
      %v375 = vlaneseq
      %v376 = vshrl.u32 %v375, 7
      %v377 = vsub.s32 0, %v376
      %v378 = vrot.slane %v373, %v377
      %v380 = vmul.f32 %v365, %v378
      %v381 = vmul.f32 %v366, %v378
      %v382 = vmul.f32 %v367, %v378
      %v383 = vmul.f32 %v368, %v378
      %v384 = vmul.f32 %v369, %v378
      %v385 = vmul.f32 %v370, %v378
      %v386 = vmul.f32 %v371, %v378
      %v387 = vmul.f32 %v372, %v378
      %v388 = vld [vmem:[%s4] sm:$0x1]
      %v390 = vlaneseq
      %v391 = vshrl.u32 %v390, 7
      %v392 = vsub.s32 0, %v391
      %v393 = vrot.slane %v388, %v392
      %v395 = vadd.f32 %v380, %v393
      %v396 = vadd.f32 %v381, %v393
      %v397 = vadd.f32 %v382, %v393
      %v398 = vadd.f32 %v383, %v393
      %v399 = vadd.f32 %v384, %v393
      %v400 = vadd.f32 %v385, %v393
      %v401 = vadd.f32 %v386, %v393
      %v402 = vadd.f32 %v387, %v393
      %v403 = vsel %vm301, %v395, -inf
      %v404 = vsel %vm301, %v396, -inf
      %v405 = vsel %vm301, %v397, -inf
      %v406 = vsel %vm301, %v398, -inf
      %v407 = vsel %vm301, %v399, -inf
      %v408 = vmax.f32 %v403, %v407
      %v409 = vsel %vm301, %v400, -inf
      %v410 = vmax.f32 %v404, %v409
      %v411 = vsel %vm301, %v401, -inf
      %v412 = vmax.f32 %v405, %v411
      %v413 = vsel %vm301, %v402, -inf
      %v414 = vmax.f32 %v406, %v413
      %v415 = vmax.f32 %v408, %v410
      %v416 = vmax.f32 %v412, %v414
      %v417 = vmax.f32 %v415, %v416
      %v418 = vrot.slane %v417, 4
      %v419 = vmax.f32 %v417, %v418
      %v420 = vrot.slane %v419, 2
      %v421 = vmax.f32 %v419, %v420
      %v422 = vrot.slane %v421, 1
      %v423 = vmax.f32 %v421, %v422
      %v424 = vsub.f32 %v395, %v423
      %v425 = vsub.f32 %v396, %v423
      %v426 = vsub.f32 %v397, %v423
      %v427 = vsub.f32 %v398, %v423
      %v428 = vsub.f32 %v399, %v423
      %v429 = vsub.f32 %v400, %v423
      %v430 = vsub.f32 %v401, %v423
      %v431 = vsub.f32 %v402, %v423
      %v432 = vmul.f32 %v424, 1.442695
      %v433 = vpow.pop %v432
      %v434 = vmul.f32 %v425, 1.442695
      %v435 = vpow.pop %v434
      %v436 = vmul.f32 %v426, 1.442695
      %v437 = vpow.pop %v436
      %v438 = vmul.f32 %v427, 1.442695
      %v439 = vpow.pop %v438
      %v440 = vmul.f32 %v428, 1.442695
      %v441 = vpow.pop %v440
      %v442 = vmul.f32 %v429, 1.442695
      %v443 = vpow.pop %v442
      %v444 = vmul.f32 %v430, 1.442695
      %v445 = vpow.pop %v444
      %v446 = vmul.f32 %v431, 1.442695
      %v447 = vpow.pop %v446
      %v448 = vsel %vm301, %v433, 0.0
      %v449 = vsel %vm301, %v435, 0.0
      %v450 = vadd.f32 %v448, %v449
      %v451 = vsel %vm301, %v437, 0.0
      %v452 = vadd.f32 %v450, %v451
      %v453 = vsel %vm301, %v439, 0.0
      %v454 = vadd.f32 %v452, %v453
      %v455 = vsel %vm301, %v441, 0.0
      %v456 = vadd.f32 %v454, %v455
      %v457 = vsel %vm301, %v443, 0.0
      %v458 = vadd.f32 %v456, %v457
      %v459 = vsel %vm301, %v445, 0.0
      %v460 = vadd.f32 %v458, %v459
      %v461 = vsel %vm301, %v447, 0.0
      %v462 = vadd.f32 %v460, %v461
      %v463 = vrot.slane %v462, 4
      %v464 = vadd.f32 %v462, %v463
      %v465 = vrot.slane %v464, 2
      %v466 = vadd.f32 %v464, %v465
      %v467 = vrot.slane %v466, 1
      %v468 = vadd.f32 %v466, %v467
      %v469 = vrcp.pop %v468
      %v470 = vmul.f32 %v433, %v469
      %v471 = vmul.f32 %v435, %v469
      %v472 = vmul.f32 %v437, %v469
      %v473 = vmul.f32 %v439, %v469
      %v474 = vmul.f32 %v441, %v469
      %v475 = vmul.f32 %v443, %v469
      %v476 = vmul.f32 %v445, %v469
      %v477 = vmul.f32 %v447, %v469
      %v478 = vpack.c.bf16 %v471, %v470
      %v479 = vpack.c.bf16 %v473, %v472
      %v480 = vpack.c.bf16 %v475, %v474
      %v481 = vpack.c.bf16 %v477, %v476
      %v482 = vld [vmem:[%s281] sm:$0xff]
      %v483 = vld [vmem:[%s281 + $0x8] sm:$0xff]
      %v484 = vld [vmem:[%s281 + $0x10] sm:$0xff]
      %v485 = vld [vmem:[%s281 + $0x18] sm:$0xff]
      %v486 = vld [vmem:[%s281 + $0x20] sm:$0xff]
      %v487 = vld [vmem:[%s281 + $0x28] sm:$0xff]
      %v488 = vld [vmem:[%s281 + $0x30] sm:$0xff]
      %v489 = vld [vmem:[%s281 + $0x38] sm:$0xff]
      %v490 = vpack.c.bf16 %v483, %v482
      %v491 = vpack.c.bf16 %v485, %v484
      %v492 = vpack.c.bf16 %v487, %v486
      %v493 = vpack.c.bf16 %v489, %v488
      %494 = vxpose.xlu0.c.b16.start [1/8] %v478, 128
      %495 = vxpose.xlu0.c.b16.cont [2/8] %v479, 128
      %496 = vxpose.xlu0.c.b16.cont [3/8] %v480, 128
      %497 = vxpose.xlu0.c.b16.cont [4/8] %v481, 128
      %498 = vxpose.xlu0.c.b16.cont [5/8] 0, 128
      %499 = vxpose.xlu0.c.b16.cont [6/8] 0, 128
      %500 = vxpose.xlu0.c.b16.cont [7/8] 0, 128
      %501 = vxpose.xlu0.c.b16.end [8/8] 0, 128
      %v502 = vpop.trf.xlu0
      %v503 = vpop.trf.xlu0
      %v504 = vpop.trf.xlu0
      %v505 = vpop.trf.xlu0
      %v506 = vpop.trf.xlu0
      %v507 = vpop.trf.xlu0
      %v508 = vpop.trf.xlu0
      %v509 = vpop.trf.xlu0
      %vm510 = vcmask 523264
      %v512 = vsel %vm510, %v502, 0
      %514 = vmatprep.subr.bf16.mxu0 0
      %515 = vmatpush1.bf16.msra.mxu0 %v490
      %516 = vmatprep.subr.bf16.mxu0 0
      %517 = vmatpush1.bf16.msra.mxu0 %v491
      %518 = vmatprep.subr.bf16.mxu0 0
      %519 = vmatpush1.bf16.msra.mxu0 %v492
      %520 = vmatprep.subr.bf16.mxu0 0
      %521 = vmatpush1.bf16.msra.mxu0 %v493
      %522 = vmatprep.subr.bf16.mxu0 0
      %523 = vmatpush1.bf16.msra.mxu0 0
      %524 = vmatprep.subr.bf16.mxu0 0
      %525 = vmatpush1.bf16.msra.mxu0 0
      %526 = vmatprep.subr.bf16.mxu0 0
      %527 = vmatpush1.bf16.msra.mxu0 0
      %528 = vmatprep.subr.bf16.mxu0 0
      %529 = vmatpush1.bf16.msra.mxu0 0
      %530 = vmatprep.subr.bf16.mxu0 0
      %531 = vmatpush1.bf16.msra.mxu0 0
      %532 = vmatprep.subr.bf16.mxu0 0
      %533 = vmatpush1.bf16.msra.mxu0 0
      %534 = vmatprep.subr.bf16.mxu0 0
      %535 = vmatpush1.bf16.msra.mxu0 0
      %536 = vmatprep.subr.bf16.mxu0 0
      %537 = vmatpush1.bf16.msra.mxu0 0
      %538 = vmatprep.subr.bf16.mxu0 0
      %539 = vmatpush1.bf16.msra.mxu0 0
      %540 = vmatprep.subr.bf16.mxu0 0
      %541 = vmatpush1.bf16.msra.mxu0 0
      %542 = vmatprep.subr.bf16.mxu0 0
      %543 = vmatpush1.bf16.msra.mxu0 0
      %544 = vmatprep.subr.bf16.mxu0 0
      %545 = vmatpush1.bf16.msra.mxu0 0
      %546 = vmatprep.mubr.bf16.mxu0 0
      %547 = vmatmul.mubr.bf16.gmra.mrb[0].mxu0 %v512
      %v548 = vpop.f32.mrb[0].mxu0
      %v549 = vadd.f32 0.0, %v548
      %v550 = vpop.f32.mrb[0].mxu0
      %v551 = vpop.f32.mrb[0].mxu0
      %v552 = vadd.f32 0.0, %v551
      %v553 = vpop.f32.mrb[0].mxu0
      %554 = vdwg.mxu0
      %v555 = vld [vmem:[%s5] sm:$0xff]
      %v556 = vld [vmem:[%s5 + $0x8] sm:$0xff]
      %v557 = vsub.f32 0.0, %v555
      %v558 = vsub.f32 0.0, %v556
      %v559 = vmul.f32 %v557, 1.442695
      %v560 = vpow.pop %v559
      %v561 = vmul.f32 %v558, 1.442695
      %v562 = vpow.pop %v561
      %v563 = vadd.f32 %v560, 1.0
      %v564 = vadd.f32 %v562, 1.0
      %v565 = vrcp.pop %v563
      %v566 = vmul.f32 1.0, %v565
      %v567 = vrcp.pop %v564
      %v568 = vmul.f32 1.0, %v567
      %v569 = vld [vmem:[%s286] sm:$0xff]
      %v570 = vld [vmem:[%s286 + $0x8] sm:$0xff]
      %572 = vset.pattern.permute.xlu0 0
      %573 = vperm.xlu0 %572, %v566
      %v574 = vpop.permute.xlu0 %573
      %577 = vset.pattern.permute.xlu0 0
      %578 = vperm.xlu0 %577, %v568
      %v579 = vpop.permute.xlu0 %578
      %v581 = vmul.f32 %v574, %v569
      %v582 = vmul.f32 %v579, %v570
      %v583 = vsub.f32 1.0, %v566
      %v584 = vsub.f32 1.0, %v568
      %586 = vset.pattern.permute.xlu0 0
      %587 = vperm.xlu0 %586, %v583
      %v588 = vpop.permute.xlu0 %587
      %591 = vset.pattern.permute.xlu0 0
      %592 = vperm.xlu0 %591, %v584
      %v593 = vpop.permute.xlu0 %592
      %v595 = vmul.f32 %v588, %v549
      %v596 = vmul.f32 %v593, %v552
      %v597 = vadd.f32 %v581, %v595
      %v598 = vadd.f32 %v582, %v596
      %vm599 = vcmask 261120
      %600 = vst.msk [vmem:[%s291] sm:$0xff] %vm599, %v597
      %601 = vst.msk [vmem:[%s291 + $0x8] sm:$0xff] %vm599, %v598
      %p602 = scmp.lt.s32.totalorder %s17, 1
      %s603 = scalar_select %p602, %s17, 1
      %s604 = smul.addr %s603, 2
      %s605 = smul.addr %s604, 8
      %s606 = scalar_lea.vmem %s6, %s605
      // Predicated region
      $region45: #{_lambda_.25} parent=43 // pred_check
        %p607 = pneg %p176
      $region46: #{_lambda_.25} parent=43 // pred_check_branch
        %609 = sbr.rel (%p607) target = $region48
      $region47: #{_lambda_.25} parent=43 // pred_region
        _
      $region48: #{_lambda_.25} parent=43 // pred_fallthru
        _
    $region44: #{_lambda_.25} parent=5 // pred_fallthru
      _
    %p610 = scmp.le.s32.totalorder 2, %s12
    // Predicated region
    $region49: #{_lambda_.25} parent=5 // pred_check
      %p611 = pneg %p610
    $region50: #{_lambda_.25} parent=5 // pred_check_branch
      %613 = sbr.rel (%p611) target = $region52
    $region51: #{_lambda_.25} parent=5 // pred_region
      %s614 = ssub.s32 %s12, 2
      // Predicated region
      $region53: #{_lambda_.25} parent=51 // pred_check
        %p615 = pneg %p182
      $region54: #{_lambda_.25} parent=51 // pred_check_branch
        %617 = sbr.rel (%p615) target = $region56
      $region55: #{_lambda_.25} parent=51 // pred_region
        %p618 = scmp.lt.s32.totalorder %s18, 1
        %s619 = scalar_select %p618, %s18, 1
        %s620 = smul.addr %s619, 2
        %s621 = smul.addr %s620, 8
        %s622 = scalar_lea.vmem %s6, %s621
      $region56: #{_lambda_.25} parent=51 // pred_fallthru
        _
    $region52: #{_lambda_.25} parent=5 // pred_fallthru
      _
  $region6: #{_lambda_.25} parent=0 // loop_footer
    %s16 = sadd.s32 1, %s12
  $region7: #{_lambda_.25} parent=0 // loop_footer_branch
    %11 = sbr.rel target = $region3
  $region8: #{_lambda_.25} parent=0 // loop_exit
    _

// kernel: _lambda_.23
$region0: #{_lambda_.23}
  #allocation0 [shape = 'u32[]', space=smem, size = 0x4, offset = 0x4, fixed_abs, tag = 'smem constant byte address 0x4 - core index']
  #allocation1 [shape = 'u32[144,128]{1,0:T(1,128)}', space=vmem, size = 0x12000, scoped, tag = 'internal scratch']
  %s0 = inlined_call_operand.vmem [shape: bf16[2,12,12,64], index: 0, kind: input, shape index: {}]
  %s1 = inlined_call_operand.vmem [shape: bf16[25,64], index: 1, kind: input, shape index: {}]
  %s2 = inlined_call_operand.vmem [shape: f32[1,64], index: 2, kind: input, shape index: {}]
  %s3 = inlined_call_operand.vmem [shape: bf16[2,8,8,64], index: 3, kind: output, shape index: {}]
  %s4 = sld [smem:[#allocation0]]
  $region45: #{_lambda_.23} parent=0
    _
  %s6 = ssub.s32 1, %s4
  %s7 = scalar_select 0, %s6, %s4
  loop: start=0, step=1, limit=4
  $region2: #{_lambda_.23} parent=0 // loop_pre_header
    _
  $region3: #{_lambda_.23} parent=0 // loop_header
    %s9 = sphi 0, %s13
    %p10 = scmp.ge.s32.totalorder %s9, 4
    %s16 = sphi 0, %s28
    %s17 = sphi 0, %s24
    %s18 = sphi 0, %s16
    %s19 = sphi 0, %s17
    %s20 = sphi 0, %s18
    %s21 = sphi 0, %s19
    %s33 = sphi 0, %s35
    %s36 = sphi 0, %s33
    %s37 = sphi 0, %s36
    %s53 = sphi 0, %s37
    %s59 = sphi 0, %s61
    %s62 = sphi 0, %s59
    %s63 = sphi 0, %s62
    %s79 = sphi 0, %s63
    %s85 = sphi 0, %s87
    %s88 = sphi 0, %s85
    %s89 = sphi 0, %s88
    %s105 = sphi 0, %s89
    %s113 = sphi 0, %s115
    %s116 = sphi 0, %s113
    %s117 = sphi 0, %s116
    %s133 = sphi 0, %s117
  $region4: #{_lambda_.23} parent=0 // loop_header_branch
    %12 = sbr.rel (%p10) target = $region8
  $region5: #{_lambda_.23} parent=0 // loop_body
    %s14 = ssub.s32 %s9, 1
    %s15 = ssub.s32 %s9, 2
    %s22 = sadd.s32 1, %s17
    %p23 = scmp.ge.s32.totalorder %s22, 1
    %s24 = scalar_select %p23, 0, %s22
    %s25 = sadd.s32 1, %s16
    %s26 = scalar_select %p23, %s25, %s16
    %p27 = scmp.ge.s32.totalorder %s26, 2
    %s28 = scalar_select %p27, 0, %s26
    %s29 = ssub.s32 %s16, %s28
    %s30 = ssub.s32 %s17, %s24
    %s31 = sor.u32 %s29, %s30
    %p32 = scmp.eq.s32.totalorder %s31, 0
    %s34 = sadd.s32 %s33, 1
    %s35 = scalar_select %p32, %s33, %s34
    %p38 = pneg %p32
    %p39 = scmp.eq.s32.totalorder %s9, 1
    %p40 = por %p38, %p39
    %p41 = scmp.ne.s32.totalorder %s33, %s36
    %p42 = scmp.eq.s32.totalorder %s9, 0
    %p43 = por %p41, %p42
    %p44 = scmp.ne.s32.totalorder %s33, %s36
    %p45 = scmp.eq.s32.totalorder %s14, 1
    %p46 = por %p44, %p45
    %p47 = scmp.ne.s32.totalorder %s36, %s37
    %p48 = scmp.eq.s32.totalorder %s14, 0
    %p49 = por %p47, %p48
    %p50 = scmp.ne.s32.totalorder %s36, %s37
    %p51 = scmp.eq.s32.totalorder %s15, 1
    %p52 = por %p50, %p51
    %p54 = scmp.ne.s32.totalorder %s37, %s53
    %p55 = scmp.eq.s32.totalorder %s15, 0
    %p56 = por %p54, %p55
    %s57 = ssub.s32 %s17, %s24
    %p58 = scmp.eq.s32.totalorder %s57, 0
    %s60 = sadd.s32 %s59, 1
    %s61 = scalar_select %p58, %s59, %s60
    %p64 = pneg %p58
    %p65 = scmp.eq.s32.totalorder %s9, 1
    %p66 = por %p64, %p65
    %p67 = scmp.ne.s32.totalorder %s59, %s62
    %p68 = scmp.eq.s32.totalorder %s9, 0
    %p69 = por %p67, %p68
    %p70 = scmp.ne.s32.totalorder %s59, %s62
    %p71 = scmp.eq.s32.totalorder %s14, 1
    %p72 = por %p70, %p71
    %p73 = scmp.ne.s32.totalorder %s62, %s63
    %p74 = scmp.eq.s32.totalorder %s14, 0
    %p75 = por %p73, %p74
    %p76 = scmp.ne.s32.totalorder %s62, %s63
    %p77 = scmp.eq.s32.totalorder %s15, 1
    %p78 = por %p76, %p77
    %p80 = scmp.ne.s32.totalorder %s63, %s79
    %p81 = scmp.eq.s32.totalorder %s15, 0
    %p82 = por %p80, %p81
    %s83 = ssub.s32 %s17, %s24
    %p84 = scmp.eq.s32.totalorder %s83, 0
    %s86 = sadd.s32 %s85, 1
    %s87 = scalar_select %p84, %s85, %s86
    %p90 = pneg %p84
    %p91 = scmp.eq.s32.totalorder %s9, 1
    %p92 = por %p90, %p91
    %p93 = scmp.ne.s32.totalorder %s85, %s88
    %p94 = scmp.eq.s32.totalorder %s9, 0
    %p95 = por %p93, %p94
    %p96 = scmp.ne.s32.totalorder %s85, %s88
    %p97 = scmp.eq.s32.totalorder %s14, 1
    %p98 = por %p96, %p97
    %p99 = scmp.ne.s32.totalorder %s88, %s89
    %p100 = scmp.eq.s32.totalorder %s14, 0
    %p101 = por %p99, %p100
    %p102 = scmp.ne.s32.totalorder %s88, %s89
    %p103 = scmp.eq.s32.totalorder %s15, 1
    %p104 = por %p102, %p103
    %p106 = scmp.ne.s32.totalorder %s89, %s105
    %p107 = scmp.eq.s32.totalorder %s15, 0
    %p108 = por %p106, %p107
    %s109 = ssub.s32 %s16, %s28
    %s110 = ssub.s32 %s17, %s24
    %s111 = sor.u32 %s109, %s110
    %p112 = scmp.eq.s32.totalorder %s111, 0
    %s114 = sadd.s32 %s113, 1
    %s115 = scalar_select %p112, %s113, %s114
    %p118 = pneg %p112
    %p119 = scmp.eq.s32.totalorder %s9, 1
    %p120 = por %p118, %p119
    %p121 = scmp.ne.s32.totalorder %s113, %s116
    %p122 = scmp.eq.s32.totalorder %s9, 0
    %p123 = por %p121, %p122
    %p124 = scmp.ne.s32.totalorder %s113, %s116
    %p125 = scmp.eq.s32.totalorder %s14, 1
    %p126 = por %p124, %p125
    %p127 = scmp.ne.s32.totalorder %s116, %s117
    %p128 = scmp.eq.s32.totalorder %s14, 0
    %p129 = por %p127, %p128
    %p130 = scmp.ne.s32.totalorder %s116, %s117
    %p131 = scmp.eq.s32.totalorder %s15, 1
    %p132 = por %p130, %p131
    %p134 = scmp.ne.s32.totalorder %s117, %s133
    %p135 = scmp.eq.s32.totalorder %s15, 0
    %p136 = por %p134, %p135
    %p137 = scmp.le.s32.totalorder 1, %s9
    %p138 = scmp.lt.s32.totalorder %s9, 3
    %p139 = pnand %p137, %p138
    %p140 = pneg %p139
    // Predicated region
    $region9: #{_lambda_.23} parent=5 // pred_check
      _
    $region10: #{_lambda_.23} parent=5 // pred_check_branch
      %142 = sbr.rel (%p139) target = $region12
    $region11: #{_lambda_.23} parent=5 // pred_region
      %s143 = ssub.s32 %s9, 1
      // Predicated region
      $region13: #{_lambda_.23} parent=11 // pred_check
        %p144 = pneg %p75
      $region14: #{_lambda_.23} parent=11 // pred_check_branch
        %146 = sbr.rel (%p144) target = $region16
      $region15: #{_lambda_.23} parent=11 // pred_region
        %p147 = scmp.lt.s32.totalorder %s19, 0
        %s148 = scalar_select %p147, %s19, 0
        %s149 = smul.addr %s148, 4
        %s150 = scalar_lea.vmem %s1, %s149
      $region16: #{_lambda_.23} parent=11 // pred_fallthru
        _
      // Predicated region
      $region17: #{_lambda_.23} parent=11 // pred_check
        %p151 = pneg %p101
      $region18: #{_lambda_.23} parent=11 // pred_check_branch
        %153 = sbr.rel (%p151) target = $region20
      $region19: #{_lambda_.23} parent=11 // pred_region
        %p154 = scmp.lt.s32.totalorder %s19, 0
        %s155 = scalar_select %p154, %s19, 0
        %s156 = scalar_lea.vmem %s2, %s155
      $region20: #{_lambda_.23} parent=11 // pred_fallthru
        _
    $region12: #{_lambda_.23} parent=5 // pred_fallthru
      _
    %p157 = scmp.lt.s32.totalorder %s9, 2
    // Predicated region
    $region21: #{_lambda_.23} parent=5 // pred_check
      %p158 = pneg %p157
    $region22: #{_lambda_.23} parent=5 // pred_check_branch
      %160 = sbr.rel (%p158) target = $region24
    $region23: #{_lambda_.23} parent=5 // pred_region
      // Predicated region
      $region25: #{_lambda_.23} parent=23 // pred_check
        %p161 = pneg %p43
      $region26: #{_lambda_.23} parent=23 // pred_check_branch
        %163 = sbr.rel (%p161) target = $region28
      $region27: #{_lambda_.23} parent=23 // pred_region
        %p164 = scmp.lt.s32.totalorder %s16, 1
        %s165 = scalar_select %p164, %s16, 1
        %p166 = scmp.lt.s32.totalorder %s17, 0
        %s167 = scalar_select %p166, %s17, 0
        %s168 = smul.addr %s165, 24
        %s169 = sadd.s32 %s167, %s168
        %s170 = smul.addr %s169, 4
        %s171 = scalar_lea.vmem %s0, %s170
      $region28: #{_lambda_.23} parent=23 // pred_fallthru
        _
    $region24: #{_lambda_.23} parent=5 // pred_fallthru
      _
    %p172 = scmp.le.s32.totalorder 1, %s9
    %p173 = scmp.lt.s32.totalorder %s9, 3
    %p174 = pnand %p172, %p173
    %p175 = pneg %p174
    // Predicated region
    $region29: #{_lambda_.23} parent=5 // pred_check
      _
    $region30: #{_lambda_.23} parent=5 // pred_check_branch
      %177 = sbr.rel (%p174) target = $region32
    $region31: #{_lambda_.23} parent=5 // pred_region
      %s178 = ssub.s32 %s9, 1
      %p179 = scmp.lt.s32.totalorder %s18, 1
      %s180 = scalar_select %p179, %s18, 1
      %p181 = scmp.lt.s32.totalorder %s19, 0
      %s182 = scalar_select %p181, %s19, 0
      %s183 = smul.addr %s180, 24
      %s184 = sadd.s32 %s182, %s183
      %s185 = smul.addr %s184, 4
      %s186 = scalar_lea.vmem %s0, %s185
      %p187 = pneg %p49
      %p188 = pneg %p46
      %p189 = scmp.lt.s32.totalorder %s19, 0
      %s190 = scalar_select %p189, %s19, 0
      %s191 = smul.addr %s190, 4
      %s192 = scalar_lea.vmem %s1, %s191
      %p193 = pneg %p75
      %p194 = pneg %p72
      %p195 = scmp.lt.s32.totalorder %s19, 0
      %s196 = scalar_select %p195, %s19, 0
      %s197 = scalar_lea.vmem %s2, %s196
      %p198 = pneg %p101
      %p199 = pneg %p98
      %p200 = pneg %p129
      %p201 = pneg %p126
      %p202 = scmp.lt.s32.totalorder %s18, 1
      %s203 = scalar_select %p202, %s18, 1
      %p204 = scmp.lt.s32.totalorder %s19, 0
      %s205 = scalar_select %p204, %s19, 0
      %s206 = smul.addr %s203, 8
      %s207 = sadd.s32 %s205, %s206
      %s208 = smul.addr %s207, 4
      %s209 = scalar_lea.vmem %s3, %s208
      %p210 = scmp.lt.s32.totalorder %s18, 1
      %s211 = scalar_select %p210, %s18, 1
      %p212 = scmp.lt.s32.totalorder %s19, 0
      %s213 = scalar_select %p212, %s19, 0
      %s214 = smul.addr %s211, 24
      %s215 = sadd.s32 %s213, %s214
      %s216 = smul.addr %s215, 4
      %s217 = scalar_lea.vmem %s0, %s216
      %p218 = scmp.lt.s32.totalorder %s19, 0
      %s219 = scalar_select %p218, %s19, 0
      %s220 = smul.addr %s219, 4
      %s221 = scalar_lea.vmem %s1, %s220
      %p222 = scmp.lt.s32.totalorder %s19, 0
      %s223 = scalar_select %p222, %s19, 0
      %s224 = scalar_lea.vmem %s2, %s223
      %p225 = scmp.lt.s32.totalorder %s18, 1
      %s226 = scalar_select %p225, %s18, 1
      %p227 = scmp.lt.s32.totalorder %s19, 0
      %s228 = scalar_select %p227, %s19, 0
      %s229 = smul.addr %s226, 8
      %s230 = sadd.s32 %s228, %s229
      %s231 = smul.addr %s230, 4
      %s232 = scalar_lea.vmem %s3, %s231
      %v233 = vld [vmem:[%s217] sm:$0xf]
      %v234 = vld [vmem:[%s217 + $0x4] sm:$0x3]
      %v235 = vld [vmem:[%s217 + $0x8] sm:$0xf]
      %v236 = vld [vmem:[%s217 + $0xc] sm:$0x3]
      %v237 = vld [vmem:[%s217 + $0x10] sm:$0xf]
      %v238 = vld [vmem:[%s217 + $0x14] sm:$0x3]
      %v239 = vld [vmem:[%s217 + $0x18] sm:$0xf]
      %v240 = vld [vmem:[%s217 + $0x1c] sm:$0x3]
      %v241 = vld [vmem:[%s217 + $0x20] sm:$0xf]
      %v242 = vld [vmem:[%s217 + $0x24] sm:$0x3]
      %v243 = vld [vmem:[%s217 + $0x28] sm:$0xf]
      %v244 = vld [vmem:[%s217 + $0x2c] sm:$0x3]
      %v245 = vld [vmem:[%s217 + $0x30] sm:$0xf]
      %v246 = vld [vmem:[%s217 + $0x34] sm:$0x3]
      %v247 = vld [vmem:[%s217 + $0x38] sm:$0xf]
      %v248 = vld [vmem:[%s217 + $0x3c] sm:$0x3]
      %v249 = vld [vmem:[%s217 + $0x40] sm:$0xf]
      %v250 = vld [vmem:[%s217 + $0x44] sm:$0x3]
      %v251 = vld [vmem:[%s217 + $0x48] sm:$0xf]
      %v252 = vld [vmem:[%s217 + $0x4c] sm:$0x3]
      %v253 = vld [vmem:[%s217 + $0x50] sm:$0xf]
      %v254 = vld [vmem:[%s217 + $0x54] sm:$0x3]
      %v255 = vld [vmem:[%s217 + $0x58] sm:$0xf]
      %v256 = vld [vmem:[%s217 + $0x5c] sm:$0x3]
      %v257 = vunpack.c.l.bf16 %v233
      %v258 = vunpack.c.l.bf16 %v234
      %v259 = vunpack.c.l.bf16 %v235
      %v260 = vunpack.c.l.bf16 %v236
      %v261 = vunpack.c.l.bf16 %v237
      %v262 = vunpack.c.l.bf16 %v238
      %v263 = vunpack.c.l.bf16 %v239
      %v264 = vunpack.c.l.bf16 %v240
      %v265 = vunpack.c.l.bf16 %v241
      %v266 = vunpack.c.l.bf16 %v242
      %v267 = vunpack.c.l.bf16 %v243
      %v268 = vunpack.c.l.bf16 %v244
      %v269 = vunpack.c.l.bf16 %v245
      %v270 = vunpack.c.l.bf16 %v246
      %v271 = vunpack.c.l.bf16 %v247
      %v272 = vunpack.c.l.bf16 %v248
      %v273 = vunpack.c.l.bf16 %v249
      %v274 = vunpack.c.l.bf16 %v250
      %v275 = vunpack.c.l.bf16 %v251
      %v276 = vunpack.c.l.bf16 %v252
      %v277 = vunpack.c.l.bf16 %v253
      %v278 = vunpack.c.l.bf16 %v254
      %v279 = vunpack.c.l.bf16 %v255
      %v280 = vunpack.c.l.bf16 %v256
      %v281 = vld [vmem:[%s221] sm:$0xf]
      %v282 = vld [vmem:[%s221 + $0x4] sm:$0xf]
      %v283 = vld [vmem:[%s221 + $0x8] sm:$0xf]
      %v284 = vld [vmem:[%s221 + $0xc] sm:$0x1]
      %v285 = vunpack.c.l.bf16 %v281
      %v286 = vunpack.c.l.bf16 %v282
      %v287 = vunpack.c.l.bf16 %v283
      %v288 = vunpack.c.l.bf16 %v284
      %v289 = vlaneseq
      %v290 = vshrl.u32 %v289, 7
      %v291 = vsub.s32 0, %v290
      %v292 = vrot.slane %v285, %v291
      %v293 = vmul.f32 %v257, %v292
      %v294 = vmul.f32 %v259, %v292
      %v295 = vmul.f32 %v261, %v292
      %v296 = vmul.f32 %v263, %v292
      %v297 = vmul.f32 %v265, %v292
      %v298 = vmul.f32 %v267, %v292
      %v299 = vmul.f32 %v269, %v292
      %v300 = vmul.f32 %v271, %v292
      %v301 = vadd.f32 %v293, 0.0
      %v302 = vadd.f32 %v294, 0.0
      %v303 = vadd.f32 %v295, 0.0
      %v304 = vadd.f32 %v296, 0.0
      %v305 = vadd.f32 %v297, 0.0
      %v306 = vadd.f32 %v298, 0.0
      %v307 = vadd.f32 %v299, 0.0
      %v308 = vadd.f32 %v300, 0.0
      %v309 = vlaneseq
      %v310 = vshrl.u32 %v309, 7
      %v311 = vsub.s32 1, %v310
      %v312 = vrot.slane %v285, %v311
      %v313 = vmul.f32 %v257, %v312
      %v314 = vmul.f32 %v258, %v312
      %v315 = vmul.f32 %v259, %v312
      %v316 = vmul.f32 %v260, %v312
      %v317 = vmul.f32 %v261, %v312
      %v318 = vmul.f32 %v262, %v312
      %v319 = vmul.f32 %v263, %v312
      %v320 = vmul.f32 %v264, %v312
      %v321 = vmul.f32 %v265, %v312
      %v322 = vmul.f32 %v266, %v312
      %v323 = vmul.f32 %v267, %v312
      %v324 = vmul.f32 %v268, %v312
      %v325 = vmul.f32 %v269, %v312
      %v326 = vmul.f32 %v270, %v312
      %v327 = vmul.f32 %v271, %v312
      %v328 = vmul.f32 %v272, %v312
      %vm345 = vcmask 1046528
      %v346 = vrot.slane %v313, 1
      %v347 = vrot.slane %v314, 1
      %v348 = vsel %vm345, %v346, %v347
      %v349 = vrot.slane %v315, 1
      %v350 = vrot.slane %v316, 1
      %v351 = vsel %vm345, %v349, %v350
      %v352 = vrot.slane %v317, 1
      %v353 = vrot.slane %v318, 1
      %v354 = vsel %vm345, %v352, %v353
      %v355 = vrot.slane %v319, 1
      %v356 = vrot.slane %v320, 1
      %v357 = vsel %vm345, %v355, %v356
      %v358 = vrot.slane %v321, 1
      %v359 = vrot.slane %v322, 1
      %v360 = vsel %vm345, %v358, %v359
      %v361 = vrot.slane %v323, 1
      %v362 = vrot.slane %v324, 1
      %v363 = vsel %vm345, %v361, %v362
      %v364 = vrot.slane %v325, 1
      %v365 = vrot.slane %v326, 1
      %v366 = vsel %vm345, %v364, %v365
      %v367 = vrot.slane %v327, 1
      %v368 = vrot.slane %v328, 1
      %v369 = vsel %vm345, %v367, %v368
      %v378 = vadd.f32 %v301, %v348
      %v379 = vadd.f32 %v302, %v351
      %v380 = vadd.f32 %v303, %v354
      %v381 = vadd.f32 %v304, %v357
      %v382 = vadd.f32 %v305, %v360
      %v383 = vadd.f32 %v306, %v363
      %v384 = vadd.f32 %v307, %v366
      %v385 = vadd.f32 %v308, %v369
      %v386 = vlaneseq
      %v387 = vshrl.u32 %v386, 7
      %v388 = vsub.s32 2, %v387
      %v389 = vrot.slane %v285, %v388
      %v390 = vmul.f32 %v257, %v389
      %v391 = vmul.f32 %v258, %v389
      %v392 = vmul.f32 %v259, %v389
      %v393 = vmul.f32 %v260, %v389
      %v394 = vmul.f32 %v261, %v389
      %v395 = vmul.f32 %v262, %v389
      %v396 = vmul.f32 %v263, %v389
      %v397 = vmul.f32 %v264, %v389
      %v398 = vmul.f32 %v265, %v389
      %v399 = vmul.f32 %v266, %v389
      %v400 = vmul.f32 %v267, %v389
      %v401 = vmul.f32 %v268, %v389
      %v402 = vmul.f32 %v269, %v389
      %v403 = vmul.f32 %v270, %v389
      %v404 = vmul.f32 %v271, %v389
      %v405 = vmul.f32 %v272, %v389
      %vm422 = vcmask 1045504
      %v423 = vrot.slane %v390, 2
      %v424 = vrot.slane %v391, 2
      %v425 = vsel %vm422, %v423, %v424
      %v426 = vrot.slane %v392, 2
      %v427 = vrot.slane %v393, 2
      %v428 = vsel %vm422, %v426, %v427
      %v429 = vrot.slane %v394, 2
      %v430 = vrot.slane %v395, 2
      %v431 = vsel %vm422, %v429, %v430
      %v432 = vrot.slane %v396, 2
      %v433 = vrot.slane %v397, 2
      %v434 = vsel %vm422, %v432, %v433
      %v435 = vrot.slane %v398, 2
      %v436 = vrot.slane %v399, 2
      %v437 = vsel %vm422, %v435, %v436
      %v438 = vrot.slane %v400, 2
      %v439 = vrot.slane %v401, 2
      %v440 = vsel %vm422, %v438, %v439
      %v441 = vrot.slane %v402, 2
      %v442 = vrot.slane %v403, 2
      %v443 = vsel %vm422, %v441, %v442
      %v444 = vrot.slane %v404, 2
      %v445 = vrot.slane %v405, 2
      %v446 = vsel %vm422, %v444, %v445
      %v455 = vadd.f32 %v378, %v425
      %v456 = vadd.f32 %v379, %v428
      %v457 = vadd.f32 %v380, %v431
      %v458 = vadd.f32 %v381, %v434
      %v459 = vadd.f32 %v382, %v437
      %v460 = vadd.f32 %v383, %v440
      %v461 = vadd.f32 %v384, %v443
      %v462 = vadd.f32 %v385, %v446
      %v463 = vlaneseq
      %v464 = vshrl.u32 %v463, 7
      %v465 = vsub.s32 3, %v464
      %v466 = vrot.slane %v285, %v465
      %v467 = vmul.f32 %v257, %v466
      %v468 = vmul.f32 %v258, %v466
      %v469 = vmul.f32 %v259, %v466
      %v470 = vmul.f32 %v260, %v466
      %v471 = vmul.f32 %v261, %v466
      %v472 = vmul.f32 %v262, %v466
      %v473 = vmul.f32 %v263, %v466
      %v474 = vmul.f32 %v264, %v466
      %v475 = vmul.f32 %v265, %v466
      %v476 = vmul.f32 %v266, %v466
      %v477 = vmul.f32 %v267, %v466
      %v478 = vmul.f32 %v268, %v466
      %v479 = vmul.f32 %v269, %v466
      %v480 = vmul.f32 %v270, %v466
      %v481 = vmul.f32 %v271, %v466
      %v482 = vmul.f32 %v272, %v466
      %vm499 = vcmask 1044480
      %v500 = vrot.slane %v467, 3
      %v501 = vrot.slane %v468, 3
      %v502 = vsel %vm499, %v500, %v501
      %v503 = vrot.slane %v469, 3
      %v504 = vrot.slane %v470, 3
      %v505 = vsel %vm499, %v503, %v504
      %v506 = vrot.slane %v471, 3
      %v507 = vrot.slane %v472, 3
      %v508 = vsel %vm499, %v506, %v507
      %v509 = vrot.slane %v473, 3
      %v510 = vrot.slane %v474, 3
      %v511 = vsel %vm499, %v509, %v510
      %v512 = vrot.slane %v475, 3
      %v513 = vrot.slane %v476, 3
      %v514 = vsel %vm499, %v512, %v513
      %v515 = vrot.slane %v477, 3
      %v516 = vrot.slane %v478, 3
      %v517 = vsel %vm499, %v515, %v516
      %v518 = vrot.slane %v479, 3
      %v519 = vrot.slane %v480, 3
      %v520 = vsel %vm499, %v518, %v519
      %v521 = vrot.slane %v481, 3
      %v522 = vrot.slane %v482, 3
      %v523 = vsel %vm499, %v521, %v522
      %v532 = vadd.f32 %v455, %v502
      %v533 = vadd.f32 %v456, %v505
      %v534 = vadd.f32 %v457, %v508
      %v535 = vadd.f32 %v458, %v511
      %v536 = vadd.f32 %v459, %v514
      %v537 = vadd.f32 %v460, %v517
      %v538 = vadd.f32 %v461, %v520
      %v539 = vadd.f32 %v462, %v523
      %v540 = vlaneseq
      %v541 = vshrl.u32 %v540, 7
      %v542 = vsub.s32 4, %v541
      %v543 = vrot.slane %v285, %v542
      %v544 = vmul.f32 %v257, %v543
      %v545 = vmul.f32 %v258, %v543
      %v546 = vmul.f32 %v259, %v543
      %v547 = vmul.f32 %v260, %v543
      %v548 = vmul.f32 %v261, %v543
      %v549 = vmul.f32 %v262, %v543
      %v550 = vmul.f32 %v263, %v543
      %v551 = vmul.f32 %v264, %v543
      %v552 = vmul.f32 %v265, %v543
      %v553 = vmul.f32 %v266, %v543
      %v554 = vmul.f32 %v267, %v543
      %v555 = vmul.f32 %v268, %v543
      %v556 = vmul.f32 %v269, %v543
      %v557 = vmul.f32 %v270, %v543
      %v558 = vmul.f32 %v271, %v543
      %v559 = vmul.f32 %v272, %v543
      %vm576 = vcmask 1043456
      %v577 = vrot.slane %v544, 4
      %v578 = vrot.slane %v545, 4
      %v579 = vsel %vm576, %v577, %v578
      %v580 = vrot.slane %v546, 4
      %v581 = vrot.slane %v547, 4
      %v582 = vsel %vm576, %v580, %v581
      %v583 = vrot.slane %v548, 4
      %v584 = vrot.slane %v549, 4
      %v585 = vsel %vm576, %v583, %v584
      %v586 = vrot.slane %v550, 4
      %v587 = vrot.slane %v551, 4
      %v588 = vsel %vm576, %v586, %v587
      %v589 = vrot.slane %v552, 4
      %v590 = vrot.slane %v553, 4
      %v591 = vsel %vm576, %v589, %v590
      %v592 = vrot.slane %v554, 4
      %v593 = vrot.slane %v555, 4
      %v594 = vsel %vm576, %v592, %v593
      %v595 = vrot.slane %v556, 4
      %v596 = vrot.slane %v557, 4
      %v597 = vsel %vm576, %v595, %v596
      %v598 = vrot.slane %v558, 4
      %v599 = vrot.slane %v559, 4
      %v600 = vsel %vm576, %v598, %v599
      %v609 = vadd.f32 %v532, %v579
      %v610 = vadd.f32 %v533, %v582
      %v611 = vadd.f32 %v534, %v585
      %v612 = vadd.f32 %v535, %v588
      %v613 = vadd.f32 %v536, %v591
      %v614 = vadd.f32 %v537, %v594
      %v615 = vadd.f32 %v538, %v597
      %v616 = vadd.f32 %v539, %v600
      %v617 = vlaneseq
      %v618 = vshrl.u32 %v617, 7
      %v619 = vsub.s32 5, %v618
      %v620 = vrot.slane %v285, %v619
      %v621 = vmul.f32 %v259, %v620
      %v622 = vmul.f32 %v261, %v620
      %v623 = vmul.f32 %v263, %v620
      %v624 = vmul.f32 %v265, %v620
      %v625 = vmul.f32 %v267, %v620
      %v626 = vmul.f32 %v269, %v620
      %v627 = vmul.f32 %v271, %v620
      %v628 = vmul.f32 %v273, %v620
      %v629 = vadd.f32 %v609, %v621
      %v630 = vadd.f32 %v610, %v622
      %v631 = vadd.f32 %v611, %v623
      %v632 = vadd.f32 %v612, %v624
      %v633 = vadd.f32 %v613, %v625
      %v634 = vadd.f32 %v614, %v626
      %v635 = vadd.f32 %v615, %v627
      %v636 = vadd.f32 %v616, %v628
      %v637 = vlaneseq
      %v638 = vshrl.u32 %v637, 7
      %v639 = vsub.s32 6, %v638
      %v640 = vrot.slane %v285, %v639
      %v641 = vmul.f32 %v259, %v640
      %v642 = vmul.f32 %v260, %v640
      %v643 = vmul.f32 %v261, %v640
      %v644 = vmul.f32 %v262, %v640
      %v645 = vmul.f32 %v263, %v640
      %v646 = vmul.f32 %v264, %v640
      %v647 = vmul.f32 %v265, %v640
      %v648 = vmul.f32 %v266, %v640
      %v649 = vmul.f32 %v267, %v640
      %v650 = vmul.f32 %v268, %v640
      %v651 = vmul.f32 %v269, %v640
      %v652 = vmul.f32 %v270, %v640
      %v653 = vmul.f32 %v271, %v640
      %v654 = vmul.f32 %v272, %v640
      %v655 = vmul.f32 %v273, %v640
      %v656 = vmul.f32 %v274, %v640
      %v673 = vrot.slane %v641, 1
      %v674 = vrot.slane %v642, 1
      %v675 = vsel %vm345, %v673, %v674
      %v676 = vrot.slane %v643, 1
      %v677 = vrot.slane %v644, 1
      %v678 = vsel %vm345, %v676, %v677
      %v679 = vrot.slane %v645, 1
      %v680 = vrot.slane %v646, 1
      %v681 = vsel %vm345, %v679, %v680
      %v682 = vrot.slane %v647, 1
      %v683 = vrot.slane %v648, 1
      %v684 = vsel %vm345, %v682, %v683
      %v685 = vrot.slane %v649, 1
      %v686 = vrot.slane %v650, 1
      %v687 = vsel %vm345, %v685, %v686
      %v688 = vrot.slane %v651, 1
      %v689 = vrot.slane %v652, 1
      %v690 = vsel %vm345, %v688, %v689
      %v691 = vrot.slane %v653, 1
      %v692 = vrot.slane %v654, 1
      %v693 = vsel %vm345, %v691, %v692
      %v694 = vrot.slane %v655, 1
      %v695 = vrot.slane %v656, 1
      %v696 = vsel %vm345, %v694, %v695
      %v705 = vadd.f32 %v629, %v675
      %v706 = vadd.f32 %v630, %v678
      %v707 = vadd.f32 %v631, %v681
      %v708 = vadd.f32 %v632, %v684
      %v709 = vadd.f32 %v633, %v687
      %v710 = vadd.f32 %v634, %v690
      %v711 = vadd.f32 %v635, %v693
      %v712 = vadd.f32 %v636, %v696
      %v713 = vlaneseq
      %v714 = vshrl.u32 %v713, 7
      %v715 = vsub.s32 7, %v714
      %v716 = vrot.slane %v285, %v715
      %v717 = vmul.f32 %v259, %v716
      %v718 = vmul.f32 %v260, %v716
      %v719 = vmul.f32 %v261, %v716
      %v720 = vmul.f32 %v262, %v716
      %v721 = vmul.f32 %v263, %v716
      %v722 = vmul.f32 %v264, %v716
      %v723 = vmul.f32 %v265, %v716
      %v724 = vmul.f32 %v266, %v716
      %v725 = vmul.f32 %v267, %v716
      %v726 = vmul.f32 %v268, %v716
      %v727 = vmul.f32 %v269, %v716
      %v728 = vmul.f32 %v270, %v716
      %v729 = vmul.f32 %v271, %v716
      %v730 = vmul.f32 %v272, %v716
      %v731 = vmul.f32 %v273, %v716
      %v732 = vmul.f32 %v274, %v716
      %v749 = vrot.slane %v717, 2
      %v750 = vrot.slane %v718, 2
      %v751 = vsel %vm422, %v749, %v750
      %v752 = vrot.slane %v719, 2
      %v753 = vrot.slane %v720, 2
      %v754 = vsel %vm422, %v752, %v753
      %v755 = vrot.slane %v721, 2
      %v756 = vrot.slane %v722, 2
      %v757 = vsel %vm422, %v755, %v756
      %v758 = vrot.slane %v723, 2
      %v759 = vrot.slane %v724, 2
      %v760 = vsel %vm422, %v758, %v759
      %v761 = vrot.slane %v725, 2
      %v762 = vrot.slane %v726, 2
      %v763 = vsel %vm422, %v761, %v762
      %v764 = vrot.slane %v727, 2
      %v765 = vrot.slane %v728, 2
      %v766 = vsel %vm422, %v764, %v765
      %v767 = vrot.slane %v729, 2
      %v768 = vrot.slane %v730, 2
      %v769 = vsel %vm422, %v767, %v768
      %v770 = vrot.slane %v731, 2
      %v771 = vrot.slane %v732, 2
      %v772 = vsel %vm422, %v770, %v771
      %v781 = vadd.f32 %v705, %v751
      %v782 = vadd.f32 %v706, %v754
      %v783 = vadd.f32 %v707, %v757
      %v784 = vadd.f32 %v708, %v760
      %v785 = vadd.f32 %v709, %v763
      %v786 = vadd.f32 %v710, %v766
      %v787 = vadd.f32 %v711, %v769
      %v788 = vadd.f32 %v712, %v772
      %v789 = vlaneseq
      %v790 = vshrl.u32 %v789, 7
      %v791 = vsub.s32 0, %v790
      %v792 = vrot.slane %v286, %v791
      %v793 = vmul.f32 %v259, %v792
      %v794 = vmul.f32 %v260, %v792
      %v795 = vmul.f32 %v261, %v792
      %v796 = vmul.f32 %v262, %v792
      %v797 = vmul.f32 %v263, %v792
      %v798 = vmul.f32 %v264, %v792
      %v799 = vmul.f32 %v265, %v792
      %v800 = vmul.f32 %v266, %v792
      %v801 = vmul.f32 %v267, %v792
      %v802 = vmul.f32 %v268, %v792
      %v803 = vmul.f32 %v269, %v792
      %v804 = vmul.f32 %v270, %v792
      %v805 = vmul.f32 %v271, %v792
      %v806 = vmul.f32 %v272, %v792
      %v807 = vmul.f32 %v273, %v792
      %v808 = vmul.f32 %v274, %v792
      %v825 = vrot.slane %v793, 3
      %v826 = vrot.slane %v794, 3
      %v827 = vsel %vm499, %v825, %v826
      %v828 = vrot.slane %v795, 3
      %v829 = vrot.slane %v796, 3
      %v830 = vsel %vm499, %v828, %v829
      %v831 = vrot.slane %v797, 3
      %v832 = vrot.slane %v798, 3
      %v833 = vsel %vm499, %v831, %v832
      %v834 = vrot.slane %v799, 3
      %v835 = vrot.slane %v800, 3
      %v836 = vsel %vm499, %v834, %v835
      %v837 = vrot.slane %v801, 3
      %v838 = vrot.slane %v802, 3
      %v839 = vsel %vm499, %v837, %v838
      %v840 = vrot.slane %v803, 3
      %v841 = vrot.slane %v804, 3
      %v842 = vsel %vm499, %v840, %v841
      %v843 = vrot.slane %v805, 3
      %v844 = vrot.slane %v806, 3
      %v845 = vsel %vm499, %v843, %v844
      %v846 = vrot.slane %v807, 3
      %v847 = vrot.slane %v808, 3
      %v848 = vsel %vm499, %v846, %v847
      %v857 = vadd.f32 %v781, %v827
      %v858 = vadd.f32 %v782, %v830
      %v859 = vadd.f32 %v783, %v833
      %v860 = vadd.f32 %v784, %v836
      %v861 = vadd.f32 %v785, %v839
      %v862 = vadd.f32 %v786, %v842
      %v863 = vadd.f32 %v787, %v845
      %v864 = vadd.f32 %v788, %v848
      %v865 = vlaneseq
      %v866 = vshrl.u32 %v865, 7
      %v867 = vsub.s32 1, %v866
      %v868 = vrot.slane %v286, %v867
      %v869 = vmul.f32 %v259, %v868
      %v870 = vmul.f32 %v260, %v868
      %v871 = vmul.f32 %v261, %v868
      %v872 = vmul.f32 %v262, %v868
      %v873 = vmul.f32 %v263, %v868
      %v874 = vmul.f32 %v264, %v868
      %v875 = vmul.f32 %v265, %v868
      %v876 = vmul.f32 %v266, %v868
      %v877 = vmul.f32 %v267, %v868
      %v878 = vmul.f32 %v268, %v868
      %v879 = vmul.f32 %v269, %v868
      %v880 = vmul.f32 %v270, %v868
      %v881 = vmul.f32 %v271, %v868
      %v882 = vmul.f32 %v272, %v868
      %v883 = vmul.f32 %v273, %v868
      %v884 = vmul.f32 %v274, %v868
      %v901 = vrot.slane %v869, 4
      %v902 = vrot.slane %v870, 4
      %v903 = vsel %vm576, %v901, %v902
      %v904 = vrot.slane %v871, 4
      %v905 = vrot.slane %v872, 4
      %v906 = vsel %vm576, %v904, %v905
      %v907 = vrot.slane %v873, 4
      %v908 = vrot.slane %v874, 4
      %v909 = vsel %vm576, %v907, %v908
      %v910 = vrot.slane %v875, 4
      %v911 = vrot.slane %v876, 4
      %v912 = vsel %vm576, %v910, %v911
      %v913 = vrot.slane %v877, 4
      %v914 = vrot.slane %v878, 4
      %v915 = vsel %vm576, %v913, %v914
      %v916 = vrot.slane %v879, 4
      %v917 = vrot.slane %v880, 4
      %v918 = vsel %vm576, %v916, %v917
      %v919 = vrot.slane %v881, 4
      %v920 = vrot.slane %v882, 4
      %v921 = vsel %vm576, %v919, %v920
      %v922 = vrot.slane %v883, 4
      %v923 = vrot.slane %v884, 4
      %v924 = vsel %vm576, %v922, %v923
      %v933 = vadd.f32 %v857, %v903
      %v934 = vadd.f32 %v858, %v906
      %v935 = vadd.f32 %v859, %v909
      %v936 = vadd.f32 %v860, %v912
      %v937 = vadd.f32 %v861, %v915
      %v938 = vadd.f32 %v862, %v918
      %v939 = vadd.f32 %v863, %v921
      %v940 = vadd.f32 %v864, %v924
      %v941 = vlaneseq
      %v942 = vshrl.u32 %v941, 7
      %v943 = vsub.s32 2, %v942
      %v944 = vrot.slane %v286, %v943
      %v945 = vmul.f32 %v261, %v944
      %v946 = vmul.f32 %v263, %v944
      %v947 = vmul.f32 %v265, %v944
      %v948 = vmul.f32 %v267, %v944
      %v949 = vmul.f32 %v269, %v944
      %v950 = vmul.f32 %v271, %v944
      %v951 = vmul.f32 %v273, %v944
      %v952 = vmul.f32 %v275, %v944
      %v953 = vadd.f32 %v933, %v945
      %v954 = vadd.f32 %v934, %v946
      %v955 = vadd.f32 %v935, %v947
      %v956 = vadd.f32 %v936, %v948
      %v957 = vadd.f32 %v937, %v949
      %v958 = vadd.f32 %v938, %v950
      %v959 = vadd.f32 %v939, %v951
      %v960 = vadd.f32 %v940, %v952
      %v961 = vlaneseq
      %v962 = vshrl.u32 %v961, 7
      %v963 = vsub.s32 3, %v962
      %v964 = vrot.slane %v286, %v963
      %v965 = vmul.f32 %v261, %v964
      %v966 = vmul.f32 %v262, %v964
      %v967 = vmul.f32 %v263, %v964
      %v968 = vmul.f32 %v264, %v964
      %v969 = vmul.f32 %v265, %v964
      %v970 = vmul.f32 %v266, %v964
      %v971 = vmul.f32 %v267, %v964
      %v972 = vmul.f32 %v268, %v964
      %v973 = vmul.f32 %v269, %v964
      %v974 = vmul.f32 %v270, %v964
      %v975 = vmul.f32 %v271, %v964
      %v976 = vmul.f32 %v272, %v964
      %v977 = vmul.f32 %v273, %v964
      %v978 = vmul.f32 %v274, %v964
      %v979 = vmul.f32 %v275, %v964
      %v980 = vmul.f32 %v276, %v964
      %v997 = vrot.slane %v965, 1
      %v998 = vrot.slane %v966, 1
      %v999 = vsel %vm345, %v997, %v998
      %v1000 = vrot.slane %v967, 1
      %v1001 = vrot.slane %v968, 1
      %v1002 = vsel %vm345, %v1000, %v1001
      %v1003 = vrot.slane %v969, 1
      %v1004 = vrot.slane %v970, 1
      %v1005 = vsel %vm345, %v1003, %v1004
      %v1006 = vrot.slane %v971, 1
      %v1007 = vrot.slane %v972, 1
      %v1008 = vsel %vm345, %v1006, %v1007
      %v1009 = vrot.slane %v973, 1
      %v1010 = vrot.slane %v974, 1
      %v1011 = vsel %vm345, %v1009, %v1010
      %v1012 = vrot.slane %v975, 1
      %v1013 = vrot.slane %v976, 1
      %v1014 = vsel %vm345, %v1012, %v1013
      %v1015 = vrot.slane %v977, 1
      %v1016 = vrot.slane %v978, 1
      %v1017 = vsel %vm345, %v1015, %v1016
      %v1018 = vrot.slane %v979, 1
      %v1019 = vrot.slane %v980, 1
      %v1020 = vsel %vm345, %v1018, %v1019
      %v1029 = vadd.f32 %v953, %v999
      %v1030 = vadd.f32 %v954, %v1002
      %v1031 = vadd.f32 %v955, %v1005
      %v1032 = vadd.f32 %v956, %v1008
      %v1033 = vadd.f32 %v957, %v1011
      %v1034 = vadd.f32 %v958, %v1014
      %v1035 = vadd.f32 %v959, %v1017
      %v1036 = vadd.f32 %v960, %v1020
      %v1037 = vlaneseq
      %v1038 = vshrl.u32 %v1037, 7
      %v1039 = vsub.s32 4, %v1038
      %v1040 = vrot.slane %v286, %v1039
      %v1041 = vmul.f32 %v261, %v1040
      %v1042 = vmul.f32 %v262, %v1040
      %v1043 = vmul.f32 %v263, %v1040
      %v1044 = vmul.f32 %v264, %v1040
      %v1045 = vmul.f32 %v265, %v1040
      %v1046 = vmul.f32 %v266, %v1040
      %v1047 = vmul.f32 %v267, %v1040
      %v1048 = vmul.f32 %v268, %v1040
      %v1049 = vmul.f32 %v269, %v1040
      %v1050 = vmul.f32 %v270, %v1040
      %v1051 = vmul.f32 %v271, %v1040
      %v1052 = vmul.f32 %v272, %v1040
      %v1053 = vmul.f32 %v273, %v1040
      %v1054 = vmul.f32 %v274, %v1040
      %v1055 = vmul.f32 %v275, %v1040
      %v1056 = vmul.f32 %v276, %v1040
      %v1073 = vrot.slane %v1041, 2
      %v1074 = vrot.slane %v1042, 2
      %v1075 = vsel %vm422, %v1073, %v1074
      %v1076 = vrot.slane %v1043, 2
      %v1077 = vrot.slane %v1044, 2
      %v1078 = vsel %vm422, %v1076, %v1077
      %v1079 = vrot.slane %v1045, 2
      %v1080 = vrot.slane %v1046, 2
      %v1081 = vsel %vm422, %v1079, %v1080
      %v1082 = vrot.slane %v1047, 2
      %v1083 = vrot.slane %v1048, 2
      %v1084 = vsel %vm422, %v1082, %v1083
      %v1085 = vrot.slane %v1049, 2
      %v1086 = vrot.slane %v1050, 2
      %v1087 = vsel %vm422, %v1085, %v1086
      %v1088 = vrot.slane %v1051, 2
      %v1089 = vrot.slane %v1052, 2
      %v1090 = vsel %vm422, %v1088, %v1089
      %v1091 = vrot.slane %v1053, 2
      %v1092 = vrot.slane %v1054, 2
      %v1093 = vsel %vm422, %v1091, %v1092
      %v1094 = vrot.slane %v1055, 2
      %v1095 = vrot.slane %v1056, 2
      %v1096 = vsel %vm422, %v1094, %v1095
      %v1105 = vadd.f32 %v1029, %v1075
      %v1106 = vadd.f32 %v1030, %v1078
      %v1107 = vadd.f32 %v1031, %v1081
      %v1108 = vadd.f32 %v1032, %v1084
      %v1109 = vadd.f32 %v1033, %v1087
      %v1110 = vadd.f32 %v1034, %v1090
      %v1111 = vadd.f32 %v1035, %v1093
      %v1112 = vadd.f32 %v1036, %v1096
      %v1113 = vlaneseq
      %v1114 = vshrl.u32 %v1113, 7
      %v1115 = vsub.s32 5, %v1114
      %v1116 = vrot.slane %v286, %v1115
      %v1117 = vmul.f32 %v261, %v1116
      %v1118 = vmul.f32 %v262, %v1116
      %v1119 = vmul.f32 %v263, %v1116
      %v1120 = vmul.f32 %v264, %v1116
      %v1121 = vmul.f32 %v265, %v1116
      %v1122 = vmul.f32 %v266, %v1116
      %v1123 = vmul.f32 %v267, %v1116
      %v1124 = vmul.f32 %v268, %v1116
      %v1125 = vmul.f32 %v269, %v1116
      %v1126 = vmul.f32 %v270, %v1116
      %v1127 = vmul.f32 %v271, %v1116
      %v1128 = vmul.f32 %v272, %v1116
      %v1129 = vmul.f32 %v273, %v1116
      %v1130 = vmul.f32 %v274, %v1116
      %v1131 = vmul.f32 %v275, %v1116
      %v1132 = vmul.f32 %v276, %v1116
      %v1149 = vrot.slane %v1117, 3
      %v1150 = vrot.slane %v1118, 3
      %v1151 = vsel %vm499, %v1149, %v1150
      %v1152 = vrot.slane %v1119, 3
      %v1153 = vrot.slane %v1120, 3
      %v1154 = vsel %vm499, %v1152, %v1153
      %v1155 = vrot.slane %v1121, 3
      %v1156 = vrot.slane %v1122, 3
      %v1157 = vsel %vm499, %v1155, %v1156
      %v1158 = vrot.slane %v1123, 3
      %v1159 = vrot.slane %v1124, 3
      %v1160 = vsel %vm499, %v1158, %v1159
      %v1161 = vrot.slane %v1125, 3
      %v1162 = vrot.slane %v1126, 3
      %v1163 = vsel %vm499, %v1161, %v1162
      %v1164 = vrot.slane %v1127, 3
      %v1165 = vrot.slane %v1128, 3
      %v1166 = vsel %vm499, %v1164, %v1165
      %v1167 = vrot.slane %v1129, 3
      %v1168 = vrot.slane %v1130, 3
      %v1169 = vsel %vm499, %v1167, %v1168
      %v1170 = vrot.slane %v1131, 3
      %v1171 = vrot.slane %v1132, 3
      %v1172 = vsel %vm499, %v1170, %v1171
      %v1181 = vadd.f32 %v1105, %v1151
      %v1182 = vadd.f32 %v1106, %v1154
      %v1183 = vadd.f32 %v1107, %v1157
      %v1184 = vadd.f32 %v1108, %v1160
      %v1185 = vadd.f32 %v1109, %v1163
      %v1186 = vadd.f32 %v1110, %v1166
      %v1187 = vadd.f32 %v1111, %v1169
      %v1188 = vadd.f32 %v1112, %v1172
      %v1189 = vlaneseq
      %v1190 = vshrl.u32 %v1189, 7
      %v1191 = vsub.s32 6, %v1190
      %v1192 = vrot.slane %v286, %v1191
      %v1193 = vmul.f32 %v261, %v1192
      %v1194 = vmul.f32 %v262, %v1192
      %v1195 = vmul.f32 %v263, %v1192
      %v1196 = vmul.f32 %v264, %v1192
      %v1197 = vmul.f32 %v265, %v1192
      %v1198 = vmul.f32 %v266, %v1192
      %v1199 = vmul.f32 %v267, %v1192
      %v1200 = vmul.f32 %v268, %v1192
      %v1201 = vmul.f32 %v269, %v1192
      %v1202 = vmul.f32 %v270, %v1192
      %v1203 = vmul.f32 %v271, %v1192
      %v1204 = vmul.f32 %v272, %v1192
      %v1205 = vmul.f32 %v273, %v1192
      %v1206 = vmul.f32 %v274, %v1192
      %v1207 = vmul.f32 %v275, %v1192
      %v1208 = vmul.f32 %v276, %v1192
      %v1225 = vrot.slane %v1193, 4
      %v1226 = vrot.slane %v1194, 4
      %v1227 = vsel %vm576, %v1225, %v1226
      %v1228 = vrot.slane %v1195, 4
      %v1229 = vrot.slane %v1196, 4
      %v1230 = vsel %vm576, %v1228, %v1229
      %v1231 = vrot.slane %v1197, 4
      %v1232 = vrot.slane %v1198, 4
      %v1233 = vsel %vm576, %v1231, %v1232
      %v1234 = vrot.slane %v1199, 4
      %v1235 = vrot.slane %v1200, 4
      %v1236 = vsel %vm576, %v1234, %v1235
      %v1237 = vrot.slane %v1201, 4
      %v1238 = vrot.slane %v1202, 4
      %v1239 = vsel %vm576, %v1237, %v1238
      %v1240 = vrot.slane %v1203, 4
      %v1241 = vrot.slane %v1204, 4
      %v1242 = vsel %vm576, %v1240, %v1241
      %v1243 = vrot.slane %v1205, 4
      %v1244 = vrot.slane %v1206, 4
      %v1245 = vsel %vm576, %v1243, %v1244
      %v1246 = vrot.slane %v1207, 4
      %v1247 = vrot.slane %v1208, 4
      %v1248 = vsel %vm576, %v1246, %v1247
      %v1257 = vadd.f32 %v1181, %v1227
      %v1258 = vadd.f32 %v1182, %v1230
      %v1259 = vadd.f32 %v1183, %v1233
      %v1260 = vadd.f32 %v1184, %v1236
      %v1261 = vadd.f32 %v1185, %v1239
      %v1262 = vadd.f32 %v1186, %v1242
      %v1263 = vadd.f32 %v1187, %v1245
      %v1264 = vadd.f32 %v1188, %v1248
      %v1265 = vlaneseq
      %v1266 = vshrl.u32 %v1265, 7
      %v1267 = vsub.s32 7, %v1266
      %v1268 = vrot.slane %v286, %v1267
      %v1269 = vmul.f32 %v263, %v1268
      %v1270 = vmul.f32 %v265, %v1268
      %v1271 = vmul.f32 %v267, %v1268
      %v1272 = vmul.f32 %v269, %v1268
      %v1273 = vmul.f32 %v271, %v1268
      %v1274 = vmul.f32 %v273, %v1268
      %v1275 = vmul.f32 %v275, %v1268
      %v1276 = vmul.f32 %v277, %v1268
      %v1277 = vadd.f32 %v1257, %v1269
      %v1278 = vadd.f32 %v1258, %v1270
      %v1279 = vadd.f32 %v1259, %v1271
      %v1280 = vadd.f32 %v1260, %v1272
      %v1281 = vadd.f32 %v1261, %v1273
      %v1282 = vadd.f32 %v1262, %v1274
      %v1283 = vadd.f32 %v1263, %v1275
      %v1284 = vadd.f32 %v1264, %v1276
      %v1285 = vlaneseq
      %v1286 = vshrl.u32 %v1285, 7
      %v1287 = vsub.s32 0, %v1286
      %v1288 = vrot.slane %v287, %v1287
      %v1289 = vmul.f32 %v263, %v1288
      %v1290 = vmul.f32 %v264, %v1288
      %v1291 = vmul.f32 %v265, %v1288
      %v1292 = vmul.f32 %v266, %v1288
      %v1293 = vmul.f32 %v267, %v1288
      %v1294 = vmul.f32 %v268, %v1288
      %v1295 = vmul.f32 %v269, %v1288
      %v1296 = vmul.f32 %v270, %v1288
      %v1297 = vmul.f32 %v271, %v1288
      %v1298 = vmul.f32 %v272, %v1288
      %v1299 = vmul.f32 %v273, %v1288
      %v1300 = vmul.f32 %v274, %v1288
      %v1301 = vmul.f32 %v275, %v1288
      %v1302 = vmul.f32 %v276, %v1288
      %v1303 = vmul.f32 %v277, %v1288
      %v1304 = vmul.f32 %v278, %v1288
      %v1321 = vrot.slane %v1289, 1
      %v1322 = vrot.slane %v1290, 1
      %v1323 = vsel %vm345, %v1321, %v1322
      %v1324 = vrot.slane %v1291, 1
      %v1325 = vrot.slane %v1292, 1
      %v1326 = vsel %vm345, %v1324, %v1325
      %v1327 = vrot.slane %v1293, 1
      %v1328 = vrot.slane %v1294, 1
      %v1329 = vsel %vm345, %v1327, %v1328
      %v1330 = vrot.slane %v1295, 1
      %v1331 = vrot.slane %v1296, 1
      %v1332 = vsel %vm345, %v1330, %v1331
      %v1333 = vrot.slane %v1297, 1
      %v1334 = vrot.slane %v1298, 1
      %v1335 = vsel %vm345, %v1333, %v1334
      %v1336 = vrot.slane %v1299, 1
      %v1337 = vrot.slane %v1300, 1
      %v1338 = vsel %vm345, %v1336, %v1337
      %v1339 = vrot.slane %v1301, 1
      %v1340 = vrot.slane %v1302, 1
      %v1341 = vsel %vm345, %v1339, %v1340
      %v1342 = vrot.slane %v1303, 1
      %v1343 = vrot.slane %v1304, 1
      %v1344 = vsel %vm345, %v1342, %v1343
      %v1353 = vadd.f32 %v1277, %v1323
      %v1354 = vadd.f32 %v1278, %v1326
      %v1355 = vadd.f32 %v1279, %v1329
      %v1356 = vadd.f32 %v1280, %v1332
      %v1357 = vadd.f32 %v1281, %v1335
      %v1358 = vadd.f32 %v1282, %v1338
      %v1359 = vadd.f32 %v1283, %v1341
      %v1360 = vadd.f32 %v1284, %v1344
      %v1361 = vlaneseq
      %v1362 = vshrl.u32 %v1361, 7
      %v1363 = vsub.s32 1, %v1362
      %v1364 = vrot.slane %v287, %v1363
      %v1365 = vmul.f32 %v263, %v1364
      %v1366 = vmul.f32 %v264, %v1364
      %v1367 = vmul.f32 %v265, %v1364
      %v1368 = vmul.f32 %v266, %v1364
      %v1369 = vmul.f32 %v267, %v1364
      %v1370 = vmul.f32 %v268, %v1364
      %v1371 = vmul.f32 %v269, %v1364
      %v1372 = vmul.f32 %v270, %v1364
      %v1373 = vmul.f32 %v271, %v1364
      %v1374 = vmul.f32 %v272, %v1364
      %v1375 = vmul.f32 %v273, %v1364
      %v1376 = vmul.f32 %v274, %v1364
      %v1377 = vmul.f32 %v275, %v1364
      %v1378 = vmul.f32 %v276, %v1364
      %v1379 = vmul.f32 %v277, %v1364
      %v1380 = vmul.f32 %v278, %v1364
      %v1397 = vrot.slane %v1365, 2
      %v1398 = vrot.slane %v1366, 2
      %v1399 = vsel %vm422, %v1397, %v1398
      %v1400 = vrot.slane %v1367, 2
      %v1401 = vrot.slane %v1368, 2
      %v1402 = vsel %vm422, %v1400, %v1401
      %v1403 = vrot.slane %v1369, 2
      %v1404 = vrot.slane %v1370, 2
      %v1405 = vsel %vm422, %v1403, %v1404
      %v1406 = vrot.slane %v1371, 2
      %v1407 = vrot.slane %v1372, 2
      %v1408 = vsel %vm422, %v1406, %v1407
      %v1409 = vrot.slane %v1373, 2
      %v1410 = vrot.slane %v1374, 2
      %v1411 = vsel %vm422, %v1409, %v1410
      %v1412 = vrot.slane %v1375, 2
      %v1413 = vrot.slane %v1376, 2
      %v1414 = vsel %vm422, %v1412, %v1413
      %v1415 = vrot.slane %v1377, 2
      %v1416 = vrot.slane %v1378, 2
      %v1417 = vsel %vm422, %v1415, %v1416
      %v1418 = vrot.slane %v1379, 2
      %v1419 = vrot.slane %v1380, 2
      %v1420 = vsel %vm422, %v1418, %v1419
      %v1429 = vadd.f32 %v1353, %v1399
      %v1430 = vadd.f32 %v1354, %v1402
      %v1431 = vadd.f32 %v1355, %v1405
      %v1432 = vadd.f32 %v1356, %v1408
      %v1433 = vadd.f32 %v1357, %v1411
      %v1434 = vadd.f32 %v1358, %v1414
      %v1435 = vadd.f32 %v1359, %v1417
      %v1436 = vadd.f32 %v1360, %v1420
      %v1437 = vlaneseq
      %v1438 = vshrl.u32 %v1437, 7
      %v1439 = vsub.s32 2, %v1438
      %v1440 = vrot.slane %v287, %v1439
      %v1441 = vmul.f32 %v263, %v1440
      %v1442 = vmul.f32 %v264, %v1440
      %v1443 = vmul.f32 %v265, %v1440
      %v1444 = vmul.f32 %v266, %v1440
      %v1445 = vmul.f32 %v267, %v1440
      %v1446 = vmul.f32 %v268, %v1440
      %v1447 = vmul.f32 %v269, %v1440
      %v1448 = vmul.f32 %v270, %v1440
      %v1449 = vmul.f32 %v271, %v1440
      %v1450 = vmul.f32 %v272, %v1440
      %v1451 = vmul.f32 %v273, %v1440
      %v1452 = vmul.f32 %v274, %v1440
      %v1453 = vmul.f32 %v275, %v1440
      %v1454 = vmul.f32 %v276, %v1440
      %v1455 = vmul.f32 %v277, %v1440
      %v1456 = vmul.f32 %v278, %v1440
      %v1473 = vrot.slane %v1441, 3
      %v1474 = vrot.slane %v1442, 3
      %v1475 = vsel %vm499, %v1473, %v1474
      %v1476 = vrot.slane %v1443, 3
      %v1477 = vrot.slane %v1444, 3
      %v1478 = vsel %vm499, %v1476, %v1477
      %v1479 = vrot.slane %v1445, 3
      %v1480 = vrot.slane %v1446, 3
      %v1481 = vsel %vm499, %v1479, %v1480
      %v1482 = vrot.slane %v1447, 3
      %v1483 = vrot.slane %v1448, 3
      %v1484 = vsel %vm499, %v1482, %v1483
      %v1485 = vrot.slane %v1449, 3
      %v1486 = vrot.slane %v1450, 3
      %v1487 = vsel %vm499, %v1485, %v1486
      %v1488 = vrot.slane %v1451, 3
      %v1489 = vrot.slane %v1452, 3
      %v1490 = vsel %vm499, %v1488, %v1489
      %v1491 = vrot.slane %v1453, 3
      %v1492 = vrot.slane %v1454, 3
      %v1493 = vsel %vm499, %v1491, %v1492
      %v1494 = vrot.slane %v1455, 3
      %v1495 = vrot.slane %v1456, 3
      %v1496 = vsel %vm499, %v1494, %v1495
      %v1505 = vadd.f32 %v1429, %v1475
      %v1506 = vadd.f32 %v1430, %v1478
      %v1507 = vadd.f32 %v1431, %v1481
      %v1508 = vadd.f32 %v1432, %v1484
      %v1509 = vadd.f32 %v1433, %v1487
      %v1510 = vadd.f32 %v1434, %v1490
      %v1511 = vadd.f32 %v1435, %v1493
      %v1512 = vadd.f32 %v1436, %v1496
      %v1513 = vlaneseq
      %v1514 = vshrl.u32 %v1513, 7
      %v1515 = vsub.s32 3, %v1514
      %v1516 = vrot.slane %v287, %v1515
      %v1517 = vmul.f32 %v263, %v1516
      %v1518 = vmul.f32 %v264, %v1516
      %v1519 = vmul.f32 %v265, %v1516
      %v1520 = vmul.f32 %v266, %v1516
      %v1521 = vmul.f32 %v267, %v1516
      %v1522 = vmul.f32 %v268, %v1516
      %v1523 = vmul.f32 %v269, %v1516
      %v1524 = vmul.f32 %v270, %v1516
      %v1525 = vmul.f32 %v271, %v1516
      %v1526 = vmul.f32 %v272, %v1516
      %v1527 = vmul.f32 %v273, %v1516
      %v1528 = vmul.f32 %v274, %v1516
      %v1529 = vmul.f32 %v275, %v1516
      %v1530 = vmul.f32 %v276, %v1516
      %v1531 = vmul.f32 %v277, %v1516
      %v1532 = vmul.f32 %v278, %v1516
      %v1549 = vrot.slane %v1517, 4
      %v1550 = vrot.slane %v1518, 4
      %v1551 = vsel %vm576, %v1549, %v1550
      %v1552 = vrot.slane %v1519, 4
      %v1553 = vrot.slane %v1520, 4
      %v1554 = vsel %vm576, %v1552, %v1553
      %v1555 = vrot.slane %v1521, 4
      %v1556 = vrot.slane %v1522, 4
      %v1557 = vsel %vm576, %v1555, %v1556
      %v1558 = vrot.slane %v1523, 4
      %v1559 = vrot.slane %v1524, 4
      %v1560 = vsel %vm576, %v1558, %v1559
      %v1561 = vrot.slane %v1525, 4
      %v1562 = vrot.slane %v1526, 4
      %v1563 = vsel %vm576, %v1561, %v1562
      %v1564 = vrot.slane %v1527, 4
      %v1565 = vrot.slane %v1528, 4
      %v1566 = vsel %vm576, %v1564, %v1565
      %v1567 = vrot.slane %v1529, 4
      %v1568 = vrot.slane %v1530, 4
      %v1569 = vsel %vm576, %v1567, %v1568
      %v1570 = vrot.slane %v1531, 4
      %v1571 = vrot.slane %v1532, 4
      %v1572 = vsel %vm576, %v1570, %v1571
      %v1581 = vadd.f32 %v1505, %v1551
      %v1582 = vadd.f32 %v1506, %v1554
      %v1583 = vadd.f32 %v1507, %v1557
      %v1584 = vadd.f32 %v1508, %v1560
      %v1585 = vadd.f32 %v1509, %v1563
      %v1586 = vadd.f32 %v1510, %v1566
      %v1587 = vadd.f32 %v1511, %v1569
      %v1588 = vadd.f32 %v1512, %v1572
      %v1589 = vlaneseq
      %v1590 = vshrl.u32 %v1589, 7
      %v1591 = vsub.s32 4, %v1590
      %v1592 = vrot.slane %v287, %v1591
      %v1593 = vmul.f32 %v265, %v1592
      %v1594 = vmul.f32 %v267, %v1592
      %v1595 = vmul.f32 %v269, %v1592
      %v1596 = vmul.f32 %v271, %v1592
      %v1597 = vmul.f32 %v273, %v1592
      %v1598 = vmul.f32 %v275, %v1592
      %v1599 = vmul.f32 %v277, %v1592
      %v1600 = vmul.f32 %v279, %v1592
      %v1601 = vadd.f32 %v1581, %v1593
      %v1602 = vadd.f32 %v1582, %v1594
      %v1603 = vadd.f32 %v1583, %v1595
      %v1604 = vadd.f32 %v1584, %v1596
      %v1605 = vadd.f32 %v1585, %v1597
      %v1606 = vadd.f32 %v1586, %v1598
      %v1607 = vadd.f32 %v1587, %v1599
      %v1608 = vadd.f32 %v1588, %v1600
      %v1609 = vlaneseq
      %v1610 = vshrl.u32 %v1609, 7
      %v1611 = vsub.s32 5, %v1610
      %v1612 = vrot.slane %v287, %v1611
      %v1613 = vmul.f32 %v265, %v1612
      %v1614 = vmul.f32 %v266, %v1612
      %v1615 = vmul.f32 %v267, %v1612
      %v1616 = vmul.f32 %v268, %v1612
      %v1617 = vmul.f32 %v269, %v1612
      %v1618 = vmul.f32 %v270, %v1612
      %v1619 = vmul.f32 %v271, %v1612
      %v1620 = vmul.f32 %v272, %v1612
      %v1621 = vmul.f32 %v273, %v1612
      %v1622 = vmul.f32 %v274, %v1612
      %v1623 = vmul.f32 %v275, %v1612
      %v1624 = vmul.f32 %v276, %v1612
      %v1625 = vmul.f32 %v277, %v1612
      %v1626 = vmul.f32 %v278, %v1612
      %v1627 = vmul.f32 %v279, %v1612
      %v1628 = vmul.f32 %v280, %v1612
      %v1645 = vrot.slane %v1613, 1
      %v1646 = vrot.slane %v1614, 1
      %v1647 = vsel %vm345, %v1645, %v1646
      %v1648 = vrot.slane %v1615, 1
      %v1649 = vrot.slane %v1616, 1
      %v1650 = vsel %vm345, %v1648, %v1649
      %v1651 = vrot.slane %v1617, 1
      %v1652 = vrot.slane %v1618, 1
      %v1653 = vsel %vm345, %v1651, %v1652
      %v1654 = vrot.slane %v1619, 1
      %v1655 = vrot.slane %v1620, 1
      %v1656 = vsel %vm345, %v1654, %v1655
      %v1657 = vrot.slane %v1621, 1
      %v1658 = vrot.slane %v1622, 1
      %v1659 = vsel %vm345, %v1657, %v1658
      %v1660 = vrot.slane %v1623, 1
      %v1661 = vrot.slane %v1624, 1
      %v1662 = vsel %vm345, %v1660, %v1661
      %v1663 = vrot.slane %v1625, 1
      %v1664 = vrot.slane %v1626, 1
      %v1665 = vsel %vm345, %v1663, %v1664
      %v1666 = vrot.slane %v1627, 1
      %v1667 = vrot.slane %v1628, 1
      %v1668 = vsel %vm345, %v1666, %v1667
      %v1677 = vadd.f32 %v1601, %v1647
      %v1678 = vadd.f32 %v1602, %v1650
      %v1679 = vadd.f32 %v1603, %v1653
      %v1680 = vadd.f32 %v1604, %v1656
      %v1681 = vadd.f32 %v1605, %v1659
      %v1682 = vadd.f32 %v1606, %v1662
      %v1683 = vadd.f32 %v1607, %v1665
      %v1684 = vadd.f32 %v1608, %v1668
      %v1685 = vlaneseq
      %v1686 = vshrl.u32 %v1685, 7
      %v1687 = vsub.s32 6, %v1686
      %v1688 = vrot.slane %v287, %v1687
      %v1689 = vmul.f32 %v265, %v1688
      %v1690 = vmul.f32 %v266, %v1688
      %v1691 = vmul.f32 %v267, %v1688
      %v1692 = vmul.f32 %v268, %v1688
      %v1693 = vmul.f32 %v269, %v1688
      %v1694 = vmul.f32 %v270, %v1688
      %v1695 = vmul.f32 %v271, %v1688
      %v1696 = vmul.f32 %v272, %v1688
      %v1697 = vmul.f32 %v273, %v1688
      %v1698 = vmul.f32 %v274, %v1688
      %v1699 = vmul.f32 %v275, %v1688
      %v1700 = vmul.f32 %v276, %v1688
      %v1701 = vmul.f32 %v277, %v1688
      %v1702 = vmul.f32 %v278, %v1688
      %v1703 = vmul.f32 %v279, %v1688
      %v1704 = vmul.f32 %v280, %v1688
      %v1721 = vrot.slane %v1689, 2
      %v1722 = vrot.slane %v1690, 2
      %v1723 = vsel %vm422, %v1721, %v1722
      %v1724 = vrot.slane %v1691, 2
      %v1725 = vrot.slane %v1692, 2
      %v1726 = vsel %vm422, %v1724, %v1725
      %v1727 = vrot.slane %v1693, 2
      %v1728 = vrot.slane %v1694, 2
      %v1729 = vsel %vm422, %v1727, %v1728
      %v1730 = vrot.slane %v1695, 2
      %v1731 = vrot.slane %v1696, 2
      %v1732 = vsel %vm422, %v1730, %v1731
      %v1733 = vrot.slane %v1697, 2
      %v1734 = vrot.slane %v1698, 2
      %v1735 = vsel %vm422, %v1733, %v1734
      %v1736 = vrot.slane %v1699, 2
      %v1737 = vrot.slane %v1700, 2
      %v1738 = vsel %vm422, %v1736, %v1737
      %v1739 = vrot.slane %v1701, 2
      %v1740 = vrot.slane %v1702, 2
      %v1741 = vsel %vm422, %v1739, %v1740
      %v1742 = vrot.slane %v1703, 2
      %v1743 = vrot.slane %v1704, 2
      %v1744 = vsel %vm422, %v1742, %v1743
      %v1753 = vadd.f32 %v1677, %v1723
      %v1754 = vadd.f32 %v1678, %v1726
      %v1755 = vadd.f32 %v1679, %v1729
      %v1756 = vadd.f32 %v1680, %v1732
      %v1757 = vadd.f32 %v1681, %v1735
      %v1758 = vadd.f32 %v1682, %v1738
      %v1759 = vadd.f32 %v1683, %v1741
      %v1760 = vadd.f32 %v1684, %v1744
      %v1761 = vlaneseq
      %v1762 = vshrl.u32 %v1761, 7
      %v1763 = vsub.s32 7, %v1762
      %v1764 = vrot.slane %v287, %v1763
      %v1765 = vmul.f32 %v265, %v1764
      %v1766 = vmul.f32 %v266, %v1764
      %v1767 = vmul.f32 %v267, %v1764
      %v1768 = vmul.f32 %v268, %v1764
      %v1769 = vmul.f32 %v269, %v1764
      %v1770 = vmul.f32 %v270, %v1764
      %v1771 = vmul.f32 %v271, %v1764
      %v1772 = vmul.f32 %v272, %v1764
      %v1773 = vmul.f32 %v273, %v1764
      %v1774 = vmul.f32 %v274, %v1764
      %v1775 = vmul.f32 %v275, %v1764
      %v1776 = vmul.f32 %v276, %v1764
      %v1777 = vmul.f32 %v277, %v1764
      %v1778 = vmul.f32 %v278, %v1764
      %v1779 = vmul.f32 %v279, %v1764
      %v1780 = vmul.f32 %v280, %v1764
      %v1797 = vrot.slane %v1765, 3
      %v1798 = vrot.slane %v1766, 3
      %v1799 = vsel %vm499, %v1797, %v1798
      %v1800 = vrot.slane %v1767, 3
      %v1801 = vrot.slane %v1768, 3
      %v1802 = vsel %vm499, %v1800, %v1801
      %v1803 = vrot.slane %v1769, 3
      %v1804 = vrot.slane %v1770, 3
      %v1805 = vsel %vm499, %v1803, %v1804
      %v1806 = vrot.slane %v1771, 3
      %v1807 = vrot.slane %v1772, 3
      %v1808 = vsel %vm499, %v1806, %v1807
      %v1809 = vrot.slane %v1773, 3
      %v1810 = vrot.slane %v1774, 3
      %v1811 = vsel %vm499, %v1809, %v1810
      %v1812 = vrot.slane %v1775, 3
      %v1813 = vrot.slane %v1776, 3
      %v1814 = vsel %vm499, %v1812, %v1813
      %v1815 = vrot.slane %v1777, 3
      %v1816 = vrot.slane %v1778, 3
      %v1817 = vsel %vm499, %v1815, %v1816
      %v1818 = vrot.slane %v1779, 3
      %v1819 = vrot.slane %v1780, 3
      %v1820 = vsel %vm499, %v1818, %v1819
      %v1829 = vadd.f32 %v1753, %v1799
      %v1830 = vadd.f32 %v1754, %v1802
      %v1831 = vadd.f32 %v1755, %v1805
      %v1832 = vadd.f32 %v1756, %v1808
      %v1833 = vadd.f32 %v1757, %v1811
      %v1834 = vadd.f32 %v1758, %v1814
      %v1835 = vadd.f32 %v1759, %v1817
      %v1836 = vadd.f32 %v1760, %v1820
      %v1837 = vlaneseq
      %v1838 = vshrl.u32 %v1837, 7
      %v1839 = vsub.s32 0, %v1838
      %v1840 = vrot.slane %v288, %v1839
      %v1841 = vmul.f32 %v265, %v1840
      %v1842 = vmul.f32 %v266, %v1840
      %v1843 = vmul.f32 %v267, %v1840
      %v1844 = vmul.f32 %v268, %v1840
      %v1845 = vmul.f32 %v269, %v1840
      %v1846 = vmul.f32 %v270, %v1840
      %v1847 = vmul.f32 %v271, %v1840
      %v1848 = vmul.f32 %v272, %v1840
      %v1849 = vmul.f32 %v273, %v1840
      %v1850 = vmul.f32 %v274, %v1840
      %v1851 = vmul.f32 %v275, %v1840
      %v1852 = vmul.f32 %v276, %v1840
      %v1853 = vmul.f32 %v277, %v1840
      %v1854 = vmul.f32 %v278, %v1840
      %v1855 = vmul.f32 %v279, %v1840
      %v1856 = vmul.f32 %v280, %v1840
      %v1873 = vrot.slane %v1841, 4
      %v1874 = vrot.slane %v1842, 4
      %v1875 = vsel %vm576, %v1873, %v1874
      %v1876 = vrot.slane %v1843, 4
      %v1877 = vrot.slane %v1844, 4
      %v1878 = vsel %vm576, %v1876, %v1877
      %v1879 = vrot.slane %v1845, 4
      %v1880 = vrot.slane %v1846, 4
      %v1881 = vsel %vm576, %v1879, %v1880
      %v1882 = vrot.slane %v1847, 4
      %v1883 = vrot.slane %v1848, 4
      %v1884 = vsel %vm576, %v1882, %v1883
      %v1885 = vrot.slane %v1849, 4
      %v1886 = vrot.slane %v1850, 4
      %v1887 = vsel %vm576, %v1885, %v1886
      %v1888 = vrot.slane %v1851, 4
      %v1889 = vrot.slane %v1852, 4
      %v1890 = vsel %vm576, %v1888, %v1889
      %v1891 = vrot.slane %v1853, 4
      %v1892 = vrot.slane %v1854, 4
      %v1893 = vsel %vm576, %v1891, %v1892
      %v1894 = vrot.slane %v1855, 4
      %v1895 = vrot.slane %v1856, 4
      %v1896 = vsel %vm576, %v1894, %v1895
      %v1905 = vadd.f32 %v1829, %v1875
      %v1906 = vadd.f32 %v1830, %v1878
      %v1907 = vadd.f32 %v1831, %v1881
      %v1908 = vadd.f32 %v1832, %v1884
      %v1909 = vadd.f32 %v1833, %v1887
      %v1910 = vadd.f32 %v1834, %v1890
      %v1911 = vadd.f32 %v1835, %v1893
      %v1912 = vadd.f32 %v1836, %v1896
      %v1913 = vld [vmem:[%s224] sm:$0x1]
      %v1915 = vlaneseq
      %v1916 = vshrl.u32 %v1915, 7
      %v1917 = vsub.s32 0, %v1916
      %v1918 = vrot.slane %v1913, %v1917
      %v1920 = vadd.f32 %v1905, %v1918
      %v1921 = vadd.f32 %v1906, %v1918
      %v1922 = vadd.f32 %v1907, %v1918
      %v1923 = vadd.f32 %v1908, %v1918
      %v1924 = vadd.f32 %v1909, %v1918
      %v1925 = vadd.f32 %v1910, %v1918
      %v1926 = vadd.f32 %v1911, %v1918
      %v1927 = vadd.f32 %v1912, %v1918
      %v1928 = vmul.f32 %v1920, 0.5
      %v1929 = vmul.f32 %v1921, 0.5
      %v1930 = vmul.f32 %v1922, 0.5
      %v1931 = vmul.f32 %v1923, 0.5
      %v1932 = vmul.f32 %v1924, 0.5
      %v1933 = vmul.f32 %v1925, 0.5
      %v1934 = vmul.f32 %v1926, 0.5
      %v1935 = vmul.f32 %v1927, 0.5
      %v1936 = vmul.f32 %v1920, 0.70710677
      %v1937 = vmul.f32 %v1921, 0.70710677
      %v1938 = vmul.f32 %v1922, 0.70710677
      %v1939 = vmul.f32 %v1923, 0.70710677
      %v1940 = vmul.f32 %v1924, 0.70710677
      %v1941 = vmul.f32 %v1925, 0.70710677
      %v1942 = vmul.f32 %v1926, 0.70710677
      %v1943 = vmul.f32 %v1927, 0.70710677
      %vm1944 = vcmp.lt.f32.partialorder %v1936, 0.0
      %vm1945 = vcmp.lt.f32.partialorder %v1937, 0.0
      %vm1946 = vcmp.lt.f32.partialorder %v1938, 0.0
      %vm1947 = vcmp.lt.f32.partialorder %v1939, 0.0
      %vm1948 = vcmp.lt.f32.partialorder %v1940, 0.0
      %vm1949 = vcmp.lt.f32.partialorder %v1941, 0.0
      %vm1950 = vcmp.lt.f32.partialorder %v1942, 0.0
      %vm1951 = vcmp.lt.f32.partialorder %v1943, 0.0
      %v1952 = vsel %vm1944, -1.0, 1.0
      %v1953 = vsel %vm1945, -1.0, 1.0
      %v1954 = vsel %vm1946, -1.0, 1.0
      %v1955 = vsel %vm1947, -1.0, 1.0
      %v1956 = vsel %vm1948, -1.0, 1.0
      %v1957 = vsel %vm1949, -1.0, 1.0
      %v1958 = vsel %vm1950, -1.0, 1.0
      %v1959 = vsel %vm1951, -1.0, 1.0
      %v1960 = vand.u32 2147483647, %v1936
      %v1961 = vand.u32 2147483647, %v1937
      %v1962 = vand.u32 2147483647, %v1938
      %v1963 = vand.u32 2147483647, %v1939
      %v1964 = vand.u32 2147483647, %v1940
      %v1965 = vand.u32 2147483647, %v1941
      %v1966 = vand.u32 2147483647, %v1942
      %v1967 = vand.u32 2147483647, %v1943
      %v1968 = vmul.f32 %v1960, 0.3275911
      %v1969 = vmul.f32 %v1961, 0.3275911
      %v1970 = vmul.f32 %v1962, 0.3275911
      %v1971 = vmul.f32 %v1963, 0.3275911
      %v1972 = vmul.f32 %v1964, 0.3275911
      %v1973 = vmul.f32 %v1965, 0.3275911
      %v1974 = vmul.f32 %v1966, 0.3275911
      %v1975 = vmul.f32 %v1967, 0.3275911
      %v1976 = vadd.f32 %v1968, 1.0
      %v1977 = vadd.f32 %v1969, 1.0
      %v1978 = vadd.f32 %v1970, 1.0
      %v1979 = vadd.f32 %v1971, 1.0
      %v1980 = vadd.f32 %v1972, 1.0
      %v1981 = vadd.f32 %v1973, 1.0
      %v1982 = vadd.f32 %v1974, 1.0
      %v1983 = vadd.f32 %v1975, 1.0
      %v1984 = vrcp.pop %v1976
      %v1985 = vmul.f32 1.0, %v1984
      %v1986 = vrcp.pop %v1977
      %v1987 = vmul.f32 1.0, %v1986
      %v1988 = vrcp.pop %v1978
      %v1989 = vmul.f32 1.0, %v1988
      %v1990 = vrcp.pop %v1979
      %v1991 = vmul.f32 1.0, %v1990
      %v1992 = vrcp.pop %v1980
      %v1993 = vmul.f32 1.0, %v1992
      %v1994 = vrcp.pop %v1981
      %v1995 = vmul.f32 1.0, %v1994
      %v1996 = vrcp.pop %v1982
      %v1997 = vmul.f32 1.0, %v1996
      %v1998 = vrcp.pop %v1983
      %v1999 = vmul.f32 1.0, %v1998
      %v2000 = vmul.f32 %v1985, 1.0614054
      %v2001 = vmul.f32 %v1987, 1.0614054
      %v2002 = vmul.f32 %v1989, 1.0614054
      %v2003 = vmul.f32 %v1991, 1.0614054
      %v2004 = vmul.f32 %v1993, 1.0614054
      %v2005 = vmul.f32 %v1995, 1.0614054
      %v2006 = vmul.f32 %v1997, 1.0614054
      %v2007 = vmul.f32 %v1999, 1.0614054
      %v2008 = vadd.f32 %v2000, -1.4531521
      %v2009 = vadd.f32 %v2001, -1.4531521
      %v2010 = vadd.f32 %v2002, -1.4531521
      %v2011 = vadd.f32 %v2003, -1.4531521
      %v2012 = vadd.f32 %v2004, -1.4531521
      %v2013 = vadd.f32 %v2005, -1.4531521
      %v2014 = vadd.f32 %v2006, -1.4531521
      %v2015 = vadd.f32 %v2007, -1.4531521
      %v2016 = vmul.f32 %v2008, %v1985
      %v2017 = vmul.f32 %v2009, %v1987
      %v2018 = vmul.f32 %v2010, %v1989
      %v2019 = vmul.f32 %v2011, %v1991
      %v2020 = vmul.f32 %v2012, %v1993
      %v2021 = vmul.f32 %v2013, %v1995
      %v2022 = vmul.f32 %v2014, %v1997
      %v2023 = vmul.f32 %v2015, %v1999
      %v2024 = vadd.f32 %v2016, 1.4214138
      %v2025 = vadd.f32 %v2017, 1.4214138
      %v2026 = vadd.f32 %v2018, 1.4214138
      %v2027 = vadd.f32 %v2019, 1.4214138
      %v2028 = vadd.f32 %v2020, 1.4214138
      %v2029 = vadd.f32 %v2021, 1.4214138
      %v2030 = vadd.f32 %v2022, 1.4214138
      %v2031 = vadd.f32 %v2023, 1.4214138
      %v2032 = vmul.f32 %v2024, %v1985
      %v2033 = vmul.f32 %v2025, %v1987
      %v2034 = vmul.f32 %v2026, %v1989
      %v2035 = vmul.f32 %v2027, %v1991
      %v2036 = vmul.f32 %v2028, %v1993
      %v2037 = vmul.f32 %v2029, %v1995
      %v2038 = vmul.f32 %v2030, %v1997
      %v2039 = vmul.f32 %v2031, %v1999
      %v2040 = vadd.f32 %v2032, -0.28449672
      %v2041 = vadd.f32 %v2033, -0.28449672
      %v2042 = vadd.f32 %v2034, -0.28449672
      %v2043 = vadd.f32 %v2035, -0.28449672
      %v2044 = vadd.f32 %v2036, -0.28449672
      %v2045 = vadd.f32 %v2037, -0.28449672
      %v2046 = vadd.f32 %v2038, -0.28449672
      %v2047 = vadd.f32 %v2039, -0.28449672
      %v2048 = vmul.f32 %v2040, %v1985
      %v2049 = vmul.f32 %v2041, %v1987
      %v2050 = vmul.f32 %v2042, %v1989
      %v2051 = vmul.f32 %v2043, %v1991
      %v2052 = vmul.f32 %v2044, %v1993
      %v2053 = vmul.f32 %v2045, %v1995
      %v2054 = vmul.f32 %v2046, %v1997
      %v2055 = vmul.f32 %v2047, %v1999
      %v2056 = vadd.f32 %v2048, 0.2548296
      %v2057 = vadd.f32 %v2049, 0.2548296
      %v2058 = vadd.f32 %v2050, 0.2548296
      %v2059 = vadd.f32 %v2051, 0.2548296
      %v2060 = vadd.f32 %v2052, 0.2548296
      %v2061 = vadd.f32 %v2053, 0.2548296
      %v2062 = vadd.f32 %v2054, 0.2548296
      %v2063 = vadd.f32 %v2055, 0.2548296
      %v2064 = vmul.f32 %v2056, %v1985
      %v2065 = vmul.f32 %v2057, %v1987
      %v2066 = vmul.f32 %v2058, %v1989
      %v2067 = vmul.f32 %v2059, %v1991
      %v2068 = vmul.f32 %v2060, %v1993
      %v2069 = vmul.f32 %v2061, %v1995
      %v2070 = vmul.f32 %v2062, %v1997
      %v2071 = vmul.f32 %v2063, %v1999
      %v2072 = vsub.f32 0.0, %v1960
      %v2073 = vsub.f32 0.0, %v1961
      %v2074 = vsub.f32 0.0, %v1962
      %v2075 = vsub.f32 0.0, %v1963
      %v2076 = vsub.f32 0.0, %v1964
      %v2077 = vsub.f32 0.0, %v1965
      %v2078 = vsub.f32 0.0, %v1966
      %v2079 = vsub.f32 0.0, %v1967
      %v2080 = vmul.f32 %v2072, %v1960
      %v2081 = vmul.f32 %v2073, %v1961
      %v2082 = vmul.f32 %v2074, %v1962
      %v2083 = vmul.f32 %v2075, %v1963
      %v2084 = vmul.f32 %v2076, %v1964
      %v2085 = vmul.f32 %v2077, %v1965
      %v2086 = vmul.f32 %v2078, %v1966
      %v2087 = vmul.f32 %v2079, %v1967
      %v2088 = vmul.f32 %v2080, 1.442695
      %v2089 = vpow.pop %v2088
      %v2090 = vmul.f32 %v2081, 1.442695
      %v2091 = vpow.pop %v2090
      %v2092 = vmul.f32 %v2082, 1.442695
      %v2093 = vpow.pop %v2092
      %v2094 = vmul.f32 %v2083, 1.442695
      %v2095 = vpow.pop %v2094
      %v2096 = vmul.f32 %v2084, 1.442695
      %v2097 = vpow.pop %v2096
      %v2098 = vmul.f32 %v2085, 1.442695
      %v2099 = vpow.pop %v2098
      %v2100 = vmul.f32 %v2086, 1.442695
      %v2101 = vpow.pop %v2100
      %v2102 = vmul.f32 %v2087, 1.442695
      %v2103 = vpow.pop %v2102
      %v2104 = vmul.f32 %v2064, %v2089
      %v2105 = vmul.f32 %v2065, %v2091
      %v2106 = vmul.f32 %v2066, %v2093
      %v2107 = vmul.f32 %v2067, %v2095
      %v2108 = vmul.f32 %v2068, %v2097
      %v2109 = vmul.f32 %v2069, %v2099
      %v2110 = vmul.f32 %v2070, %v2101
      %v2111 = vmul.f32 %v2071, %v2103
      %v2112 = vsub.f32 1.0, %v2104
      %v2113 = vsub.f32 1.0, %v2105
      %v2114 = vsub.f32 1.0, %v2106
      %v2115 = vsub.f32 1.0, %v2107
      %v2116 = vsub.f32 1.0, %v2108
      %v2117 = vsub.f32 1.0, %v2109
      %v2118 = vsub.f32 1.0, %v2110
      %v2119 = vsub.f32 1.0, %v2111
      %v2120 = vmul.f32 %v1952, %v2112
      %v2121 = vmul.f32 %v1953, %v2113
      %v2122 = vmul.f32 %v1954, %v2114
      %v2123 = vmul.f32 %v1955, %v2115
      %v2124 = vmul.f32 %v1956, %v2116
      %v2125 = vmul.f32 %v1957, %v2117
      %v2126 = vmul.f32 %v1958, %v2118
      %v2127 = vmul.f32 %v1959, %v2119
      %v2128 = vadd.f32 %v2120, 1.0
      %v2129 = vadd.f32 %v2121, 1.0
      %v2130 = vadd.f32 %v2122, 1.0
      %v2131 = vadd.f32 %v2123, 1.0
      %v2132 = vadd.f32 %v2124, 1.0
      %v2133 = vadd.f32 %v2125, 1.0
      %v2134 = vadd.f32 %v2126, 1.0
      %v2135 = vadd.f32 %v2127, 1.0
      %v2136 = vmul.f32 %v1928, %v2128
      %v2137 = vmul.f32 %v1929, %v2129
      %v2138 = vmul.f32 %v1930, %v2130
      %v2139 = vmul.f32 %v1931, %v2131
      %v2140 = vmul.f32 %v1932, %v2132
      %v2141 = vmul.f32 %v1933, %v2133
      %v2142 = vmul.f32 %v1934, %v2134
      %v2143 = vmul.f32 %v1935, %v2135
      %v2152 = vrot.slane %v2136, 6
      %v2153 = vrot.slane %v2137, 6
      %v2154 = vrot.slane %v2138, 6
      %v2155 = vrot.slane %v2139, 6
      %v2156 = vrot.slane %v2140, 6
      %v2157 = vrot.slane %v2141, 6
      %v2158 = vrot.slane %v2142, 6
      %v2159 = vrot.slane %v2143, 6
      %v2168 = vadd.f32 %v261, %v2152
      %v2169 = vadd.f32 %v262, %v2152
      %v2170 = vadd.f32 %v263, %v2153
      %v2171 = vadd.f32 %v264, %v2153
      %v2172 = vadd.f32 %v265, %v2154
      %v2173 = vadd.f32 %v266, %v2154
      %v2174 = vadd.f32 %v267, %v2155
      %v2175 = vadd.f32 %v268, %v2155
      %v2176 = vadd.f32 %v269, %v2156
      %v2177 = vadd.f32 %v270, %v2156
      %v2178 = vadd.f32 %v271, %v2157
      %v2179 = vadd.f32 %v272, %v2157
      %v2180 = vadd.f32 %v273, %v2158
      %v2181 = vadd.f32 %v274, %v2158
      %v2182 = vadd.f32 %v275, %v2159
      %v2183 = vadd.f32 %v276, %v2159
      %v2184 = vpack.c.bf16 %v2169, %v2168
      %v2185 = vpack.c.bf16 %v2171, %v2170
      %v2186 = vpack.c.bf16 %v2173, %v2172
      %v2187 = vpack.c.bf16 %v2175, %v2174
      %v2188 = vpack.c.bf16 %v2177, %v2176
      %v2189 = vpack.c.bf16 %v2179, %v2178
      %v2190 = vpack.c.bf16 %v2181, %v2180
      %v2191 = vpack.c.bf16 %v2183, %v2182
      %v2200 = vunpack.c.l.b16 %v2184
      %v2201 = vunpack.c.h.b16 %v2184
      %v2202 = vunpack.c.l.b16 %v2185
      %v2203 = vunpack.c.h.b16 %v2185
      %v2204 = vunpack.c.l.b16 %v2186
      %v2205 = vunpack.c.h.b16 %v2186
      %v2206 = vunpack.c.l.b16 %v2187
      %v2207 = vunpack.c.h.b16 %v2187
      %v2208 = vunpack.c.l.b16 %v2188
      %v2209 = vunpack.c.h.b16 %v2188
      %v2210 = vunpack.c.l.b16 %v2189
      %v2211 = vunpack.c.h.b16 %v2189
      %v2212 = vunpack.c.l.b16 %v2190
      %v2213 = vunpack.c.h.b16 %v2190
      %v2214 = vunpack.c.l.b16 %v2191
      %v2215 = vunpack.c.h.b16 %v2191
      %v2216 = vpack.c.b16 %v2200, %v2200
      %v2217 = vpack.c.b16 %v2201, %v2201
      %v2218 = vpack.c.b16 %v2202, %v2202
      %v2219 = vpack.c.b16 %v2203, %v2203
      %v2220 = vpack.c.b16 %v2204, %v2204
      %v2221 = vpack.c.b16 %v2205, %v2205
      %v2222 = vpack.c.b16 %v2206, %v2206
      %v2223 = vpack.c.b16 %v2207, %v2207
      %v2224 = vpack.c.b16 %v2208, %v2208
      %v2225 = vpack.c.b16 %v2209, %v2209
      %v2226 = vpack.c.b16 %v2210, %v2210
      %v2227 = vpack.c.b16 %v2211, %v2211
      %v2228 = vpack.c.b16 %v2212, %v2212
      %v2229 = vpack.c.b16 %v2213, %v2213
      %v2230 = vpack.c.b16 %v2214, %v2214
      %v2231 = vpack.c.b16 %v2215, %v2215
      %vm2232 = vcmask 1042432
      %vm2233 = vcmask 1046532
      %vm2234 = vmor %vm2232, %vm2233
      %v2235 = vrot.slane %v2216, 5
      %v2236 = vrot.slane %v2235, 4
      %v2237 = vrot.slane %v2217, 5
      %v2238 = vsel %vm2234, %v2236, %v2237
      %v2239 = vrot.slane %v2218, 5
      %v2240 = vrot.slane %v2239, 4
      %v2241 = vrot.slane %v2219, 5
      %v2242 = vsel %vm2234, %v2240, %v2241
      %v2243 = vrot.slane %v2220, 5
      %v2244 = vrot.slane %v2243, 4
      %v2245 = vrot.slane %v2221, 5
      %v2246 = vsel %vm2234, %v2244, %v2245
      %v2247 = vrot.slane %v2222, 5
      %v2248 = vrot.slane %v2247, 4
      %v2249 = vrot.slane %v2223, 5
      %v2250 = vsel %vm2234, %v2248, %v2249
      %v2251 = vrot.slane %v2224, 5
      %v2252 = vrot.slane %v2251, 4
      %v2253 = vrot.slane %v2225, 5
      %v2254 = vsel %vm2234, %v2252, %v2253
      %v2255 = vrot.slane %v2226, 5
      %v2256 = vrot.slane %v2255, 4
      %v2257 = vrot.slane %v2227, 5
      %v2258 = vsel %vm2234, %v2256, %v2257
      %v2259 = vrot.slane %v2228, 5
      %v2260 = vrot.slane %v2259, 4
      %v2261 = vrot.slane %v2229, 5
      %v2262 = vsel %vm2234, %v2260, %v2261
      %v2263 = vrot.slane %v2230, 5
      %v2264 = vrot.slane %v2263, 4
      %v2265 = vrot.slane %v2231, 5
      %v2266 = vsel %vm2234, %v2264, %v2265
      %vm2275 = vcmask 519168
      %2276 = vst.msk [vmem:[%s232] sm:$0xf] %vm2275, %v2238
      %2277 = vst.msk [vmem:[%s232 + $0x4] sm:$0xf] %vm2275, %v2242
      %2278 = vst.msk [vmem:[%s232 + $0x8] sm:$0xf] %vm2275, %v2246
      %2279 = vst.msk [vmem:[%s232 + $0xc] sm:$0xf] %vm2275, %v2250
      %2280 = vst.msk [vmem:[%s232 + $0x10] sm:$0xf] %vm2275, %v2254
      %2281 = vst.msk [vmem:[%s232 + $0x14] sm:$0xf] %vm2275, %v2258
      %2282 = vst.msk [vmem:[%s232 + $0x18] sm:$0xf] %vm2275, %v2262
      %2283 = vst.msk [vmem:[%s232 + $0x1c] sm:$0xf] %vm2275, %v2266
      %p2284 = scmp.lt.s32.totalorder %s18, 1
      %s2285 = scalar_select %p2284, %s18, 1
      %p2286 = scmp.lt.s32.totalorder %s19, 0
      %s2287 = scalar_select %p2286, %s19, 0
      %s2288 = smul.addr %s2285, 8
      %s2289 = sadd.s32 %s2287, %s2288
      %s2290 = smul.addr %s2289, 4
      %s2291 = scalar_lea.vmem %s3, %s2290
      // Predicated region
      $region33: #{_lambda_.23} parent=31 // pred_check
        %p2292 = pneg %p126
      $region34: #{_lambda_.23} parent=31 // pred_check_branch
        %2294 = sbr.rel (%p2292) target = $region36
      $region35: #{_lambda_.23} parent=31 // pred_region
        _
      $region36: #{_lambda_.23} parent=31 // pred_fallthru
        _
    $region32: #{_lambda_.23} parent=5 // pred_fallthru
      _
    %p2295 = scmp.le.s32.totalorder 2, %s9
    // Predicated region
    $region37: #{_lambda_.23} parent=5 // pred_check
      %p2296 = pneg %p2295
    $region38: #{_lambda_.23} parent=5 // pred_check_branch
      %2298 = sbr.rel (%p2296) target = $region40
    $region39: #{_lambda_.23} parent=5 // pred_region
      %s2299 = ssub.s32 %s9, 2
      // Predicated region
      $region41: #{_lambda_.23} parent=39 // pred_check
        %p2300 = pneg %p132
      $region42: #{_lambda_.23} parent=39 // pred_check_branch
        %2302 = sbr.rel (%p2300) target = $region44
      $region43: #{_lambda_.23} parent=39 // pred_region
        %p2303 = scmp.lt.s32.totalorder %s20, 1
        %s2304 = scalar_select %p2303, %s20, 1
        %p2305 = scmp.lt.s32.totalorder %s21, 0
        %s2306 = scalar_select %p2305, %s21, 0
        %s2307 = smul.addr %s2304, 8
        %s2308 = sadd.s32 %s2306, %s2307
        %s2309 = smul.addr %s2308, 4
        %s2310 = scalar_lea.vmem %s3, %s2309
      $region44: #{_lambda_.23} parent=39 // pred_fallthru
        _
    $region40: #{_lambda_.23} parent=5 // pred_fallthru
      _
  $region6: #{_lambda_.23} parent=0 // loop_footer
    %s13 = sadd.s32 1, %s9
  $region7: #{_lambda_.23} parent=0 // loop_footer_branch
    %8 = sbr.rel target = $region3
  $region8: #{_lambda_.23} parent=0 // loop_exit
    _

</llo_original>
